<compile_context>
chip_gen: v6e
topology: v6e:2x2x1
jax: 0.10.0
libtpu: 0.0.40
codegen_flags: <defaults>
</compile_context>

<pallas_src>
import functools

import jax
import jax.numpy as jnp
from jax import lax
from jax.experimental import pallas as pl
from jax.experimental.pallas import tpu as pltpu

_HIGH = lax.Precision.HIGHEST
_UNROLL_MAX = 32          # fully unroll the time loop up to this many steps


def _dot(a, b):
    return jnp.dot(a, b, precision=_HIGH, preferred_element_type=jnp.float32)


def _branchnet_kernel(num_rnn, use_scratch, *refs):
    """Single-invocation kernel: whole sequence recurrence runs in VMEM."""
    n_in = 9 if num_rnn > 1 else 8
    in_refs = refs[:n_in]
    out_ref, hn_ref = refs[n_in], refs[n_in + 1]
    if use_scratch:
        proj_sc, top_sc = refs[n_in + 2], refs[n_in + 3]

    if num_rnn > 1:
        (x_ref, h0_ref, w0_ref, whh0_ref, wstk_ref, bias_ref,
         wfc_ref, bfc_ref, relax_ref) = in_refs
    else:
        (x_ref, h0_ref, w0_ref, whh0_ref, bias_ref,
         wfc_ref, bfc_ref, relax_ref) = in_refs
        wstk_ref = None

    S, Bp, F = x_ref.shape
    H = whh0_ref.shape[0]
    Fout = wfc_ref.shape[1]

    # ---- loop-invariant loads / broadcasts, hoisted once --------------------
    r = relax_ref[0]                                  # scalar in SMEM
    one_minus_r = 1.0 - r
    whh0 = whh0_ref[...]                              # (H, H) layer-0 hidden W
    wstk = ([wstk_ref[l] for l in range(num_rnn - 1)]
            if num_rnn > 1 else [])                   # (2H, H) each, layers>=1
    bias_b = [jnp.broadcast_to(bias_ref[l], (Bp, H))  # pre-broadcast b_ih+b_hh
              for l in range(num_rnn)]

    # ---- batched layer-0 input projection (graph mixing pre-folded) ---------
    x_all = x_ref[...]                                # (S, Bp, F)
    proj = _dot(x_all.reshape(S * Bp, F), w0_ref[...]).reshape(S, Bp, H)

    def step(inp, h):
        """One timestep over the stacked tanh-RNN; h is a list of values."""
        h0_new = jnp.tanh(_dot(h[0], whh0) + inp + bias_b[0])
        new_h = [h0_new]
        top = h0_new
        for l in range(1, num_rnn):
            cat = jnp.concatenate([top, h[l]], axis=1)          # (Bp, 2H)
            hl = jnp.tanh(_dot(cat, wstk[l - 1]) + bias_b[l])   # fused ih+hh
            new_h.append(hl)
            top = hl
        return new_h, top

    if not use_scratch:
        # Short sequence: full unroll, hidden state + per-step tops in vregs.
        h = [h0_ref[l] for l in range(num_rnn)]
        tops = []
        for t in range(S):
            h, top = step(proj[t], h)
            tops.append(top)
        hn_ref[...] = jnp.stack(h, axis=0)
        top_all = jnp.stack(tops, axis=0)             # (S, Bp, H)
    else:
        # Long sequence: projection / tops go through VMEM scratch; hidden
        # state is the fori_loop carry (values, not ref round-trips).
        proj_sc[...] = proj

        def body(t, h_stk):
            h = [h_stk[l] for l in range(num_rnn)]
            h, top = step(proj_sc[t], h)
            top_sc[t] = top
            return jnp.stack(h, axis=0)

        h_final = lax.fori_loop(0, S, body, h0_ref[...], unroll=4)
        hn_ref[...] = h_final
        top_all = top_sc[...]

    # ---- deferred FC + relaxation blend, ONE bulk store ---------------------
    y = _dot(top_all.reshape(S * Bp, H), wfc_ref[...]).reshape(S, Bp, Fout)
    y = y + bfc_ref[...]
    out_ref[...] = r * y + one_minus_r * x_all


def branchnet_rgnn_forward(x, hidden, params):
    """x: (B, S, F) batch-first (PyTorch convention); hidden: (L, B, H)."""
    B, S, F = x.shape
    L, _, H = hidden.shape
    Fout = params["w_fc_t"].shape[1]

    # Fold graph mixing into the layer-0 input weight (algebraically identical):
    #   (x_t @ (adj*adj_w)) @ W_ih0^T == x_t @ ((adj*adj_w) @ W_ih0^T)
    w0_eff = jnp.dot(params["adj"] * params["adj_weight"], params["w_ih0_t"],
                     precision=_HIGH)                         # (F, H)
    bias = params["b_ih"] + params["b_hh"]                    # (L, 1, H)
    whh0 = params["w_hh_t"][0]                                # (H, H)
    if L > 1:
        # Fused per-layer weight for l>=1: [W_ih_rest; W_hh] stacked along the
        # contraction axis so one matmul replaces two per layer/step.
        w_stk = jnp.concatenate(
            [params["w_ih_rest_t"][:L - 1], params["w_hh_t"][1:]],
            axis=1)                                           # (L-1, 2H, H)

    # Time-major layout; pad batch to a full sublane (8) for denser vregs.
    Bp = max(8, ((B + 7) // 8) * 8)
    x_tm = jnp.transpose(x, (1, 0, 2))                        # (S, B, F)
    if Bp != B:
        x_tm = jnp.pad(x_tm, ((0, 0), (0, Bp - B), (0, 0)))
        hidden_p = jnp.pad(hidden, ((0, 0), (0, Bp - B), (0, 0)))
    else:
        hidden_p = hidden

    vmem = pltpu.MemorySpace.VMEM
    smem = pltpu.MemorySpace.SMEM

    args = [x_tm, hidden_p, w0_eff, whh0]
    if L > 1:
        args.append(w_stk)
    args += [bias, params["w_fc_t"], params["b_fc"],
             params["relaxation"].reshape(1)]                 # scalar -> SMEM
    in_specs = ([pl.BlockSpec(memory_space=vmem)] * (len(args) - 1)
                + [pl.BlockSpec(memory_space=smem)])

    use_scratch = S > _UNROLL_MAX
    scratch_shapes = ([pltpu.VMEM((S, Bp, H), jnp.float32)] * 2
                      if use_scratch else [])

    # All-resident footprint -> explicit scoped-VMEM limit with headroom
    # (v5e scoped default 16 MiB; v7x physical VMEM 64 MiB).
    fp = 4 * (x_tm.size + hidden_p.size * 2 + w0_eff.size + whh0.size
              + (w_stk.size if L > 1 else 0) + bias.size
              + params["w_fc_t"].size + params["b_fc"].size
              + S * Bp * Fout + (2 * S * Bp * H if use_scratch else 0))
    vmem_limit = int(min(max(4 * fp, 16 << 20), 48 << 20))

    out_tm, h_n = pl.pallas_call(
        functools.partial(_branchnet_kernel, L, use_scratch),
        out_shape=(jax.ShapeDtypeStruct((S, Bp, Fout), jnp.float32),
                   jax.ShapeDtypeStruct((L, Bp, H), jnp.float32)),
        in_specs=in_specs,
        out_specs=(pl.BlockSpec(memory_space=vmem),
                   pl.BlockSpec(memory_space=vmem)),
        scratch_shapes=scratch_shapes,
        compiler_params=pltpu.CompilerParams(vmem_limit_bytes=vmem_limit),
    )(*args)

    out = jnp.transpose(out_tm[:, :B, :], (1, 0, 2))          # back to (B,S,Fout)
    return out, h_n[:, :B, :], params["relaxation"]


def branchnet_ref(x, hidden, params):
    """Pure-JAX reference mirroring the PyTorch forward exactly (un-folded)."""
    adj_eff = params["adj"] * params["adj_weight"]
    mixed = jnp.einsum("bsf,fg->bsg", x, adj_eff, precision="highest")
    L = hidden.shape[0]
    S = x.shape[1]
    h = [hidden[l] for l in range(L)]
    outs = []
    for t in range(S):
        inp = mixed[:, t, :]
        for l in range(L):
            w_ih_t = params["w_ih0_t"] if l == 0 else params["w_ih_rest_t"][l - 1]
            h_new = jnp.tanh(jnp.dot(inp, w_ih_t, precision="highest")
                             + jnp.dot(h[l], params["w_hh_t"][l], precision="highest")
                             + params["b_ih"][l] + params["b_hh"][l])
            h[l] = h_new
            inp = h_new
        outs.append(inp)
    rnn_out = jnp.stack(outs, axis=1)                              # (B, S, H)
    y = jnp.dot(rnn_out, params["w_fc_t"], precision="highest") + params["b_fc"]
    r = params["relaxation"][0]
    out = r * y + (1.0 - r) * x
    return out, jnp.stack(h, axis=0), params["relaxation"]


if __name__ == "__main__":
    # Small, forward-consistent shapes: out_feature == in_feature (required by
    # the residual blend in the PyTorch forward).
    B, S, F, H, L = 2, 8, 4, 32, 2
    Fout = F

    key = jax.random.PRNGKey(0)
    ks = jax.random.split(key, 10)
    std = float(1.0 / (H ** 0.5))

    params = dict(
        adj=(jax.random.uniform(ks[0], (F, F)) > 0.5).astype(jnp.float32),
        adj_weight=jax.random.normal(ks[1], (F, F), jnp.float32),
        # RNN / Linear weights stored pre-transposed (in_dim, out_dim).
        w_ih0_t=jax.random.uniform(ks[2], (F, H), jnp.float32, -std, std),
        w_ih_rest_t=jax.random.uniform(ks[3], (max(L - 1, 1), H, H),
                                       jnp.float32, -std, std),
        w_hh_t=jax.random.uniform(ks[4], (L, H, H), jnp.float32, -std, std),
        b_ih=jax.random.uniform(ks[5], (L, 1, H), jnp.float32, -std, std),
        b_hh=jax.random.uniform(ks[6], (L, 1, H), jnp.float32, -std, std),
        w_fc_t=jax.random.uniform(ks[7], (H, Fout), jnp.float32, -std, std),
        b_fc=jax.random.uniform(ks[8], (1, Fout), jnp.float32, -std, std),
        relaxation=jnp.full((1,), 0.001, jnp.float32),
    )

    x = jax.random.normal(ks[9], (B, S, F), jnp.float32)
    hidden = jnp.zeros((L, B, H), jnp.float32)   # init_hidden(batch_size)

    out, h_n, relax = branchnet_rgnn_forward(x, hidden, params)
    jax.block_until_ready((out, h_n, relax))

    out_r, h_r, relax_r = branchnet_ref(x, hidden, params)
    assert out.shape == (B, S, Fout) and h_n.shape == (L, B, H)
    assert jnp.allclose(out, out_r, atol=1e-4, rtol=1e-4)
    assert jnp.allclose(h_n, h_r, atol=1e-4, rtol=1e-4)
    assert jnp.allclose(relax, relax_r)

    print("KERNEL_OK")
</pallas_src>

<mosaic_0001>
module attributes {stable_mosaic.version = 11 : i64} {
  func.func @_branchnet_kernel(%arg0: memref<8x8x4xf32, #tpu.memory_space<vmem>>, %arg1: memref<2x8x32xf32, #tpu.memory_space<vmem>>, %arg2: memref<4x32xf32, #tpu.memory_space<vmem>>, %arg3: memref<32x32xf32, #tpu.memory_space<vmem>>, %arg4: memref<1x64x32xf32, #tpu.memory_space<vmem>>, %arg5: memref<2x1x32xf32, #tpu.memory_space<vmem>>, %arg6: memref<32x4xf32, #tpu.memory_space<vmem>>, %arg7: memref<1x4xf32, #tpu.memory_space<vmem>>, %arg8: memref<1xf32, #tpu.memory_space<smem>>, %arg9: memref<8x8x4xf32, #tpu.memory_space<vmem>>, %arg10: memref<2x8x32xf32, #tpu.memory_space<vmem>>) attributes {dimension_semantics = [], scalar_prefetch = 0 : i64, scratch_operands = 0 : i64, tpu.core_type = #tpu.core_type<tc>} {
    %c0 = arith.constant 0 : index
    %0 = memref.load %arg8[%c0] : memref<1xf32, #tpu.memory_space<smem>>
    %cst = arith.constant 1.000000e+00 : f32
    %1 = arith.subf %cst, %0 : f32
    %c0_0 = arith.constant 0 : index
    %c0_1 = arith.constant 0 : index
    %2 = vector.load %arg3[%c0_0, %c0_1] : memref<32x32xf32, #tpu.memory_space<vmem>>, vector<32x32xf32>
    %c0_2 = arith.constant 0 : index
    %c0_3 = arith.constant 0 : index
    %c0_4 = arith.constant 0 : index
    %3 = vector.load %arg4[%c0_2, %c0_3, %c0_4] : memref<1x64x32xf32, #tpu.memory_space<vmem>>, vector<1x64x32xf32>
    %4 = vector.shape_cast %3 : vector<1x64x32xf32> to vector<64x32xf32>
    %c0_5 = arith.constant 0 : index
    %c0_6 = arith.constant 0 : index
    %c0_7 = arith.constant 0 : index
    %5 = vector.load %arg5[%c0_5, %c0_6, %c0_7] : memref<2x1x32xf32, #tpu.memory_space<vmem>>, vector<1x1x32xf32>
    %6 = vector.shape_cast %5 : vector<1x1x32xf32> to vector<1x32xf32>
    %7 = vector.shape_cast %6 : vector<1x32xf32> to vector<1x32xf32>
    %8 = vector.broadcast %7 : vector<1x32xf32> to vector<8x32xf32>
    %c1 = arith.constant 1 : index
    %c0_8 = arith.constant 0 : index
    %c0_9 = arith.constant 0 : index
    %9 = vector.load %arg5[%c1, %c0_8, %c0_9] : memref<2x1x32xf32, #tpu.memory_space<vmem>>, vector<1x1x32xf32>
    %10 = vector.shape_cast %9 : vector<1x1x32xf32> to vector<1x32xf32>
    %11 = vector.shape_cast %10 : vector<1x32xf32> to vector<1x32xf32>
    %12 = vector.broadcast %11 : vector<1x32xf32> to vector<8x32xf32>
    %c0_10 = arith.constant 0 : index
    %c0_11 = arith.constant 0 : index
    %c0_12 = arith.constant 0 : index
    %13 = vector.load %arg0[%c0_10, %c0_11, %c0_12] : memref<8x8x4xf32, #tpu.memory_space<vmem>>, vector<8x8x4xf32>
    %14 = vector.shape_cast %13 : vector<8x8x4xf32> to vector<64x4xf32>
    %c0_13 = arith.constant 0 : index
    %c0_14 = arith.constant 0 : index
    %15 = vector.load %arg2[%c0_13, %c0_14] : memref<4x32xf32, #tpu.memory_space<vmem>>, vector<4x32xf32>
    %cst_15 = arith.constant dense<0.000000e+00> : vector<64x32xf32>
    %16 = tpu.matmul %14, %15, %cst_15 {dimension_numbers = #tpu.dot_dimension_numbers<[1], [0], [0], [1], [0, 0, 1, 1], [], []>, precision = #tpu.contract_precision<fp32>} : vector<64x4xf32>, vector<4x32xf32>, vector<64x32xf32> -> vector<64x32xf32>
    %17 = vector.shape_cast %16 : vector<64x32xf32> to vector<8x8x32xf32>
    %c0_16 = arith.constant 0 : index
    %c0_17 = arith.constant 0 : index
    %c0_18 = arith.constant 0 : index
    %18 = vector.load %arg1[%c0_16, %c0_17, %c0_18] : memref<2x8x32xf32, #tpu.memory_space<vmem>>, vector<1x8x32xf32>
    %19 = vector.shape_cast %18 : vector<1x8x32xf32> to vector<8x32xf32>
    %c1_19 = arith.constant 1 : index
    %c0_20 = arith.constant 0 : index
    %c0_21 = arith.constant 0 : index
    %20 = vector.load %arg1[%c1_19, %c0_20, %c0_21] : memref<2x8x32xf32, #tpu.memory_space<vmem>>, vector<1x8x32xf32>
    %21 = vector.shape_cast %20 : vector<1x8x32xf32> to vector<8x32xf32>
    %22 = vector.extract_strided_slice %17 {offsets = [0, 0, 0], sizes = [1, 8, 32], strides = [1, 1, 1]} : vector<8x8x32xf32> to vector<1x8x32xf32>
    %23 = vector.shape_cast %22 : vector<1x8x32xf32> to vector<8x32xf32>
    %cst_22 = arith.constant dense<0.000000e+00> : vector<8x32xf32>
    %24 = tpu.matmul %19, %2, %cst_22 {dimension_numbers = #tpu.dot_dimension_numbers<[1], [0], [0], [1], [0, 0, 1, 1], [], []>, precision = #tpu.contract_precision<fp32>} : vector<8x32xf32>, vector<32x32xf32>, vector<8x32xf32> -> vector<8x32xf32>
    %25 = arith.addf %24, %23 : vector<8x32xf32>
    %26 = arith.addf %25, %8 : vector<8x32xf32>
    %27 = math.tanh %26 : vector<8x32xf32>
    %28 = tpu.concatenate %27, %21 in 1 : vector<8x32xf32>, vector<8x32xf32> -> vector<8x64xf32>
    %cst_23 = arith.constant dense<0.000000e+00> : vector<8x32xf32>
    %29 = tpu.matmul %28, %4, %cst_23 {dimension_numbers = #tpu.dot_dimension_numbers<[1], [0], [0], [1], [0, 0, 1, 1], [], []>, precision = #tpu.contract_precision<fp32>} : vector<8x64xf32>, vector<64x32xf32>, vector<8x32xf32> -> vector<8x32xf32>
    %30 = arith.addf %29, %12 : vector<8x32xf32>
    %31 = math.tanh %30 : vector<8x32xf32>
    %32 = vector.extract_strided_slice %17 {offsets = [1, 0, 0], sizes = [1, 8, 32], strides = [1, 1, 1]} : vector<8x8x32xf32> to vector<1x8x32xf32>
    %33 = vector.shape_cast %32 : vector<1x8x32xf32> to vector<8x32xf32>
    %cst_24 = arith.constant dense<0.000000e+00> : vector<8x32xf32>
    %34 = tpu.matmul %27, %2, %cst_24 {dimension_numbers = #tpu.dot_dimension_numbers<[1], [0], [0], [1], [0, 0, 1, 1], [], []>, precision = #tpu.contract_precision<fp32>} : vector<8x32xf32>, vector<32x32xf32>, vector<8x32xf32> -> vector<8x32xf32>
    %35 = arith.addf %34, %33 : vector<8x32xf32>
    %36 = arith.addf %35, %8 : vector<8x32xf32>
    %37 = math.tanh %36 : vector<8x32xf32>
    %38 = tpu.concatenate %37, %31 in 1 : vector<8x32xf32>, vector<8x32xf32> -> vector<8x64xf32>
    %cst_25 = arith.constant dense<0.000000e+00> : vector<8x32xf32>
    %39 = tpu.matmul %38, %4, %cst_25 {dimension_numbers = #tpu.dot_dimension_numbers<[1], [0], [0], [1], [0, 0, 1, 1], [], []>, precision = #tpu.contract_precision<fp32>} : vector<8x64xf32>, vector<64x32xf32>, vector<8x32xf32> -> vector<8x32xf32>
    %40 = arith.addf %39, %12 : vector<8x32xf32>
    %41 = math.tanh %40 : vector<8x32xf32>
    %42 = vector.extract_strided_slice %17 {offsets = [2, 0, 0], sizes = [1, 8, 32], strides = [1, 1, 1]} : vector<8x8x32xf32> to vector<1x8x32xf32>
    %43 = vector.shape_cast %42 : vector<1x8x32xf32> to vector<8x32xf32>
    %cst_26 = arith.constant dense<0.000000e+00> : vector<8x32xf32>
    %44 = tpu.matmul %37, %2, %cst_26 {dimension_numbers = #tpu.dot_dimension_numbers<[1], [0], [0], [1], [0, 0, 1, 1], [], []>, precision = #tpu.contract_precision<fp32>} : vector<8x32xf32>, vector<32x32xf32>, vector<8x32xf32> -> vector<8x32xf32>
    %45 = arith.addf %44, %43 : vector<8x32xf32>
    %46 = arith.addf %45, %8 : vector<8x32xf32>
    %47 = math.tanh %46 : vector<8x32xf32>
    %48 = tpu.concatenate %47, %41 in 1 : vector<8x32xf32>, vector<8x32xf32> -> vector<8x64xf32>
    %cst_27 = arith.constant dense<0.000000e+00> : vector<8x32xf32>
    %49 = tpu.matmul %48, %4, %cst_27 {dimension_numbers = #tpu.dot_dimension_numbers<[1], [0], [0], [1], [0, 0, 1, 1], [], []>, precision = #tpu.contract_precision<fp32>} : vector<8x64xf32>, vector<64x32xf32>, vector<8x32xf32> -> vector<8x32xf32>
    %50 = arith.addf %49, %12 : vector<8x32xf32>
    %51 = math.tanh %50 : vector<8x32xf32>
    %52 = vector.extract_strided_slice %17 {offsets = [3, 0, 0], sizes = [1, 8, 32], strides = [1, 1, 1]} : vector<8x8x32xf32> to vector<1x8x32xf32>
    %53 = vector.shape_cast %52 : vector<1x8x32xf32> to vector<8x32xf32>
    %cst_28 = arith.constant dense<0.000000e+00> : vector<8x32xf32>
    %54 = tpu.matmul %47, %2, %cst_28 {dimension_numbers = #tpu.dot_dimension_numbers<[1], [0], [0], [1], [0, 0, 1, 1], [], []>, precision = #tpu.contract_precision<fp32>} : vector<8x32xf32>, vector<32x32xf32>, vector<8x32xf32> -> vector<8x32xf32>
    %55 = arith.addf %54, %53 : vector<8x32xf32>
    %56 = arith.addf %55, %8 : vector<8x32xf32>
    %57 = math.tanh %56 : vector<8x32xf32>
    %58 = tpu.concatenate %57, %51 in 1 : vector<8x32xf32>, vector<8x32xf32> -> vector<8x64xf32>
    %cst_29 = arith.constant dense<0.000000e+00> : vector<8x32xf32>
    %59 = tpu.matmul %58, %4, %cst_29 {dimension_numbers = #tpu.dot_dimension_numbers<[1], [0], [0], [1], [0, 0, 1, 1], [], []>, precision = #tpu.contract_precision<fp32>} : vector<8x64xf32>, vector<64x32xf32>, vector<8x32xf32> -> vector<8x32xf32>
    %60 = arith.addf %59, %12 : vector<8x32xf32>
    %61 = math.tanh %60 : vector<8x32xf32>
    %62 = vector.extract_strided_slice %17 {offsets = [4, 0, 0], sizes = [1, 8, 32], strides = [1, 1, 1]} : vector<8x8x32xf32> to vector<1x8x32xf32>
    %63 = vector.shape_cast %62 : vector<1x8x32xf32> to vector<8x32xf32>
    %cst_30 = arith.constant dense<0.000000e+00> : vector<8x32xf32>
    %64 = tpu.matmul %57, %2, %cst_30 {dimension_numbers = #tpu.dot_dimension_numbers<[1], [0], [0], [1], [0, 0, 1, 1], [], []>, precision = #tpu.contract_precision<fp32>} : vector<8x32xf32>, vector<32x32xf32>, vector<8x32xf32> -> vector<8x32xf32>
    %65 = arith.addf %64, %63 : vector<8x32xf32>
    %66 = arith.addf %65, %8 : vector<8x32xf32>
    %67 = math.tanh %66 : vector<8x32xf32>
    %68 = tpu.concatenate %67, %61 in 1 : vector<8x32xf32>, vector<8x32xf32> -> vector<8x64xf32>
    %cst_31 = arith.constant dense<0.000000e+00> : vector<8x32xf32>
    %69 = tpu.matmul %68, %4, %cst_31 {dimension_numbers = #tpu.dot_dimension_numbers<[1], [0], [0], [1], [0, 0, 1, 1], [], []>, precision = #tpu.contract_precision<fp32>} : vector<8x64xf32>, vector<64x32xf32>, vector<8x32xf32> -> vector<8x32xf32>
    %70 = arith.addf %69, %12 : vector<8x32xf32>
    %71 = math.tanh %70 : vector<8x32xf32>
    %72 = vector.extract_strided_slice %17 {offsets = [5, 0, 0], sizes = [1, 8, 32], strides = [1, 1, 1]} : vector<8x8x32xf32> to vector<1x8x32xf32>
    %73 = vector.shape_cast %72 : vector<1x8x32xf32> to vector<8x32xf32>
    %cst_32 = arith.constant dense<0.000000e+00> : vector<8x32xf32>
    %74 = tpu.matmul %67, %2, %cst_32 {dimension_numbers = #tpu.dot_dimension_numbers<[1], [0], [0], [1], [0, 0, 1, 1], [], []>, precision = #tpu.contract_precision<fp32>} : vector<8x32xf32>, vector<32x32xf32>, vector<8x32xf32> -> vector<8x32xf32>
    %75 = arith.addf %74, %73 : vector<8x32xf32>
    %76 = arith.addf %75, %8 : vector<8x32xf32>
    %77 = math.tanh %76 : vector<8x32xf32>
    %78 = tpu.concatenate %77, %71 in 1 : vector<8x32xf32>, vector<8x32xf32> -> vector<8x64xf32>
    %cst_33 = arith.constant dense<0.000000e+00> : vector<8x32xf32>
    %79 = tpu.matmul %78, %4, %cst_33 {dimension_numbers = #tpu.dot_dimension_numbers<[1], [0], [0], [1], [0, 0, 1, 1], [], []>, precision = #tpu.contract_precision<fp32>} : vector<8x64xf32>, vector<64x32xf32>, vector<8x32xf32> -> vector<8x32xf32>
    %80 = arith.addf %79, %12 : vector<8x32xf32>
    %81 = math.tanh %80 : vector<8x32xf32>
    %82 = vector.extract_strided_slice %17 {offsets = [6, 0, 0], sizes = [1, 8, 32], strides = [1, 1, 1]} : vector<8x8x32xf32> to vector<1x8x32xf32>
    %83 = vector.shape_cast %82 : vector<1x8x32xf32> to vector<8x32xf32>
    %cst_34 = arith.constant dense<0.000000e+00> : vector<8x32xf32>
    %84 = tpu.matmul %77, %2, %cst_34 {dimension_numbers = #tpu.dot_dimension_numbers<[1], [0], [0], [1], [0, 0, 1, 1], [], []>, precision = #tpu.contract_precision<fp32>} : vector<8x32xf32>, vector<32x32xf32>, vector<8x32xf32> -> vector<8x32xf32>
    %85 = arith.addf %84, %83 : vector<8x32xf32>
    %86 = arith.addf %85, %8 : vector<8x32xf32>
    %87 = math.tanh %86 : vector<8x32xf32>
    %88 = tpu.concatenate %87, %81 in 1 : vector<8x32xf32>, vector<8x32xf32> -> vector<8x64xf32>
    %cst_35 = arith.constant dense<0.000000e+00> : vector<8x32xf32>
    %89 = tpu.matmul %88, %4, %cst_35 {dimension_numbers = #tpu.dot_dimension_numbers<[1], [0], [0], [1], [0, 0, 1, 1], [], []>, precision = #tpu.contract_precision<fp32>} : vector<8x64xf32>, vector<64x32xf32>, vector<8x32xf32> -> vector<8x32xf32>
    %90 = arith.addf %89, %12 : vector<8x32xf32>
    %91 = math.tanh %90 : vector<8x32xf32>
    %92 = vector.extract_strided_slice %17 {offsets = [7, 0, 0], sizes = [1, 8, 32], strides = [1, 1, 1]} : vector<8x8x32xf32> to vector<1x8x32xf32>
    %93 = vector.shape_cast %92 : vector<1x8x32xf32> to vector<8x32xf32>
    %cst_36 = arith.constant dense<0.000000e+00> : vector<8x32xf32>
    %94 = tpu.matmul %87, %2, %cst_36 {dimension_numbers = #tpu.dot_dimension_numbers<[1], [0], [0], [1], [0, 0, 1, 1], [], []>, precision = #tpu.contract_precision<fp32>} : vector<8x32xf32>, vector<32x32xf32>, vector<8x32xf32> -> vector<8x32xf32>
    %95 = arith.addf %94, %93 : vector<8x32xf32>
    %96 = arith.addf %95, %8 : vector<8x32xf32>
    %97 = math.tanh %96 : vector<8x32xf32>
    %98 = tpu.concatenate %97, %91 in 1 : vector<8x32xf32>, vector<8x32xf32> -> vector<8x64xf32>
    %cst_37 = arith.constant dense<0.000000e+00> : vector<8x32xf32>
    %99 = tpu.matmul %98, %4, %cst_37 {dimension_numbers = #tpu.dot_dimension_numbers<[1], [0], [0], [1], [0, 0, 1, 1], [], []>, precision = #tpu.contract_precision<fp32>} : vector<8x64xf32>, vector<64x32xf32>, vector<8x32xf32> -> vector<8x32xf32>
    %100 = arith.addf %99, %12 : vector<8x32xf32>
    %101 = math.tanh %100 : vector<8x32xf32>
    %102 = vector.shape_cast %97 : vector<8x32xf32> to vector<1x8x32xf32>
    %103 = vector.shape_cast %101 : vector<8x32xf32> to vector<1x8x32xf32>
    %104 = tpu.concatenate %102, %103 in 0 : vector<1x8x32xf32>, vector<1x8x32xf32> -> vector<2x8x32xf32>
    %c0_38 = arith.constant 0 : index
    %c0_39 = arith.constant 0 : index
    %c0_40 = arith.constant 0 : index
    %105 = vector.load %arg10[%c0_38, %c0_39, %c0_40] : memref<2x8x32xf32, #tpu.memory_space<vmem>>, vector<2x8x32xf32>
    tpu.vector_store %arg10[%c0_38, %c0_39, %c0_40], %104 {strides = array<i32>} : memref<2x8x32xf32, #tpu.memory_space<vmem>>, vector<2x8x32xf32>,
    %106 = vector.shape_cast %31 : vector<8x32xf32> to vector<1x8x32xf32>
    %107 = vector.shape_cast %41 : vector<8x32xf32> to vector<1x8x32xf32>
    %108 = vector.shape_cast %51 : vector<8x32xf32> to vector<1x8x32xf32>
    %109 = vector.shape_cast %61 : vector<8x32xf32> to vector<1x8x32xf32>
    %110 = vector.shape_cast %71 : vector<8x32xf32> to vector<1x8x32xf32>
    %111 = vector.shape_cast %81 : vector<8x32xf32> to vector<1x8x32xf32>
    %112 = vector.shape_cast %91 : vector<8x32xf32> to vector<1x8x32xf32>
    %113 = vector.shape_cast %101 : vector<8x32xf32> to vector<1x8x32xf32>
    %114 = tpu.concatenate %106, %107, %108, %109, %110, %111, %112, %113 in 0 : vector<1x8x32xf32>, vector<1x8x32xf32>, vector<1x8x32xf32>, vector<1x8x32xf32>, vector<1x8x32xf32>, vector<1x8x32xf32>, vector<1x8x32xf32>, vector<1x8x32xf32> -> vector<8x8x32xf32>
    %115 = vector.shape_cast %114 : vector<8x8x32xf32> to vector<64x32xf32>
    %c0_41 = arith.constant 0 : index
    %c0_42 = arith.constant 0 : index
    %116 = vector.load %arg6[%c0_41, %c0_42] : memref<32x4xf32, #tpu.memory_space<vmem>>, vector<32x4xf32>
    %cst_43 = arith.constant dense<0.000000e+00> : vector<64x4xf32>
    %117 = tpu.matmul %115, %116, %cst_43 {dimension_numbers = #tpu.dot_dimension_numbers<[1], [0], [0], [1], [0, 0, 1, 1], [], []>, precision = #tpu.contract_precision<fp32>} : vector<64x32xf32>, vector<32x4xf32>, vector<64x4xf32> -> vector<64x4xf32>
    %118 = vector.shape_cast %117 : vector<64x4xf32> to vector<8x8x4xf32>
    %c0_44 = arith.constant 0 : index
    %c0_45 = arith.constant 0 : index
    %119 = vector.load %arg7[%c0_44, %c0_45] : memref<1x4xf32, #tpu.memory_space<vmem>>, vector<1x4xf32>
    %120 = vector.shape_cast %119 : vector<1x4xf32> to vector<1x1x4xf32>
    %121 = vector.broadcast %120 : vector<1x1x4xf32> to vector<8x8x4xf32>
    %122 = arith.addf %118, %121 : vector<8x8x4xf32>
    %123 = vector.broadcast %0 : f32 to vector<8x8x4xf32>
    %124 = arith.mulf %123, %122 : vector<8x8x4xf32>
    %125 = vector.broadcast %1 : f32 to vector<8x8x4xf32>
    %126 = arith.mulf %125, %13 : vector<8x8x4xf32>
    %127 = arith.addf %124, %126 : vector<8x8x4xf32>
    %c0_46 = arith.constant 0 : index
    %c0_47 = arith.constant 0 : index
    %c0_48 = arith.constant 0 : index
    %128 = vector.load %arg9[%c0_46, %c0_47, %c0_48] : memref<8x8x4xf32, #tpu.memory_space<vmem>>, vector<8x8x4xf32>
    tpu.vector_store %arg9[%c0_46, %c0_47, %c0_48], %127 {strides = array<i32>} : memref<8x8x4xf32, #tpu.memory_space<vmem>>, vector<8x8x4xf32>,
    return
  }
}

</mosaic_0001>

<llo_original>
// kernel: tpu_custom_call.1
$region0: #{tpu_custom_call.1}
  #allocation0 [shape = 'u32[]', space=smem, size = 0x4, offset = 0x4, fixed_abs, tag = 'smem constant byte address 0x4 - core index']
  #allocation1 [shape = 'u32[144,128]{1,0:T(1,128)}', space=vmem, size = 0x12000, scoped, tag = 'internal scratch']
  #allocation2 [shape = 'f32[1]{0:T(128)S(6)}', space=smem, size = 0x200, scoped, tag = 'scoped memory for tpu_custom_call.1']
  %s0 = inlined_call_operand.vmem [shape: f32[8,8,4], index: 0, kind: input, shape index: {}]
  %s1 = inlined_call_operand.vmem [shape: f32[2,8,32], index: 1, kind: input, shape index: {}]
  %s2 = inlined_call_operand.vmem [shape: f32[4,32], index: 2, kind: input, shape index: {}]
  %s3 = inlined_call_operand.vmem [shape: f32[32,32], index: 3, kind: input, shape index: {}]
  %s4 = inlined_call_operand.vmem [shape: f32[1,64,32], index: 4, kind: input, shape index: {}]
  %s5 = inlined_call_operand.vmem [shape: f32[2,1,32], index: 5, kind: input, shape index: {}]
  %s6 = inlined_call_operand.vmem [shape: f32[32,4], index: 6, kind: input, shape index: {}]
  %s7 = inlined_call_operand.vmem [shape: f32[1,4], index: 7, kind: input, shape index: {}]
  %s8 = inlined_call_operand.<no memory space> [shape: f32[1], index: 8, kind: input, shape index: {}]
  %s9 = inlined_call_operand.vmem [shape: f32[8,8,4], index: 9, kind: output, shape index: {0}]
  %s10 = inlined_call_operand.hbm [shape: f32[2,8,32], index: 10, kind: output, shape index: {1}]
  %11 = xla_tuple %s9, %s10
  %s12 = sld [smem:[#allocation0]]
  $region54: #{tpu_custom_call.1} parent=0
    _
  %s14 = ssub.s32 1, %s12
  %s15 = scalar_select 0, %s14, %s12
  %16 = sst [smem:[#allocation2]] %s8
  $region1: #{tpu_custom_call.1} parent=0
    #allocation3 [shape = 'u8[8192]{0}', space=vmem, size = 0x2000, scoped, tag = 'output window, operand 1, single buffered']
    #allocation4 [shape = 's32[1]{0}', space=sflag, size = 0x4, scoped, tag = 'scoped memory for tpu_custom_call.1']
    %17 = vsyncpa [#allocation4], 0
    // Predicated region
    $region2: #{tpu_custom_call.1} parent=1 // pred_check
      _
    $region3: #{tpu_custom_call.1} parent=1 // pred_check_branch
      %19 = sbr.rel (0) target = $region5
    $region4: #{tpu_custom_call.1} parent=1 // pred_region
      _
    $region5: #{tpu_custom_call.1} parent=1 // pred_fallthru
      _
    // Predicated region
    $region6: #{tpu_custom_call.1} parent=1 // pred_check
      _
    $region7: #{tpu_custom_call.1} parent=1 // pred_check_branch
      %21 = sbr.rel (0) target = $region9
    $region8: #{tpu_custom_call.1} parent=1 // pred_region
      _
    $region9: #{tpu_custom_call.1} parent=1 // pred_fallthru
      _
    // Predicated region
    $region10: #{tpu_custom_call.1} parent=1 // pred_check
      _
    $region11: #{tpu_custom_call.1} parent=1 // pred_check_branch
      %23 = sbr.rel (0) target = $region13
    $region12: #{tpu_custom_call.1} parent=1 // pred_region
      _
    $region13: #{tpu_custom_call.1} parent=1 // pred_fallthru
      _
    // Predicated region
    $region14: #{tpu_custom_call.1} parent=1 // pred_check
      _
    $region15: #{tpu_custom_call.1} parent=1 // pred_check_branch
      %25 = sbr.rel (0) target = $region17
    $region16: #{tpu_custom_call.1} parent=1 // pred_region
      _
    $region17: #{tpu_custom_call.1} parent=1 // pred_fallthru
      _
    // Predicated region
    $region18: #{tpu_custom_call.1} parent=1 // pred_check
      _
    $region19: #{tpu_custom_call.1} parent=1 // pred_check_branch
      %27 = sbr.rel (0) target = $region21
    $region20: #{tpu_custom_call.1} parent=1 // pred_region
      _
    $region21: #{tpu_custom_call.1} parent=1 // pred_fallthru
      _
    // Predicated region
    $region22: #{tpu_custom_call.1} parent=1 // pred_check
      _
    $region23: #{tpu_custom_call.1} parent=1 // pred_check_branch
      %29 = sbr.rel (0) target = $region25
    $region24: #{tpu_custom_call.1} parent=1 // pred_region
      _
    $region25: #{tpu_custom_call.1} parent=1 // pred_fallthru
      _
    // Predicated region
    $region26: #{tpu_custom_call.1} parent=1 // pred_check
      _
    $region27: #{tpu_custom_call.1} parent=1 // pred_check_branch
      %31 = sbr.rel (0) target = $region29
    $region28: #{tpu_custom_call.1} parent=1 // pred_region
      _
    $region29: #{tpu_custom_call.1} parent=1 // pred_fallthru
      _
    // Predicated region
    $region30: #{tpu_custom_call.1} parent=1 // pred_check
      _
    $region31: #{tpu_custom_call.1} parent=1 // pred_check_branch
      %33 = sbr.rel (0) target = $region33
    $region32: #{tpu_custom_call.1} parent=1 // pred_region
      _
    $region33: #{tpu_custom_call.1} parent=1 // pred_fallthru
      _
    // Predicated region
    $region34: #{tpu_custom_call.1} parent=1 // pred_check
      _
    $region35: #{tpu_custom_call.1} parent=1 // pred_check_branch
      %35 = sbr.rel (0) target = $region37
    $region36: #{tpu_custom_call.1} parent=1 // pred_region
      _
    $region37: #{tpu_custom_call.1} parent=1 // pred_fallthru
      _
    %s36 = sld [smem:[#allocation2]]
    %s37 = ssub.f32 1.0, %s36
    %v38 = vld [vmem:[%s3] sm:$0xff]
    %v39 = vld [vmem:[%s3 + $0x8] sm:$0xff]
    %v40 = vld [vmem:[%s3 + $0x10] sm:$0xff]
    %v41 = vld [vmem:[%s3 + $0x18] sm:$0xff]
    %v42 = vld [vmem:[%s4] sm:$0xff]
    %v43 = vld [vmem:[%s4 + $0x8] sm:$0xff]
    %v44 = vld [vmem:[%s4 + $0x10] sm:$0xff]
    %v45 = vld [vmem:[%s4 + $0x18] sm:$0xff]
    %v46 = vld [vmem:[%s4 + $0x20] sm:$0xff]
    %v47 = vld [vmem:[%s4 + $0x28] sm:$0xff]
    %v48 = vld [vmem:[%s4 + $0x30] sm:$0xff]
    %v49 = vld [vmem:[%s4 + $0x38] sm:$0xff]
    %v50 = vld [vmem:[%s5] sm:$0x1]
    %v52 = vlaneseq
    %v53 = vshrl.u32 %v52, 7
    %v54 = vsub.s32 0, %v53
    %v55 = vrot.slane %v50, %v54
    %s57 = scalar_lea.vmem %s5, 1
    %v58 = vld [vmem:[%s57] sm:$0x1]
    %v60 = vlaneseq
    %v61 = vshrl.u32 %v60, 7
    %v62 = vsub.s32 0, %v61
    %v63 = vrot.slane %v58, %v62
    %v65 = vld [vmem:[%s0] sm:$0xff]
    %v66 = vld [vmem:[%s0 + $0x8] sm:$0xff]
    %v67 = vld [vmem:[%s0 + $0x10] sm:$0xff]
    %v68 = vld [vmem:[%s0 + $0x18] sm:$0xff]
    %v69 = vld [vmem:[%s0 + $0x20] sm:$0xff]
    %v70 = vld [vmem:[%s0 + $0x28] sm:$0xff]
    %v71 = vld [vmem:[%s0 + $0x30] sm:$0xff]
    %v72 = vld [vmem:[%s0 + $0x38] sm:$0xff]
    %v73 = vld [vmem:[%s2] sm:$0xf]
    %vm74 = vcmask 31744
    %v76 = vsel %vm74, %v65, 0
    %v79 = vsel %vm74, %v66, 0
    %v82 = vsel %vm74, %v67, 0
    %v85 = vsel %vm74, %v68, 0
    %v88 = vsel %vm74, %v69, 0
    %v91 = vsel %vm74, %v70, 0
    %v94 = vsel %vm74, %v71, 0
    %v97 = vsel %vm74, %v72, 0
    %vm99 = vcmask 1043456
    %v101 = vsel %vm99, %v73, 0
    %103 = vmatprep.subr.mxu0 0.0
    %104 = vmatpush1.msra.mxu0 0.0
    %105 = vmatprep.subr.mxu0 0.0
    %106 = vmatpush1.msra.mxu0 0.0
    %107 = vmatprep.subr.mxu0 0.0
    %108 = vmatpush1.msra.mxu0 0.0
    %109 = vmatprep.subr.mxu0 0.0
    %110 = vmatpush1.msra.mxu0 0.0
    %111 = vmatprep.subr.mxu0 0.0
    %112 = vmatpush1.msra.mxu0 0.0
    %113 = vmatprep.subr.mxu0 0.0
    %114 = vmatpush1.msra.mxu0 0.0
    %115 = vmatprep.subr.mxu0 0.0
    %116 = vmatpush1.msra.mxu0 0.0
    %117 = vmatprep.subr.mxu0 0.0
    %118 = vmatpush1.msra.mxu0 0.0
    %119 = vmatprep.subr.mxu0 0.0
    %120 = vmatpush1.msra.mxu0 0.0
    %121 = vmatprep.subr.mxu0 0.0
    %122 = vmatpush1.msra.mxu0 0.0
    %123 = vmatprep.subr.mxu0 0.0
    %124 = vmatpush1.msra.mxu0 0.0
    %125 = vmatprep.subr.mxu0 0.0
    %126 = vmatpush1.msra.mxu0 0.0
    %127 = vmatprep.subr.mxu0 0.0
    %128 = vmatpush1.msra.mxu0 0.0
    %129 = vmatprep.subr.mxu0 0.0
    %130 = vmatpush1.msra.mxu0 0.0
    %131 = vmatprep.subr.mxu0 0.0
    %132 = vmatpush1.msra.mxu0 0.0
    %133 = vmatprep.subr.mxu0 0.0
    %v134 = vand.u32 %v101, 4294901760
    %135 = vmatpush1.msra.mxu0 %v134
    %136 = vmatprep.subr.mxu0 0.0
    %137 = vmatpush2.msra.mxu0 0.0
    %138 = vmatprep.subr.mxu0 0.0
    %139 = vmatpush2.msra.mxu0 0.0
    %140 = vmatprep.subr.mxu0 0.0
    %141 = vmatpush2.msra.mxu0 0.0
    %142 = vmatprep.subr.mxu0 0.0
    %143 = vmatpush2.msra.mxu0 0.0
    %144 = vmatprep.subr.mxu0 0.0
    %145 = vmatpush2.msra.mxu0 0.0
    %146 = vmatprep.subr.mxu0 0.0
    %147 = vmatpush2.msra.mxu0 0.0
    %148 = vmatprep.subr.mxu0 0.0
    %149 = vmatpush2.msra.mxu0 0.0
    %150 = vmatprep.subr.mxu0 0.0
    %151 = vmatpush2.msra.mxu0 0.0
    %152 = vmatprep.subr.mxu0 0.0
    %153 = vmatpush2.msra.mxu0 0.0
    %154 = vmatprep.subr.mxu0 0.0
    %155 = vmatpush2.msra.mxu0 0.0
    %156 = vmatprep.subr.mxu0 0.0
    %157 = vmatpush2.msra.mxu0 0.0
    %158 = vmatprep.subr.mxu0 0.0
    %159 = vmatpush2.msra.mxu0 0.0
    %160 = vmatprep.subr.mxu0 0.0
    %161 = vmatpush2.msra.mxu0 0.0
    %162 = vmatprep.subr.mxu0 0.0
    %163 = vmatpush2.msra.mxu0 0.0
    %164 = vmatprep.subr.mxu0 0.0
    %165 = vmatpush2.msra.mxu0 0.0
    %166 = vmatprep.subr.mxu0 0.0
    %167 = vmatpush2.msra.mxu0 0.0
    %168 = vmatprep.mubr.f32.mxu0 0.0
    %v169 = vand.u32 %v76, 4294901760
    %v170 = vsub.f32 %v76, %v169
    %v171 = vand.u32 %v170, 4294901760
    %v172 = vsub.f32 %v170, %v171
    %v173 = vand.u32 %v172, 4294901760
    %174 = vmatmul.mubr.f32.gmra.mxu0 %v173
    %v175 = vpop.f32.mrf.mxu0
    %v176 = vadd.f32 0.0, %v175
    %v177 = vpop.f32.mrf.mxu0
    %178 = vmatprep.mubr.f32.mxu0 0.0
    %v179 = vand.u32 %v79, 4294901760
    %v180 = vsub.f32 %v79, %v179
    %v181 = vand.u32 %v180, 4294901760
    %v182 = vsub.f32 %v180, %v181
    %v183 = vand.u32 %v182, 4294901760
    %184 = vmatmul.mubr.f32.gmra.mxu0 %v183
    %v185 = vpop.f32.mrf.mxu0
    %v186 = vadd.f32 0.0, %v185
    %v187 = vpop.f32.mrf.mxu0
    %188 = vmatprep.mubr.f32.mxu0 0.0
    %v189 = vand.u32 %v82, 4294901760
    %v190 = vsub.f32 %v82, %v189
    %v191 = vand.u32 %v190, 4294901760
    %v192 = vsub.f32 %v190, %v191
    %v193 = vand.u32 %v192, 4294901760
    %194 = vmatmul.mubr.f32.gmra.mxu0 %v193
    %v195 = vpop.f32.mrf.mxu0
    %v196 = vadd.f32 0.0, %v195
    %v197 = vpop.f32.mrf.mxu0
    %198 = vmatprep.mubr.f32.mxu0 0.0
    %v199 = vand.u32 %v85, 4294901760
    %v200 = vsub.f32 %v85, %v199
    %v201 = vand.u32 %v200, 4294901760
    %v202 = vsub.f32 %v200, %v201
    %v203 = vand.u32 %v202, 4294901760
    %204 = vmatmul.mubr.f32.gmra.mxu0 %v203
    %v205 = vpop.f32.mrf.mxu0
    %v206 = vadd.f32 0.0, %v205
    %v207 = vpop.f32.mrf.mxu0
    %208 = vmatprep.mubr.f32.mxu0 0.0
    %v209 = vand.u32 %v88, 4294901760
    %v210 = vsub.f32 %v88, %v209
    %v211 = vand.u32 %v210, 4294901760
    %v212 = vsub.f32 %v210, %v211
    %v213 = vand.u32 %v212, 4294901760
    %214 = vmatmul.mubr.f32.gmra.mxu0 %v213
    %v215 = vpop.f32.mrf.mxu0
    %v216 = vadd.f32 0.0, %v215
    %v217 = vpop.f32.mrf.mxu0
    %218 = vmatprep.mubr.f32.mxu0 0.0
    %v219 = vand.u32 %v91, 4294901760
    %v220 = vsub.f32 %v91, %v219
    %v221 = vand.u32 %v220, 4294901760
    %v222 = vsub.f32 %v220, %v221
    %v223 = vand.u32 %v222, 4294901760
    %224 = vmatmul.mubr.f32.gmra.mxu0 %v223
    %v225 = vpop.f32.mrf.mxu0
    %v226 = vadd.f32 0.0, %v225
    %v227 = vpop.f32.mrf.mxu0
    %228 = vmatprep.mubr.f32.mxu0 0.0
    %v229 = vand.u32 %v94, 4294901760
    %v230 = vsub.f32 %v94, %v229
    %v231 = vand.u32 %v230, 4294901760
    %v232 = vsub.f32 %v230, %v231
    %v233 = vand.u32 %v232, 4294901760
    %234 = vmatmul.mubr.f32.gmra.mxu0 %v233
    %v235 = vpop.f32.mrf.mxu0
    %v236 = vadd.f32 0.0, %v235
    %v237 = vpop.f32.mrf.mxu0
    %238 = vmatprep.mubr.f32.mxu0 0.0
    %v239 = vand.u32 %v97, 4294901760
    %v240 = vsub.f32 %v97, %v239
    %v241 = vand.u32 %v240, 4294901760
    %v242 = vsub.f32 %v240, %v241
    %v243 = vand.u32 %v242, 4294901760
    %244 = vmatmul.mubr.f32.gmra.mxu0 %v243
    %v245 = vpop.f32.mrf.mxu0
    %v246 = vadd.f32 0.0, %v245
    %v247 = vpop.f32.mrf.mxu0
    %248 = vdwg.mxu0
    %249 = vmatprep.subr.mxu0 0.0
    %250 = vmatpush1.msra.mxu0 0.0
    %251 = vmatprep.subr.mxu0 0.0
    %252 = vmatpush1.msra.mxu0 0.0
    %253 = vmatprep.subr.mxu0 0.0
    %254 = vmatpush1.msra.mxu0 0.0
    %255 = vmatprep.subr.mxu0 0.0
    %256 = vmatpush1.msra.mxu0 0.0
    %257 = vmatprep.subr.mxu0 0.0
    %258 = vmatpush1.msra.mxu0 0.0
    %259 = vmatprep.subr.mxu0 0.0
    %260 = vmatpush1.msra.mxu0 0.0
    %261 = vmatprep.subr.mxu0 0.0
    %262 = vmatpush1.msra.mxu0 0.0
    %263 = vmatprep.subr.mxu0 0.0
    %264 = vmatpush1.msra.mxu0 0.0
    %265 = vmatprep.subr.mxu0 0.0
    %266 = vmatpush1.msra.mxu0 0.0
    %267 = vmatprep.subr.mxu0 0.0
    %268 = vmatpush1.msra.mxu0 0.0
    %269 = vmatprep.subr.mxu0 0.0
    %270 = vmatpush1.msra.mxu0 0.0
    %271 = vmatprep.subr.mxu0 0.0
    %272 = vmatpush1.msra.mxu0 0.0
    %273 = vmatprep.subr.mxu0 0.0
    %274 = vmatpush1.msra.mxu0 0.0
    %275 = vmatprep.subr.mxu0 0.0
    %276 = vmatpush1.msra.mxu0 0.0
    %277 = vmatprep.subr.mxu0 0.0
    %278 = vmatpush1.msra.mxu0 0.0
    %279 = vmatprep.subr.mxu0 0.0
    %v280 = vand.u32 %v101, 4294901760
    %v281 = vsub.f32 %v101, %v280
    %v282 = vand.u32 %v281, 4294901760
    %v283 = vsub.f32 %v281, %v282
    %v284 = vand.u32 %v283, 4294901760
    %285 = vmatpush1.msra.mxu0 %v284
    %286 = vmatprep.subr.mxu0 0.0
    %287 = vmatpush2.msra.mxu0 0.0
    %288 = vmatprep.subr.mxu0 0.0
    %289 = vmatpush2.msra.mxu0 0.0
    %290 = vmatprep.subr.mxu0 0.0
    %291 = vmatpush2.msra.mxu0 0.0
    %292 = vmatprep.subr.mxu0 0.0
    %293 = vmatpush2.msra.mxu0 0.0
    %294 = vmatprep.subr.mxu0 0.0
    %295 = vmatpush2.msra.mxu0 0.0
    %296 = vmatprep.subr.mxu0 0.0
    %297 = vmatpush2.msra.mxu0 0.0
    %298 = vmatprep.subr.mxu0 0.0
    %299 = vmatpush2.msra.mxu0 0.0
    %300 = vmatprep.subr.mxu0 0.0
    %301 = vmatpush2.msra.mxu0 0.0
    %302 = vmatprep.subr.mxu0 0.0
    %303 = vmatpush2.msra.mxu0 0.0
    %304 = vmatprep.subr.mxu0 0.0
    %305 = vmatpush2.msra.mxu0 0.0
    %306 = vmatprep.subr.mxu0 0.0
    %307 = vmatpush2.msra.mxu0 0.0
    %308 = vmatprep.subr.mxu0 0.0
    %309 = vmatpush2.msra.mxu0 0.0
    %310 = vmatprep.subr.mxu0 0.0
    %311 = vmatpush2.msra.mxu0 0.0
    %312 = vmatprep.subr.mxu0 0.0
    %313 = vmatpush2.msra.mxu0 0.0
    %314 = vmatprep.subr.mxu0 0.0
    %315 = vmatpush2.msra.mxu0 0.0
    %316 = vmatprep.subr.mxu0 0.0
    %317 = vmatpush2.msra.mxu0 0.0
    %318 = vmatprep.mubr.f32.mxu0 0.0
    %v319 = vand.u32 %v76, 4294901760
    %320 = vmatmul.mubr.f32.gmra.mxu0 %v319
    %v321 = vpop.f32.mrf.mxu0
    %v322 = vadd.f32 %v176, %v321
    %v323 = vpop.f32.mrf.mxu0
    %324 = vmatprep.mubr.f32.mxu0 0.0
    %v325 = vand.u32 %v79, 4294901760
    %326 = vmatmul.mubr.f32.gmra.mxu0 %v325
    %v327 = vpop.f32.mrf.mxu0
    %v328 = vadd.f32 %v186, %v327
    %v329 = vpop.f32.mrf.mxu0
    %330 = vmatprep.mubr.f32.mxu0 0.0
    %v331 = vand.u32 %v82, 4294901760
    %332 = vmatmul.mubr.f32.gmra.mxu0 %v331
    %v333 = vpop.f32.mrf.mxu0
    %v334 = vadd.f32 %v196, %v333
    %v335 = vpop.f32.mrf.mxu0
    %336 = vmatprep.mubr.f32.mxu0 0.0
    %v337 = vand.u32 %v85, 4294901760
    %338 = vmatmul.mubr.f32.gmra.mxu0 %v337
    %v339 = vpop.f32.mrf.mxu0
    %v340 = vadd.f32 %v206, %v339
    %v341 = vpop.f32.mrf.mxu0
    %342 = vmatprep.mubr.f32.mxu0 0.0
    %v343 = vand.u32 %v88, 4294901760
    %344 = vmatmul.mubr.f32.gmra.mxu0 %v343
    %v345 = vpop.f32.mrf.mxu0
    %v346 = vadd.f32 %v216, %v345
    %v347 = vpop.f32.mrf.mxu0
    %348 = vmatprep.mubr.f32.mxu0 0.0
    %v349 = vand.u32 %v91, 4294901760
    %350 = vmatmul.mubr.f32.gmra.mxu0 %v349
    %v351 = vpop.f32.mrf.mxu0
    %v352 = vadd.f32 %v226, %v351
    %v353 = vpop.f32.mrf.mxu0
    %354 = vmatprep.mubr.f32.mxu0 0.0
    %v355 = vand.u32 %v94, 4294901760
    %356 = vmatmul.mubr.f32.gmra.mxu0 %v355
    %v357 = vpop.f32.mrf.mxu0
    %v358 = vadd.f32 %v236, %v357
    %v359 = vpop.f32.mrf.mxu0
    %360 = vmatprep.mubr.f32.mxu0 0.0
    %v361 = vand.u32 %v97, 4294901760
    %362 = vmatmul.mubr.f32.gmra.mxu0 %v361
    %v363 = vpop.f32.mrf.mxu0
    %v364 = vadd.f32 %v246, %v363
    %v365 = vpop.f32.mrf.mxu0
    %366 = vdwg.mxu0
    %367 = vmatprep.subr.mxu0 0.0
    %368 = vmatpush1.msra.mxu0 0.0
    %369 = vmatprep.subr.mxu0 0.0
    %370 = vmatpush1.msra.mxu0 0.0
    %371 = vmatprep.subr.mxu0 0.0
    %372 = vmatpush1.msra.mxu0 0.0
    %373 = vmatprep.subr.mxu0 0.0
    %374 = vmatpush1.msra.mxu0 0.0
    %375 = vmatprep.subr.mxu0 0.0
    %376 = vmatpush1.msra.mxu0 0.0
    %377 = vmatprep.subr.mxu0 0.0
    %378 = vmatpush1.msra.mxu0 0.0
    %379 = vmatprep.subr.mxu0 0.0
    %380 = vmatpush1.msra.mxu0 0.0
    %381 = vmatprep.subr.mxu0 0.0
    %382 = vmatpush1.msra.mxu0 0.0
    %383 = vmatprep.subr.mxu0 0.0
    %384 = vmatpush1.msra.mxu0 0.0
    %385 = vmatprep.subr.mxu0 0.0
    %386 = vmatpush1.msra.mxu0 0.0
    %387 = vmatprep.subr.mxu0 0.0
    %388 = vmatpush1.msra.mxu0 0.0
    %389 = vmatprep.subr.mxu0 0.0
    %390 = vmatpush1.msra.mxu0 0.0
    %391 = vmatprep.subr.mxu0 0.0
    %392 = vmatpush1.msra.mxu0 0.0
    %393 = vmatprep.subr.mxu0 0.0
    %394 = vmatpush1.msra.mxu0 0.0
    %395 = vmatprep.subr.mxu0 0.0
    %396 = vmatpush1.msra.mxu0 0.0
    %397 = vmatprep.subr.mxu0 0.0
    %v398 = vand.u32 %v101, 4294901760
    %v399 = vsub.f32 %v101, %v398
    %400 = vmatpush1.msra.mxu0 %v399
    %401 = vmatprep.subr.mxu0 0.0
    %402 = vmatpush2.msra.mxu0 0.0
    %403 = vmatprep.subr.mxu0 0.0
    %404 = vmatpush2.msra.mxu0 0.0
    %405 = vmatprep.subr.mxu0 0.0
    %406 = vmatpush2.msra.mxu0 0.0
    %407 = vmatprep.subr.mxu0 0.0
    %408 = vmatpush2.msra.mxu0 0.0
    %409 = vmatprep.subr.mxu0 0.0
    %410 = vmatpush2.msra.mxu0 0.0
    %411 = vmatprep.subr.mxu0 0.0
    %412 = vmatpush2.msra.mxu0 0.0
    %413 = vmatprep.subr.mxu0 0.0
    %414 = vmatpush2.msra.mxu0 0.0
    %415 = vmatprep.subr.mxu0 0.0
    %416 = vmatpush2.msra.mxu0 0.0
    %417 = vmatprep.subr.mxu0 0.0
    %418 = vmatpush2.msra.mxu0 0.0
    %419 = vmatprep.subr.mxu0 0.0
    %420 = vmatpush2.msra.mxu0 0.0
    %421 = vmatprep.subr.mxu0 0.0
    %422 = vmatpush2.msra.mxu0 0.0
    %423 = vmatprep.subr.mxu0 0.0
    %424 = vmatpush2.msra.mxu0 0.0
    %425 = vmatprep.subr.mxu0 0.0
    %426 = vmatpush2.msra.mxu0 0.0
    %427 = vmatprep.subr.mxu0 0.0
    %428 = vmatpush2.msra.mxu0 0.0
    %429 = vmatprep.subr.mxu0 0.0
    %430 = vmatpush2.msra.mxu0 0.0
    %431 = vmatprep.subr.mxu0 0.0
    %432 = vmatpush2.msra.mxu0 0.0
    %433 = vmatprep.mubr.f32.mxu0 0.0
    %v434 = vand.u32 %v76, 4294901760
    %v435 = vsub.f32 %v76, %v434
    %436 = vmatmul.mubr.f32.gmra.mxu0 %v435
    %v437 = vpop.f32.mrf.mxu0
    %v438 = vadd.f32 %v322, %v437
    %v439 = vpop.f32.mrf.mxu0
    %440 = vmatprep.mubr.f32.mxu0 0.0
    %v441 = vand.u32 %v79, 4294901760
    %v442 = vsub.f32 %v79, %v441
    %443 = vmatmul.mubr.f32.gmra.mxu0 %v442
    %v444 = vpop.f32.mrf.mxu0
    %v445 = vadd.f32 %v328, %v444
    %v446 = vpop.f32.mrf.mxu0
    %447 = vmatprep.mubr.f32.mxu0 0.0
    %v448 = vand.u32 %v82, 4294901760
    %v449 = vsub.f32 %v82, %v448
    %450 = vmatmul.mubr.f32.gmra.mxu0 %v449
    %v451 = vpop.f32.mrf.mxu0
    %v452 = vadd.f32 %v334, %v451
    %v453 = vpop.f32.mrf.mxu0
    %454 = vmatprep.mubr.f32.mxu0 0.0
    %v455 = vand.u32 %v85, 4294901760
    %v456 = vsub.f32 %v85, %v455
    %457 = vmatmul.mubr.f32.gmra.mxu0 %v456
    %v458 = vpop.f32.mrf.mxu0
    %v459 = vadd.f32 %v340, %v458
    %v460 = vpop.f32.mrf.mxu0
    %461 = vmatprep.mubr.f32.mxu0 0.0
    %v462 = vand.u32 %v88, 4294901760
    %v463 = vsub.f32 %v88, %v462
    %464 = vmatmul.mubr.f32.gmra.mxu0 %v463
    %v465 = vpop.f32.mrf.mxu0
    %v466 = vadd.f32 %v346, %v465
    %v467 = vpop.f32.mrf.mxu0
    %468 = vmatprep.mubr.f32.mxu0 0.0
    %v469 = vand.u32 %v91, 4294901760
    %v470 = vsub.f32 %v91, %v469
    %471 = vmatmul.mubr.f32.gmra.mxu0 %v470
    %v472 = vpop.f32.mrf.mxu0
    %v473 = vadd.f32 %v352, %v472
    %v474 = vpop.f32.mrf.mxu0
    %475 = vmatprep.mubr.f32.mxu0 0.0
    %v476 = vand.u32 %v94, 4294901760
    %v477 = vsub.f32 %v94, %v476
    %478 = vmatmul.mubr.f32.gmra.mxu0 %v477
    %v479 = vpop.f32.mrf.mxu0
    %v480 = vadd.f32 %v358, %v479
    %v481 = vpop.f32.mrf.mxu0
    %482 = vmatprep.mubr.f32.mxu0 0.0
    %v483 = vand.u32 %v97, 4294901760
    %v484 = vsub.f32 %v97, %v483
    %485 = vmatmul.mubr.f32.gmra.mxu0 %v484
    %v486 = vpop.f32.mrf.mxu0
    %v487 = vadd.f32 %v364, %v486
    %v488 = vpop.f32.mrf.mxu0
    %489 = vdwg.mxu0
    %490 = vmatprep.subr.mxu0 0.0
    %491 = vmatpush1.msra.mxu0 0.0
    %492 = vmatprep.subr.mxu0 0.0
    %493 = vmatpush1.msra.mxu0 0.0
    %494 = vmatprep.subr.mxu0 0.0
    %495 = vmatpush1.msra.mxu0 0.0
    %496 = vmatprep.subr.mxu0 0.0
    %497 = vmatpush1.msra.mxu0 0.0
    %498 = vmatprep.subr.mxu0 0.0
    %499 = vmatpush1.msra.mxu0 0.0
    %500 = vmatprep.subr.mxu0 0.0
    %501 = vmatpush1.msra.mxu0 0.0
    %502 = vmatprep.subr.mxu0 0.0
    %503 = vmatpush1.msra.mxu0 0.0
    %504 = vmatprep.subr.mxu0 0.0
    %505 = vmatpush1.msra.mxu0 0.0
    %506 = vmatprep.subr.mxu0 0.0
    %507 = vmatpush1.msra.mxu0 0.0
    %508 = vmatprep.subr.mxu0 0.0
    %509 = vmatpush1.msra.mxu0 0.0
    %510 = vmatprep.subr.mxu0 0.0
    %511 = vmatpush1.msra.mxu0 0.0
    %512 = vmatprep.subr.mxu0 0.0
    %513 = vmatpush1.msra.mxu0 0.0
    %514 = vmatprep.subr.mxu0 0.0
    %515 = vmatpush1.msra.mxu0 0.0
    %516 = vmatprep.subr.mxu0 0.0
    %517 = vmatpush1.msra.mxu0 0.0
    %518 = vmatprep.subr.mxu0 0.0
    %519 = vmatpush1.msra.mxu0 0.0
    %520 = vmatprep.subr.mxu0 0.0
    %v521 = vand.u32 %v101, 4294901760
    %522 = vmatpush1.msra.mxu0 %v521
    %523 = vmatprep.subr.mxu0 0.0
    %524 = vmatpush2.msra.mxu0 0.0
    %525 = vmatprep.subr.mxu0 0.0
    %526 = vmatpush2.msra.mxu0 0.0
    %527 = vmatprep.subr.mxu0 0.0
    %528 = vmatpush2.msra.mxu0 0.0
    %529 = vmatprep.subr.mxu0 0.0
    %530 = vmatpush2.msra.mxu0 0.0
    %531 = vmatprep.subr.mxu0 0.0
    %532 = vmatpush2.msra.mxu0 0.0
    %533 = vmatprep.subr.mxu0 0.0
    %534 = vmatpush2.msra.mxu0 0.0
    %535 = vmatprep.subr.mxu0 0.0
    %536 = vmatpush2.msra.mxu0 0.0
    %537 = vmatprep.subr.mxu0 0.0
    %538 = vmatpush2.msra.mxu0 0.0
    %539 = vmatprep.subr.mxu0 0.0
    %540 = vmatpush2.msra.mxu0 0.0
    %541 = vmatprep.subr.mxu0 0.0
    %542 = vmatpush2.msra.mxu0 0.0
    %543 = vmatprep.subr.mxu0 0.0
    %544 = vmatpush2.msra.mxu0 0.0
    %545 = vmatprep.subr.mxu0 0.0
    %546 = vmatpush2.msra.mxu0 0.0
    %547 = vmatprep.subr.mxu0 0.0
    %548 = vmatpush2.msra.mxu0 0.0
    %549 = vmatprep.subr.mxu0 0.0
    %550 = vmatpush2.msra.mxu0 0.0
    %551 = vmatprep.subr.mxu0 0.0
    %552 = vmatpush2.msra.mxu0 0.0
    %553 = vmatprep.subr.mxu0 0.0
    %554 = vmatpush2.msra.mxu0 0.0
    %555 = vmatprep.mubr.f32.mxu0 0.0
    %v556 = vand.u32 %v76, 4294901760
    %v557 = vsub.f32 %v76, %v556
    %v558 = vand.u32 %v557, 4294901760
    %559 = vmatmul.mubr.f32.gmra.mxu0 %v558
    %v560 = vpop.f32.mrf.mxu0
    %v561 = vadd.f32 %v438, %v560
    %v562 = vpop.f32.mrf.mxu0
    %563 = vmatprep.mubr.f32.mxu0 0.0
    %v564 = vand.u32 %v79, 4294901760
    %v565 = vsub.f32 %v79, %v564
    %v566 = vand.u32 %v565, 4294901760
    %567 = vmatmul.mubr.f32.gmra.mxu0 %v566
    %v568 = vpop.f32.mrf.mxu0
    %v569 = vadd.f32 %v445, %v568
    %v570 = vpop.f32.mrf.mxu0
    %571 = vmatprep.mubr.f32.mxu0 0.0
    %v572 = vand.u32 %v82, 4294901760
    %v573 = vsub.f32 %v82, %v572
    %v574 = vand.u32 %v573, 4294901760
    %575 = vmatmul.mubr.f32.gmra.mxu0 %v574
    %v576 = vpop.f32.mrf.mxu0
    %v577 = vadd.f32 %v452, %v576
    %v578 = vpop.f32.mrf.mxu0
    %579 = vmatprep.mubr.f32.mxu0 0.0
    %v580 = vand.u32 %v85, 4294901760
    %v581 = vsub.f32 %v85, %v580
    %v582 = vand.u32 %v581, 4294901760
    %583 = vmatmul.mubr.f32.gmra.mxu0 %v582
    %v584 = vpop.f32.mrf.mxu0
    %v585 = vadd.f32 %v459, %v584
    %v586 = vpop.f32.mrf.mxu0
    %587 = vmatprep.mubr.f32.mxu0 0.0
    %v588 = vand.u32 %v88, 4294901760
    %v589 = vsub.f32 %v88, %v588
    %v590 = vand.u32 %v589, 4294901760
    %591 = vmatmul.mubr.f32.gmra.mxu0 %v590
    %v592 = vpop.f32.mrf.mxu0
    %v593 = vadd.f32 %v466, %v592
    %v594 = vpop.f32.mrf.mxu0
    %595 = vmatprep.mubr.f32.mxu0 0.0
    %v596 = vand.u32 %v91, 4294901760
    %v597 = vsub.f32 %v91, %v596
    %v598 = vand.u32 %v597, 4294901760
    %599 = vmatmul.mubr.f32.gmra.mxu0 %v598
    %v600 = vpop.f32.mrf.mxu0
    %v601 = vadd.f32 %v473, %v600
    %v602 = vpop.f32.mrf.mxu0
    %603 = vmatprep.mubr.f32.mxu0 0.0
    %v604 = vand.u32 %v94, 4294901760
    %v605 = vsub.f32 %v94, %v604
    %v606 = vand.u32 %v605, 4294901760
    %607 = vmatmul.mubr.f32.gmra.mxu0 %v606
    %v608 = vpop.f32.mrf.mxu0
    %v609 = vadd.f32 %v480, %v608
    %v610 = vpop.f32.mrf.mxu0
    %611 = vmatprep.mubr.f32.mxu0 0.0
    %v612 = vand.u32 %v97, 4294901760
    %v613 = vsub.f32 %v97, %v612
    %v614 = vand.u32 %v613, 4294901760
    %615 = vmatmul.mubr.f32.gmra.mxu0 %v614
    %v616 = vpop.f32.mrf.mxu0
    %v617 = vadd.f32 %v487, %v616
    %v618 = vpop.f32.mrf.mxu0
    %619 = vdwg.mxu0
    %620 = vmatprep.subr.mxu0 0.0
    %621 = vmatpush1.msra.mxu0 0.0
    %622 = vmatprep.subr.mxu0 0.0
    %623 = vmatpush1.msra.mxu0 0.0
    %624 = vmatprep.subr.mxu0 0.0
    %625 = vmatpush1.msra.mxu0 0.0
    %626 = vmatprep.subr.mxu0 0.0
    %627 = vmatpush1.msra.mxu0 0.0
    %628 = vmatprep.subr.mxu0 0.0
    %629 = vmatpush1.msra.mxu0 0.0
    %630 = vmatprep.subr.mxu0 0.0
    %631 = vmatpush1.msra.mxu0 0.0
    %632 = vmatprep.subr.mxu0 0.0
    %633 = vmatpush1.msra.mxu0 0.0
    %634 = vmatprep.subr.mxu0 0.0
    %635 = vmatpush1.msra.mxu0 0.0
    %636 = vmatprep.subr.mxu0 0.0
    %637 = vmatpush1.msra.mxu0 0.0
    %638 = vmatprep.subr.mxu0 0.0
    %639 = vmatpush1.msra.mxu0 0.0
    %640 = vmatprep.subr.mxu0 0.0
    %641 = vmatpush1.msra.mxu0 0.0
    %642 = vmatprep.subr.mxu0 0.0
    %643 = vmatpush1.msra.mxu0 0.0
    %644 = vmatprep.subr.mxu0 0.0
    %645 = vmatpush1.msra.mxu0 0.0
    %646 = vmatprep.subr.mxu0 0.0
    %647 = vmatpush1.msra.mxu0 0.0
    %648 = vmatprep.subr.mxu0 0.0
    %649 = vmatpush1.msra.mxu0 0.0
    %650 = vmatprep.subr.mxu0 0.0
    %v651 = vand.u32 %v101, 4294901760
    %v652 = vsub.f32 %v101, %v651
    %v653 = vand.u32 %v652, 4294901760
    %654 = vmatpush1.msra.mxu0 %v653
    %655 = vmatprep.subr.mxu0 0.0
    %656 = vmatpush2.msra.mxu0 0.0
    %657 = vmatprep.subr.mxu0 0.0
    %658 = vmatpush2.msra.mxu0 0.0
    %659 = vmatprep.subr.mxu0 0.0
    %660 = vmatpush2.msra.mxu0 0.0
    %661 = vmatprep.subr.mxu0 0.0
    %662 = vmatpush2.msra.mxu0 0.0
    %663 = vmatprep.subr.mxu0 0.0
    %664 = vmatpush2.msra.mxu0 0.0
    %665 = vmatprep.subr.mxu0 0.0
    %666 = vmatpush2.msra.mxu0 0.0
    %667 = vmatprep.subr.mxu0 0.0
    %668 = vmatpush2.msra.mxu0 0.0
    %669 = vmatprep.subr.mxu0 0.0
    %670 = vmatpush2.msra.mxu0 0.0
    %671 = vmatprep.subr.mxu0 0.0
    %672 = vmatpush2.msra.mxu0 0.0
    %673 = vmatprep.subr.mxu0 0.0
    %674 = vmatpush2.msra.mxu0 0.0
    %675 = vmatprep.subr.mxu0 0.0
    %676 = vmatpush2.msra.mxu0 0.0
    %677 = vmatprep.subr.mxu0 0.0
    %678 = vmatpush2.msra.mxu0 0.0
    %679 = vmatprep.subr.mxu0 0.0
    %680 = vmatpush2.msra.mxu0 0.0
    %681 = vmatprep.subr.mxu0 0.0
    %682 = vmatpush2.msra.mxu0 0.0
    %683 = vmatprep.subr.mxu0 0.0
    %684 = vmatpush2.msra.mxu0 0.0
    %685 = vmatprep.subr.mxu0 0.0
    %686 = vmatpush2.msra.mxu0 0.0
    %687 = vmatprep.mubr.f32.mxu0 0.0
    %v688 = vand.u32 %v76, 4294901760
    %689 = vmatmul.mubr.f32.gmra.mxu0 %v688
    %v690 = vpop.f32.mrf.mxu0
    %v691 = vadd.f32 %v561, %v690
    %v692 = vpop.f32.mrf.mxu0
    %693 = vmatprep.mubr.f32.mxu0 0.0
    %v694 = vand.u32 %v79, 4294901760
    %695 = vmatmul.mubr.f32.gmra.mxu0 %v694
    %v696 = vpop.f32.mrf.mxu0
    %v697 = vadd.f32 %v569, %v696
    %v698 = vpop.f32.mrf.mxu0
    %699 = vmatprep.mubr.f32.mxu0 0.0
    %v700 = vand.u32 %v82, 4294901760
    %701 = vmatmul.mubr.f32.gmra.mxu0 %v700
    %v702 = vpop.f32.mrf.mxu0
    %v703 = vadd.f32 %v577, %v702
    %v704 = vpop.f32.mrf.mxu0
    %705 = vmatprep.mubr.f32.mxu0 0.0
    %v706 = vand.u32 %v85, 4294901760
    %707 = vmatmul.mubr.f32.gmra.mxu0 %v706
    %v708 = vpop.f32.mrf.mxu0
    %v709 = vadd.f32 %v585, %v708
    %v710 = vpop.f32.mrf.mxu0
    %711 = vmatprep.mubr.f32.mxu0 0.0
    %v712 = vand.u32 %v88, 4294901760
    %713 = vmatmul.mubr.f32.gmra.mxu0 %v712
    %v714 = vpop.f32.mrf.mxu0
    %v715 = vadd.f32 %v593, %v714
    %v716 = vpop.f32.mrf.mxu0
    %717 = vmatprep.mubr.f32.mxu0 0.0
    %v718 = vand.u32 %v91, 4294901760
    %719 = vmatmul.mubr.f32.gmra.mxu0 %v718
    %v720 = vpop.f32.mrf.mxu0
    %v721 = vadd.f32 %v601, %v720
    %v722 = vpop.f32.mrf.mxu0
    %723 = vmatprep.mubr.f32.mxu0 0.0
    %v724 = vand.u32 %v94, 4294901760
    %725 = vmatmul.mubr.f32.gmra.mxu0 %v724
    %v726 = vpop.f32.mrf.mxu0
    %v727 = vadd.f32 %v609, %v726
    %v728 = vpop.f32.mrf.mxu0
    %729 = vmatprep.mubr.f32.mxu0 0.0
    %v730 = vand.u32 %v97, 4294901760
    %731 = vmatmul.mubr.f32.gmra.mxu0 %v730
    %v732 = vpop.f32.mrf.mxu0
    %v733 = vadd.f32 %v617, %v732
    %v734 = vpop.f32.mrf.mxu0
    %735 = vdwg.mxu0
    %736 = vmatprep.subr.mxu0 0.0
    %737 = vmatpush1.msra.mxu0 0.0
    %738 = vmatprep.subr.mxu0 0.0
    %739 = vmatpush1.msra.mxu0 0.0
    %740 = vmatprep.subr.mxu0 0.0
    %741 = vmatpush1.msra.mxu0 0.0
    %742 = vmatprep.subr.mxu0 0.0
    %743 = vmatpush1.msra.mxu0 0.0
    %744 = vmatprep.subr.mxu0 0.0
    %745 = vmatpush1.msra.mxu0 0.0
    %746 = vmatprep.subr.mxu0 0.0
    %747 = vmatpush1.msra.mxu0 0.0
    %748 = vmatprep.subr.mxu0 0.0
    %749 = vmatpush1.msra.mxu0 0.0
    %750 = vmatprep.subr.mxu0 0.0
    %751 = vmatpush1.msra.mxu0 0.0
    %752 = vmatprep.subr.mxu0 0.0
    %753 = vmatpush1.msra.mxu0 0.0
    %754 = vmatprep.subr.mxu0 0.0
    %755 = vmatpush1.msra.mxu0 0.0
    %756 = vmatprep.subr.mxu0 0.0
    %757 = vmatpush1.msra.mxu0 0.0
    %758 = vmatprep.subr.mxu0 0.0
    %759 = vmatpush1.msra.mxu0 0.0
    %760 = vmatprep.subr.mxu0 0.0
    %761 = vmatpush1.msra.mxu0 0.0
    %762 = vmatprep.subr.mxu0 0.0
    %763 = vmatpush1.msra.mxu0 0.0
    %764 = vmatprep.subr.mxu0 0.0
    %765 = vmatpush1.msra.mxu0 0.0
    %766 = vmatprep.subr.mxu0 0.0
    %v767 = vand.u32 %v101, 4294901760
    %768 = vmatpush1.msra.mxu0 %v767
    %769 = vmatprep.subr.mxu0 0.0
    %770 = vmatpush2.msra.mxu0 0.0
    %771 = vmatprep.subr.mxu0 0.0
    %772 = vmatpush2.msra.mxu0 0.0
    %773 = vmatprep.subr.mxu0 0.0
    %774 = vmatpush2.msra.mxu0 0.0
    %775 = vmatprep.subr.mxu0 0.0
    %776 = vmatpush2.msra.mxu0 0.0
    %777 = vmatprep.subr.mxu0 0.0
    %778 = vmatpush2.msra.mxu0 0.0
    %779 = vmatprep.subr.mxu0 0.0
    %780 = vmatpush2.msra.mxu0 0.0
    %781 = vmatprep.subr.mxu0 0.0
    %782 = vmatpush2.msra.mxu0 0.0
    %783 = vmatprep.subr.mxu0 0.0
    %784 = vmatpush2.msra.mxu0 0.0
    %785 = vmatprep.subr.mxu0 0.0
    %786 = vmatpush2.msra.mxu0 0.0
    %787 = vmatprep.subr.mxu0 0.0
    %788 = vmatpush2.msra.mxu0 0.0
    %789 = vmatprep.subr.mxu0 0.0
    %790 = vmatpush2.msra.mxu0 0.0
    %791 = vmatprep.subr.mxu0 0.0
    %792 = vmatpush2.msra.mxu0 0.0
    %793 = vmatprep.subr.mxu0 0.0
    %794 = vmatpush2.msra.mxu0 0.0
    %795 = vmatprep.subr.mxu0 0.0
    %796 = vmatpush2.msra.mxu0 0.0
    %797 = vmatprep.subr.mxu0 0.0
    %798 = vmatpush2.msra.mxu0 0.0
    %799 = vmatprep.subr.mxu0 0.0
    %800 = vmatpush2.msra.mxu0 0.0
    %801 = vmatprep.mubr.f32.mxu0 0.0
    %v802 = vand.u32 %v76, 4294901760
    %803 = vmatmul.mubr.f32.gmra.mxu0 %v802
    %v804 = vpop.f32.mrf.mxu0
    %v805 = vadd.f32 %v691, %v804
    %v806 = vpop.f32.mrf.mxu0
    %807 = vmatprep.mubr.f32.mxu0 0.0
    %v808 = vand.u32 %v79, 4294901760
    %809 = vmatmul.mubr.f32.gmra.mxu0 %v808
    %v810 = vpop.f32.mrf.mxu0
    %v811 = vadd.f32 %v697, %v810
    %v812 = vpop.f32.mrf.mxu0
    %813 = vmatprep.mubr.f32.mxu0 0.0
    %v814 = vand.u32 %v82, 4294901760
    %815 = vmatmul.mubr.f32.gmra.mxu0 %v814
    %v816 = vpop.f32.mrf.mxu0
    %v817 = vadd.f32 %v703, %v816
    %v818 = vpop.f32.mrf.mxu0
    %819 = vmatprep.mubr.f32.mxu0 0.0
    %v820 = vand.u32 %v85, 4294901760
    %821 = vmatmul.mubr.f32.gmra.mxu0 %v820
    %v822 = vpop.f32.mrf.mxu0
    %v823 = vadd.f32 %v709, %v822
    %v824 = vpop.f32.mrf.mxu0
    %825 = vmatprep.mubr.f32.mxu0 0.0
    %v826 = vand.u32 %v88, 4294901760
    %827 = vmatmul.mubr.f32.gmra.mxu0 %v826
    %v828 = vpop.f32.mrf.mxu0
    %v829 = vadd.f32 %v715, %v828
    %v830 = vpop.f32.mrf.mxu0
    %831 = vmatprep.mubr.f32.mxu0 0.0
    %v832 = vand.u32 %v91, 4294901760
    %833 = vmatmul.mubr.f32.gmra.mxu0 %v832
    %v834 = vpop.f32.mrf.mxu0
    %v835 = vadd.f32 %v721, %v834
    %v836 = vpop.f32.mrf.mxu0
    %837 = vmatprep.mubr.f32.mxu0 0.0
    %v838 = vand.u32 %v94, 4294901760
    %839 = vmatmul.mubr.f32.gmra.mxu0 %v838
    %v840 = vpop.f32.mrf.mxu0
    %v841 = vadd.f32 %v727, %v840
    %v842 = vpop.f32.mrf.mxu0
    %843 = vmatprep.mubr.f32.mxu0 0.0
    %v844 = vand.u32 %v97, 4294901760
    %845 = vmatmul.mubr.f32.gmra.mxu0 %v844
    %v846 = vpop.f32.mrf.mxu0
    %v847 = vadd.f32 %v733, %v846
    %v848 = vpop.f32.mrf.mxu0
    %849 = vdwg.mxu0
    %v850 = vld [vmem:[%s1] sm:$0xff]
    %s851 = scalar_lea.vmem %s1, 8
    %v852 = vld [vmem:[%s851] sm:$0xff]
    %vm853 = vcmask 261120
    %v855 = vsel %vm853, %v850, 0
    %857 = vmatprep.subr.mxu0 0.0
    %858 = vmatpush1.msra.mxu0 0.0
    %859 = vmatprep.subr.mxu0 0.0
    %860 = vmatpush1.msra.mxu0 0.0
    %861 = vmatprep.subr.mxu0 0.0
    %862 = vmatpush1.msra.mxu0 0.0
    %863 = vmatprep.subr.mxu0 0.0
    %864 = vmatpush1.msra.mxu0 0.0
    %865 = vmatprep.subr.mxu0 0.0
    %866 = vmatpush1.msra.mxu0 0.0
    %867 = vmatprep.subr.mxu0 0.0
    %868 = vmatpush1.msra.mxu0 0.0
    %869 = vmatprep.subr.mxu0 0.0
    %870 = vmatpush1.msra.mxu0 0.0
    %871 = vmatprep.subr.mxu0 0.0
    %872 = vmatpush1.msra.mxu0 0.0
    %873 = vmatprep.subr.mxu0 0.0
    %874 = vmatpush1.msra.mxu0 0.0
    %875 = vmatprep.subr.mxu0 0.0
    %876 = vmatpush1.msra.mxu0 0.0
    %877 = vmatprep.subr.mxu0 0.0
    %878 = vmatpush1.msra.mxu0 0.0
    %879 = vmatprep.subr.mxu0 0.0
    %880 = vmatpush1.msra.mxu0 0.0
    %881 = vmatprep.subr.mxu0 0.0
    %v882 = vand.u32 %v41, 4294901760
    %883 = vmatpush1.msra.mxu0 %v882
    %884 = vmatprep.subr.mxu0 0.0
    %v885 = vand.u32 %v40, 4294901760
    %886 = vmatpush1.msra.mxu0 %v885
    %887 = vmatprep.subr.mxu0 0.0
    %v888 = vand.u32 %v39, 4294901760
    %889 = vmatpush1.msra.mxu0 %v888
    %890 = vmatprep.subr.mxu0 0.0
    %v891 = vand.u32 %v38, 4294901760
    %892 = vmatpush1.msra.mxu0 %v891
    %893 = vmatprep.subr.mxu0 0.0
    %894 = vmatpush2.msra.mxu0 0.0
    %895 = vmatprep.subr.mxu0 0.0
    %896 = vmatpush2.msra.mxu0 0.0
    %897 = vmatprep.subr.mxu0 0.0
    %898 = vmatpush2.msra.mxu0 0.0
    %899 = vmatprep.subr.mxu0 0.0
    %900 = vmatpush2.msra.mxu0 0.0
    %901 = vmatprep.subr.mxu0 0.0
    %902 = vmatpush2.msra.mxu0 0.0
    %903 = vmatprep.subr.mxu0 0.0
    %904 = vmatpush2.msra.mxu0 0.0
    %905 = vmatprep.subr.mxu0 0.0
    %906 = vmatpush2.msra.mxu0 0.0
    %907 = vmatprep.subr.mxu0 0.0
    %908 = vmatpush2.msra.mxu0 0.0
    %909 = vmatprep.subr.mxu0 0.0
    %910 = vmatpush2.msra.mxu0 0.0
    %911 = vmatprep.subr.mxu0 0.0
    %912 = vmatpush2.msra.mxu0 0.0
    %913 = vmatprep.subr.mxu0 0.0
    %914 = vmatpush2.msra.mxu0 0.0
    %915 = vmatprep.subr.mxu0 0.0
    %916 = vmatpush2.msra.mxu0 0.0
    %917 = vmatprep.subr.mxu0 0.0
    %918 = vmatpush2.msra.mxu0 0.0
    %919 = vmatprep.subr.mxu0 0.0
    %920 = vmatpush2.msra.mxu0 0.0
    %921 = vmatprep.subr.mxu0 0.0
    %922 = vmatpush2.msra.mxu0 0.0
    %923 = vmatprep.subr.mxu0 0.0
    %924 = vmatpush2.msra.mxu0 0.0
    %925 = vmatprep.mubr.f32.mxu0 0.0
    %v926 = vand.u32 %v855, 4294901760
    %v927 = vsub.f32 %v855, %v926
    %v928 = vand.u32 %v927, 4294901760
    %v929 = vsub.f32 %v927, %v928
    %v930 = vand.u32 %v929, 4294901760
    %931 = vmatmul.mubr.f32.gmra.mxu0 %v930
    %v932 = vpop.f32.mrf.mxu0
    %v933 = vadd.f32 %v805, %v932
    %v934 = vpop.f32.mrf.mxu0
    %935 = vdwg.mxu0
    %936 = vmatprep.subr.mxu0 0.0
    %937 = vmatpush1.msra.mxu0 0.0
    %938 = vmatprep.subr.mxu0 0.0
    %939 = vmatpush1.msra.mxu0 0.0
    %940 = vmatprep.subr.mxu0 0.0
    %941 = vmatpush1.msra.mxu0 0.0
    %942 = vmatprep.subr.mxu0 0.0
    %943 = vmatpush1.msra.mxu0 0.0
    %944 = vmatprep.subr.mxu0 0.0
    %945 = vmatpush1.msra.mxu0 0.0
    %946 = vmatprep.subr.mxu0 0.0
    %947 = vmatpush1.msra.mxu0 0.0
    %948 = vmatprep.subr.mxu0 0.0
    %949 = vmatpush1.msra.mxu0 0.0
    %950 = vmatprep.subr.mxu0 0.0
    %951 = vmatpush1.msra.mxu0 0.0
    %952 = vmatprep.subr.mxu0 0.0
    %953 = vmatpush1.msra.mxu0 0.0
    %954 = vmatprep.subr.mxu0 0.0
    %955 = vmatpush1.msra.mxu0 0.0
    %956 = vmatprep.subr.mxu0 0.0
    %957 = vmatpush1.msra.mxu0 0.0
    %958 = vmatprep.subr.mxu0 0.0
    %959 = vmatpush1.msra.mxu0 0.0
    %960 = vmatprep.subr.mxu0 0.0
    %v961 = vand.u32 %v41, 4294901760
    %v962 = vsub.f32 %v41, %v961
    %v963 = vand.u32 %v962, 4294901760
    %v964 = vsub.f32 %v962, %v963
    %v965 = vand.u32 %v964, 4294901760
    %966 = vmatpush1.msra.mxu0 %v965
    %967 = vmatprep.subr.mxu0 0.0
    %v968 = vand.u32 %v40, 4294901760
    %v969 = vsub.f32 %v40, %v968
    %v970 = vand.u32 %v969, 4294901760
    %v971 = vsub.f32 %v969, %v970
    %v972 = vand.u32 %v971, 4294901760
    %973 = vmatpush1.msra.mxu0 %v972
    %974 = vmatprep.subr.mxu0 0.0
    %v975 = vand.u32 %v39, 4294901760
    %v976 = vsub.f32 %v39, %v975
    %v977 = vand.u32 %v976, 4294901760
    %v978 = vsub.f32 %v976, %v977
    %v979 = vand.u32 %v978, 4294901760
    %980 = vmatpush1.msra.mxu0 %v979
    %981 = vmatprep.subr.mxu0 0.0
    %v982 = vand.u32 %v38, 4294901760
    %v983 = vsub.f32 %v38, %v982
    %v984 = vand.u32 %v983, 4294901760
    %v985 = vsub.f32 %v983, %v984
    %v986 = vand.u32 %v985, 4294901760
    %987 = vmatpush1.msra.mxu0 %v986
    %988 = vmatprep.subr.mxu0 0.0
    %989 = vmatpush2.msra.mxu0 0.0
    %990 = vmatprep.subr.mxu0 0.0
    %991 = vmatpush2.msra.mxu0 0.0
    %992 = vmatprep.subr.mxu0 0.0
    %993 = vmatpush2.msra.mxu0 0.0
    %994 = vmatprep.subr.mxu0 0.0
    %995 = vmatpush2.msra.mxu0 0.0
    %996 = vmatprep.subr.mxu0 0.0
    %997 = vmatpush2.msra.mxu0 0.0
    %998 = vmatprep.subr.mxu0 0.0
    %999 = vmatpush2.msra.mxu0 0.0
    %1000 = vmatprep.subr.mxu0 0.0
    %1001 = vmatpush2.msra.mxu0 0.0
    %1002 = vmatprep.subr.mxu0 0.0
    %1003 = vmatpush2.msra.mxu0 0.0
    %1004 = vmatprep.subr.mxu0 0.0
    %1005 = vmatpush2.msra.mxu0 0.0
    %1006 = vmatprep.subr.mxu0 0.0
    %1007 = vmatpush2.msra.mxu0 0.0
    %1008 = vmatprep.subr.mxu0 0.0
    %1009 = vmatpush2.msra.mxu0 0.0
    %1010 = vmatprep.subr.mxu0 0.0
    %1011 = vmatpush2.msra.mxu0 0.0
    %1012 = vmatprep.subr.mxu0 0.0
    %1013 = vmatpush2.msra.mxu0 0.0
    %1014 = vmatprep.subr.mxu0 0.0
    %1015 = vmatpush2.msra.mxu0 0.0
    %1016 = vmatprep.subr.mxu0 0.0
    %1017 = vmatpush2.msra.mxu0 0.0
    %1018 = vmatprep.subr.mxu0 0.0
    %1019 = vmatpush2.msra.mxu0 0.0
    %1020 = vmatprep.mubr.f32.mxu0 0.0
    %v1021 = vand.u32 %v855, 4294901760
    %1022 = vmatmul.mubr.f32.gmra.mxu0 %v1021
    %v1023 = vpop.f32.mrf.mxu0
    %v1024 = vadd.f32 %v933, %v1023
    %v1025 = vpop.f32.mrf.mxu0
    %1026 = vdwg.mxu0
    %1027 = vmatprep.subr.mxu0 0.0
    %1028 = vmatpush1.msra.mxu0 0.0
    %1029 = vmatprep.subr.mxu0 0.0
    %1030 = vmatpush1.msra.mxu0 0.0
    %1031 = vmatprep.subr.mxu0 0.0
    %1032 = vmatpush1.msra.mxu0 0.0
    %1033 = vmatprep.subr.mxu0 0.0
    %1034 = vmatpush1.msra.mxu0 0.0
    %1035 = vmatprep.subr.mxu0 0.0
    %1036 = vmatpush1.msra.mxu0 0.0
    %1037 = vmatprep.subr.mxu0 0.0
    %1038 = vmatpush1.msra.mxu0 0.0
    %1039 = vmatprep.subr.mxu0 0.0
    %1040 = vmatpush1.msra.mxu0 0.0
    %1041 = vmatprep.subr.mxu0 0.0
    %1042 = vmatpush1.msra.mxu0 0.0
    %1043 = vmatprep.subr.mxu0 0.0
    %1044 = vmatpush1.msra.mxu0 0.0
    %1045 = vmatprep.subr.mxu0 0.0
    %1046 = vmatpush1.msra.mxu0 0.0
    %1047 = vmatprep.subr.mxu0 0.0
    %1048 = vmatpush1.msra.mxu0 0.0
    %1049 = vmatprep.subr.mxu0 0.0
    %1050 = vmatpush1.msra.mxu0 0.0
    %1051 = vmatprep.subr.mxu0 0.0
    %v1052 = vand.u32 %v41, 4294901760
    %v1053 = vsub.f32 %v41, %v1052
    %1054 = vmatpush1.msra.mxu0 %v1053
    %1055 = vmatprep.subr.mxu0 0.0
    %v1056 = vand.u32 %v40, 4294901760
    %v1057 = vsub.f32 %v40, %v1056
    %1058 = vmatpush1.msra.mxu0 %v1057
    %1059 = vmatprep.subr.mxu0 0.0
    %v1060 = vand.u32 %v39, 4294901760
    %v1061 = vsub.f32 %v39, %v1060
    %1062 = vmatpush1.msra.mxu0 %v1061
    %1063 = vmatprep.subr.mxu0 0.0
    %v1064 = vand.u32 %v38, 4294901760
    %v1065 = vsub.f32 %v38, %v1064
    %1066 = vmatpush1.msra.mxu0 %v1065
    %1067 = vmatprep.subr.mxu0 0.0
    %1068 = vmatpush2.msra.mxu0 0.0
    %1069 = vmatprep.subr.mxu0 0.0
    %1070 = vmatpush2.msra.mxu0 0.0
    %1071 = vmatprep.subr.mxu0 0.0
    %1072 = vmatpush2.msra.mxu0 0.0
    %1073 = vmatprep.subr.mxu0 0.0
    %1074 = vmatpush2.msra.mxu0 0.0
    %1075 = vmatprep.subr.mxu0 0.0
    %1076 = vmatpush2.msra.mxu0 0.0
    %1077 = vmatprep.subr.mxu0 0.0
    %1078 = vmatpush2.msra.mxu0 0.0
    %1079 = vmatprep.subr.mxu0 0.0
    %1080 = vmatpush2.msra.mxu0 0.0
    %1081 = vmatprep.subr.mxu0 0.0
    %1082 = vmatpush2.msra.mxu0 0.0
    %1083 = vmatprep.subr.mxu0 0.0
    %1084 = vmatpush2.msra.mxu0 0.0
    %1085 = vmatprep.subr.mxu0 0.0
    %1086 = vmatpush2.msra.mxu0 0.0
    %1087 = vmatprep.subr.mxu0 0.0
    %1088 = vmatpush2.msra.mxu0 0.0
    %1089 = vmatprep.subr.mxu0 0.0
    %1090 = vmatpush2.msra.mxu0 0.0
    %1091 = vmatprep.subr.mxu0 0.0
    %1092 = vmatpush2.msra.mxu0 0.0
    %1093 = vmatprep.subr.mxu0 0.0
    %1094 = vmatpush2.msra.mxu0 0.0
    %1095 = vmatprep.subr.mxu0 0.0
    %1096 = vmatpush2.msra.mxu0 0.0
    %1097 = vmatprep.subr.mxu0 0.0
    %1098 = vmatpush2.msra.mxu0 0.0
    %1099 = vmatprep.mubr.f32.mxu0 0.0
    %v1100 = vand.u32 %v855, 4294901760
    %v1101 = vsub.f32 %v855, %v1100
    %1102 = vmatmul.mubr.f32.gmra.mxu0 %v1101
    %v1103 = vpop.f32.mrf.mxu0
    %v1104 = vadd.f32 %v1024, %v1103
    %v1105 = vpop.f32.mrf.mxu0
    %1106 = vdwg.mxu0
    %1107 = vmatprep.subr.mxu0 0.0
    %1108 = vmatpush1.msra.mxu0 0.0
    %1109 = vmatprep.subr.mxu0 0.0
    %1110 = vmatpush1.msra.mxu0 0.0
    %1111 = vmatprep.subr.mxu0 0.0
    %1112 = vmatpush1.msra.mxu0 0.0
    %1113 = vmatprep.subr.mxu0 0.0
    %1114 = vmatpush1.msra.mxu0 0.0
    %1115 = vmatprep.subr.mxu0 0.0
    %1116 = vmatpush1.msra.mxu0 0.0
    %1117 = vmatprep.subr.mxu0 0.0
    %1118 = vmatpush1.msra.mxu0 0.0
    %1119 = vmatprep.subr.mxu0 0.0
    %1120 = vmatpush1.msra.mxu0 0.0
    %1121 = vmatprep.subr.mxu0 0.0
    %1122 = vmatpush1.msra.mxu0 0.0
    %1123 = vmatprep.subr.mxu0 0.0
    %1124 = vmatpush1.msra.mxu0 0.0
    %1125 = vmatprep.subr.mxu0 0.0
    %1126 = vmatpush1.msra.mxu0 0.0
    %1127 = vmatprep.subr.mxu0 0.0
    %1128 = vmatpush1.msra.mxu0 0.0
    %1129 = vmatprep.subr.mxu0 0.0
    %1130 = vmatpush1.msra.mxu0 0.0
    %1131 = vmatprep.subr.mxu0 0.0
    %v1132 = vand.u32 %v41, 4294901760
    %1133 = vmatpush1.msra.mxu0 %v1132
    %1134 = vmatprep.subr.mxu0 0.0
    %v1135 = vand.u32 %v40, 4294901760
    %1136 = vmatpush1.msra.mxu0 %v1135
    %1137 = vmatprep.subr.mxu0 0.0
    %v1138 = vand.u32 %v39, 4294901760
    %1139 = vmatpush1.msra.mxu0 %v1138
    %1140 = vmatprep.subr.mxu0 0.0
    %v1141 = vand.u32 %v38, 4294901760
    %1142 = vmatpush1.msra.mxu0 %v1141
    %1143 = vmatprep.subr.mxu0 0.0
    %1144 = vmatpush2.msra.mxu0 0.0
    %1145 = vmatprep.subr.mxu0 0.0
    %1146 = vmatpush2.msra.mxu0 0.0
    %1147 = vmatprep.subr.mxu0 0.0
    %1148 = vmatpush2.msra.mxu0 0.0
    %1149 = vmatprep.subr.mxu0 0.0
    %1150 = vmatpush2.msra.mxu0 0.0
    %1151 = vmatprep.subr.mxu0 0.0
    %1152 = vmatpush2.msra.mxu0 0.0
    %1153 = vmatprep.subr.mxu0 0.0
    %1154 = vmatpush2.msra.mxu0 0.0
    %1155 = vmatprep.subr.mxu0 0.0
    %1156 = vmatpush2.msra.mxu0 0.0
    %1157 = vmatprep.subr.mxu0 0.0
    %1158 = vmatpush2.msra.mxu0 0.0
    %1159 = vmatprep.subr.mxu0 0.0
    %1160 = vmatpush2.msra.mxu0 0.0
    %1161 = vmatprep.subr.mxu0 0.0
    %1162 = vmatpush2.msra.mxu0 0.0
    %1163 = vmatprep.subr.mxu0 0.0
    %1164 = vmatpush2.msra.mxu0 0.0
    %1165 = vmatprep.subr.mxu0 0.0
    %1166 = vmatpush2.msra.mxu0 0.0
    %1167 = vmatprep.subr.mxu0 0.0
    %1168 = vmatpush2.msra.mxu0 0.0
    %1169 = vmatprep.subr.mxu0 0.0
    %1170 = vmatpush2.msra.mxu0 0.0
    %1171 = vmatprep.subr.mxu0 0.0
    %1172 = vmatpush2.msra.mxu0 0.0
    %1173 = vmatprep.subr.mxu0 0.0
    %1174 = vmatpush2.msra.mxu0 0.0
    %1175 = vmatprep.mubr.f32.mxu0 0.0
    %v1176 = vand.u32 %v855, 4294901760
    %v1177 = vsub.f32 %v855, %v1176
    %v1178 = vand.u32 %v1177, 4294901760
    %1179 = vmatmul.mubr.f32.gmra.mxu0 %v1178
    %v1180 = vpop.f32.mrf.mxu0
    %v1181 = vadd.f32 %v1104, %v1180
    %v1182 = vpop.f32.mrf.mxu0
    %1183 = vdwg.mxu0
    %1184 = vmatprep.subr.mxu0 0.0
    %1185 = vmatpush1.msra.mxu0 0.0
    %1186 = vmatprep.subr.mxu0 0.0
    %1187 = vmatpush1.msra.mxu0 0.0
    %1188 = vmatprep.subr.mxu0 0.0
    %1189 = vmatpush1.msra.mxu0 0.0
    %1190 = vmatprep.subr.mxu0 0.0
    %1191 = vmatpush1.msra.mxu0 0.0
    %1192 = vmatprep.subr.mxu0 0.0
    %1193 = vmatpush1.msra.mxu0 0.0
    %1194 = vmatprep.subr.mxu0 0.0
    %1195 = vmatpush1.msra.mxu0 0.0
    %1196 = vmatprep.subr.mxu0 0.0
    %1197 = vmatpush1.msra.mxu0 0.0
    %1198 = vmatprep.subr.mxu0 0.0
    %1199 = vmatpush1.msra.mxu0 0.0
    %1200 = vmatprep.subr.mxu0 0.0
    %1201 = vmatpush1.msra.mxu0 0.0
    %1202 = vmatprep.subr.mxu0 0.0
    %1203 = vmatpush1.msra.mxu0 0.0
    %1204 = vmatprep.subr.mxu0 0.0
    %1205 = vmatpush1.msra.mxu0 0.0
    %1206 = vmatprep.subr.mxu0 0.0
    %1207 = vmatpush1.msra.mxu0 0.0
    %1208 = vmatprep.subr.mxu0 0.0
    %v1209 = vand.u32 %v41, 4294901760
    %v1210 = vsub.f32 %v41, %v1209
    %v1211 = vand.u32 %v1210, 4294901760
    %1212 = vmatpush1.msra.mxu0 %v1211
    %1213 = vmatprep.subr.mxu0 0.0
    %v1214 = vand.u32 %v40, 4294901760
    %v1215 = vsub.f32 %v40, %v1214
    %v1216 = vand.u32 %v1215, 4294901760
    %1217 = vmatpush1.msra.mxu0 %v1216
    %1218 = vmatprep.subr.mxu0 0.0
    %v1219 = vand.u32 %v39, 4294901760
    %v1220 = vsub.f32 %v39, %v1219
    %v1221 = vand.u32 %v1220, 4294901760
    %1222 = vmatpush1.msra.mxu0 %v1221
    %1223 = vmatprep.subr.mxu0 0.0
    %v1224 = vand.u32 %v38, 4294901760
    %v1225 = vsub.f32 %v38, %v1224
    %v1226 = vand.u32 %v1225, 4294901760
    %1227 = vmatpush1.msra.mxu0 %v1226
    %1228 = vmatprep.subr.mxu0 0.0
    %1229 = vmatpush2.msra.mxu0 0.0
    %1230 = vmatprep.subr.mxu0 0.0
    %1231 = vmatpush2.msra.mxu0 0.0
    %1232 = vmatprep.subr.mxu0 0.0
    %1233 = vmatpush2.msra.mxu0 0.0
    %1234 = vmatprep.subr.mxu0 0.0
    %1235 = vmatpush2.msra.mxu0 0.0
    %1236 = vmatprep.subr.mxu0 0.0
    %1237 = vmatpush2.msra.mxu0 0.0
    %1238 = vmatprep.subr.mxu0 0.0
    %1239 = vmatpush2.msra.mxu0 0.0
    %1240 = vmatprep.subr.mxu0 0.0
    %1241 = vmatpush2.msra.mxu0 0.0
    %1242 = vmatprep.subr.mxu0 0.0
    %1243 = vmatpush2.msra.mxu0 0.0
    %1244 = vmatprep.subr.mxu0 0.0
    %1245 = vmatpush2.msra.mxu0 0.0
    %1246 = vmatprep.subr.mxu0 0.0
    %1247 = vmatpush2.msra.mxu0 0.0
    %1248 = vmatprep.subr.mxu0 0.0
    %1249 = vmatpush2.msra.mxu0 0.0
    %1250 = vmatprep.subr.mxu0 0.0
    %1251 = vmatpush2.msra.mxu0 0.0
    %1252 = vmatprep.subr.mxu0 0.0
    %1253 = vmatpush2.msra.mxu0 0.0
    %1254 = vmatprep.subr.mxu0 0.0
    %1255 = vmatpush2.msra.mxu0 0.0
    %1256 = vmatprep.subr.mxu0 0.0
    %1257 = vmatpush2.msra.mxu0 0.0
    %1258 = vmatprep.subr.mxu0 0.0
    %1259 = vmatpush2.msra.mxu0 0.0
    %1260 = vmatprep.mubr.f32.mxu0 0.0
    %v1261 = vand.u32 %v855, 4294901760
    %1262 = vmatmul.mubr.f32.gmra.mxu0 %v1261
    %v1263 = vpop.f32.mrf.mxu0
    %v1264 = vadd.f32 %v1181, %v1263
    %v1265 = vpop.f32.mrf.mxu0
    %1266 = vdwg.mxu0
    %1267 = vmatprep.subr.mxu0 0.0
    %1268 = vmatpush1.msra.mxu0 0.0
    %1269 = vmatprep.subr.mxu0 0.0
    %1270 = vmatpush1.msra.mxu0 0.0
    %1271 = vmatprep.subr.mxu0 0.0
    %1272 = vmatpush1.msra.mxu0 0.0
    %1273 = vmatprep.subr.mxu0 0.0
    %1274 = vmatpush1.msra.mxu0 0.0
    %1275 = vmatprep.subr.mxu0 0.0
    %1276 = vmatpush1.msra.mxu0 0.0
    %1277 = vmatprep.subr.mxu0 0.0
    %1278 = vmatpush1.msra.mxu0 0.0
    %1279 = vmatprep.subr.mxu0 0.0
    %1280 = vmatpush1.msra.mxu0 0.0
    %1281 = vmatprep.subr.mxu0 0.0
    %1282 = vmatpush1.msra.mxu0 0.0
    %1283 = vmatprep.subr.mxu0 0.0
    %1284 = vmatpush1.msra.mxu0 0.0
    %1285 = vmatprep.subr.mxu0 0.0
    %1286 = vmatpush1.msra.mxu0 0.0
    %1287 = vmatprep.subr.mxu0 0.0
    %1288 = vmatpush1.msra.mxu0 0.0
    %1289 = vmatprep.subr.mxu0 0.0
    %1290 = vmatpush1.msra.mxu0 0.0
    %1291 = vmatprep.subr.mxu0 0.0
    %v1292 = vand.u32 %v41, 4294901760
    %1293 = vmatpush1.msra.mxu0 %v1292
    %1294 = vmatprep.subr.mxu0 0.0
    %v1295 = vand.u32 %v40, 4294901760
    %1296 = vmatpush1.msra.mxu0 %v1295
    %1297 = vmatprep.subr.mxu0 0.0
    %v1298 = vand.u32 %v39, 4294901760
    %1299 = vmatpush1.msra.mxu0 %v1298
    %1300 = vmatprep.subr.mxu0 0.0
    %v1301 = vand.u32 %v38, 4294901760
    %1302 = vmatpush1.msra.mxu0 %v1301
    %1303 = vmatprep.subr.mxu0 0.0
    %1304 = vmatpush2.msra.mxu0 0.0
    %1305 = vmatprep.subr.mxu0 0.0
    %1306 = vmatpush2.msra.mxu0 0.0
    %1307 = vmatprep.subr.mxu0 0.0
    %1308 = vmatpush2.msra.mxu0 0.0
    %1309 = vmatprep.subr.mxu0 0.0
    %1310 = vmatpush2.msra.mxu0 0.0
    %1311 = vmatprep.subr.mxu0 0.0
    %1312 = vmatpush2.msra.mxu0 0.0
    %1313 = vmatprep.subr.mxu0 0.0
    %1314 = vmatpush2.msra.mxu0 0.0
    %1315 = vmatprep.subr.mxu0 0.0
    %1316 = vmatpush2.msra.mxu0 0.0
    %1317 = vmatprep.subr.mxu0 0.0
    %1318 = vmatpush2.msra.mxu0 0.0
    %1319 = vmatprep.subr.mxu0 0.0
    %1320 = vmatpush2.msra.mxu0 0.0
    %1321 = vmatprep.subr.mxu0 0.0
    %1322 = vmatpush2.msra.mxu0 0.0
    %1323 = vmatprep.subr.mxu0 0.0
    %1324 = vmatpush2.msra.mxu0 0.0
    %1325 = vmatprep.subr.mxu0 0.0
    %1326 = vmatpush2.msra.mxu0 0.0
    %1327 = vmatprep.subr.mxu0 0.0
    %1328 = vmatpush2.msra.mxu0 0.0
    %1329 = vmatprep.subr.mxu0 0.0
    %1330 = vmatpush2.msra.mxu0 0.0
    %1331 = vmatprep.subr.mxu0 0.0
    %1332 = vmatpush2.msra.mxu0 0.0
    %1333 = vmatprep.subr.mxu0 0.0
    %1334 = vmatpush2.msra.mxu0 0.0
    %1335 = vmatprep.mubr.f32.mxu0 0.0
    %v1336 = vand.u32 %v855, 4294901760
    %1337 = vmatmul.mubr.f32.gmra.mxu0 %v1336
    %v1338 = vpop.f32.mrf.mxu0
    %v1339 = vadd.f32 %v1264, %v1338
    %v1340 = vpop.f32.mrf.mxu0
    %1341 = vdwg.mxu0
    %v1342 = vadd.f32 %v1339, %v55
    %v1343 = vtanh.pop %v1342
    %1345 = vrot.lane.b32.xlu0 %v852, 32
    %v1346 = vpop.permute.xlu0 %1345
    %v1348 = vsel %vm853, %v1343, %v1346
    %vm1349 = vcmask 523264
    %v1351 = vsel %vm1349, %v1348, 0
    %1353 = vmatprep.subr.mxu0 0.0
    %1354 = vmatpush1.msra.mxu0 0.0
    %1355 = vmatprep.subr.mxu0 0.0
    %1356 = vmatpush1.msra.mxu0 0.0
    %1357 = vmatprep.subr.mxu0 0.0
    %1358 = vmatpush1.msra.mxu0 0.0
    %1359 = vmatprep.subr.mxu0 0.0
    %1360 = vmatpush1.msra.mxu0 0.0
    %1361 = vmatprep.subr.mxu0 0.0
    %1362 = vmatpush1.msra.mxu0 0.0
    %1363 = vmatprep.subr.mxu0 0.0
    %1364 = vmatpush1.msra.mxu0 0.0
    %1365 = vmatprep.subr.mxu0 0.0
    %1366 = vmatpush1.msra.mxu0 0.0
    %1367 = vmatprep.subr.mxu0 0.0
    %1368 = vmatpush1.msra.mxu0 0.0
    %1369 = vmatprep.subr.mxu0 0.0
    %v1370 = vand.u32 %v49, 4294901760
    %1371 = vmatpush1.msra.mxu0 %v1370
    %1372 = vmatprep.subr.mxu0 0.0
    %v1373 = vand.u32 %v48, 4294901760
    %1374 = vmatpush1.msra.mxu0 %v1373
    %1375 = vmatprep.subr.mxu0 0.0
    %v1376 = vand.u32 %v47, 4294901760
    %1377 = vmatpush1.msra.mxu0 %v1376
    %1378 = vmatprep.subr.mxu0 0.0
    %v1379 = vand.u32 %v46, 4294901760
    %1380 = vmatpush1.msra.mxu0 %v1379
    %1381 = vmatprep.subr.mxu0 0.0
    %v1382 = vand.u32 %v45, 4294901760
    %1383 = vmatpush1.msra.mxu0 %v1382
    %1384 = vmatprep.subr.mxu0 0.0
    %v1385 = vand.u32 %v44, 4294901760
    %1386 = vmatpush1.msra.mxu0 %v1385
    %1387 = vmatprep.subr.mxu0 0.0
    %v1388 = vand.u32 %v43, 4294901760
    %1389 = vmatpush1.msra.mxu0 %v1388
    %1390 = vmatprep.subr.mxu0 0.0
    %v1391 = vand.u32 %v42, 4294901760
    %1392 = vmatpush1.msra.mxu0 %v1391
    %1393 = vmatprep.subr.mxu0 0.0
    %1394 = vmatpush2.msra.mxu0 0.0
    %1395 = vmatprep.subr.mxu0 0.0
    %1396 = vmatpush2.msra.mxu0 0.0
    %1397 = vmatprep.subr.mxu0 0.0
    %1398 = vmatpush2.msra.mxu0 0.0
    %1399 = vmatprep.subr.mxu0 0.0
    %1400 = vmatpush2.msra.mxu0 0.0
    %1401 = vmatprep.subr.mxu0 0.0
    %1402 = vmatpush2.msra.mxu0 0.0
    %1403 = vmatprep.subr.mxu0 0.0
    %1404 = vmatpush2.msra.mxu0 0.0
    %1405 = vmatprep.subr.mxu0 0.0
    %1406 = vmatpush2.msra.mxu0 0.0
    %1407 = vmatprep.subr.mxu0 0.0
    %1408 = vmatpush2.msra.mxu0 0.0
    %1409 = vmatprep.subr.mxu0 0.0
    %1410 = vmatpush2.msra.mxu0 0.0
    %1411 = vmatprep.subr.mxu0 0.0
    %1412 = vmatpush2.msra.mxu0 0.0
    %1413 = vmatprep.subr.mxu0 0.0
    %1414 = vmatpush2.msra.mxu0 0.0
    %1415 = vmatprep.subr.mxu0 0.0
    %1416 = vmatpush2.msra.mxu0 0.0
    %1417 = vmatprep.subr.mxu0 0.0
    %1418 = vmatpush2.msra.mxu0 0.0
    %1419 = vmatprep.subr.mxu0 0.0
    %1420 = vmatpush2.msra.mxu0 0.0
    %1421 = vmatprep.subr.mxu0 0.0
    %1422 = vmatpush2.msra.mxu0 0.0
    %1423 = vmatprep.subr.mxu0 0.0
    %1424 = vmatpush2.msra.mxu0 0.0
    %1425 = vmatprep.mubr.f32.mxu0 0.0
    %v1426 = vand.u32 %v1351, 4294901760
    %v1427 = vsub.f32 %v1351, %v1426
    %v1428 = vand.u32 %v1427, 4294901760
    %v1429 = vsub.f32 %v1427, %v1428
    %v1430 = vand.u32 %v1429, 4294901760
    %1431 = vmatmul.mubr.f32.gmra.mxu0 %v1430
    %v1432 = vpop.f32.mrf.mxu0
    %v1433 = vadd.f32 %v63, %v1432
    %v1434 = vpop.f32.mrf.mxu0
    %1435 = vdwg.mxu0
    %1436 = vmatprep.subr.mxu0 0.0
    %1437 = vmatpush1.msra.mxu0 0.0
    %1438 = vmatprep.subr.mxu0 0.0
    %1439 = vmatpush1.msra.mxu0 0.0
    %1440 = vmatprep.subr.mxu0 0.0
    %1441 = vmatpush1.msra.mxu0 0.0
    %1442 = vmatprep.subr.mxu0 0.0
    %1443 = vmatpush1.msra.mxu0 0.0
    %1444 = vmatprep.subr.mxu0 0.0
    %1445 = vmatpush1.msra.mxu0 0.0
    %1446 = vmatprep.subr.mxu0 0.0
    %1447 = vmatpush1.msra.mxu0 0.0
    %1448 = vmatprep.subr.mxu0 0.0
    %1449 = vmatpush1.msra.mxu0 0.0
    %1450 = vmatprep.subr.mxu0 0.0
    %1451 = vmatpush1.msra.mxu0 0.0
    %1452 = vmatprep.subr.mxu0 0.0
    %v1453 = vand.u32 %v49, 4294901760
    %v1454 = vsub.f32 %v49, %v1453
    %v1455 = vand.u32 %v1454, 4294901760
    %v1456 = vsub.f32 %v1454, %v1455
    %v1457 = vand.u32 %v1456, 4294901760
    %1458 = vmatpush1.msra.mxu0 %v1457
    %1459 = vmatprep.subr.mxu0 0.0
    %v1460 = vand.u32 %v48, 4294901760
    %v1461 = vsub.f32 %v48, %v1460
    %v1462 = vand.u32 %v1461, 4294901760
    %v1463 = vsub.f32 %v1461, %v1462
    %v1464 = vand.u32 %v1463, 4294901760
    %1465 = vmatpush1.msra.mxu0 %v1464
    %1466 = vmatprep.subr.mxu0 0.0
    %v1467 = vand.u32 %v47, 4294901760
    %v1468 = vsub.f32 %v47, %v1467
    %v1469 = vand.u32 %v1468, 4294901760
    %v1470 = vsub.f32 %v1468, %v1469
    %v1471 = vand.u32 %v1470, 4294901760
    %1472 = vmatpush1.msra.mxu0 %v1471
    %1473 = vmatprep.subr.mxu0 0.0
    %v1474 = vand.u32 %v46, 4294901760
    %v1475 = vsub.f32 %v46, %v1474
    %v1476 = vand.u32 %v1475, 4294901760
    %v1477 = vsub.f32 %v1475, %v1476
    %v1478 = vand.u32 %v1477, 4294901760
    %1479 = vmatpush1.msra.mxu0 %v1478
    %1480 = vmatprep.subr.mxu0 0.0
    %v1481 = vand.u32 %v45, 4294901760
    %v1482 = vsub.f32 %v45, %v1481
    %v1483 = vand.u32 %v1482, 4294901760
    %v1484 = vsub.f32 %v1482, %v1483
    %v1485 = vand.u32 %v1484, 4294901760
    %1486 = vmatpush1.msra.mxu0 %v1485
    %1487 = vmatprep.subr.mxu0 0.0
    %v1488 = vand.u32 %v44, 4294901760
    %v1489 = vsub.f32 %v44, %v1488
    %v1490 = vand.u32 %v1489, 4294901760
    %v1491 = vsub.f32 %v1489, %v1490
    %v1492 = vand.u32 %v1491, 4294901760
    %1493 = vmatpush1.msra.mxu0 %v1492
    %1494 = vmatprep.subr.mxu0 0.0
    %v1495 = vand.u32 %v43, 4294901760
    %v1496 = vsub.f32 %v43, %v1495
    %v1497 = vand.u32 %v1496, 4294901760
    %v1498 = vsub.f32 %v1496, %v1497
    %v1499 = vand.u32 %v1498, 4294901760
    %1500 = vmatpush1.msra.mxu0 %v1499
    %1501 = vmatprep.subr.mxu0 0.0
    %v1502 = vand.u32 %v42, 4294901760
    %v1503 = vsub.f32 %v42, %v1502
    %v1504 = vand.u32 %v1503, 4294901760
    %v1505 = vsub.f32 %v1503, %v1504
    %v1506 = vand.u32 %v1505, 4294901760
    %1507 = vmatpush1.msra.mxu0 %v1506
    %1508 = vmatprep.subr.mxu0 0.0
    %1509 = vmatpush2.msra.mxu0 0.0
    %1510 = vmatprep.subr.mxu0 0.0
    %1511 = vmatpush2.msra.mxu0 0.0
    %1512 = vmatprep.subr.mxu0 0.0
    %1513 = vmatpush2.msra.mxu0 0.0
    %1514 = vmatprep.subr.mxu0 0.0
    %1515 = vmatpush2.msra.mxu0 0.0
    %1516 = vmatprep.subr.mxu0 0.0
    %1517 = vmatpush2.msra.mxu0 0.0
    %1518 = vmatprep.subr.mxu0 0.0
    %1519 = vmatpush2.msra.mxu0 0.0
    %1520 = vmatprep.subr.mxu0 0.0
    %1521 = vmatpush2.msra.mxu0 0.0
    %1522 = vmatprep.subr.mxu0 0.0
    %1523 = vmatpush2.msra.mxu0 0.0
    %1524 = vmatprep.subr.mxu0 0.0
    %1525 = vmatpush2.msra.mxu0 0.0
    %1526 = vmatprep.subr.mxu0 0.0
    %1527 = vmatpush2.msra.mxu0 0.0
    %1528 = vmatprep.subr.mxu0 0.0
    %1529 = vmatpush2.msra.mxu0 0.0
    %1530 = vmatprep.subr.mxu0 0.0
    %1531 = vmatpush2.msra.mxu0 0.0
    %1532 = vmatprep.subr.mxu0 0.0
    %1533 = vmatpush2.msra.mxu0 0.0
    %1534 = vmatprep.subr.mxu0 0.0
    %1535 = vmatpush2.msra.mxu0 0.0
    %1536 = vmatprep.subr.mxu0 0.0
    %1537 = vmatpush2.msra.mxu0 0.0
    %1538 = vmatprep.subr.mxu0 0.0
    %1539 = vmatpush2.msra.mxu0 0.0
    %1540 = vmatprep.mubr.f32.mxu0 0.0
    %v1541 = vand.u32 %v1351, 4294901760
    %1542 = vmatmul.mubr.f32.gmra.mxu0 %v1541
    %v1543 = vpop.f32.mrf.mxu0
    %v1544 = vadd.f32 %v1433, %v1543
    %v1545 = vpop.f32.mrf.mxu0
    %1546 = vdwg.mxu0
    %1547 = vmatprep.subr.mxu0 0.0
    %1548 = vmatpush1.msra.mxu0 0.0
    %1549 = vmatprep.subr.mxu0 0.0
    %1550 = vmatpush1.msra.mxu0 0.0
    %1551 = vmatprep.subr.mxu0 0.0
    %1552 = vmatpush1.msra.mxu0 0.0
    %1553 = vmatprep.subr.mxu0 0.0
    %1554 = vmatpush1.msra.mxu0 0.0
    %1555 = vmatprep.subr.mxu0 0.0
    %1556 = vmatpush1.msra.mxu0 0.0
    %1557 = vmatprep.subr.mxu0 0.0
    %1558 = vmatpush1.msra.mxu0 0.0
    %1559 = vmatprep.subr.mxu0 0.0
    %1560 = vmatpush1.msra.mxu0 0.0
    %1561 = vmatprep.subr.mxu0 0.0
    %1562 = vmatpush1.msra.mxu0 0.0
    %1563 = vmatprep.subr.mxu0 0.0
    %v1564 = vand.u32 %v49, 4294901760
    %v1565 = vsub.f32 %v49, %v1564
    %1566 = vmatpush1.msra.mxu0 %v1565
    %1567 = vmatprep.subr.mxu0 0.0
    %v1568 = vand.u32 %v48, 4294901760
    %v1569 = vsub.f32 %v48, %v1568
    %1570 = vmatpush1.msra.mxu0 %v1569
    %1571 = vmatprep.subr.mxu0 0.0
    %v1572 = vand.u32 %v47, 4294901760
    %v1573 = vsub.f32 %v47, %v1572
    %1574 = vmatpush1.msra.mxu0 %v1573
    %1575 = vmatprep.subr.mxu0 0.0
    %v1576 = vand.u32 %v46, 4294901760
    %v1577 = vsub.f32 %v46, %v1576
    %1578 = vmatpush1.msra.mxu0 %v1577
    %1579 = vmatprep.subr.mxu0 0.0
    %v1580 = vand.u32 %v45, 4294901760
    %v1581 = vsub.f32 %v45, %v1580
    %1582 = vmatpush1.msra.mxu0 %v1581
    %1583 = vmatprep.subr.mxu0 0.0
    %v1584 = vand.u32 %v44, 4294901760
    %v1585 = vsub.f32 %v44, %v1584
    %1586 = vmatpush1.msra.mxu0 %v1585
    %1587 = vmatprep.subr.mxu0 0.0
    %v1588 = vand.u32 %v43, 4294901760
    %v1589 = vsub.f32 %v43, %v1588
    %1590 = vmatpush1.msra.mxu0 %v1589
    %1591 = vmatprep.subr.mxu0 0.0
    %v1592 = vand.u32 %v42, 4294901760
    %v1593 = vsub.f32 %v42, %v1592
    %1594 = vmatpush1.msra.mxu0 %v1593
    %1595 = vmatprep.subr.mxu0 0.0
    %1596 = vmatpush2.msra.mxu0 0.0
    %1597 = vmatprep.subr.mxu0 0.0
    %1598 = vmatpush2.msra.mxu0 0.0
    %1599 = vmatprep.subr.mxu0 0.0
    %1600 = vmatpush2.msra.mxu0 0.0
    %1601 = vmatprep.subr.mxu0 0.0
    %1602 = vmatpush2.msra.mxu0 0.0
    %1603 = vmatprep.subr.mxu0 0.0
    %1604 = vmatpush2.msra.mxu0 0.0
    %1605 = vmatprep.subr.mxu0 0.0
    %1606 = vmatpush2.msra.mxu0 0.0
    %1607 = vmatprep.subr.mxu0 0.0
    %1608 = vmatpush2.msra.mxu0 0.0
    %1609 = vmatprep.subr.mxu0 0.0
    %1610 = vmatpush2.msra.mxu0 0.0
    %1611 = vmatprep.subr.mxu0 0.0
    %1612 = vmatpush2.msra.mxu0 0.0
    %1613 = vmatprep.subr.mxu0 0.0
    %1614 = vmatpush2.msra.mxu0 0.0
    %1615 = vmatprep.subr.mxu0 0.0
    %1616 = vmatpush2.msra.mxu0 0.0
    %1617 = vmatprep.subr.mxu0 0.0
    %1618 = vmatpush2.msra.mxu0 0.0
    %1619 = vmatprep.subr.mxu0 0.0
    %1620 = vmatpush2.msra.mxu0 0.0
    %1621 = vmatprep.subr.mxu0 0.0
    %1622 = vmatpush2.msra.mxu0 0.0
    %1623 = vmatprep.subr.mxu0 0.0
    %1624 = vmatpush2.msra.mxu0 0.0
    %1625 = vmatprep.subr.mxu0 0.0
    %1626 = vmatpush2.msra.mxu0 0.0
    %1627 = vmatprep.mubr.f32.mxu0 0.0
    %v1628 = vand.u32 %v1351, 4294901760
    %v1629 = vsub.f32 %v1351, %v1628
    %1630 = vmatmul.mubr.f32.gmra.mxu0 %v1629
    %v1631 = vpop.f32.mrf.mxu0
    %v1632 = vadd.f32 %v1544, %v1631
    %v1633 = vpop.f32.mrf.mxu0
    %1634 = vdwg.mxu0
    %1635 = vmatprep.subr.mxu0 0.0
    %1636 = vmatpush1.msra.mxu0 0.0
    %1637 = vmatprep.subr.mxu0 0.0
    %1638 = vmatpush1.msra.mxu0 0.0
    %1639 = vmatprep.subr.mxu0 0.0
    %1640 = vmatpush1.msra.mxu0 0.0
    %1641 = vmatprep.subr.mxu0 0.0
    %1642 = vmatpush1.msra.mxu0 0.0
    %1643 = vmatprep.subr.mxu0 0.0
    %1644 = vmatpush1.msra.mxu0 0.0
    %1645 = vmatprep.subr.mxu0 0.0
    %1646 = vmatpush1.msra.mxu0 0.0
    %1647 = vmatprep.subr.mxu0 0.0
    %1648 = vmatpush1.msra.mxu0 0.0
    %1649 = vmatprep.subr.mxu0 0.0
    %1650 = vmatpush1.msra.mxu0 0.0
    %1651 = vmatprep.subr.mxu0 0.0
    %v1652 = vand.u32 %v49, 4294901760
    %1653 = vmatpush1.msra.mxu0 %v1652
    %1654 = vmatprep.subr.mxu0 0.0
    %v1655 = vand.u32 %v48, 4294901760
    %1656 = vmatpush1.msra.mxu0 %v1655
    %1657 = vmatprep.subr.mxu0 0.0
    %v1658 = vand.u32 %v47, 4294901760
    %1659 = vmatpush1.msra.mxu0 %v1658
    %1660 = vmatprep.subr.mxu0 0.0
    %v1661 = vand.u32 %v46, 4294901760
    %1662 = vmatpush1.msra.mxu0 %v1661
    %1663 = vmatprep.subr.mxu0 0.0
    %v1664 = vand.u32 %v45, 4294901760
    %1665 = vmatpush1.msra.mxu0 %v1664
    %1666 = vmatprep.subr.mxu0 0.0
    %v1667 = vand.u32 %v44, 4294901760
    %1668 = vmatpush1.msra.mxu0 %v1667
    %1669 = vmatprep.subr.mxu0 0.0
    %v1670 = vand.u32 %v43, 4294901760
    %1671 = vmatpush1.msra.mxu0 %v1670
    %1672 = vmatprep.subr.mxu0 0.0
    %v1673 = vand.u32 %v42, 4294901760
    %1674 = vmatpush1.msra.mxu0 %v1673
    %1675 = vmatprep.subr.mxu0 0.0
    %1676 = vmatpush2.msra.mxu0 0.0
    %1677 = vmatprep.subr.mxu0 0.0
    %1678 = vmatpush2.msra.mxu0 0.0
    %1679 = vmatprep.subr.mxu0 0.0
    %1680 = vmatpush2.msra.mxu0 0.0
    %1681 = vmatprep.subr.mxu0 0.0
    %1682 = vmatpush2.msra.mxu0 0.0
    %1683 = vmatprep.subr.mxu0 0.0
    %1684 = vmatpush2.msra.mxu0 0.0
    %1685 = vmatprep.subr.mxu0 0.0
    %1686 = vmatpush2.msra.mxu0 0.0
    %1687 = vmatprep.subr.mxu0 0.0
    %1688 = vmatpush2.msra.mxu0 0.0
    %1689 = vmatprep.subr.mxu0 0.0
    %1690 = vmatpush2.msra.mxu0 0.0
    %1691 = vmatprep.subr.mxu0 0.0
    %1692 = vmatpush2.msra.mxu0 0.0
    %1693 = vmatprep.subr.mxu0 0.0
    %1694 = vmatpush2.msra.mxu0 0.0
    %1695 = vmatprep.subr.mxu0 0.0
    %1696 = vmatpush2.msra.mxu0 0.0
    %1697 = vmatprep.subr.mxu0 0.0
    %1698 = vmatpush2.msra.mxu0 0.0
    %1699 = vmatprep.subr.mxu0 0.0
    %1700 = vmatpush2.msra.mxu0 0.0
    %1701 = vmatprep.subr.mxu0 0.0
    %1702 = vmatpush2.msra.mxu0 0.0
    %1703 = vmatprep.subr.mxu0 0.0
    %1704 = vmatpush2.msra.mxu0 0.0
    %1705 = vmatprep.subr.mxu0 0.0
    %1706 = vmatpush2.msra.mxu0 0.0
    %1707 = vmatprep.mubr.f32.mxu0 0.0
    %v1708 = vand.u32 %v1351, 4294901760
    %v1709 = vsub.f32 %v1351, %v1708
    %v1710 = vand.u32 %v1709, 4294901760
    %1711 = vmatmul.mubr.f32.gmra.mxu0 %v1710
    %v1712 = vpop.f32.mrf.mxu0
    %v1713 = vadd.f32 %v1632, %v1712
    %v1714 = vpop.f32.mrf.mxu0
    %1715 = vdwg.mxu0
    %1716 = vmatprep.subr.mxu0 0.0
    %1717 = vmatpush1.msra.mxu0 0.0
    %1718 = vmatprep.subr.mxu0 0.0
    %1719 = vmatpush1.msra.mxu0 0.0
    %1720 = vmatprep.subr.mxu0 0.0
    %1721 = vmatpush1.msra.mxu0 0.0
    %1722 = vmatprep.subr.mxu0 0.0
    %1723 = vmatpush1.msra.mxu0 0.0
    %1724 = vmatprep.subr.mxu0 0.0
    %1725 = vmatpush1.msra.mxu0 0.0
    %1726 = vmatprep.subr.mxu0 0.0
    %1727 = vmatpush1.msra.mxu0 0.0
    %1728 = vmatprep.subr.mxu0 0.0
    %1729 = vmatpush1.msra.mxu0 0.0
    %1730 = vmatprep.subr.mxu0 0.0
    %1731 = vmatpush1.msra.mxu0 0.0
    %1732 = vmatprep.subr.mxu0 0.0
    %v1733 = vand.u32 %v49, 4294901760
    %v1734 = vsub.f32 %v49, %v1733
    %v1735 = vand.u32 %v1734, 4294901760
    %1736 = vmatpush1.msra.mxu0 %v1735
    %1737 = vmatprep.subr.mxu0 0.0
    %v1738 = vand.u32 %v48, 4294901760
    %v1739 = vsub.f32 %v48, %v1738
    %v1740 = vand.u32 %v1739, 4294901760
    %1741 = vmatpush1.msra.mxu0 %v1740
    %1742 = vmatprep.subr.mxu0 0.0
    %v1743 = vand.u32 %v47, 4294901760
    %v1744 = vsub.f32 %v47, %v1743
    %v1745 = vand.u32 %v1744, 4294901760
    %1746 = vmatpush1.msra.mxu0 %v1745
    %1747 = vmatprep.subr.mxu0 0.0
    %v1748 = vand.u32 %v46, 4294901760
    %v1749 = vsub.f32 %v46, %v1748
    %v1750 = vand.u32 %v1749, 4294901760
    %1751 = vmatpush1.msra.mxu0 %v1750
    %1752 = vmatprep.subr.mxu0 0.0
    %v1753 = vand.u32 %v45, 4294901760
    %v1754 = vsub.f32 %v45, %v1753
    %v1755 = vand.u32 %v1754, 4294901760
    %1756 = vmatpush1.msra.mxu0 %v1755
    %1757 = vmatprep.subr.mxu0 0.0
    %v1758 = vand.u32 %v44, 4294901760
    %v1759 = vsub.f32 %v44, %v1758
    %v1760 = vand.u32 %v1759, 4294901760
    %1761 = vmatpush1.msra.mxu0 %v1760
    %1762 = vmatprep.subr.mxu0 0.0
    %v1763 = vand.u32 %v43, 4294901760
    %v1764 = vsub.f32 %v43, %v1763
    %v1765 = vand.u32 %v1764, 4294901760
    %1766 = vmatpush1.msra.mxu0 %v1765
    %1767 = vmatprep.subr.mxu0 0.0
    %v1768 = vand.u32 %v42, 4294901760
    %v1769 = vsub.f32 %v42, %v1768
    %v1770 = vand.u32 %v1769, 4294901760
    %1771 = vmatpush1.msra.mxu0 %v1770
    %1772 = vmatprep.subr.mxu0 0.0
    %1773 = vmatpush2.msra.mxu0 0.0
    %1774 = vmatprep.subr.mxu0 0.0
    %1775 = vmatpush2.msra.mxu0 0.0
    %1776 = vmatprep.subr.mxu0 0.0
    %1777 = vmatpush2.msra.mxu0 0.0
    %1778 = vmatprep.subr.mxu0 0.0
    %1779 = vmatpush2.msra.mxu0 0.0
    %1780 = vmatprep.subr.mxu0 0.0
    %1781 = vmatpush2.msra.mxu0 0.0
    %1782 = vmatprep.subr.mxu0 0.0
    %1783 = vmatpush2.msra.mxu0 0.0
    %1784 = vmatprep.subr.mxu0 0.0
    %1785 = vmatpush2.msra.mxu0 0.0
    %1786 = vmatprep.subr.mxu0 0.0
    %1787 = vmatpush2.msra.mxu0 0.0
    %1788 = vmatprep.subr.mxu0 0.0
    %1789 = vmatpush2.msra.mxu0 0.0
    %1790 = vmatprep.subr.mxu0 0.0
    %1791 = vmatpush2.msra.mxu0 0.0
    %1792 = vmatprep.subr.mxu0 0.0
    %1793 = vmatpush2.msra.mxu0 0.0
    %1794 = vmatprep.subr.mxu0 0.0
    %1795 = vmatpush2.msra.mxu0 0.0
    %1796 = vmatprep.subr.mxu0 0.0
    %1797 = vmatpush2.msra.mxu0 0.0
    %1798 = vmatprep.subr.mxu0 0.0
    %1799 = vmatpush2.msra.mxu0 0.0
    %1800 = vmatprep.subr.mxu0 0.0
    %1801 = vmatpush2.msra.mxu0 0.0
    %1802 = vmatprep.subr.mxu0 0.0
    %1803 = vmatpush2.msra.mxu0 0.0
    %1804 = vmatprep.mubr.f32.mxu0 0.0
    %v1805 = vand.u32 %v1351, 4294901760
    %1806 = vmatmul.mubr.f32.gmra.mxu0 %v1805
    %v1807 = vpop.f32.mrf.mxu0
    %v1808 = vadd.f32 %v1713, %v1807
    %v1809 = vpop.f32.mrf.mxu0
    %1810 = vdwg.mxu0
    %1811 = vmatprep.subr.mxu0 0.0
    %1812 = vmatpush1.msra.mxu0 0.0
    %1813 = vmatprep.subr.mxu0 0.0
    %1814 = vmatpush1.msra.mxu0 0.0
    %1815 = vmatprep.subr.mxu0 0.0
    %1816 = vmatpush1.msra.mxu0 0.0
    %1817 = vmatprep.subr.mxu0 0.0
    %1818 = vmatpush1.msra.mxu0 0.0
    %1819 = vmatprep.subr.mxu0 0.0
    %1820 = vmatpush1.msra.mxu0 0.0
    %1821 = vmatprep.subr.mxu0 0.0
    %1822 = vmatpush1.msra.mxu0 0.0
    %1823 = vmatprep.subr.mxu0 0.0
    %1824 = vmatpush1.msra.mxu0 0.0
    %1825 = vmatprep.subr.mxu0 0.0
    %1826 = vmatpush1.msra.mxu0 0.0
    %1827 = vmatprep.subr.mxu0 0.0
    %v1828 = vand.u32 %v49, 4294901760
    %1829 = vmatpush1.msra.mxu0 %v1828
    %1830 = vmatprep.subr.mxu0 0.0
    %v1831 = vand.u32 %v48, 4294901760
    %1832 = vmatpush1.msra.mxu0 %v1831
    %1833 = vmatprep.subr.mxu0 0.0
    %v1834 = vand.u32 %v47, 4294901760
    %1835 = vmatpush1.msra.mxu0 %v1834
    %1836 = vmatprep.subr.mxu0 0.0
    %v1837 = vand.u32 %v46, 4294901760
    %1838 = vmatpush1.msra.mxu0 %v1837
    %1839 = vmatprep.subr.mxu0 0.0
    %v1840 = vand.u32 %v45, 4294901760
    %1841 = vmatpush1.msra.mxu0 %v1840
    %1842 = vmatprep.subr.mxu0 0.0
    %v1843 = vand.u32 %v44, 4294901760
    %1844 = vmatpush1.msra.mxu0 %v1843
    %1845 = vmatprep.subr.mxu0 0.0
    %v1846 = vand.u32 %v43, 4294901760
    %1847 = vmatpush1.msra.mxu0 %v1846
    %1848 = vmatprep.subr.mxu0 0.0
    %v1849 = vand.u32 %v42, 4294901760
    %1850 = vmatpush1.msra.mxu0 %v1849
    %1851 = vmatprep.subr.mxu0 0.0
    %1852 = vmatpush2.msra.mxu0 0.0
    %1853 = vmatprep.subr.mxu0 0.0
    %1854 = vmatpush2.msra.mxu0 0.0
    %1855 = vmatprep.subr.mxu0 0.0
    %1856 = vmatpush2.msra.mxu0 0.0
    %1857 = vmatprep.subr.mxu0 0.0
    %1858 = vmatpush2.msra.mxu0 0.0
    %1859 = vmatprep.subr.mxu0 0.0
    %1860 = vmatpush2.msra.mxu0 0.0
    %1861 = vmatprep.subr.mxu0 0.0
    %1862 = vmatpush2.msra.mxu0 0.0
    %1863 = vmatprep.subr.mxu0 0.0
    %1864 = vmatpush2.msra.mxu0 0.0
    %1865 = vmatprep.subr.mxu0 0.0
    %1866 = vmatpush2.msra.mxu0 0.0
    %1867 = vmatprep.subr.mxu0 0.0
    %1868 = vmatpush2.msra.mxu0 0.0
    %1869 = vmatprep.subr.mxu0 0.0
    %1870 = vmatpush2.msra.mxu0 0.0
    %1871 = vmatprep.subr.mxu0 0.0
    %1872 = vmatpush2.msra.mxu0 0.0
    %1873 = vmatprep.subr.mxu0 0.0
    %1874 = vmatpush2.msra.mxu0 0.0
    %1875 = vmatprep.subr.mxu0 0.0
    %1876 = vmatpush2.msra.mxu0 0.0
    %1877 = vmatprep.subr.mxu0 0.0
    %1878 = vmatpush2.msra.mxu0 0.0
    %1879 = vmatprep.subr.mxu0 0.0
    %1880 = vmatpush2.msra.mxu0 0.0
    %1881 = vmatprep.subr.mxu0 0.0
    %1882 = vmatpush2.msra.mxu0 0.0
    %1883 = vmatprep.mubr.f32.mxu0 0.0
    %v1884 = vand.u32 %v1351, 4294901760
    %1885 = vmatmul.mubr.f32.gmra.mxu0 %v1884
    %v1886 = vpop.f32.mrf.mxu0
    %v1887 = vadd.f32 %v1808, %v1886
    %v1888 = vpop.f32.mrf.mxu0
    %1889 = vdwg.mxu0
    %v1890 = vtanh.pop %v1887
    %v1892 = vsel %vm853, %v1343, 0
    %1894 = vmatprep.subr.mxu0 0.0
    %1895 = vmatpush1.msra.mxu0 0.0
    %1896 = vmatprep.subr.mxu0 0.0
    %1897 = vmatpush1.msra.mxu0 0.0
    %1898 = vmatprep.subr.mxu0 0.0
    %1899 = vmatpush1.msra.mxu0 0.0
    %1900 = vmatprep.subr.mxu0 0.0
    %1901 = vmatpush1.msra.mxu0 0.0
    %1902 = vmatprep.subr.mxu0 0.0
    %1903 = vmatpush1.msra.mxu0 0.0
    %1904 = vmatprep.subr.mxu0 0.0
    %1905 = vmatpush1.msra.mxu0 0.0
    %1906 = vmatprep.subr.mxu0 0.0
    %1907 = vmatpush1.msra.mxu0 0.0
    %1908 = vmatprep.subr.mxu0 0.0
    %1909 = vmatpush1.msra.mxu0 0.0
    %1910 = vmatprep.subr.mxu0 0.0
    %1911 = vmatpush1.msra.mxu0 0.0
    %1912 = vmatprep.subr.mxu0 0.0
    %1913 = vmatpush1.msra.mxu0 0.0
    %1914 = vmatprep.subr.mxu0 0.0
    %1915 = vmatpush1.msra.mxu0 0.0
    %1916 = vmatprep.subr.mxu0 0.0
    %1917 = vmatpush1.msra.mxu0 0.0
    %1918 = vmatprep.subr.mxu0 0.0
    %v1919 = vand.u32 %v41, 4294901760
    %1920 = vmatpush1.msra.mxu0 %v1919
    %1921 = vmatprep.subr.mxu0 0.0
    %v1922 = vand.u32 %v40, 4294901760
    %1923 = vmatpush1.msra.mxu0 %v1922
    %1924 = vmatprep.subr.mxu0 0.0
    %v1925 = vand.u32 %v39, 4294901760
    %1926 = vmatpush1.msra.mxu0 %v1925
    %1927 = vmatprep.subr.mxu0 0.0
    %v1928 = vand.u32 %v38, 4294901760
    %1929 = vmatpush1.msra.mxu0 %v1928
    %1930 = vmatprep.subr.mxu0 0.0
    %1931 = vmatpush2.msra.mxu0 0.0
    %1932 = vmatprep.subr.mxu0 0.0
    %1933 = vmatpush2.msra.mxu0 0.0
    %1934 = vmatprep.subr.mxu0 0.0
    %1935 = vmatpush2.msra.mxu0 0.0
    %1936 = vmatprep.subr.mxu0 0.0
    %1937 = vmatpush2.msra.mxu0 0.0
    %1938 = vmatprep.subr.mxu0 0.0
    %1939 = vmatpush2.msra.mxu0 0.0
    %1940 = vmatprep.subr.mxu0 0.0
    %1941 = vmatpush2.msra.mxu0 0.0
    %1942 = vmatprep.subr.mxu0 0.0
    %1943 = vmatpush2.msra.mxu0 0.0
    %1944 = vmatprep.subr.mxu0 0.0
    %1945 = vmatpush2.msra.mxu0 0.0
    %1946 = vmatprep.subr.mxu0 0.0
    %1947 = vmatpush2.msra.mxu0 0.0
    %1948 = vmatprep.subr.mxu0 0.0
    %1949 = vmatpush2.msra.mxu0 0.0
    %1950 = vmatprep.subr.mxu0 0.0
    %1951 = vmatpush2.msra.mxu0 0.0
    %1952 = vmatprep.subr.mxu0 0.0
    %1953 = vmatpush2.msra.mxu0 0.0
    %1954 = vmatprep.subr.mxu0 0.0
    %1955 = vmatpush2.msra.mxu0 0.0
    %1956 = vmatprep.subr.mxu0 0.0
    %1957 = vmatpush2.msra.mxu0 0.0
    %1958 = vmatprep.subr.mxu0 0.0
    %1959 = vmatpush2.msra.mxu0 0.0
    %1960 = vmatprep.subr.mxu0 0.0
    %1961 = vmatpush2.msra.mxu0 0.0
    %1962 = vmatprep.mubr.f32.mxu0 0.0
    %v1963 = vand.u32 %v1892, 4294901760
    %v1964 = vsub.f32 %v1892, %v1963
    %v1965 = vand.u32 %v1964, 4294901760
    %v1966 = vsub.f32 %v1964, %v1965
    %v1967 = vand.u32 %v1966, 4294901760
    %1968 = vmatmul.mubr.f32.gmra.mxu0 %v1967
    %v1969 = vpop.f32.mrf.mxu0
    %v1970 = vadd.f32 %v811, %v1969
    %v1971 = vpop.f32.mrf.mxu0
    %1972 = vdwg.mxu0
    %1973 = vmatprep.subr.mxu0 0.0
    %1974 = vmatpush1.msra.mxu0 0.0
    %1975 = vmatprep.subr.mxu0 0.0
    %1976 = vmatpush1.msra.mxu0 0.0
    %1977 = vmatprep.subr.mxu0 0.0
    %1978 = vmatpush1.msra.mxu0 0.0
    %1979 = vmatprep.subr.mxu0 0.0
    %1980 = vmatpush1.msra.mxu0 0.0
    %1981 = vmatprep.subr.mxu0 0.0
    %1982 = vmatpush1.msra.mxu0 0.0
    %1983 = vmatprep.subr.mxu0 0.0
    %1984 = vmatpush1.msra.mxu0 0.0
    %1985 = vmatprep.subr.mxu0 0.0
    %1986 = vmatpush1.msra.mxu0 0.0
    %1987 = vmatprep.subr.mxu0 0.0
    %1988 = vmatpush1.msra.mxu0 0.0
    %1989 = vmatprep.subr.mxu0 0.0
    %1990 = vmatpush1.msra.mxu0 0.0
    %1991 = vmatprep.subr.mxu0 0.0
    %1992 = vmatpush1.msra.mxu0 0.0
    %1993 = vmatprep.subr.mxu0 0.0
    %1994 = vmatpush1.msra.mxu0 0.0
    %1995 = vmatprep.subr.mxu0 0.0
    %1996 = vmatpush1.msra.mxu0 0.0
    %1997 = vmatprep.subr.mxu0 0.0
    %v1998 = vand.u32 %v41, 4294901760
    %v1999 = vsub.f32 %v41, %v1998
    %v2000 = vand.u32 %v1999, 4294901760
    %v2001 = vsub.f32 %v1999, %v2000
    %v2002 = vand.u32 %v2001, 4294901760
    %2003 = vmatpush1.msra.mxu0 %v2002
    %2004 = vmatprep.subr.mxu0 0.0
    %v2005 = vand.u32 %v40, 4294901760
    %v2006 = vsub.f32 %v40, %v2005
    %v2007 = vand.u32 %v2006, 4294901760
    %v2008 = vsub.f32 %v2006, %v2007
    %v2009 = vand.u32 %v2008, 4294901760
    %2010 = vmatpush1.msra.mxu0 %v2009
    %2011 = vmatprep.subr.mxu0 0.0
    %v2012 = vand.u32 %v39, 4294901760
    %v2013 = vsub.f32 %v39, %v2012
    %v2014 = vand.u32 %v2013, 4294901760
    %v2015 = vsub.f32 %v2013, %v2014
    %v2016 = vand.u32 %v2015, 4294901760
    %2017 = vmatpush1.msra.mxu0 %v2016
    %2018 = vmatprep.subr.mxu0 0.0
    %v2019 = vand.u32 %v38, 4294901760
    %v2020 = vsub.f32 %v38, %v2019
    %v2021 = vand.u32 %v2020, 4294901760
    %v2022 = vsub.f32 %v2020, %v2021
    %v2023 = vand.u32 %v2022, 4294901760
    %2024 = vmatpush1.msra.mxu0 %v2023
    %2025 = vmatprep.subr.mxu0 0.0
    %2026 = vmatpush2.msra.mxu0 0.0
    %2027 = vmatprep.subr.mxu0 0.0
    %2028 = vmatpush2.msra.mxu0 0.0
    %2029 = vmatprep.subr.mxu0 0.0
    %2030 = vmatpush2.msra.mxu0 0.0
    %2031 = vmatprep.subr.mxu0 0.0
    %2032 = vmatpush2.msra.mxu0 0.0
    %2033 = vmatprep.subr.mxu0 0.0
    %2034 = vmatpush2.msra.mxu0 0.0
    %2035 = vmatprep.subr.mxu0 0.0
    %2036 = vmatpush2.msra.mxu0 0.0
    %2037 = vmatprep.subr.mxu0 0.0
    %2038 = vmatpush2.msra.mxu0 0.0
    %2039 = vmatprep.subr.mxu0 0.0
    %2040 = vmatpush2.msra.mxu0 0.0
    %2041 = vmatprep.subr.mxu0 0.0
    %2042 = vmatpush2.msra.mxu0 0.0
    %2043 = vmatprep.subr.mxu0 0.0
    %2044 = vmatpush2.msra.mxu0 0.0
    %2045 = vmatprep.subr.mxu0 0.0
    %2046 = vmatpush2.msra.mxu0 0.0
    %2047 = vmatprep.subr.mxu0 0.0
    %2048 = vmatpush2.msra.mxu0 0.0
    %2049 = vmatprep.subr.mxu0 0.0
    %2050 = vmatpush2.msra.mxu0 0.0
    %2051 = vmatprep.subr.mxu0 0.0
    %2052 = vmatpush2.msra.mxu0 0.0
    %2053 = vmatprep.subr.mxu0 0.0
    %2054 = vmatpush2.msra.mxu0 0.0
    %2055 = vmatprep.subr.mxu0 0.0
    %2056 = vmatpush2.msra.mxu0 0.0
    %2057 = vmatprep.mubr.f32.mxu0 0.0
    %v2058 = vand.u32 %v1892, 4294901760
    %2059 = vmatmul.mubr.f32.gmra.mxu0 %v2058
    %v2060 = vpop.f32.mrf.mxu0
    %v2061 = vadd.f32 %v1970, %v2060
    %v2062 = vpop.f32.mrf.mxu0
    %2063 = vdwg.mxu0
    %2064 = vmatprep.subr.mxu0 0.0
    %2065 = vmatpush1.msra.mxu0 0.0
    %2066 = vmatprep.subr.mxu0 0.0
    %2067 = vmatpush1.msra.mxu0 0.0
    %2068 = vmatprep.subr.mxu0 0.0
    %2069 = vmatpush1.msra.mxu0 0.0
    %2070 = vmatprep.subr.mxu0 0.0
    %2071 = vmatpush1.msra.mxu0 0.0
    %2072 = vmatprep.subr.mxu0 0.0
    %2073 = vmatpush1.msra.mxu0 0.0
    %2074 = vmatprep.subr.mxu0 0.0
    %2075 = vmatpush1.msra.mxu0 0.0
    %2076 = vmatprep.subr.mxu0 0.0
    %2077 = vmatpush1.msra.mxu0 0.0
    %2078 = vmatprep.subr.mxu0 0.0
    %2079 = vmatpush1.msra.mxu0 0.0
    %2080 = vmatprep.subr.mxu0 0.0
    %2081 = vmatpush1.msra.mxu0 0.0
    %2082 = vmatprep.subr.mxu0 0.0
    %2083 = vmatpush1.msra.mxu0 0.0
    %2084 = vmatprep.subr.mxu0 0.0
    %2085 = vmatpush1.msra.mxu0 0.0
    %2086 = vmatprep.subr.mxu0 0.0
    %2087 = vmatpush1.msra.mxu0 0.0
    %2088 = vmatprep.subr.mxu0 0.0
    %v2089 = vand.u32 %v41, 4294901760
    %v2090 = vsub.f32 %v41, %v2089
    %2091 = vmatpush1.msra.mxu0 %v2090
    %2092 = vmatprep.subr.mxu0 0.0
    %v2093 = vand.u32 %v40, 4294901760
    %v2094 = vsub.f32 %v40, %v2093
    %2095 = vmatpush1.msra.mxu0 %v2094
    %2096 = vmatprep.subr.mxu0 0.0
    %v2097 = vand.u32 %v39, 4294901760
    %v2098 = vsub.f32 %v39, %v2097
    %2099 = vmatpush1.msra.mxu0 %v2098
    %2100 = vmatprep.subr.mxu0 0.0
    %v2101 = vand.u32 %v38, 4294901760
    %v2102 = vsub.f32 %v38, %v2101
    %2103 = vmatpush1.msra.mxu0 %v2102
    %2104 = vmatprep.subr.mxu0 0.0
    %2105 = vmatpush2.msra.mxu0 0.0
    %2106 = vmatprep.subr.mxu0 0.0
    %2107 = vmatpush2.msra.mxu0 0.0
    %2108 = vmatprep.subr.mxu0 0.0
    %2109 = vmatpush2.msra.mxu0 0.0
    %2110 = vmatprep.subr.mxu0 0.0
    %2111 = vmatpush2.msra.mxu0 0.0
    %2112 = vmatprep.subr.mxu0 0.0
    %2113 = vmatpush2.msra.mxu0 0.0
    %2114 = vmatprep.subr.mxu0 0.0
    %2115 = vmatpush2.msra.mxu0 0.0
    %2116 = vmatprep.subr.mxu0 0.0
    %2117 = vmatpush2.msra.mxu0 0.0
    %2118 = vmatprep.subr.mxu0 0.0
    %2119 = vmatpush2.msra.mxu0 0.0
    %2120 = vmatprep.subr.mxu0 0.0
    %2121 = vmatpush2.msra.mxu0 0.0
    %2122 = vmatprep.subr.mxu0 0.0
    %2123 = vmatpush2.msra.mxu0 0.0
    %2124 = vmatprep.subr.mxu0 0.0
    %2125 = vmatpush2.msra.mxu0 0.0
    %2126 = vmatprep.subr.mxu0 0.0
    %2127 = vmatpush2.msra.mxu0 0.0
    %2128 = vmatprep.subr.mxu0 0.0
    %2129 = vmatpush2.msra.mxu0 0.0
    %2130 = vmatprep.subr.mxu0 0.0
    %2131 = vmatpush2.msra.mxu0 0.0
    %2132 = vmatprep.subr.mxu0 0.0
    %2133 = vmatpush2.msra.mxu0 0.0
    %2134 = vmatprep.subr.mxu0 0.0
    %2135 = vmatpush2.msra.mxu0 0.0
    %2136 = vmatprep.mubr.f32.mxu0 0.0
    %v2137 = vand.u32 %v1892, 4294901760
    %v2138 = vsub.f32 %v1892, %v2137
    %2139 = vmatmul.mubr.f32.gmra.mxu0 %v2138
    %v2140 = vpop.f32.mrf.mxu0
    %v2141 = vadd.f32 %v2061, %v2140
    %v2142 = vpop.f32.mrf.mxu0
    %2143 = vdwg.mxu0
    %2144 = vmatprep.subr.mxu0 0.0
    %2145 = vmatpush1.msra.mxu0 0.0
    %2146 = vmatprep.subr.mxu0 0.0
    %2147 = vmatpush1.msra.mxu0 0.0
    %2148 = vmatprep.subr.mxu0 0.0
    %2149 = vmatpush1.msra.mxu0 0.0
    %2150 = vmatprep.subr.mxu0 0.0
    %2151 = vmatpush1.msra.mxu0 0.0
    %2152 = vmatprep.subr.mxu0 0.0
    %2153 = vmatpush1.msra.mxu0 0.0
    %2154 = vmatprep.subr.mxu0 0.0
    %2155 = vmatpush1.msra.mxu0 0.0
    %2156 = vmatprep.subr.mxu0 0.0
    %2157 = vmatpush1.msra.mxu0 0.0
    %2158 = vmatprep.subr.mxu0 0.0
    %2159 = vmatpush1.msra.mxu0 0.0
    %2160 = vmatprep.subr.mxu0 0.0
    %2161 = vmatpush1.msra.mxu0 0.0
    %2162 = vmatprep.subr.mxu0 0.0
    %2163 = vmatpush1.msra.mxu0 0.0
    %2164 = vmatprep.subr.mxu0 0.0
    %2165 = vmatpush1.msra.mxu0 0.0
    %2166 = vmatprep.subr.mxu0 0.0
    %2167 = vmatpush1.msra.mxu0 0.0
    %2168 = vmatprep.subr.mxu0 0.0
    %v2169 = vand.u32 %v41, 4294901760
    %2170 = vmatpush1.msra.mxu0 %v2169
    %2171 = vmatprep.subr.mxu0 0.0
    %v2172 = vand.u32 %v40, 4294901760
    %2173 = vmatpush1.msra.mxu0 %v2172
    %2174 = vmatprep.subr.mxu0 0.0
    %v2175 = vand.u32 %v39, 4294901760
    %2176 = vmatpush1.msra.mxu0 %v2175
    %2177 = vmatprep.subr.mxu0 0.0
    %v2178 = vand.u32 %v38, 4294901760
    %2179 = vmatpush1.msra.mxu0 %v2178
    %2180 = vmatprep.subr.mxu0 0.0
    %2181 = vmatpush2.msra.mxu0 0.0
    %2182 = vmatprep.subr.mxu0 0.0
    %2183 = vmatpush2.msra.mxu0 0.0
    %2184 = vmatprep.subr.mxu0 0.0
    %2185 = vmatpush2.msra.mxu0 0.0
    %2186 = vmatprep.subr.mxu0 0.0
    %2187 = vmatpush2.msra.mxu0 0.0
    %2188 = vmatprep.subr.mxu0 0.0
    %2189 = vmatpush2.msra.mxu0 0.0
    %2190 = vmatprep.subr.mxu0 0.0
    %2191 = vmatpush2.msra.mxu0 0.0
    %2192 = vmatprep.subr.mxu0 0.0
    %2193 = vmatpush2.msra.mxu0 0.0
    %2194 = vmatprep.subr.mxu0 0.0
    %2195 = vmatpush2.msra.mxu0 0.0
    %2196 = vmatprep.subr.mxu0 0.0
    %2197 = vmatpush2.msra.mxu0 0.0
    %2198 = vmatprep.subr.mxu0 0.0
    %2199 = vmatpush2.msra.mxu0 0.0
    %2200 = vmatprep.subr.mxu0 0.0
    %2201 = vmatpush2.msra.mxu0 0.0
    %2202 = vmatprep.subr.mxu0 0.0
    %2203 = vmatpush2.msra.mxu0 0.0
    %2204 = vmatprep.subr.mxu0 0.0
    %2205 = vmatpush2.msra.mxu0 0.0
    %2206 = vmatprep.subr.mxu0 0.0
    %2207 = vmatpush2.msra.mxu0 0.0
    %2208 = vmatprep.subr.mxu0 0.0
    %2209 = vmatpush2.msra.mxu0 0.0
    %2210 = vmatprep.subr.mxu0 0.0
    %2211 = vmatpush2.msra.mxu0 0.0
    %2212 = vmatprep.mubr.f32.mxu0 0.0
    %v2213 = vand.u32 %v1892, 4294901760
    %v2214 = vsub.f32 %v1892, %v2213
    %v2215 = vand.u32 %v2214, 4294901760
    %2216 = vmatmul.mubr.f32.gmra.mxu0 %v2215
    %v2217 = vpop.f32.mrf.mxu0
    %v2218 = vadd.f32 %v2141, %v2217
    %v2219 = vpop.f32.mrf.mxu0
    %2220 = vdwg.mxu0
    %2221 = vmatprep.subr.mxu0 0.0
    %2222 = vmatpush1.msra.mxu0 0.0
    %2223 = vmatprep.subr.mxu0 0.0
    %2224 = vmatpush1.msra.mxu0 0.0
    %2225 = vmatprep.subr.mxu0 0.0
    %2226 = vmatpush1.msra.mxu0 0.0
    %2227 = vmatprep.subr.mxu0 0.0
    %2228 = vmatpush1.msra.mxu0 0.0
    %2229 = vmatprep.subr.mxu0 0.0
    %2230 = vmatpush1.msra.mxu0 0.0
    %2231 = vmatprep.subr.mxu0 0.0
    %2232 = vmatpush1.msra.mxu0 0.0
    %2233 = vmatprep.subr.mxu0 0.0
    %2234 = vmatpush1.msra.mxu0 0.0
    %2235 = vmatprep.subr.mxu0 0.0
    %2236 = vmatpush1.msra.mxu0 0.0
    %2237 = vmatprep.subr.mxu0 0.0
    %2238 = vmatpush1.msra.mxu0 0.0
    %2239 = vmatprep.subr.mxu0 0.0
    %2240 = vmatpush1.msra.mxu0 0.0
    %2241 = vmatprep.subr.mxu0 0.0
    %2242 = vmatpush1.msra.mxu0 0.0
    %2243 = vmatprep.subr.mxu0 0.0
    %2244 = vmatpush1.msra.mxu0 0.0
    %2245 = vmatprep.subr.mxu0 0.0
    %v2246 = vand.u32 %v41, 4294901760
    %v2247 = vsub.f32 %v41, %v2246
    %v2248 = vand.u32 %v2247, 4294901760
    %2249 = vmatpush1.msra.mxu0 %v2248
    %2250 = vmatprep.subr.mxu0 0.0
    %v2251 = vand.u32 %v40, 4294901760
    %v2252 = vsub.f32 %v40, %v2251
    %v2253 = vand.u32 %v2252, 4294901760
    %2254 = vmatpush1.msra.mxu0 %v2253
    %2255 = vmatprep.subr.mxu0 0.0
    %v2256 = vand.u32 %v39, 4294901760
    %v2257 = vsub.f32 %v39, %v2256
    %v2258 = vand.u32 %v2257, 4294901760
    %2259 = vmatpush1.msra.mxu0 %v2258
    %2260 = vmatprep.subr.mxu0 0.0
    %v2261 = vand.u32 %v38, 4294901760
    %v2262 = vsub.f32 %v38, %v2261
    %v2263 = vand.u32 %v2262, 4294901760
    %2264 = vmatpush1.msra.mxu0 %v2263
    %2265 = vmatprep.subr.mxu0 0.0
    %2266 = vmatpush2.msra.mxu0 0.0
    %2267 = vmatprep.subr.mxu0 0.0
    %2268 = vmatpush2.msra.mxu0 0.0
    %2269 = vmatprep.subr.mxu0 0.0
    %2270 = vmatpush2.msra.mxu0 0.0
    %2271 = vmatprep.subr.mxu0 0.0
    %2272 = vmatpush2.msra.mxu0 0.0
    %2273 = vmatprep.subr.mxu0 0.0
    %2274 = vmatpush2.msra.mxu0 0.0
    %2275 = vmatprep.subr.mxu0 0.0
    %2276 = vmatpush2.msra.mxu0 0.0
    %2277 = vmatprep.subr.mxu0 0.0
    %2278 = vmatpush2.msra.mxu0 0.0
    %2279 = vmatprep.subr.mxu0 0.0
    %2280 = vmatpush2.msra.mxu0 0.0
    %2281 = vmatprep.subr.mxu0 0.0
    %2282 = vmatpush2.msra.mxu0 0.0
    %2283 = vmatprep.subr.mxu0 0.0
    %2284 = vmatpush2.msra.mxu0 0.0
    %2285 = vmatprep.subr.mxu0 0.0
    %2286 = vmatpush2.msra.mxu0 0.0
    %2287 = vmatprep.subr.mxu0 0.0
    %2288 = vmatpush2.msra.mxu0 0.0
    %2289 = vmatprep.subr.mxu0 0.0
    %2290 = vmatpush2.msra.mxu0 0.0
    %2291 = vmatprep.subr.mxu0 0.0
    %2292 = vmatpush2.msra.mxu0 0.0
    %2293 = vmatprep.subr.mxu0 0.0
    %2294 = vmatpush2.msra.mxu0 0.0
    %2295 = vmatprep.subr.mxu0 0.0
    %2296 = vmatpush2.msra.mxu0 0.0
    %2297 = vmatprep.mubr.f32.mxu0 0.0
    %v2298 = vand.u32 %v1892, 4294901760
    %2299 = vmatmul.mubr.f32.gmra.mxu0 %v2298
    %v2300 = vpop.f32.mrf.mxu0
    %v2301 = vadd.f32 %v2218, %v2300
    %v2302 = vpop.f32.mrf.mxu0
    %2303 = vdwg.mxu0
    %2304 = vmatprep.subr.mxu0 0.0
    %2305 = vmatpush1.msra.mxu0 0.0
    %2306 = vmatprep.subr.mxu0 0.0
    %2307 = vmatpush1.msra.mxu0 0.0
    %2308 = vmatprep.subr.mxu0 0.0
    %2309 = vmatpush1.msra.mxu0 0.0
    %2310 = vmatprep.subr.mxu0 0.0
    %2311 = vmatpush1.msra.mxu0 0.0
    %2312 = vmatprep.subr.mxu0 0.0
    %2313 = vmatpush1.msra.mxu0 0.0
    %2314 = vmatprep.subr.mxu0 0.0
    %2315 = vmatpush1.msra.mxu0 0.0
    %2316 = vmatprep.subr.mxu0 0.0
    %2317 = vmatpush1.msra.mxu0 0.0
    %2318 = vmatprep.subr.mxu0 0.0
    %2319 = vmatpush1.msra.mxu0 0.0
    %2320 = vmatprep.subr.mxu0 0.0
    %2321 = vmatpush1.msra.mxu0 0.0
    %2322 = vmatprep.subr.mxu0 0.0
    %2323 = vmatpush1.msra.mxu0 0.0
    %2324 = vmatprep.subr.mxu0 0.0
    %2325 = vmatpush1.msra.mxu0 0.0
    %2326 = vmatprep.subr.mxu0 0.0
    %2327 = vmatpush1.msra.mxu0 0.0
    %2328 = vmatprep.subr.mxu0 0.0
    %v2329 = vand.u32 %v41, 4294901760
    %2330 = vmatpush1.msra.mxu0 %v2329
    %2331 = vmatprep.subr.mxu0 0.0
    %v2332 = vand.u32 %v40, 4294901760
    %2333 = vmatpush1.msra.mxu0 %v2332
    %2334 = vmatprep.subr.mxu0 0.0
    %v2335 = vand.u32 %v39, 4294901760
    %2336 = vmatpush1.msra.mxu0 %v2335
    %2337 = vmatprep.subr.mxu0 0.0
    %v2338 = vand.u32 %v38, 4294901760
    %2339 = vmatpush1.msra.mxu0 %v2338
    %2340 = vmatprep.subr.mxu0 0.0
    %2341 = vmatpush2.msra.mxu0 0.0
    %2342 = vmatprep.subr.mxu0 0.0
    %2343 = vmatpush2.msra.mxu0 0.0
    %2344 = vmatprep.subr.mxu0 0.0
    %2345 = vmatpush2.msra.mxu0 0.0
    %2346 = vmatprep.subr.mxu0 0.0
    %2347 = vmatpush2.msra.mxu0 0.0
    %2348 = vmatprep.subr.mxu0 0.0
    %2349 = vmatpush2.msra.mxu0 0.0
    %2350 = vmatprep.subr.mxu0 0.0
    %2351 = vmatpush2.msra.mxu0 0.0
    %2352 = vmatprep.subr.mxu0 0.0
    %2353 = vmatpush2.msra.mxu0 0.0
    %2354 = vmatprep.subr.mxu0 0.0
    %2355 = vmatpush2.msra.mxu0 0.0
    %2356 = vmatprep.subr.mxu0 0.0
    %2357 = vmatpush2.msra.mxu0 0.0
    %2358 = vmatprep.subr.mxu0 0.0
    %2359 = vmatpush2.msra.mxu0 0.0
    %2360 = vmatprep.subr.mxu0 0.0
    %2361 = vmatpush2.msra.mxu0 0.0
    %2362 = vmatprep.subr.mxu0 0.0
    %2363 = vmatpush2.msra.mxu0 0.0
    %2364 = vmatprep.subr.mxu0 0.0
    %2365 = vmatpush2.msra.mxu0 0.0
    %2366 = vmatprep.subr.mxu0 0.0
    %2367 = vmatpush2.msra.mxu0 0.0
    %2368 = vmatprep.subr.mxu0 0.0
    %2369 = vmatpush2.msra.mxu0 0.0
    %2370 = vmatprep.subr.mxu0 0.0
    %2371 = vmatpush2.msra.mxu0 0.0
    %2372 = vmatprep.mubr.f32.mxu0 0.0
    %v2373 = vand.u32 %v1892, 4294901760
    %2374 = vmatmul.mubr.f32.gmra.mxu0 %v2373
    %v2375 = vpop.f32.mrf.mxu0
    %v2376 = vadd.f32 %v2301, %v2375
    %v2377 = vpop.f32.mrf.mxu0
    %2378 = vdwg.mxu0
    %v2379 = vadd.f32 %v2376, %v55
    %v2380 = vtanh.pop %v2379
    %2382 = vrot.lane.b32.xlu0 %v1890, 32
    %v2383 = vpop.permute.xlu0 %2382
    %v2385 = vsel %vm853, %v2380, %v2383
    %v2387 = vsel %vm1349, %v2385, 0
    %2389 = vmatprep.subr.mxu0 0.0
    %2390 = vmatpush1.msra.mxu0 0.0
    %2391 = vmatprep.subr.mxu0 0.0
    %2392 = vmatpush1.msra.mxu0 0.0
    %2393 = vmatprep.subr.mxu0 0.0
    %2394 = vmatpush1.msra.mxu0 0.0
    %2395 = vmatprep.subr.mxu0 0.0
    %2396 = vmatpush1.msra.mxu0 0.0
    %2397 = vmatprep.subr.mxu0 0.0
    %2398 = vmatpush1.msra.mxu0 0.0
    %2399 = vmatprep.subr.mxu0 0.0
    %2400 = vmatpush1.msra.mxu0 0.0
    %2401 = vmatprep.subr.mxu0 0.0
    %2402 = vmatpush1.msra.mxu0 0.0
    %2403 = vmatprep.subr.mxu0 0.0
    %2404 = vmatpush1.msra.mxu0 0.0
    %2405 = vmatprep.subr.mxu0 0.0
    %v2406 = vand.u32 %v49, 4294901760
    %2407 = vmatpush1.msra.mxu0 %v2406
    %2408 = vmatprep.subr.mxu0 0.0
    %v2409 = vand.u32 %v48, 4294901760
    %2410 = vmatpush1.msra.mxu0 %v2409
    %2411 = vmatprep.subr.mxu0 0.0
    %v2412 = vand.u32 %v47, 4294901760
    %2413 = vmatpush1.msra.mxu0 %v2412
    %2414 = vmatprep.subr.mxu0 0.0
    %v2415 = vand.u32 %v46, 4294901760
    %2416 = vmatpush1.msra.mxu0 %v2415
    %2417 = vmatprep.subr.mxu0 0.0
    %v2418 = vand.u32 %v45, 4294901760
    %2419 = vmatpush1.msra.mxu0 %v2418
    %2420 = vmatprep.subr.mxu0 0.0
    %v2421 = vand.u32 %v44, 4294901760
    %2422 = vmatpush1.msra.mxu0 %v2421
    %2423 = vmatprep.subr.mxu0 0.0
    %v2424 = vand.u32 %v43, 4294901760
    %2425 = vmatpush1.msra.mxu0 %v2424
    %2426 = vmatprep.subr.mxu0 0.0
    %v2427 = vand.u32 %v42, 4294901760
    %2428 = vmatpush1.msra.mxu0 %v2427
    %2429 = vmatprep.subr.mxu0 0.0
    %2430 = vmatpush2.msra.mxu0 0.0
    %2431 = vmatprep.subr.mxu0 0.0
    %2432 = vmatpush2.msra.mxu0 0.0
    %2433 = vmatprep.subr.mxu0 0.0
    %2434 = vmatpush2.msra.mxu0 0.0
    %2435 = vmatprep.subr.mxu0 0.0
    %2436 = vmatpush2.msra.mxu0 0.0
    %2437 = vmatprep.subr.mxu0 0.0
    %2438 = vmatpush2.msra.mxu0 0.0
    %2439 = vmatprep.subr.mxu0 0.0
    %2440 = vmatpush2.msra.mxu0 0.0
    %2441 = vmatprep.subr.mxu0 0.0
    %2442 = vmatpush2.msra.mxu0 0.0
    %2443 = vmatprep.subr.mxu0 0.0
    %2444 = vmatpush2.msra.mxu0 0.0
    %2445 = vmatprep.subr.mxu0 0.0
    %2446 = vmatpush2.msra.mxu0 0.0
    %2447 = vmatprep.subr.mxu0 0.0
    %2448 = vmatpush2.msra.mxu0 0.0
    %2449 = vmatprep.subr.mxu0 0.0
    %2450 = vmatpush2.msra.mxu0 0.0
    %2451 = vmatprep.subr.mxu0 0.0
    %2452 = vmatpush2.msra.mxu0 0.0
    %2453 = vmatprep.subr.mxu0 0.0
    %2454 = vmatpush2.msra.mxu0 0.0
    %2455 = vmatprep.subr.mxu0 0.0
    %2456 = vmatpush2.msra.mxu0 0.0
    %2457 = vmatprep.subr.mxu0 0.0
    %2458 = vmatpush2.msra.mxu0 0.0
    %2459 = vmatprep.subr.mxu0 0.0
    %2460 = vmatpush2.msra.mxu0 0.0
    %2461 = vmatprep.mubr.f32.mxu0 0.0
    %v2462 = vand.u32 %v2387, 4294901760
    %v2463 = vsub.f32 %v2387, %v2462
    %v2464 = vand.u32 %v2463, 4294901760
    %v2465 = vsub.f32 %v2463, %v2464
    %v2466 = vand.u32 %v2465, 4294901760
    %2467 = vmatmul.mubr.f32.gmra.mxu0 %v2466
    %v2468 = vpop.f32.mrf.mxu0
    %v2469 = vadd.f32 %v63, %v2468
    %v2470 = vpop.f32.mrf.mxu0
    %2471 = vdwg.mxu0
    %2472 = vmatprep.subr.mxu0 0.0
    %2473 = vmatpush1.msra.mxu0 0.0
    %2474 = vmatprep.subr.mxu0 0.0
    %2475 = vmatpush1.msra.mxu0 0.0
    %2476 = vmatprep.subr.mxu0 0.0
    %2477 = vmatpush1.msra.mxu0 0.0
    %2478 = vmatprep.subr.mxu0 0.0
    %2479 = vmatpush1.msra.mxu0 0.0
    %2480 = vmatprep.subr.mxu0 0.0
    %2481 = vmatpush1.msra.mxu0 0.0
    %2482 = vmatprep.subr.mxu0 0.0
    %2483 = vmatpush1.msra.mxu0 0.0
    %2484 = vmatprep.subr.mxu0 0.0
    %2485 = vmatpush1.msra.mxu0 0.0
    %2486 = vmatprep.subr.mxu0 0.0
    %2487 = vmatpush1.msra.mxu0 0.0
    %2488 = vmatprep.subr.mxu0 0.0
    %v2489 = vand.u32 %v49, 4294901760
    %v2490 = vsub.f32 %v49, %v2489
    %v2491 = vand.u32 %v2490, 4294901760
    %v2492 = vsub.f32 %v2490, %v2491
    %v2493 = vand.u32 %v2492, 4294901760
    %2494 = vmatpush1.msra.mxu0 %v2493
    %2495 = vmatprep.subr.mxu0 0.0
    %v2496 = vand.u32 %v48, 4294901760
    %v2497 = vsub.f32 %v48, %v2496
    %v2498 = vand.u32 %v2497, 4294901760
    %v2499 = vsub.f32 %v2497, %v2498
    %v2500 = vand.u32 %v2499, 4294901760
    %2501 = vmatpush1.msra.mxu0 %v2500
    %2502 = vmatprep.subr.mxu0 0.0
    %v2503 = vand.u32 %v47, 4294901760
    %v2504 = vsub.f32 %v47, %v2503
    %v2505 = vand.u32 %v2504, 4294901760
    %v2506 = vsub.f32 %v2504, %v2505
    %v2507 = vand.u32 %v2506, 4294901760
    %2508 = vmatpush1.msra.mxu0 %v2507
    %2509 = vmatprep.subr.mxu0 0.0
    %v2510 = vand.u32 %v46, 4294901760
    %v2511 = vsub.f32 %v46, %v2510
    %v2512 = vand.u32 %v2511, 4294901760
    %v2513 = vsub.f32 %v2511, %v2512
    %v2514 = vand.u32 %v2513, 4294901760
    %2515 = vmatpush1.msra.mxu0 %v2514
    %2516 = vmatprep.subr.mxu0 0.0
    %v2517 = vand.u32 %v45, 4294901760
    %v2518 = vsub.f32 %v45, %v2517
    %v2519 = vand.u32 %v2518, 4294901760
    %v2520 = vsub.f32 %v2518, %v2519
    %v2521 = vand.u32 %v2520, 4294901760
    %2522 = vmatpush1.msra.mxu0 %v2521
    %2523 = vmatprep.subr.mxu0 0.0
    %v2524 = vand.u32 %v44, 4294901760
    %v2525 = vsub.f32 %v44, %v2524
    %v2526 = vand.u32 %v2525, 4294901760
    %v2527 = vsub.f32 %v2525, %v2526
    %v2528 = vand.u32 %v2527, 4294901760
    %2529 = vmatpush1.msra.mxu0 %v2528
    %2530 = vmatprep.subr.mxu0 0.0
    %v2531 = vand.u32 %v43, 4294901760
    %v2532 = vsub.f32 %v43, %v2531
    %v2533 = vand.u32 %v2532, 4294901760
    %v2534 = vsub.f32 %v2532, %v2533
    %v2535 = vand.u32 %v2534, 4294901760
    %2536 = vmatpush1.msra.mxu0 %v2535
    %2537 = vmatprep.subr.mxu0 0.0
    %v2538 = vand.u32 %v42, 4294901760
    %v2539 = vsub.f32 %v42, %v2538
    %v2540 = vand.u32 %v2539, 4294901760
    %v2541 = vsub.f32 %v2539, %v2540
    %v2542 = vand.u32 %v2541, 4294901760
    %2543 = vmatpush1.msra.mxu0 %v2542
    %2544 = vmatprep.subr.mxu0 0.0
    %2545 = vmatpush2.msra.mxu0 0.0
    %2546 = vmatprep.subr.mxu0 0.0
    %2547 = vmatpush2.msra.mxu0 0.0
    %2548 = vmatprep.subr.mxu0 0.0
    %2549 = vmatpush2.msra.mxu0 0.0
    %2550 = vmatprep.subr.mxu0 0.0
    %2551 = vmatpush2.msra.mxu0 0.0
    %2552 = vmatprep.subr.mxu0 0.0
    %2553 = vmatpush2.msra.mxu0 0.0
    %2554 = vmatprep.subr.mxu0 0.0
    %2555 = vmatpush2.msra.mxu0 0.0
    %2556 = vmatprep.subr.mxu0 0.0
    %2557 = vmatpush2.msra.mxu0 0.0
    %2558 = vmatprep.subr.mxu0 0.0
    %2559 = vmatpush2.msra.mxu0 0.0
    %2560 = vmatprep.subr.mxu0 0.0
    %2561 = vmatpush2.msra.mxu0 0.0
    %2562 = vmatprep.subr.mxu0 0.0
    %2563 = vmatpush2.msra.mxu0 0.0
    %2564 = vmatprep.subr.mxu0 0.0
    %2565 = vmatpush2.msra.mxu0 0.0
    %2566 = vmatprep.subr.mxu0 0.0
    %2567 = vmatpush2.msra.mxu0 0.0
    %2568 = vmatprep.subr.mxu0 0.0
    %2569 = vmatpush2.msra.mxu0 0.0
    %2570 = vmatprep.subr.mxu0 0.0
    %2571 = vmatpush2.msra.mxu0 0.0
    %2572 = vmatprep.subr.mxu0 0.0
    %2573 = vmatpush2.msra.mxu0 0.0
    %2574 = vmatprep.subr.mxu0 0.0
    %2575 = vmatpush2.msra.mxu0 0.0
    %2576 = vmatprep.mubr.f32.mxu0 0.0
    %v2577 = vand.u32 %v2387, 4294901760
    %2578 = vmatmul.mubr.f32.gmra.mxu0 %v2577
    %v2579 = vpop.f32.mrf.mxu0
    %v2580 = vadd.f32 %v2469, %v2579
    %v2581 = vpop.f32.mrf.mxu0
    %2582 = vdwg.mxu0
    %2583 = vmatprep.subr.mxu0 0.0
    %2584 = vmatpush1.msra.mxu0 0.0
    %2585 = vmatprep.subr.mxu0 0.0
    %2586 = vmatpush1.msra.mxu0 0.0
    %2587 = vmatprep.subr.mxu0 0.0
    %2588 = vmatpush1.msra.mxu0 0.0
    %2589 = vmatprep.subr.mxu0 0.0
    %2590 = vmatpush1.msra.mxu0 0.0
    %2591 = vmatprep.subr.mxu0 0.0
    %2592 = vmatpush1.msra.mxu0 0.0
    %2593 = vmatprep.subr.mxu0 0.0
    %2594 = vmatpush1.msra.mxu0 0.0
    %2595 = vmatprep.subr.mxu0 0.0
    %2596 = vmatpush1.msra.mxu0 0.0
    %2597 = vmatprep.subr.mxu0 0.0
    %2598 = vmatpush1.msra.mxu0 0.0
    %2599 = vmatprep.subr.mxu0 0.0
    %v2600 = vand.u32 %v49, 4294901760
    %v2601 = vsub.f32 %v49, %v2600
    %2602 = vmatpush1.msra.mxu0 %v2601
    %2603 = vmatprep.subr.mxu0 0.0
    %v2604 = vand.u32 %v48, 4294901760
    %v2605 = vsub.f32 %v48, %v2604
    %2606 = vmatpush1.msra.mxu0 %v2605
    %2607 = vmatprep.subr.mxu0 0.0
    %v2608 = vand.u32 %v47, 4294901760
    %v2609 = vsub.f32 %v47, %v2608
    %2610 = vmatpush1.msra.mxu0 %v2609
    %2611 = vmatprep.subr.mxu0 0.0
    %v2612 = vand.u32 %v46, 4294901760
    %v2613 = vsub.f32 %v46, %v2612
    %2614 = vmatpush1.msra.mxu0 %v2613
    %2615 = vmatprep.subr.mxu0 0.0
    %v2616 = vand.u32 %v45, 4294901760
    %v2617 = vsub.f32 %v45, %v2616
    %2618 = vmatpush1.msra.mxu0 %v2617
    %2619 = vmatprep.subr.mxu0 0.0
    %v2620 = vand.u32 %v44, 4294901760
    %v2621 = vsub.f32 %v44, %v2620
    %2622 = vmatpush1.msra.mxu0 %v2621
    %2623 = vmatprep.subr.mxu0 0.0
    %v2624 = vand.u32 %v43, 4294901760
    %v2625 = vsub.f32 %v43, %v2624
    %2626 = vmatpush1.msra.mxu0 %v2625
    %2627 = vmatprep.subr.mxu0 0.0
    %v2628 = vand.u32 %v42, 4294901760
    %v2629 = vsub.f32 %v42, %v2628
    %2630 = vmatpush1.msra.mxu0 %v2629
    %2631 = vmatprep.subr.mxu0 0.0
    %2632 = vmatpush2.msra.mxu0 0.0
    %2633 = vmatprep.subr.mxu0 0.0
    %2634 = vmatpush2.msra.mxu0 0.0
    %2635 = vmatprep.subr.mxu0 0.0
    %2636 = vmatpush2.msra.mxu0 0.0
    %2637 = vmatprep.subr.mxu0 0.0
    %2638 = vmatpush2.msra.mxu0 0.0
    %2639 = vmatprep.subr.mxu0 0.0
    %2640 = vmatpush2.msra.mxu0 0.0
    %2641 = vmatprep.subr.mxu0 0.0
    %2642 = vmatpush2.msra.mxu0 0.0
    %2643 = vmatprep.subr.mxu0 0.0
    %2644 = vmatpush2.msra.mxu0 0.0
    %2645 = vmatprep.subr.mxu0 0.0
    %2646 = vmatpush2.msra.mxu0 0.0
    %2647 = vmatprep.subr.mxu0 0.0
    %2648 = vmatpush2.msra.mxu0 0.0
    %2649 = vmatprep.subr.mxu0 0.0
    %2650 = vmatpush2.msra.mxu0 0.0
    %2651 = vmatprep.subr.mxu0 0.0
    %2652 = vmatpush2.msra.mxu0 0.0
    %2653 = vmatprep.subr.mxu0 0.0
    %2654 = vmatpush2.msra.mxu0 0.0
    %2655 = vmatprep.subr.mxu0 0.0
    %2656 = vmatpush2.msra.mxu0 0.0
    %2657 = vmatprep.subr.mxu0 0.0
    %2658 = vmatpush2.msra.mxu0 0.0
    %2659 = vmatprep.subr.mxu0 0.0
    %2660 = vmatpush2.msra.mxu0 0.0
    %2661 = vmatprep.subr.mxu0 0.0
    %2662 = vmatpush2.msra.mxu0 0.0
    %2663 = vmatprep.mubr.f32.mxu0 0.0
    %v2664 = vand.u32 %v2387, 4294901760
    %v2665 = vsub.f32 %v2387, %v2664
    %2666 = vmatmul.mubr.f32.gmra.mxu0 %v2665
    %v2667 = vpop.f32.mrf.mxu0
    %v2668 = vadd.f32 %v2580, %v2667
    %v2669 = vpop.f32.mrf.mxu0
    %2670 = vdwg.mxu0
    %2671 = vmatprep.subr.mxu0 0.0
    %2672 = vmatpush1.msra.mxu0 0.0
    %2673 = vmatprep.subr.mxu0 0.0
    %2674 = vmatpush1.msra.mxu0 0.0
    %2675 = vmatprep.subr.mxu0 0.0
    %2676 = vmatpush1.msra.mxu0 0.0
    %2677 = vmatprep.subr.mxu0 0.0
    %2678 = vmatpush1.msra.mxu0 0.0
    %2679 = vmatprep.subr.mxu0 0.0
    %2680 = vmatpush1.msra.mxu0 0.0
    %2681 = vmatprep.subr.mxu0 0.0
    %2682 = vmatpush1.msra.mxu0 0.0
    %2683 = vmatprep.subr.mxu0 0.0
    %2684 = vmatpush1.msra.mxu0 0.0
    %2685 = vmatprep.subr.mxu0 0.0
    %2686 = vmatpush1.msra.mxu0 0.0
    %2687 = vmatprep.subr.mxu0 0.0
    %v2688 = vand.u32 %v49, 4294901760
    %2689 = vmatpush1.msra.mxu0 %v2688
    %2690 = vmatprep.subr.mxu0 0.0
    %v2691 = vand.u32 %v48, 4294901760
    %2692 = vmatpush1.msra.mxu0 %v2691
    %2693 = vmatprep.subr.mxu0 0.0
    %v2694 = vand.u32 %v47, 4294901760
    %2695 = vmatpush1.msra.mxu0 %v2694
    %2696 = vmatprep.subr.mxu0 0.0
    %v2697 = vand.u32 %v46, 4294901760
    %2698 = vmatpush1.msra.mxu0 %v2697
    %2699 = vmatprep.subr.mxu0 0.0
    %v2700 = vand.u32 %v45, 4294901760
    %2701 = vmatpush1.msra.mxu0 %v2700
    %2702 = vmatprep.subr.mxu0 0.0
    %v2703 = vand.u32 %v44, 4294901760
    %2704 = vmatpush1.msra.mxu0 %v2703
    %2705 = vmatprep.subr.mxu0 0.0
    %v2706 = vand.u32 %v43, 4294901760
    %2707 = vmatpush1.msra.mxu0 %v2706
    %2708 = vmatprep.subr.mxu0 0.0
    %v2709 = vand.u32 %v42, 4294901760
    %2710 = vmatpush1.msra.mxu0 %v2709
    %2711 = vmatprep.subr.mxu0 0.0
    %2712 = vmatpush2.msra.mxu0 0.0
    %2713 = vmatprep.subr.mxu0 0.0
    %2714 = vmatpush2.msra.mxu0 0.0
    %2715 = vmatprep.subr.mxu0 0.0
    %2716 = vmatpush2.msra.mxu0 0.0
    %2717 = vmatprep.subr.mxu0 0.0
    %2718 = vmatpush2.msra.mxu0 0.0
    %2719 = vmatprep.subr.mxu0 0.0
    %2720 = vmatpush2.msra.mxu0 0.0
    %2721 = vmatprep.subr.mxu0 0.0
    %2722 = vmatpush2.msra.mxu0 0.0
    %2723 = vmatprep.subr.mxu0 0.0
    %2724 = vmatpush2.msra.mxu0 0.0
    %2725 = vmatprep.subr.mxu0 0.0
    %2726 = vmatpush2.msra.mxu0 0.0
    %2727 = vmatprep.subr.mxu0 0.0
    %2728 = vmatpush2.msra.mxu0 0.0
    %2729 = vmatprep.subr.mxu0 0.0
    %2730 = vmatpush2.msra.mxu0 0.0
    %2731 = vmatprep.subr.mxu0 0.0
    %2732 = vmatpush2.msra.mxu0 0.0
    %2733 = vmatprep.subr.mxu0 0.0
    %2734 = vmatpush2.msra.mxu0 0.0
    %2735 = vmatprep.subr.mxu0 0.0
    %2736 = vmatpush2.msra.mxu0 0.0
    %2737 = vmatprep.subr.mxu0 0.0
    %2738 = vmatpush2.msra.mxu0 0.0
    %2739 = vmatprep.subr.mxu0 0.0
    %2740 = vmatpush2.msra.mxu0 0.0
    %2741 = vmatprep.subr.mxu0 0.0
    %2742 = vmatpush2.msra.mxu0 0.0
    %2743 = vmatprep.mubr.f32.mxu0 0.0
    %v2744 = vand.u32 %v2387, 4294901760
    %v2745 = vsub.f32 %v2387, %v2744
    %v2746 = vand.u32 %v2745, 4294901760
    %2747 = vmatmul.mubr.f32.gmra.mxu0 %v2746
    %v2748 = vpop.f32.mrf.mxu0
    %v2749 = vadd.f32 %v2668, %v2748
    %v2750 = vpop.f32.mrf.mxu0
    %2751 = vdwg.mxu0
    %2752 = vmatprep.subr.mxu0 0.0
    %2753 = vmatpush1.msra.mxu0 0.0
    %2754 = vmatprep.subr.mxu0 0.0
    %2755 = vmatpush1.msra.mxu0 0.0
    %2756 = vmatprep.subr.mxu0 0.0
    %2757 = vmatpush1.msra.mxu0 0.0
    %2758 = vmatprep.subr.mxu0 0.0
    %2759 = vmatpush1.msra.mxu0 0.0
    %2760 = vmatprep.subr.mxu0 0.0
    %2761 = vmatpush1.msra.mxu0 0.0
    %2762 = vmatprep.subr.mxu0 0.0
    %2763 = vmatpush1.msra.mxu0 0.0
    %2764 = vmatprep.subr.mxu0 0.0
    %2765 = vmatpush1.msra.mxu0 0.0
    %2766 = vmatprep.subr.mxu0 0.0
    %2767 = vmatpush1.msra.mxu0 0.0
    %2768 = vmatprep.subr.mxu0 0.0
    %v2769 = vand.u32 %v49, 4294901760
    %v2770 = vsub.f32 %v49, %v2769
    %v2771 = vand.u32 %v2770, 4294901760
    %2772 = vmatpush1.msra.mxu0 %v2771
    %2773 = vmatprep.subr.mxu0 0.0
    %v2774 = vand.u32 %v48, 4294901760
    %v2775 = vsub.f32 %v48, %v2774
    %v2776 = vand.u32 %v2775, 4294901760
    %2777 = vmatpush1.msra.mxu0 %v2776
    %2778 = vmatprep.subr.mxu0 0.0
    %v2779 = vand.u32 %v47, 4294901760
    %v2780 = vsub.f32 %v47, %v2779
    %v2781 = vand.u32 %v2780, 4294901760
    %2782 = vmatpush1.msra.mxu0 %v2781
    %2783 = vmatprep.subr.mxu0 0.0
    %v2784 = vand.u32 %v46, 4294901760
    %v2785 = vsub.f32 %v46, %v2784
    %v2786 = vand.u32 %v2785, 4294901760
    %2787 = vmatpush1.msra.mxu0 %v2786
    %2788 = vmatprep.subr.mxu0 0.0
    %v2789 = vand.u32 %v45, 4294901760
    %v2790 = vsub.f32 %v45, %v2789
    %v2791 = vand.u32 %v2790, 4294901760
    %2792 = vmatpush1.msra.mxu0 %v2791
    %2793 = vmatprep.subr.mxu0 0.0
    %v2794 = vand.u32 %v44, 4294901760
    %v2795 = vsub.f32 %v44, %v2794
    %v2796 = vand.u32 %v2795, 4294901760
    %2797 = vmatpush1.msra.mxu0 %v2796
    %2798 = vmatprep.subr.mxu0 0.0
    %v2799 = vand.u32 %v43, 4294901760
    %v2800 = vsub.f32 %v43, %v2799
    %v2801 = vand.u32 %v2800, 4294901760
    %2802 = vmatpush1.msra.mxu0 %v2801
    %2803 = vmatprep.subr.mxu0 0.0
    %v2804 = vand.u32 %v42, 4294901760
    %v2805 = vsub.f32 %v42, %v2804
    %v2806 = vand.u32 %v2805, 4294901760
    %2807 = vmatpush1.msra.mxu0 %v2806
    %2808 = vmatprep.subr.mxu0 0.0
    %2809 = vmatpush2.msra.mxu0 0.0
    %2810 = vmatprep.subr.mxu0 0.0
    %2811 = vmatpush2.msra.mxu0 0.0
    %2812 = vmatprep.subr.mxu0 0.0
    %2813 = vmatpush2.msra.mxu0 0.0
    %2814 = vmatprep.subr.mxu0 0.0
    %2815 = vmatpush2.msra.mxu0 0.0
    %2816 = vmatprep.subr.mxu0 0.0
    %2817 = vmatpush2.msra.mxu0 0.0
    %2818 = vmatprep.subr.mxu0 0.0
    %2819 = vmatpush2.msra.mxu0 0.0
    %2820 = vmatprep.subr.mxu0 0.0
    %2821 = vmatpush2.msra.mxu0 0.0
    %2822 = vmatprep.subr.mxu0 0.0
    %2823 = vmatpush2.msra.mxu0 0.0
    %2824 = vmatprep.subr.mxu0 0.0
    %2825 = vmatpush2.msra.mxu0 0.0
    %2826 = vmatprep.subr.mxu0 0.0
    %2827 = vmatpush2.msra.mxu0 0.0
    %2828 = vmatprep.subr.mxu0 0.0
    %2829 = vmatpush2.msra.mxu0 0.0
    %2830 = vmatprep.subr.mxu0 0.0
    %2831 = vmatpush2.msra.mxu0 0.0
    %2832 = vmatprep.subr.mxu0 0.0
    %2833 = vmatpush2.msra.mxu0 0.0
    %2834 = vmatprep.subr.mxu0 0.0
    %2835 = vmatpush2.msra.mxu0 0.0
    %2836 = vmatprep.subr.mxu0 0.0
    %2837 = vmatpush2.msra.mxu0 0.0
    %2838 = vmatprep.subr.mxu0 0.0
    %2839 = vmatpush2.msra.mxu0 0.0
    %2840 = vmatprep.mubr.f32.mxu0 0.0
    %v2841 = vand.u32 %v2387, 4294901760
    %2842 = vmatmul.mubr.f32.gmra.mxu0 %v2841
    %v2843 = vpop.f32.mrf.mxu0
    %v2844 = vadd.f32 %v2749, %v2843
    %v2845 = vpop.f32.mrf.mxu0
    %2846 = vdwg.mxu0
    %2847 = vmatprep.subr.mxu0 0.0
    %2848 = vmatpush1.msra.mxu0 0.0
    %2849 = vmatprep.subr.mxu0 0.0
    %2850 = vmatpush1.msra.mxu0 0.0
    %2851 = vmatprep.subr.mxu0 0.0
    %2852 = vmatpush1.msra.mxu0 0.0
    %2853 = vmatprep.subr.mxu0 0.0
    %2854 = vmatpush1.msra.mxu0 0.0
    %2855 = vmatprep.subr.mxu0 0.0
    %2856 = vmatpush1.msra.mxu0 0.0
    %2857 = vmatprep.subr.mxu0 0.0
    %2858 = vmatpush1.msra.mxu0 0.0
    %2859 = vmatprep.subr.mxu0 0.0
    %2860 = vmatpush1.msra.mxu0 0.0
    %2861 = vmatprep.subr.mxu0 0.0
    %2862 = vmatpush1.msra.mxu0 0.0
    %2863 = vmatprep.subr.mxu0 0.0
    %v2864 = vand.u32 %v49, 4294901760
    %2865 = vmatpush1.msra.mxu0 %v2864
    %2866 = vmatprep.subr.mxu0 0.0
    %v2867 = vand.u32 %v48, 4294901760
    %2868 = vmatpush1.msra.mxu0 %v2867
    %2869 = vmatprep.subr.mxu0 0.0
    %v2870 = vand.u32 %v47, 4294901760
    %2871 = vmatpush1.msra.mxu0 %v2870
    %2872 = vmatprep.subr.mxu0 0.0
    %v2873 = vand.u32 %v46, 4294901760
    %2874 = vmatpush1.msra.mxu0 %v2873
    %2875 = vmatprep.subr.mxu0 0.0
    %v2876 = vand.u32 %v45, 4294901760
    %2877 = vmatpush1.msra.mxu0 %v2876
    %2878 = vmatprep.subr.mxu0 0.0
    %v2879 = vand.u32 %v44, 4294901760
    %2880 = vmatpush1.msra.mxu0 %v2879
    %2881 = vmatprep.subr.mxu0 0.0
    %v2882 = vand.u32 %v43, 4294901760
    %2883 = vmatpush1.msra.mxu0 %v2882
    %2884 = vmatprep.subr.mxu0 0.0
    %v2885 = vand.u32 %v42, 4294901760
    %2886 = vmatpush1.msra.mxu0 %v2885
    %2887 = vmatprep.subr.mxu0 0.0
    %2888 = vmatpush2.msra.mxu0 0.0
    %2889 = vmatprep.subr.mxu0 0.0
    %2890 = vmatpush2.msra.mxu0 0.0
    %2891 = vmatprep.subr.mxu0 0.0
    %2892 = vmatpush2.msra.mxu0 0.0
    %2893 = vmatprep.subr.mxu0 0.0
    %2894 = vmatpush2.msra.mxu0 0.0
    %2895 = vmatprep.subr.mxu0 0.0
    %2896 = vmatpush2.msra.mxu0 0.0
    %2897 = vmatprep.subr.mxu0 0.0
    %2898 = vmatpush2.msra.mxu0 0.0
    %2899 = vmatprep.subr.mxu0 0.0
    %2900 = vmatpush2.msra.mxu0 0.0
    %2901 = vmatprep.subr.mxu0 0.0
    %2902 = vmatpush2.msra.mxu0 0.0
    %2903 = vmatprep.subr.mxu0 0.0
    %2904 = vmatpush2.msra.mxu0 0.0
    %2905 = vmatprep.subr.mxu0 0.0
    %2906 = vmatpush2.msra.mxu0 0.0
    %2907 = vmatprep.subr.mxu0 0.0
    %2908 = vmatpush2.msra.mxu0 0.0
    %2909 = vmatprep.subr.mxu0 0.0
    %2910 = vmatpush2.msra.mxu0 0.0
    %2911 = vmatprep.subr.mxu0 0.0
    %2912 = vmatpush2.msra.mxu0 0.0
    %2913 = vmatprep.subr.mxu0 0.0
    %2914 = vmatpush2.msra.mxu0 0.0
    %2915 = vmatprep.subr.mxu0 0.0
    %2916 = vmatpush2.msra.mxu0 0.0
    %2917 = vmatprep.subr.mxu0 0.0
    %2918 = vmatpush2.msra.mxu0 0.0
    %2919 = vmatprep.mubr.f32.mxu0 0.0
    %v2920 = vand.u32 %v2387, 4294901760
    %2921 = vmatmul.mubr.f32.gmra.mxu0 %v2920
    %v2922 = vpop.f32.mrf.mxu0
    %v2923 = vadd.f32 %v2844, %v2922
    %v2924 = vpop.f32.mrf.mxu0
    %2925 = vdwg.mxu0
    %v2926 = vtanh.pop %v2923
    %v2928 = vsel %vm853, %v2380, 0
    %2930 = vmatprep.subr.mxu0 0.0
    %2931 = vmatpush1.msra.mxu0 0.0
    %2932 = vmatprep.subr.mxu0 0.0
    %2933 = vmatpush1.msra.mxu0 0.0
    %2934 = vmatprep.subr.mxu0 0.0
    %2935 = vmatpush1.msra.mxu0 0.0
    %2936 = vmatprep.subr.mxu0 0.0
    %2937 = vmatpush1.msra.mxu0 0.0
    %2938 = vmatprep.subr.mxu0 0.0
    %2939 = vmatpush1.msra.mxu0 0.0
    %2940 = vmatprep.subr.mxu0 0.0
    %2941 = vmatpush1.msra.mxu0 0.0
    %2942 = vmatprep.subr.mxu0 0.0
    %2943 = vmatpush1.msra.mxu0 0.0
    %2944 = vmatprep.subr.mxu0 0.0
    %2945 = vmatpush1.msra.mxu0 0.0
    %2946 = vmatprep.subr.mxu0 0.0
    %2947 = vmatpush1.msra.mxu0 0.0
    %2948 = vmatprep.subr.mxu0 0.0
    %2949 = vmatpush1.msra.mxu0 0.0
    %2950 = vmatprep.subr.mxu0 0.0
    %2951 = vmatpush1.msra.mxu0 0.0
    %2952 = vmatprep.subr.mxu0 0.0
    %2953 = vmatpush1.msra.mxu0 0.0
    %2954 = vmatprep.subr.mxu0 0.0
    %v2955 = vand.u32 %v41, 4294901760
    %2956 = vmatpush1.msra.mxu0 %v2955
    %2957 = vmatprep.subr.mxu0 0.0
    %v2958 = vand.u32 %v40, 4294901760
    %2959 = vmatpush1.msra.mxu0 %v2958
    %2960 = vmatprep.subr.mxu0 0.0
    %v2961 = vand.u32 %v39, 4294901760
    %2962 = vmatpush1.msra.mxu0 %v2961
    %2963 = vmatprep.subr.mxu0 0.0
    %v2964 = vand.u32 %v38, 4294901760
    %2965 = vmatpush1.msra.mxu0 %v2964
    %2966 = vmatprep.subr.mxu0 0.0
    %2967 = vmatpush2.msra.mxu0 0.0
    %2968 = vmatprep.subr.mxu0 0.0
    %2969 = vmatpush2.msra.mxu0 0.0
    %2970 = vmatprep.subr.mxu0 0.0
    %2971 = vmatpush2.msra.mxu0 0.0
    %2972 = vmatprep.subr.mxu0 0.0
    %2973 = vmatpush2.msra.mxu0 0.0
    %2974 = vmatprep.subr.mxu0 0.0
    %2975 = vmatpush2.msra.mxu0 0.0
    %2976 = vmatprep.subr.mxu0 0.0
    %2977 = vmatpush2.msra.mxu0 0.0
    %2978 = vmatprep.subr.mxu0 0.0
    %2979 = vmatpush2.msra.mxu0 0.0
    %2980 = vmatprep.subr.mxu0 0.0
    %2981 = vmatpush2.msra.mxu0 0.0
    %2982 = vmatprep.subr.mxu0 0.0
    %2983 = vmatpush2.msra.mxu0 0.0
    %2984 = vmatprep.subr.mxu0 0.0
    %2985 = vmatpush2.msra.mxu0 0.0
    %2986 = vmatprep.subr.mxu0 0.0
    %2987 = vmatpush2.msra.mxu0 0.0
    %2988 = vmatprep.subr.mxu0 0.0
    %2989 = vmatpush2.msra.mxu0 0.0
    %2990 = vmatprep.subr.mxu0 0.0
    %2991 = vmatpush2.msra.mxu0 0.0
    %2992 = vmatprep.subr.mxu0 0.0
    %2993 = vmatpush2.msra.mxu0 0.0
    %2994 = vmatprep.subr.mxu0 0.0
    %2995 = vmatpush2.msra.mxu0 0.0
    %2996 = vmatprep.subr.mxu0 0.0
    %2997 = vmatpush2.msra.mxu0 0.0
    %2998 = vmatprep.mubr.f32.mxu0 0.0
    %v2999 = vand.u32 %v2928, 4294901760
    %v3000 = vsub.f32 %v2928, %v2999
    %v3001 = vand.u32 %v3000, 4294901760
    %v3002 = vsub.f32 %v3000, %v3001
    %v3003 = vand.u32 %v3002, 4294901760
    %3004 = vmatmul.mubr.f32.gmra.mxu0 %v3003
    %v3005 = vpop.f32.mrf.mxu0
    %v3006 = vadd.f32 %v817, %v3005
    %v3007 = vpop.f32.mrf.mxu0
    %3008 = vdwg.mxu0
    %3009 = vmatprep.subr.mxu0 0.0
    %3010 = vmatpush1.msra.mxu0 0.0
    %3011 = vmatprep.subr.mxu0 0.0
    %3012 = vmatpush1.msra.mxu0 0.0
    %3013 = vmatprep.subr.mxu0 0.0
    %3014 = vmatpush1.msra.mxu0 0.0
    %3015 = vmatprep.subr.mxu0 0.0
    %3016 = vmatpush1.msra.mxu0 0.0
    %3017 = vmatprep.subr.mxu0 0.0
    %3018 = vmatpush1.msra.mxu0 0.0
    %3019 = vmatprep.subr.mxu0 0.0
    %3020 = vmatpush1.msra.mxu0 0.0
    %3021 = vmatprep.subr.mxu0 0.0
    %3022 = vmatpush1.msra.mxu0 0.0
    %3023 = vmatprep.subr.mxu0 0.0
    %3024 = vmatpush1.msra.mxu0 0.0
    %3025 = vmatprep.subr.mxu0 0.0
    %3026 = vmatpush1.msra.mxu0 0.0
    %3027 = vmatprep.subr.mxu0 0.0
    %3028 = vmatpush1.msra.mxu0 0.0
    %3029 = vmatprep.subr.mxu0 0.0
    %3030 = vmatpush1.msra.mxu0 0.0
    %3031 = vmatprep.subr.mxu0 0.0
    %3032 = vmatpush1.msra.mxu0 0.0
    %3033 = vmatprep.subr.mxu0 0.0
    %v3034 = vand.u32 %v41, 4294901760
    %v3035 = vsub.f32 %v41, %v3034
    %v3036 = vand.u32 %v3035, 4294901760
    %v3037 = vsub.f32 %v3035, %v3036
    %v3038 = vand.u32 %v3037, 4294901760
    %3039 = vmatpush1.msra.mxu0 %v3038
    %3040 = vmatprep.subr.mxu0 0.0
    %v3041 = vand.u32 %v40, 4294901760
    %v3042 = vsub.f32 %v40, %v3041
    %v3043 = vand.u32 %v3042, 4294901760
    %v3044 = vsub.f32 %v3042, %v3043
    %v3045 = vand.u32 %v3044, 4294901760
    %3046 = vmatpush1.msra.mxu0 %v3045
    %3047 = vmatprep.subr.mxu0 0.0
    %v3048 = vand.u32 %v39, 4294901760
    %v3049 = vsub.f32 %v39, %v3048
    %v3050 = vand.u32 %v3049, 4294901760
    %v3051 = vsub.f32 %v3049, %v3050
    %v3052 = vand.u32 %v3051, 4294901760
    %3053 = vmatpush1.msra.mxu0 %v3052
    %3054 = vmatprep.subr.mxu0 0.0
    %v3055 = vand.u32 %v38, 4294901760
    %v3056 = vsub.f32 %v38, %v3055
    %v3057 = vand.u32 %v3056, 4294901760
    %v3058 = vsub.f32 %v3056, %v3057
    %v3059 = vand.u32 %v3058, 4294901760
    %3060 = vmatpush1.msra.mxu0 %v3059
    %3061 = vmatprep.subr.mxu0 0.0
    %3062 = vmatpush2.msra.mxu0 0.0
    %3063 = vmatprep.subr.mxu0 0.0
    %3064 = vmatpush2.msra.mxu0 0.0
    %3065 = vmatprep.subr.mxu0 0.0
    %3066 = vmatpush2.msra.mxu0 0.0
    %3067 = vmatprep.subr.mxu0 0.0
    %3068 = vmatpush2.msra.mxu0 0.0
    %3069 = vmatprep.subr.mxu0 0.0
    %3070 = vmatpush2.msra.mxu0 0.0
    %3071 = vmatprep.subr.mxu0 0.0
    %3072 = vmatpush2.msra.mxu0 0.0
    %3073 = vmatprep.subr.mxu0 0.0
    %3074 = vmatpush2.msra.mxu0 0.0
    %3075 = vmatprep.subr.mxu0 0.0
    %3076 = vmatpush2.msra.mxu0 0.0
    %3077 = vmatprep.subr.mxu0 0.0
    %3078 = vmatpush2.msra.mxu0 0.0
    %3079 = vmatprep.subr.mxu0 0.0
    %3080 = vmatpush2.msra.mxu0 0.0
    %3081 = vmatprep.subr.mxu0 0.0
    %3082 = vmatpush2.msra.mxu0 0.0
    %3083 = vmatprep.subr.mxu0 0.0
    %3084 = vmatpush2.msra.mxu0 0.0
    %3085 = vmatprep.subr.mxu0 0.0
    %3086 = vmatpush2.msra.mxu0 0.0
    %3087 = vmatprep.subr.mxu0 0.0
    %3088 = vmatpush2.msra.mxu0 0.0
    %3089 = vmatprep.subr.mxu0 0.0
    %3090 = vmatpush2.msra.mxu0 0.0
    %3091 = vmatprep.subr.mxu0 0.0
    %3092 = vmatpush2.msra.mxu0 0.0
    %3093 = vmatprep.mubr.f32.mxu0 0.0
    %v3094 = vand.u32 %v2928, 4294901760
    %3095 = vmatmul.mubr.f32.gmra.mxu0 %v3094
    %v3096 = vpop.f32.mrf.mxu0
    %v3097 = vadd.f32 %v3006, %v3096
    %v3098 = vpop.f32.mrf.mxu0
    %3099 = vdwg.mxu0
    %3100 = vmatprep.subr.mxu0 0.0
    %3101 = vmatpush1.msra.mxu0 0.0
    %3102 = vmatprep.subr.mxu0 0.0
    %3103 = vmatpush1.msra.mxu0 0.0
    %3104 = vmatprep.subr.mxu0 0.0
    %3105 = vmatpush1.msra.mxu0 0.0
    %3106 = vmatprep.subr.mxu0 0.0
    %3107 = vmatpush1.msra.mxu0 0.0
    %3108 = vmatprep.subr.mxu0 0.0
    %3109 = vmatpush1.msra.mxu0 0.0
    %3110 = vmatprep.subr.mxu0 0.0
    %3111 = vmatpush1.msra.mxu0 0.0
    %3112 = vmatprep.subr.mxu0 0.0
    %3113 = vmatpush1.msra.mxu0 0.0
    %3114 = vmatprep.subr.mxu0 0.0
    %3115 = vmatpush1.msra.mxu0 0.0
    %3116 = vmatprep.subr.mxu0 0.0
    %3117 = vmatpush1.msra.mxu0 0.0
    %3118 = vmatprep.subr.mxu0 0.0
    %3119 = vmatpush1.msra.mxu0 0.0
    %3120 = vmatprep.subr.mxu0 0.0
    %3121 = vmatpush1.msra.mxu0 0.0
    %3122 = vmatprep.subr.mxu0 0.0
    %3123 = vmatpush1.msra.mxu0 0.0
    %3124 = vmatprep.subr.mxu0 0.0
    %v3125 = vand.u32 %v41, 4294901760
    %v3126 = vsub.f32 %v41, %v3125
    %3127 = vmatpush1.msra.mxu0 %v3126
    %3128 = vmatprep.subr.mxu0 0.0
    %v3129 = vand.u32 %v40, 4294901760
    %v3130 = vsub.f32 %v40, %v3129
    %3131 = vmatpush1.msra.mxu0 %v3130
    %3132 = vmatprep.subr.mxu0 0.0
    %v3133 = vand.u32 %v39, 4294901760
    %v3134 = vsub.f32 %v39, %v3133
    %3135 = vmatpush1.msra.mxu0 %v3134
    %3136 = vmatprep.subr.mxu0 0.0
    %v3137 = vand.u32 %v38, 4294901760
    %v3138 = vsub.f32 %v38, %v3137
    %3139 = vmatpush1.msra.mxu0 %v3138
    %3140 = vmatprep.subr.mxu0 0.0
    %3141 = vmatpush2.msra.mxu0 0.0
    %3142 = vmatprep.subr.mxu0 0.0
    %3143 = vmatpush2.msra.mxu0 0.0
    %3144 = vmatprep.subr.mxu0 0.0
    %3145 = vmatpush2.msra.mxu0 0.0
    %3146 = vmatprep.subr.mxu0 0.0
    %3147 = vmatpush2.msra.mxu0 0.0
    %3148 = vmatprep.subr.mxu0 0.0
    %3149 = vmatpush2.msra.mxu0 0.0
    %3150 = vmatprep.subr.mxu0 0.0
    %3151 = vmatpush2.msra.mxu0 0.0
    %3152 = vmatprep.subr.mxu0 0.0
    %3153 = vmatpush2.msra.mxu0 0.0
    %3154 = vmatprep.subr.mxu0 0.0
    %3155 = vmatpush2.msra.mxu0 0.0
    %3156 = vmatprep.subr.mxu0 0.0
    %3157 = vmatpush2.msra.mxu0 0.0
    %3158 = vmatprep.subr.mxu0 0.0
    %3159 = vmatpush2.msra.mxu0 0.0
    %3160 = vmatprep.subr.mxu0 0.0
    %3161 = vmatpush2.msra.mxu0 0.0
    %3162 = vmatprep.subr.mxu0 0.0
    %3163 = vmatpush2.msra.mxu0 0.0
    %3164 = vmatprep.subr.mxu0 0.0
    %3165 = vmatpush2.msra.mxu0 0.0
    %3166 = vmatprep.subr.mxu0 0.0
    %3167 = vmatpush2.msra.mxu0 0.0
    %3168 = vmatprep.subr.mxu0 0.0
    %3169 = vmatpush2.msra.mxu0 0.0
    %3170 = vmatprep.subr.mxu0 0.0
    %3171 = vmatpush2.msra.mxu0 0.0
    %3172 = vmatprep.mubr.f32.mxu0 0.0
    %v3173 = vand.u32 %v2928, 4294901760
    %v3174 = vsub.f32 %v2928, %v3173
    %3175 = vmatmul.mubr.f32.gmra.mxu0 %v3174
    %v3176 = vpop.f32.mrf.mxu0
    %v3177 = vadd.f32 %v3097, %v3176
    %v3178 = vpop.f32.mrf.mxu0
    %3179 = vdwg.mxu0
    %3180 = vmatprep.subr.mxu0 0.0
    %3181 = vmatpush1.msra.mxu0 0.0
    %3182 = vmatprep.subr.mxu0 0.0
    %3183 = vmatpush1.msra.mxu0 0.0
    %3184 = vmatprep.subr.mxu0 0.0
    %3185 = vmatpush1.msra.mxu0 0.0
    %3186 = vmatprep.subr.mxu0 0.0
    %3187 = vmatpush1.msra.mxu0 0.0
    %3188 = vmatprep.subr.mxu0 0.0
    %3189 = vmatpush1.msra.mxu0 0.0
    %3190 = vmatprep.subr.mxu0 0.0
    %3191 = vmatpush1.msra.mxu0 0.0
    %3192 = vmatprep.subr.mxu0 0.0
    %3193 = vmatpush1.msra.mxu0 0.0
    %3194 = vmatprep.subr.mxu0 0.0
    %3195 = vmatpush1.msra.mxu0 0.0
    %3196 = vmatprep.subr.mxu0 0.0
    %3197 = vmatpush1.msra.mxu0 0.0
    %3198 = vmatprep.subr.mxu0 0.0
    %3199 = vmatpush1.msra.mxu0 0.0
    %3200 = vmatprep.subr.mxu0 0.0
    %3201 = vmatpush1.msra.mxu0 0.0
    %3202 = vmatprep.subr.mxu0 0.0
    %3203 = vmatpush1.msra.mxu0 0.0
    %3204 = vmatprep.subr.mxu0 0.0
    %v3205 = vand.u32 %v41, 4294901760
    %3206 = vmatpush1.msra.mxu0 %v3205
    %3207 = vmatprep.subr.mxu0 0.0
    %v3208 = vand.u32 %v40, 4294901760
    %3209 = vmatpush1.msra.mxu0 %v3208
    %3210 = vmatprep.subr.mxu0 0.0
    %v3211 = vand.u32 %v39, 4294901760
    %3212 = vmatpush1.msra.mxu0 %v3211
    %3213 = vmatprep.subr.mxu0 0.0
    %v3214 = vand.u32 %v38, 4294901760
    %3215 = vmatpush1.msra.mxu0 %v3214
    %3216 = vmatprep.subr.mxu0 0.0
    %3217 = vmatpush2.msra.mxu0 0.0
    %3218 = vmatprep.subr.mxu0 0.0
    %3219 = vmatpush2.msra.mxu0 0.0
    %3220 = vmatprep.subr.mxu0 0.0
    %3221 = vmatpush2.msra.mxu0 0.0
    %3222 = vmatprep.subr.mxu0 0.0
    %3223 = vmatpush2.msra.mxu0 0.0
    %3224 = vmatprep.subr.mxu0 0.0
    %3225 = vmatpush2.msra.mxu0 0.0
    %3226 = vmatprep.subr.mxu0 0.0
    %3227 = vmatpush2.msra.mxu0 0.0
    %3228 = vmatprep.subr.mxu0 0.0
    %3229 = vmatpush2.msra.mxu0 0.0
    %3230 = vmatprep.subr.mxu0 0.0
    %3231 = vmatpush2.msra.mxu0 0.0
    %3232 = vmatprep.subr.mxu0 0.0
    %3233 = vmatpush2.msra.mxu0 0.0
    %3234 = vmatprep.subr.mxu0 0.0
    %3235 = vmatpush2.msra.mxu0 0.0
    %3236 = vmatprep.subr.mxu0 0.0
    %3237 = vmatpush2.msra.mxu0 0.0
    %3238 = vmatprep.subr.mxu0 0.0
    %3239 = vmatpush2.msra.mxu0 0.0
    %3240 = vmatprep.subr.mxu0 0.0
    %3241 = vmatpush2.msra.mxu0 0.0
    %3242 = vmatprep.subr.mxu0 0.0
    %3243 = vmatpush2.msra.mxu0 0.0
    %3244 = vmatprep.subr.mxu0 0.0
    %3245 = vmatpush2.msra.mxu0 0.0
    %3246 = vmatprep.subr.mxu0 0.0
    %3247 = vmatpush2.msra.mxu0 0.0
    %3248 = vmatprep.mubr.f32.mxu0 0.0
    %v3249 = vand.u32 %v2928, 4294901760
    %v3250 = vsub.f32 %v2928, %v3249
    %v3251 = vand.u32 %v3250, 4294901760
    %3252 = vmatmul.mubr.f32.gmra.mxu0 %v3251
    %v3253 = vpop.f32.mrf.mxu0
    %v3254 = vadd.f32 %v3177, %v3253
    %v3255 = vpop.f32.mrf.mxu0
    %3256 = vdwg.mxu0
    %3257 = vmatprep.subr.mxu0 0.0
    %3258 = vmatpush1.msra.mxu0 0.0
    %3259 = vmatprep.subr.mxu0 0.0
    %3260 = vmatpush1.msra.mxu0 0.0
    %3261 = vmatprep.subr.mxu0 0.0
    %3262 = vmatpush1.msra.mxu0 0.0
    %3263 = vmatprep.subr.mxu0 0.0
    %3264 = vmatpush1.msra.mxu0 0.0
    %3265 = vmatprep.subr.mxu0 0.0
    %3266 = vmatpush1.msra.mxu0 0.0
    %3267 = vmatprep.subr.mxu0 0.0
    %3268 = vmatpush1.msra.mxu0 0.0
    %3269 = vmatprep.subr.mxu0 0.0
    %3270 = vmatpush1.msra.mxu0 0.0
    %3271 = vmatprep.subr.mxu0 0.0
    %3272 = vmatpush1.msra.mxu0 0.0
    %3273 = vmatprep.subr.mxu0 0.0
    %3274 = vmatpush1.msra.mxu0 0.0
    %3275 = vmatprep.subr.mxu0 0.0
    %3276 = vmatpush1.msra.mxu0 0.0
    %3277 = vmatprep.subr.mxu0 0.0
    %3278 = vmatpush1.msra.mxu0 0.0
    %3279 = vmatprep.subr.mxu0 0.0
    %3280 = vmatpush1.msra.mxu0 0.0
    %3281 = vmatprep.subr.mxu0 0.0
    %v3282 = vand.u32 %v41, 4294901760
    %v3283 = vsub.f32 %v41, %v3282
    %v3284 = vand.u32 %v3283, 4294901760
    %3285 = vmatpush1.msra.mxu0 %v3284
    %3286 = vmatprep.subr.mxu0 0.0
    %v3287 = vand.u32 %v40, 4294901760
    %v3288 = vsub.f32 %v40, %v3287
    %v3289 = vand.u32 %v3288, 4294901760
    %3290 = vmatpush1.msra.mxu0 %v3289
    %3291 = vmatprep.subr.mxu0 0.0
    %v3292 = vand.u32 %v39, 4294901760
    %v3293 = vsub.f32 %v39, %v3292
    %v3294 = vand.u32 %v3293, 4294901760
    %3295 = vmatpush1.msra.mxu0 %v3294
    %3296 = vmatprep.subr.mxu0 0.0
    %v3297 = vand.u32 %v38, 4294901760
    %v3298 = vsub.f32 %v38, %v3297
    %v3299 = vand.u32 %v3298, 4294901760
    %3300 = vmatpush1.msra.mxu0 %v3299
    %3301 = vmatprep.subr.mxu0 0.0
    %3302 = vmatpush2.msra.mxu0 0.0
    %3303 = vmatprep.subr.mxu0 0.0
    %3304 = vmatpush2.msra.mxu0 0.0
    %3305 = vmatprep.subr.mxu0 0.0
    %3306 = vmatpush2.msra.mxu0 0.0
    %3307 = vmatprep.subr.mxu0 0.0
    %3308 = vmatpush2.msra.mxu0 0.0
    %3309 = vmatprep.subr.mxu0 0.0
    %3310 = vmatpush2.msra.mxu0 0.0
    %3311 = vmatprep.subr.mxu0 0.0
    %3312 = vmatpush2.msra.mxu0 0.0
    %3313 = vmatprep.subr.mxu0 0.0
    %3314 = vmatpush2.msra.mxu0 0.0
    %3315 = vmatprep.subr.mxu0 0.0
    %3316 = vmatpush2.msra.mxu0 0.0
    %3317 = vmatprep.subr.mxu0 0.0
    %3318 = vmatpush2.msra.mxu0 0.0
    %3319 = vmatprep.subr.mxu0 0.0
    %3320 = vmatpush2.msra.mxu0 0.0
    %3321 = vmatprep.subr.mxu0 0.0
    %3322 = vmatpush2.msra.mxu0 0.0
    %3323 = vmatprep.subr.mxu0 0.0
    %3324 = vmatpush2.msra.mxu0 0.0
    %3325 = vmatprep.subr.mxu0 0.0
    %3326 = vmatpush2.msra.mxu0 0.0
    %3327 = vmatprep.subr.mxu0 0.0
    %3328 = vmatpush2.msra.mxu0 0.0
    %3329 = vmatprep.subr.mxu0 0.0
    %3330 = vmatpush2.msra.mxu0 0.0
    %3331 = vmatprep.subr.mxu0 0.0
    %3332 = vmatpush2.msra.mxu0 0.0
    %3333 = vmatprep.mubr.f32.mxu0 0.0
    %v3334 = vand.u32 %v2928, 4294901760
    %3335 = vmatmul.mubr.f32.gmra.mxu0 %v3334
    %v3336 = vpop.f32.mrf.mxu0
    %v3337 = vadd.f32 %v3254, %v3336
    %v3338 = vpop.f32.mrf.mxu0
    %3339 = vdwg.mxu0
    %3340 = vmatprep.subr.mxu0 0.0
    %3341 = vmatpush1.msra.mxu0 0.0
    %3342 = vmatprep.subr.mxu0 0.0
    %3343 = vmatpush1.msra.mxu0 0.0
    %3344 = vmatprep.subr.mxu0 0.0
    %3345 = vmatpush1.msra.mxu0 0.0
    %3346 = vmatprep.subr.mxu0 0.0
    %3347 = vmatpush1.msra.mxu0 0.0
    %3348 = vmatprep.subr.mxu0 0.0
    %3349 = vmatpush1.msra.mxu0 0.0
    %3350 = vmatprep.subr.mxu0 0.0
    %3351 = vmatpush1.msra.mxu0 0.0
    %3352 = vmatprep.subr.mxu0 0.0
    %3353 = vmatpush1.msra.mxu0 0.0
    %3354 = vmatprep.subr.mxu0 0.0
    %3355 = vmatpush1.msra.mxu0 0.0
    %3356 = vmatprep.subr.mxu0 0.0
    %3357 = vmatpush1.msra.mxu0 0.0
    %3358 = vmatprep.subr.mxu0 0.0
    %3359 = vmatpush1.msra.mxu0 0.0
    %3360 = vmatprep.subr.mxu0 0.0
    %3361 = vmatpush1.msra.mxu0 0.0
    %3362 = vmatprep.subr.mxu0 0.0
    %3363 = vmatpush1.msra.mxu0 0.0
    %3364 = vmatprep.subr.mxu0 0.0
    %v3365 = vand.u32 %v41, 4294901760
    %3366 = vmatpush1.msra.mxu0 %v3365
    %3367 = vmatprep.subr.mxu0 0.0
    %v3368 = vand.u32 %v40, 4294901760
    %3369 = vmatpush1.msra.mxu0 %v3368
    %3370 = vmatprep.subr.mxu0 0.0
    %v3371 = vand.u32 %v39, 4294901760
    %3372 = vmatpush1.msra.mxu0 %v3371
    %3373 = vmatprep.subr.mxu0 0.0
    %v3374 = vand.u32 %v38, 4294901760
    %3375 = vmatpush1.msra.mxu0 %v3374
    %3376 = vmatprep.subr.mxu0 0.0
    %3377 = vmatpush2.msra.mxu0 0.0
    %3378 = vmatprep.subr.mxu0 0.0
    %3379 = vmatpush2.msra.mxu0 0.0
    %3380 = vmatprep.subr.mxu0 0.0
    %3381 = vmatpush2.msra.mxu0 0.0
    %3382 = vmatprep.subr.mxu0 0.0
    %3383 = vmatpush2.msra.mxu0 0.0
    %3384 = vmatprep.subr.mxu0 0.0
    %3385 = vmatpush2.msra.mxu0 0.0
    %3386 = vmatprep.subr.mxu0 0.0
    %3387 = vmatpush2.msra.mxu0 0.0
    %3388 = vmatprep.subr.mxu0 0.0
    %3389 = vmatpush2.msra.mxu0 0.0
    %3390 = vmatprep.subr.mxu0 0.0
    %3391 = vmatpush2.msra.mxu0 0.0
    %3392 = vmatprep.subr.mxu0 0.0
    %3393 = vmatpush2.msra.mxu0 0.0
    %3394 = vmatprep.subr.mxu0 0.0
    %3395 = vmatpush2.msra.mxu0 0.0
    %3396 = vmatprep.subr.mxu0 0.0
    %3397 = vmatpush2.msra.mxu0 0.0
    %3398 = vmatprep.subr.mxu0 0.0
    %3399 = vmatpush2.msra.mxu0 0.0
    %3400 = vmatprep.subr.mxu0 0.0
    %3401 = vmatpush2.msra.mxu0 0.0
    %3402 = vmatprep.subr.mxu0 0.0
    %3403 = vmatpush2.msra.mxu0 0.0
    %3404 = vmatprep.subr.mxu0 0.0
    %3405 = vmatpush2.msra.mxu0 0.0
    %3406 = vmatprep.subr.mxu0 0.0
    %3407 = vmatpush2.msra.mxu0 0.0
    %3408 = vmatprep.mubr.f32.mxu0 0.0
    %v3409 = vand.u32 %v2928, 4294901760
    %3410 = vmatmul.mubr.f32.gmra.mxu0 %v3409
    %v3411 = vpop.f32.mrf.mxu0
    %v3412 = vadd.f32 %v3337, %v3411
    %v3413 = vpop.f32.mrf.mxu0
    %3414 = vdwg.mxu0
    %v3415 = vadd.f32 %v3412, %v55
    %v3416 = vtanh.pop %v3415
    %3418 = vrot.lane.b32.xlu0 %v2926, 32
    %v3419 = vpop.permute.xlu0 %3418
    %v3421 = vsel %vm853, %v3416, %v3419
    %v3423 = vsel %vm1349, %v3421, 0
    %3425 = vmatprep.subr.mxu0 0.0
    %3426 = vmatpush1.msra.mxu0 0.0
    %3427 = vmatprep.subr.mxu0 0.0
    %3428 = vmatpush1.msra.mxu0 0.0
    %3429 = vmatprep.subr.mxu0 0.0
    %3430 = vmatpush1.msra.mxu0 0.0
    %3431 = vmatprep.subr.mxu0 0.0
    %3432 = vmatpush1.msra.mxu0 0.0
    %3433 = vmatprep.subr.mxu0 0.0
    %3434 = vmatpush1.msra.mxu0 0.0
    %3435 = vmatprep.subr.mxu0 0.0
    %3436 = vmatpush1.msra.mxu0 0.0
    %3437 = vmatprep.subr.mxu0 0.0
    %3438 = vmatpush1.msra.mxu0 0.0
    %3439 = vmatprep.subr.mxu0 0.0
    %3440 = vmatpush1.msra.mxu0 0.0
    %3441 = vmatprep.subr.mxu0 0.0
    %v3442 = vand.u32 %v49, 4294901760
    %3443 = vmatpush1.msra.mxu0 %v3442
    %3444 = vmatprep.subr.mxu0 0.0
    %v3445 = vand.u32 %v48, 4294901760
    %3446 = vmatpush1.msra.mxu0 %v3445
    %3447 = vmatprep.subr.mxu0 0.0
    %v3448 = vand.u32 %v47, 4294901760
    %3449 = vmatpush1.msra.mxu0 %v3448
    %3450 = vmatprep.subr.mxu0 0.0
    %v3451 = vand.u32 %v46, 4294901760
    %3452 = vmatpush1.msra.mxu0 %v3451
    %3453 = vmatprep.subr.mxu0 0.0
    %v3454 = vand.u32 %v45, 4294901760
    %3455 = vmatpush1.msra.mxu0 %v3454
    %3456 = vmatprep.subr.mxu0 0.0
    %v3457 = vand.u32 %v44, 4294901760
    %3458 = vmatpush1.msra.mxu0 %v3457
    %3459 = vmatprep.subr.mxu0 0.0
    %v3460 = vand.u32 %v43, 4294901760
    %3461 = vmatpush1.msra.mxu0 %v3460
    %3462 = vmatprep.subr.mxu0 0.0
    %v3463 = vand.u32 %v42, 4294901760
    %3464 = vmatpush1.msra.mxu0 %v3463
    %3465 = vmatprep.subr.mxu0 0.0
    %3466 = vmatpush2.msra.mxu0 0.0
    %3467 = vmatprep.subr.mxu0 0.0
    %3468 = vmatpush2.msra.mxu0 0.0
    %3469 = vmatprep.subr.mxu0 0.0
    %3470 = vmatpush2.msra.mxu0 0.0
    %3471 = vmatprep.subr.mxu0 0.0
    %3472 = vmatpush2.msra.mxu0 0.0
    %3473 = vmatprep.subr.mxu0 0.0
    %3474 = vmatpush2.msra.mxu0 0.0
    %3475 = vmatprep.subr.mxu0 0.0
    %3476 = vmatpush2.msra.mxu0 0.0
    %3477 = vmatprep.subr.mxu0 0.0
    %3478 = vmatpush2.msra.mxu0 0.0
    %3479 = vmatprep.subr.mxu0 0.0
    %3480 = vmatpush2.msra.mxu0 0.0
    %3481 = vmatprep.subr.mxu0 0.0
    %3482 = vmatpush2.msra.mxu0 0.0
    %3483 = vmatprep.subr.mxu0 0.0
    %3484 = vmatpush2.msra.mxu0 0.0
    %3485 = vmatprep.subr.mxu0 0.0
    %3486 = vmatpush2.msra.mxu0 0.0
    %3487 = vmatprep.subr.mxu0 0.0
    %3488 = vmatpush2.msra.mxu0 0.0
    %3489 = vmatprep.subr.mxu0 0.0
    %3490 = vmatpush2.msra.mxu0 0.0
    %3491 = vmatprep.subr.mxu0 0.0
    %3492 = vmatpush2.msra.mxu0 0.0
    %3493 = vmatprep.subr.mxu0 0.0
    %3494 = vmatpush2.msra.mxu0 0.0
    %3495 = vmatprep.subr.mxu0 0.0
    %3496 = vmatpush2.msra.mxu0 0.0
    %3497 = vmatprep.mubr.f32.mxu0 0.0
    %v3498 = vand.u32 %v3423, 4294901760
    %v3499 = vsub.f32 %v3423, %v3498
    %v3500 = vand.u32 %v3499, 4294901760
    %v3501 = vsub.f32 %v3499, %v3500
    %v3502 = vand.u32 %v3501, 4294901760
    %3503 = vmatmul.mubr.f32.gmra.mxu0 %v3502
    %v3504 = vpop.f32.mrf.mxu0
    %v3505 = vadd.f32 %v63, %v3504
    %v3506 = vpop.f32.mrf.mxu0
    %3507 = vdwg.mxu0
    %3508 = vmatprep.subr.mxu0 0.0
    %3509 = vmatpush1.msra.mxu0 0.0
    %3510 = vmatprep.subr.mxu0 0.0
    %3511 = vmatpush1.msra.mxu0 0.0
    %3512 = vmatprep.subr.mxu0 0.0
    %3513 = vmatpush1.msra.mxu0 0.0
    %3514 = vmatprep.subr.mxu0 0.0
    %3515 = vmatpush1.msra.mxu0 0.0
    %3516 = vmatprep.subr.mxu0 0.0
    %3517 = vmatpush1.msra.mxu0 0.0
    %3518 = vmatprep.subr.mxu0 0.0
    %3519 = vmatpush1.msra.mxu0 0.0
    %3520 = vmatprep.subr.mxu0 0.0
    %3521 = vmatpush1.msra.mxu0 0.0
    %3522 = vmatprep.subr.mxu0 0.0
    %3523 = vmatpush1.msra.mxu0 0.0
    %3524 = vmatprep.subr.mxu0 0.0
    %v3525 = vand.u32 %v49, 4294901760
    %v3526 = vsub.f32 %v49, %v3525
    %v3527 = vand.u32 %v3526, 4294901760
    %v3528 = vsub.f32 %v3526, %v3527
    %v3529 = vand.u32 %v3528, 4294901760
    %3530 = vmatpush1.msra.mxu0 %v3529
    %3531 = vmatprep.subr.mxu0 0.0
    %v3532 = vand.u32 %v48, 4294901760
    %v3533 = vsub.f32 %v48, %v3532
    %v3534 = vand.u32 %v3533, 4294901760
    %v3535 = vsub.f32 %v3533, %v3534
    %v3536 = vand.u32 %v3535, 4294901760
    %3537 = vmatpush1.msra.mxu0 %v3536
    %3538 = vmatprep.subr.mxu0 0.0
    %v3539 = vand.u32 %v47, 4294901760
    %v3540 = vsub.f32 %v47, %v3539
    %v3541 = vand.u32 %v3540, 4294901760
    %v3542 = vsub.f32 %v3540, %v3541
    %v3543 = vand.u32 %v3542, 4294901760
    %3544 = vmatpush1.msra.mxu0 %v3543
    %3545 = vmatprep.subr.mxu0 0.0
    %v3546 = vand.u32 %v46, 4294901760
    %v3547 = vsub.f32 %v46, %v3546
    %v3548 = vand.u32 %v3547, 4294901760
    %v3549 = vsub.f32 %v3547, %v3548
    %v3550 = vand.u32 %v3549, 4294901760
    %3551 = vmatpush1.msra.mxu0 %v3550
    %3552 = vmatprep.subr.mxu0 0.0
    %v3553 = vand.u32 %v45, 4294901760
    %v3554 = vsub.f32 %v45, %v3553
    %v3555 = vand.u32 %v3554, 4294901760
    %v3556 = vsub.f32 %v3554, %v3555
    %v3557 = vand.u32 %v3556, 4294901760
    %3558 = vmatpush1.msra.mxu0 %v3557
    %3559 = vmatprep.subr.mxu0 0.0
    %v3560 = vand.u32 %v44, 4294901760
    %v3561 = vsub.f32 %v44, %v3560
    %v3562 = vand.u32 %v3561, 4294901760
    %v3563 = vsub.f32 %v3561, %v3562
    %v3564 = vand.u32 %v3563, 4294901760
    %3565 = vmatpush1.msra.mxu0 %v3564
    %3566 = vmatprep.subr.mxu0 0.0
    %v3567 = vand.u32 %v43, 4294901760
    %v3568 = vsub.f32 %v43, %v3567
    %v3569 = vand.u32 %v3568, 4294901760
    %v3570 = vsub.f32 %v3568, %v3569
    %v3571 = vand.u32 %v3570, 4294901760
    %3572 = vmatpush1.msra.mxu0 %v3571
    %3573 = vmatprep.subr.mxu0 0.0
    %v3574 = vand.u32 %v42, 4294901760
    %v3575 = vsub.f32 %v42, %v3574
    %v3576 = vand.u32 %v3575, 4294901760
    %v3577 = vsub.f32 %v3575, %v3576
    %v3578 = vand.u32 %v3577, 4294901760
    %3579 = vmatpush1.msra.mxu0 %v3578
    %3580 = vmatprep.subr.mxu0 0.0
    %3581 = vmatpush2.msra.mxu0 0.0
    %3582 = vmatprep.subr.mxu0 0.0
    %3583 = vmatpush2.msra.mxu0 0.0
    %3584 = vmatprep.subr.mxu0 0.0
    %3585 = vmatpush2.msra.mxu0 0.0
    %3586 = vmatprep.subr.mxu0 0.0
    %3587 = vmatpush2.msra.mxu0 0.0
    %3588 = vmatprep.subr.mxu0 0.0
    %3589 = vmatpush2.msra.mxu0 0.0
    %3590 = vmatprep.subr.mxu0 0.0
    %3591 = vmatpush2.msra.mxu0 0.0
    %3592 = vmatprep.subr.mxu0 0.0
    %3593 = vmatpush2.msra.mxu0 0.0
    %3594 = vmatprep.subr.mxu0 0.0
    %3595 = vmatpush2.msra.mxu0 0.0
    %3596 = vmatprep.subr.mxu0 0.0
    %3597 = vmatpush2.msra.mxu0 0.0
    %3598 = vmatprep.subr.mxu0 0.0
    %3599 = vmatpush2.msra.mxu0 0.0
    %3600 = vmatprep.subr.mxu0 0.0
    %3601 = vmatpush2.msra.mxu0 0.0
    %3602 = vmatprep.subr.mxu0 0.0
    %3603 = vmatpush2.msra.mxu0 0.0
    %3604 = vmatprep.subr.mxu0 0.0
    %3605 = vmatpush2.msra.mxu0 0.0
    %3606 = vmatprep.subr.mxu0 0.0
    %3607 = vmatpush2.msra.mxu0 0.0
    %3608 = vmatprep.subr.mxu0 0.0
    %3609 = vmatpush2.msra.mxu0 0.0
    %3610 = vmatprep.subr.mxu0 0.0
    %3611 = vmatpush2.msra.mxu0 0.0
    %3612 = vmatprep.mubr.f32.mxu0 0.0
    %v3613 = vand.u32 %v3423, 4294901760
    %3614 = vmatmul.mubr.f32.gmra.mxu0 %v3613
    %v3615 = vpop.f32.mrf.mxu0
    %v3616 = vadd.f32 %v3505, %v3615
    %v3617 = vpop.f32.mrf.mxu0
    %3618 = vdwg.mxu0
    %3619 = vmatprep.subr.mxu0 0.0
    %3620 = vmatpush1.msra.mxu0 0.0
    %3621 = vmatprep.subr.mxu0 0.0
    %3622 = vmatpush1.msra.mxu0 0.0
    %3623 = vmatprep.subr.mxu0 0.0
    %3624 = vmatpush1.msra.mxu0 0.0
    %3625 = vmatprep.subr.mxu0 0.0
    %3626 = vmatpush1.msra.mxu0 0.0
    %3627 = vmatprep.subr.mxu0 0.0
    %3628 = vmatpush1.msra.mxu0 0.0
    %3629 = vmatprep.subr.mxu0 0.0
    %3630 = vmatpush1.msra.mxu0 0.0
    %3631 = vmatprep.subr.mxu0 0.0
    %3632 = vmatpush1.msra.mxu0 0.0
    %3633 = vmatprep.subr.mxu0 0.0
    %3634 = vmatpush1.msra.mxu0 0.0
    %3635 = vmatprep.subr.mxu0 0.0
    %v3636 = vand.u32 %v49, 4294901760
    %v3637 = vsub.f32 %v49, %v3636
    %3638 = vmatpush1.msra.mxu0 %v3637
    %3639 = vmatprep.subr.mxu0 0.0
    %v3640 = vand.u32 %v48, 4294901760
    %v3641 = vsub.f32 %v48, %v3640
    %3642 = vmatpush1.msra.mxu0 %v3641
    %3643 = vmatprep.subr.mxu0 0.0
    %v3644 = vand.u32 %v47, 4294901760
    %v3645 = vsub.f32 %v47, %v3644
    %3646 = vmatpush1.msra.mxu0 %v3645
    %3647 = vmatprep.subr.mxu0 0.0
    %v3648 = vand.u32 %v46, 4294901760
    %v3649 = vsub.f32 %v46, %v3648
    %3650 = vmatpush1.msra.mxu0 %v3649
    %3651 = vmatprep.subr.mxu0 0.0
    %v3652 = vand.u32 %v45, 4294901760
    %v3653 = vsub.f32 %v45, %v3652
    %3654 = vmatpush1.msra.mxu0 %v3653
    %3655 = vmatprep.subr.mxu0 0.0
    %v3656 = vand.u32 %v44, 4294901760
    %v3657 = vsub.f32 %v44, %v3656
    %3658 = vmatpush1.msra.mxu0 %v3657
    %3659 = vmatprep.subr.mxu0 0.0
    %v3660 = vand.u32 %v43, 4294901760
    %v3661 = vsub.f32 %v43, %v3660
    %3662 = vmatpush1.msra.mxu0 %v3661
    %3663 = vmatprep.subr.mxu0 0.0
    %v3664 = vand.u32 %v42, 4294901760
    %v3665 = vsub.f32 %v42, %v3664
    %3666 = vmatpush1.msra.mxu0 %v3665
    %3667 = vmatprep.subr.mxu0 0.0
    %3668 = vmatpush2.msra.mxu0 0.0
    %3669 = vmatprep.subr.mxu0 0.0
    %3670 = vmatpush2.msra.mxu0 0.0
    %3671 = vmatprep.subr.mxu0 0.0
    %3672 = vmatpush2.msra.mxu0 0.0
    %3673 = vmatprep.subr.mxu0 0.0
    %3674 = vmatpush2.msra.mxu0 0.0
    %3675 = vmatprep.subr.mxu0 0.0
    %3676 = vmatpush2.msra.mxu0 0.0
    %3677 = vmatprep.subr.mxu0 0.0
    %3678 = vmatpush2.msra.mxu0 0.0
    %3679 = vmatprep.subr.mxu0 0.0
    %3680 = vmatpush2.msra.mxu0 0.0
    %3681 = vmatprep.subr.mxu0 0.0
    %3682 = vmatpush2.msra.mxu0 0.0
    %3683 = vmatprep.subr.mxu0 0.0
    %3684 = vmatpush2.msra.mxu0 0.0
    %3685 = vmatprep.subr.mxu0 0.0
    %3686 = vmatpush2.msra.mxu0 0.0
    %3687 = vmatprep.subr.mxu0 0.0
    %3688 = vmatpush2.msra.mxu0 0.0
    %3689 = vmatprep.subr.mxu0 0.0
    %3690 = vmatpush2.msra.mxu0 0.0
    %3691 = vmatprep.subr.mxu0 0.0
    %3692 = vmatpush2.msra.mxu0 0.0
    %3693 = vmatprep.subr.mxu0 0.0
    %3694 = vmatpush2.msra.mxu0 0.0
    %3695 = vmatprep.subr.mxu0 0.0
    %3696 = vmatpush2.msra.mxu0 0.0
    %3697 = vmatprep.subr.mxu0 0.0
    %3698 = vmatpush2.msra.mxu0 0.0
    %3699 = vmatprep.mubr.f32.mxu0 0.0
    %v3700 = vand.u32 %v3423, 4294901760
    %v3701 = vsub.f32 %v3423, %v3700
    %3702 = vmatmul.mubr.f32.gmra.mxu0 %v3701
    %v3703 = vpop.f32.mrf.mxu0
    %v3704 = vadd.f32 %v3616, %v3703
    %v3705 = vpop.f32.mrf.mxu0
    %3706 = vdwg.mxu0
    %3707 = vmatprep.subr.mxu0 0.0
    %3708 = vmatpush1.msra.mxu0 0.0
    %3709 = vmatprep.subr.mxu0 0.0
    %3710 = vmatpush1.msra.mxu0 0.0
    %3711 = vmatprep.subr.mxu0 0.0
    %3712 = vmatpush1.msra.mxu0 0.0
    %3713 = vmatprep.subr.mxu0 0.0
    %3714 = vmatpush1.msra.mxu0 0.0
    %3715 = vmatprep.subr.mxu0 0.0
    %3716 = vmatpush1.msra.mxu0 0.0
    %3717 = vmatprep.subr.mxu0 0.0
    %3718 = vmatpush1.msra.mxu0 0.0
    %3719 = vmatprep.subr.mxu0 0.0
    %3720 = vmatpush1.msra.mxu0 0.0
    %3721 = vmatprep.subr.mxu0 0.0
    %3722 = vmatpush1.msra.mxu0 0.0
    %3723 = vmatprep.subr.mxu0 0.0
    %v3724 = vand.u32 %v49, 4294901760
    %3725 = vmatpush1.msra.mxu0 %v3724
    %3726 = vmatprep.subr.mxu0 0.0
    %v3727 = vand.u32 %v48, 4294901760
    %3728 = vmatpush1.msra.mxu0 %v3727
    %3729 = vmatprep.subr.mxu0 0.0
    %v3730 = vand.u32 %v47, 4294901760
    %3731 = vmatpush1.msra.mxu0 %v3730
    %3732 = vmatprep.subr.mxu0 0.0
    %v3733 = vand.u32 %v46, 4294901760
    %3734 = vmatpush1.msra.mxu0 %v3733
    %3735 = vmatprep.subr.mxu0 0.0
    %v3736 = vand.u32 %v45, 4294901760
    %3737 = vmatpush1.msra.mxu0 %v3736
    %3738 = vmatprep.subr.mxu0 0.0
    %v3739 = vand.u32 %v44, 4294901760
    %3740 = vmatpush1.msra.mxu0 %v3739
    %3741 = vmatprep.subr.mxu0 0.0
    %v3742 = vand.u32 %v43, 4294901760
    %3743 = vmatpush1.msra.mxu0 %v3742
    %3744 = vmatprep.subr.mxu0 0.0
    %v3745 = vand.u32 %v42, 4294901760
    %3746 = vmatpush1.msra.mxu0 %v3745
    %3747 = vmatprep.subr.mxu0 0.0
    %3748 = vmatpush2.msra.mxu0 0.0
    %3749 = vmatprep.subr.mxu0 0.0
    %3750 = vmatpush2.msra.mxu0 0.0
    %3751 = vmatprep.subr.mxu0 0.0
    %3752 = vmatpush2.msra.mxu0 0.0
    %3753 = vmatprep.subr.mxu0 0.0
    %3754 = vmatpush2.msra.mxu0 0.0
    %3755 = vmatprep.subr.mxu0 0.0
    %3756 = vmatpush2.msra.mxu0 0.0
    %3757 = vmatprep.subr.mxu0 0.0
    %3758 = vmatpush2.msra.mxu0 0.0
    %3759 = vmatprep.subr.mxu0 0.0
    %3760 = vmatpush2.msra.mxu0 0.0
    %3761 = vmatprep.subr.mxu0 0.0
    %3762 = vmatpush2.msra.mxu0 0.0
    %3763 = vmatprep.subr.mxu0 0.0
    %3764 = vmatpush2.msra.mxu0 0.0
    %3765 = vmatprep.subr.mxu0 0.0
    %3766 = vmatpush2.msra.mxu0 0.0
    %3767 = vmatprep.subr.mxu0 0.0
    %3768 = vmatpush2.msra.mxu0 0.0
    %3769 = vmatprep.subr.mxu0 0.0
    %3770 = vmatpush2.msra.mxu0 0.0
    %3771 = vmatprep.subr.mxu0 0.0
    %3772 = vmatpush2.msra.mxu0 0.0
    %3773 = vmatprep.subr.mxu0 0.0
    %3774 = vmatpush2.msra.mxu0 0.0
    %3775 = vmatprep.subr.mxu0 0.0
    %3776 = vmatpush2.msra.mxu0 0.0
    %3777 = vmatprep.subr.mxu0 0.0
    %3778 = vmatpush2.msra.mxu0 0.0
    %3779 = vmatprep.mubr.f32.mxu0 0.0
    %v3780 = vand.u32 %v3423, 4294901760
    %v3781 = vsub.f32 %v3423, %v3780
    %v3782 = vand.u32 %v3781, 4294901760
    %3783 = vmatmul.mubr.f32.gmra.mxu0 %v3782
    %v3784 = vpop.f32.mrf.mxu0
    %v3785 = vadd.f32 %v3704, %v3784
    %v3786 = vpop.f32.mrf.mxu0
    %3787 = vdwg.mxu0
    %3788 = vmatprep.subr.mxu0 0.0
    %3789 = vmatpush1.msra.mxu0 0.0
    %3790 = vmatprep.subr.mxu0 0.0
    %3791 = vmatpush1.msra.mxu0 0.0
    %3792 = vmatprep.subr.mxu0 0.0
    %3793 = vmatpush1.msra.mxu0 0.0
    %3794 = vmatprep.subr.mxu0 0.0
    %3795 = vmatpush1.msra.mxu0 0.0
    %3796 = vmatprep.subr.mxu0 0.0
    %3797 = vmatpush1.msra.mxu0 0.0
    %3798 = vmatprep.subr.mxu0 0.0
    %3799 = vmatpush1.msra.mxu0 0.0
    %3800 = vmatprep.subr.mxu0 0.0
    %3801 = vmatpush1.msra.mxu0 0.0
    %3802 = vmatprep.subr.mxu0 0.0
    %3803 = vmatpush1.msra.mxu0 0.0
    %3804 = vmatprep.subr.mxu0 0.0
    %v3805 = vand.u32 %v49, 4294901760
    %v3806 = vsub.f32 %v49, %v3805
    %v3807 = vand.u32 %v3806, 4294901760
    %3808 = vmatpush1.msra.mxu0 %v3807
    %3809 = vmatprep.subr.mxu0 0.0
    %v3810 = vand.u32 %v48, 4294901760
    %v3811 = vsub.f32 %v48, %v3810
    %v3812 = vand.u32 %v3811, 4294901760
    %3813 = vmatpush1.msra.mxu0 %v3812
    %3814 = vmatprep.subr.mxu0 0.0
    %v3815 = vand.u32 %v47, 4294901760
    %v3816 = vsub.f32 %v47, %v3815
    %v3817 = vand.u32 %v3816, 4294901760
    %3818 = vmatpush1.msra.mxu0 %v3817
    %3819 = vmatprep.subr.mxu0 0.0
    %v3820 = vand.u32 %v46, 4294901760
    %v3821 = vsub.f32 %v46, %v3820
    %v3822 = vand.u32 %v3821, 4294901760
    %3823 = vmatpush1.msra.mxu0 %v3822
    %3824 = vmatprep.subr.mxu0 0.0
    %v3825 = vand.u32 %v45, 4294901760
    %v3826 = vsub.f32 %v45, %v3825
    %v3827 = vand.u32 %v3826, 4294901760
    %3828 = vmatpush1.msra.mxu0 %v3827
    %3829 = vmatprep.subr.mxu0 0.0
    %v3830 = vand.u32 %v44, 4294901760
    %v3831 = vsub.f32 %v44, %v3830
    %v3832 = vand.u32 %v3831, 4294901760
    %3833 = vmatpush1.msra.mxu0 %v3832
    %3834 = vmatprep.subr.mxu0 0.0
    %v3835 = vand.u32 %v43, 4294901760
    %v3836 = vsub.f32 %v43, %v3835
    %v3837 = vand.u32 %v3836, 4294901760
    %3838 = vmatpush1.msra.mxu0 %v3837
    %3839 = vmatprep.subr.mxu0 0.0
    %v3840 = vand.u32 %v42, 4294901760
    %v3841 = vsub.f32 %v42, %v3840
    %v3842 = vand.u32 %v3841, 4294901760
    %3843 = vmatpush1.msra.mxu0 %v3842
    %3844 = vmatprep.subr.mxu0 0.0
    %3845 = vmatpush2.msra.mxu0 0.0
    %3846 = vmatprep.subr.mxu0 0.0
    %3847 = vmatpush2.msra.mxu0 0.0
    %3848 = vmatprep.subr.mxu0 0.0
    %3849 = vmatpush2.msra.mxu0 0.0
    %3850 = vmatprep.subr.mxu0 0.0
    %3851 = vmatpush2.msra.mxu0 0.0
    %3852 = vmatprep.subr.mxu0 0.0
    %3853 = vmatpush2.msra.mxu0 0.0
    %3854 = vmatprep.subr.mxu0 0.0
    %3855 = vmatpush2.msra.mxu0 0.0
    %3856 = vmatprep.subr.mxu0 0.0
    %3857 = vmatpush2.msra.mxu0 0.0
    %3858 = vmatprep.subr.mxu0 0.0
    %3859 = vmatpush2.msra.mxu0 0.0
    %3860 = vmatprep.subr.mxu0 0.0
    %3861 = vmatpush2.msra.mxu0 0.0
    %3862 = vmatprep.subr.mxu0 0.0
    %3863 = vmatpush2.msra.mxu0 0.0
    %3864 = vmatprep.subr.mxu0 0.0
    %3865 = vmatpush2.msra.mxu0 0.0
    %3866 = vmatprep.subr.mxu0 0.0
    %3867 = vmatpush2.msra.mxu0 0.0
    %3868 = vmatprep.subr.mxu0 0.0
    %3869 = vmatpush2.msra.mxu0 0.0
    %3870 = vmatprep.subr.mxu0 0.0
    %3871 = vmatpush2.msra.mxu0 0.0
    %3872 = vmatprep.subr.mxu0 0.0
    %3873 = vmatpush2.msra.mxu0 0.0
    %3874 = vmatprep.subr.mxu0 0.0
    %3875 = vmatpush2.msra.mxu0 0.0
    %3876 = vmatprep.mubr.f32.mxu0 0.0
    %v3877 = vand.u32 %v3423, 4294901760
    %3878 = vmatmul.mubr.f32.gmra.mxu0 %v3877
    %v3879 = vpop.f32.mrf.mxu0
    %v3880 = vadd.f32 %v3785, %v3879
    %v3881 = vpop.f32.mrf.mxu0
    %3882 = vdwg.mxu0
    %3883 = vmatprep.subr.mxu0 0.0
    %3884 = vmatpush1.msra.mxu0 0.0
    %3885 = vmatprep.subr.mxu0 0.0
    %3886 = vmatpush1.msra.mxu0 0.0
    %3887 = vmatprep.subr.mxu0 0.0
    %3888 = vmatpush1.msra.mxu0 0.0
    %3889 = vmatprep.subr.mxu0 0.0
    %3890 = vmatpush1.msra.mxu0 0.0
    %3891 = vmatprep.subr.mxu0 0.0
    %3892 = vmatpush1.msra.mxu0 0.0
    %3893 = vmatprep.subr.mxu0 0.0
    %3894 = vmatpush1.msra.mxu0 0.0
    %3895 = vmatprep.subr.mxu0 0.0
    %3896 = vmatpush1.msra.mxu0 0.0
    %3897 = vmatprep.subr.mxu0 0.0
    %3898 = vmatpush1.msra.mxu0 0.0
    %3899 = vmatprep.subr.mxu0 0.0
    %v3900 = vand.u32 %v49, 4294901760
    %3901 = vmatpush1.msra.mxu0 %v3900
    %3902 = vmatprep.subr.mxu0 0.0
    %v3903 = vand.u32 %v48, 4294901760
    %3904 = vmatpush1.msra.mxu0 %v3903
    %3905 = vmatprep.subr.mxu0 0.0
    %v3906 = vand.u32 %v47, 4294901760
    %3907 = vmatpush1.msra.mxu0 %v3906
    %3908 = vmatprep.subr.mxu0 0.0
    %v3909 = vand.u32 %v46, 4294901760
    %3910 = vmatpush1.msra.mxu0 %v3909
    %3911 = vmatprep.subr.mxu0 0.0
    %v3912 = vand.u32 %v45, 4294901760
    %3913 = vmatpush1.msra.mxu0 %v3912
    %3914 = vmatprep.subr.mxu0 0.0
    %v3915 = vand.u32 %v44, 4294901760
    %3916 = vmatpush1.msra.mxu0 %v3915
    %3917 = vmatprep.subr.mxu0 0.0
    %v3918 = vand.u32 %v43, 4294901760
    %3919 = vmatpush1.msra.mxu0 %v3918
    %3920 = vmatprep.subr.mxu0 0.0
    %v3921 = vand.u32 %v42, 4294901760
    %3922 = vmatpush1.msra.mxu0 %v3921
    %3923 = vmatprep.subr.mxu0 0.0
    %3924 = vmatpush2.msra.mxu0 0.0
    %3925 = vmatprep.subr.mxu0 0.0
    %3926 = vmatpush2.msra.mxu0 0.0
    %3927 = vmatprep.subr.mxu0 0.0
    %3928 = vmatpush2.msra.mxu0 0.0
    %3929 = vmatprep.subr.mxu0 0.0
    %3930 = vmatpush2.msra.mxu0 0.0
    %3931 = vmatprep.subr.mxu0 0.0
    %3932 = vmatpush2.msra.mxu0 0.0
    %3933 = vmatprep.subr.mxu0 0.0
    %3934 = vmatpush2.msra.mxu0 0.0
    %3935 = vmatprep.subr.mxu0 0.0
    %3936 = vmatpush2.msra.mxu0 0.0
    %3937 = vmatprep.subr.mxu0 0.0
    %3938 = vmatpush2.msra.mxu0 0.0
    %3939 = vmatprep.subr.mxu0 0.0
    %3940 = vmatpush2.msra.mxu0 0.0
    %3941 = vmatprep.subr.mxu0 0.0
    %3942 = vmatpush2.msra.mxu0 0.0
    %3943 = vmatprep.subr.mxu0 0.0
    %3944 = vmatpush2.msra.mxu0 0.0
    %3945 = vmatprep.subr.mxu0 0.0
    %3946 = vmatpush2.msra.mxu0 0.0
    %3947 = vmatprep.subr.mxu0 0.0
    %3948 = vmatpush2.msra.mxu0 0.0
    %3949 = vmatprep.subr.mxu0 0.0
    %3950 = vmatpush2.msra.mxu0 0.0
    %3951 = vmatprep.subr.mxu0 0.0
    %3952 = vmatpush2.msra.mxu0 0.0
    %3953 = vmatprep.subr.mxu0 0.0
    %3954 = vmatpush2.msra.mxu0 0.0
    %3955 = vmatprep.mubr.f32.mxu0 0.0
    %v3956 = vand.u32 %v3423, 4294901760
    %3957 = vmatmul.mubr.f32.gmra.mxu0 %v3956
    %v3958 = vpop.f32.mrf.mxu0
    %v3959 = vadd.f32 %v3880, %v3958
    %v3960 = vpop.f32.mrf.mxu0
    %3961 = vdwg.mxu0
    %v3962 = vtanh.pop %v3959
    %v3964 = vsel %vm853, %v3416, 0
    %3966 = vmatprep.subr.mxu0 0.0
    %3967 = vmatpush1.msra.mxu0 0.0
    %3968 = vmatprep.subr.mxu0 0.0
    %3969 = vmatpush1.msra.mxu0 0.0
    %3970 = vmatprep.subr.mxu0 0.0
    %3971 = vmatpush1.msra.mxu0 0.0
    %3972 = vmatprep.subr.mxu0 0.0
    %3973 = vmatpush1.msra.mxu0 0.0
    %3974 = vmatprep.subr.mxu0 0.0
    %3975 = vmatpush1.msra.mxu0 0.0
    %3976 = vmatprep.subr.mxu0 0.0
    %3977 = vmatpush1.msra.mxu0 0.0
    %3978 = vmatprep.subr.mxu0 0.0
    %3979 = vmatpush1.msra.mxu0 0.0
    %3980 = vmatprep.subr.mxu0 0.0
    %3981 = vmatpush1.msra.mxu0 0.0
    %3982 = vmatprep.subr.mxu0 0.0
    %3983 = vmatpush1.msra.mxu0 0.0
    %3984 = vmatprep.subr.mxu0 0.0
    %3985 = vmatpush1.msra.mxu0 0.0
    %3986 = vmatprep.subr.mxu0 0.0
    %3987 = vmatpush1.msra.mxu0 0.0
    %3988 = vmatprep.subr.mxu0 0.0
    %3989 = vmatpush1.msra.mxu0 0.0
    %3990 = vmatprep.subr.mxu0 0.0
    %v3991 = vand.u32 %v41, 4294901760
    %3992 = vmatpush1.msra.mxu0 %v3991
    %3993 = vmatprep.subr.mxu0 0.0
    %v3994 = vand.u32 %v40, 4294901760
    %3995 = vmatpush1.msra.mxu0 %v3994
    %3996 = vmatprep.subr.mxu0 0.0
    %v3997 = vand.u32 %v39, 4294901760
    %3998 = vmatpush1.msra.mxu0 %v3997
    %3999 = vmatprep.subr.mxu0 0.0
    %v4000 = vand.u32 %v38, 4294901760
    %4001 = vmatpush1.msra.mxu0 %v4000
    %4002 = vmatprep.subr.mxu0 0.0
    %4003 = vmatpush2.msra.mxu0 0.0
    %4004 = vmatprep.subr.mxu0 0.0
    %4005 = vmatpush2.msra.mxu0 0.0
    %4006 = vmatprep.subr.mxu0 0.0
    %4007 = vmatpush2.msra.mxu0 0.0
    %4008 = vmatprep.subr.mxu0 0.0
    %4009 = vmatpush2.msra.mxu0 0.0
    %4010 = vmatprep.subr.mxu0 0.0
    %4011 = vmatpush2.msra.mxu0 0.0
    %4012 = vmatprep.subr.mxu0 0.0
    %4013 = vmatpush2.msra.mxu0 0.0
    %4014 = vmatprep.subr.mxu0 0.0
    %4015 = vmatpush2.msra.mxu0 0.0
    %4016 = vmatprep.subr.mxu0 0.0
    %4017 = vmatpush2.msra.mxu0 0.0
    %4018 = vmatprep.subr.mxu0 0.0
    %4019 = vmatpush2.msra.mxu0 0.0
    %4020 = vmatprep.subr.mxu0 0.0
    %4021 = vmatpush2.msra.mxu0 0.0
    %4022 = vmatprep.subr.mxu0 0.0
    %4023 = vmatpush2.msra.mxu0 0.0
    %4024 = vmatprep.subr.mxu0 0.0
    %4025 = vmatpush2.msra.mxu0 0.0
    %4026 = vmatprep.subr.mxu0 0.0
    %4027 = vmatpush2.msra.mxu0 0.0
    %4028 = vmatprep.subr.mxu0 0.0
    %4029 = vmatpush2.msra.mxu0 0.0
    %4030 = vmatprep.subr.mxu0 0.0
    %4031 = vmatpush2.msra.mxu0 0.0
    %4032 = vmatprep.subr.mxu0 0.0
    %4033 = vmatpush2.msra.mxu0 0.0
    %4034 = vmatprep.mubr.f32.mxu0 0.0
    %v4035 = vand.u32 %v3964, 4294901760
    %v4036 = vsub.f32 %v3964, %v4035
    %v4037 = vand.u32 %v4036, 4294901760
    %v4038 = vsub.f32 %v4036, %v4037
    %v4039 = vand.u32 %v4038, 4294901760
    %4040 = vmatmul.mubr.f32.gmra.mxu0 %v4039
    %v4041 = vpop.f32.mrf.mxu0
    %v4042 = vadd.f32 %v823, %v4041
    %v4043 = vpop.f32.mrf.mxu0
    %4044 = vdwg.mxu0
    %4045 = vmatprep.subr.mxu0 0.0
    %4046 = vmatpush1.msra.mxu0 0.0
    %4047 = vmatprep.subr.mxu0 0.0
    %4048 = vmatpush1.msra.mxu0 0.0
    %4049 = vmatprep.subr.mxu0 0.0
    %4050 = vmatpush1.msra.mxu0 0.0
    %4051 = vmatprep.subr.mxu0 0.0
    %4052 = vmatpush1.msra.mxu0 0.0
    %4053 = vmatprep.subr.mxu0 0.0
    %4054 = vmatpush1.msra.mxu0 0.0
    %4055 = vmatprep.subr.mxu0 0.0
    %4056 = vmatpush1.msra.mxu0 0.0
    %4057 = vmatprep.subr.mxu0 0.0
    %4058 = vmatpush1.msra.mxu0 0.0
    %4059 = vmatprep.subr.mxu0 0.0
    %4060 = vmatpush1.msra.mxu0 0.0
    %4061 = vmatprep.subr.mxu0 0.0
    %4062 = vmatpush1.msra.mxu0 0.0
    %4063 = vmatprep.subr.mxu0 0.0
    %4064 = vmatpush1.msra.mxu0 0.0
    %4065 = vmatprep.subr.mxu0 0.0
    %4066 = vmatpush1.msra.mxu0 0.0
    %4067 = vmatprep.subr.mxu0 0.0
    %4068 = vmatpush1.msra.mxu0 0.0
    %4069 = vmatprep.subr.mxu0 0.0
    %v4070 = vand.u32 %v41, 4294901760
    %v4071 = vsub.f32 %v41, %v4070
    %v4072 = vand.u32 %v4071, 4294901760
    %v4073 = vsub.f32 %v4071, %v4072
    %v4074 = vand.u32 %v4073, 4294901760
    %4075 = vmatpush1.msra.mxu0 %v4074
    %4076 = vmatprep.subr.mxu0 0.0
    %v4077 = vand.u32 %v40, 4294901760
    %v4078 = vsub.f32 %v40, %v4077
    %v4079 = vand.u32 %v4078, 4294901760
    %v4080 = vsub.f32 %v4078, %v4079
    %v4081 = vand.u32 %v4080, 4294901760
    %4082 = vmatpush1.msra.mxu0 %v4081
    %4083 = vmatprep.subr.mxu0 0.0
    %v4084 = vand.u32 %v39, 4294901760
    %v4085 = vsub.f32 %v39, %v4084
    %v4086 = vand.u32 %v4085, 4294901760
    %v4087 = vsub.f32 %v4085, %v4086
    %v4088 = vand.u32 %v4087, 4294901760
    %4089 = vmatpush1.msra.mxu0 %v4088
    %4090 = vmatprep.subr.mxu0 0.0
    %v4091 = vand.u32 %v38, 4294901760
    %v4092 = vsub.f32 %v38, %v4091
    %v4093 = vand.u32 %v4092, 4294901760
    %v4094 = vsub.f32 %v4092, %v4093
    %v4095 = vand.u32 %v4094, 4294901760
    %4096 = vmatpush1.msra.mxu0 %v4095
    %4097 = vmatprep.subr.mxu0 0.0
    %4098 = vmatpush2.msra.mxu0 0.0
    %4099 = vmatprep.subr.mxu0 0.0
    %4100 = vmatpush2.msra.mxu0 0.0
    %4101 = vmatprep.subr.mxu0 0.0
    %4102 = vmatpush2.msra.mxu0 0.0
    %4103 = vmatprep.subr.mxu0 0.0
    %4104 = vmatpush2.msra.mxu0 0.0
    %4105 = vmatprep.subr.mxu0 0.0
    %4106 = vmatpush2.msra.mxu0 0.0
    %4107 = vmatprep.subr.mxu0 0.0
    %4108 = vmatpush2.msra.mxu0 0.0
    %4109 = vmatprep.subr.mxu0 0.0
    %4110 = vmatpush2.msra.mxu0 0.0
    %4111 = vmatprep.subr.mxu0 0.0
    %4112 = vmatpush2.msra.mxu0 0.0
    %4113 = vmatprep.subr.mxu0 0.0
    %4114 = vmatpush2.msra.mxu0 0.0
    %4115 = vmatprep.subr.mxu0 0.0
    %4116 = vmatpush2.msra.mxu0 0.0
    %4117 = vmatprep.subr.mxu0 0.0
    %4118 = vmatpush2.msra.mxu0 0.0
    %4119 = vmatprep.subr.mxu0 0.0
    %4120 = vmatpush2.msra.mxu0 0.0
    %4121 = vmatprep.subr.mxu0 0.0
    %4122 = vmatpush2.msra.mxu0 0.0
    %4123 = vmatprep.subr.mxu0 0.0
    %4124 = vmatpush2.msra.mxu0 0.0
    %4125 = vmatprep.subr.mxu0 0.0
    %4126 = vmatpush2.msra.mxu0 0.0
    %4127 = vmatprep.subr.mxu0 0.0
    %4128 = vmatpush2.msra.mxu0 0.0
    %4129 = vmatprep.mubr.f32.mxu0 0.0
    %v4130 = vand.u32 %v3964, 4294901760
    %4131 = vmatmul.mubr.f32.gmra.mxu0 %v4130
    %v4132 = vpop.f32.mrf.mxu0
    %v4133 = vadd.f32 %v4042, %v4132
    %v4134 = vpop.f32.mrf.mxu0
    %4135 = vdwg.mxu0
    %4136 = vmatprep.subr.mxu0 0.0
    %4137 = vmatpush1.msra.mxu0 0.0
    %4138 = vmatprep.subr.mxu0 0.0
    %4139 = vmatpush1.msra.mxu0 0.0
    %4140 = vmatprep.subr.mxu0 0.0
    %4141 = vmatpush1.msra.mxu0 0.0
    %4142 = vmatprep.subr.mxu0 0.0
    %4143 = vmatpush1.msra.mxu0 0.0
    %4144 = vmatprep.subr.mxu0 0.0
    %4145 = vmatpush1.msra.mxu0 0.0
    %4146 = vmatprep.subr.mxu0 0.0
    %4147 = vmatpush1.msra.mxu0 0.0
    %4148 = vmatprep.subr.mxu0 0.0
    %4149 = vmatpush1.msra.mxu0 0.0
    %4150 = vmatprep.subr.mxu0 0.0
    %4151 = vmatpush1.msra.mxu0 0.0
    %4152 = vmatprep.subr.mxu0 0.0
    %4153 = vmatpush1.msra.mxu0 0.0
    %4154 = vmatprep.subr.mxu0 0.0
    %4155 = vmatpush1.msra.mxu0 0.0
    %4156 = vmatprep.subr.mxu0 0.0
    %4157 = vmatpush1.msra.mxu0 0.0
    %4158 = vmatprep.subr.mxu0 0.0
    %4159 = vmatpush1.msra.mxu0 0.0
    %4160 = vmatprep.subr.mxu0 0.0
    %v4161 = vand.u32 %v41, 4294901760
    %v4162 = vsub.f32 %v41, %v4161
    %4163 = vmatpush1.msra.mxu0 %v4162
    %4164 = vmatprep.subr.mxu0 0.0
    %v4165 = vand.u32 %v40, 4294901760
    %v4166 = vsub.f32 %v40, %v4165
    %4167 = vmatpush1.msra.mxu0 %v4166
    %4168 = vmatprep.subr.mxu0 0.0
    %v4169 = vand.u32 %v39, 4294901760
    %v4170 = vsub.f32 %v39, %v4169
    %4171 = vmatpush1.msra.mxu0 %v4170
    %4172 = vmatprep.subr.mxu0 0.0
    %v4173 = vand.u32 %v38, 4294901760
    %v4174 = vsub.f32 %v38, %v4173
    %4175 = vmatpush1.msra.mxu0 %v4174
    %4176 = vmatprep.subr.mxu0 0.0
    %4177 = vmatpush2.msra.mxu0 0.0
    %4178 = vmatprep.subr.mxu0 0.0
    %4179 = vmatpush2.msra.mxu0 0.0
    %4180 = vmatprep.subr.mxu0 0.0
    %4181 = vmatpush2.msra.mxu0 0.0
    %4182 = vmatprep.subr.mxu0 0.0
    %4183 = vmatpush2.msra.mxu0 0.0
    %4184 = vmatprep.subr.mxu0 0.0
    %4185 = vmatpush2.msra.mxu0 0.0
    %4186 = vmatprep.subr.mxu0 0.0
    %4187 = vmatpush2.msra.mxu0 0.0
    %4188 = vmatprep.subr.mxu0 0.0
    %4189 = vmatpush2.msra.mxu0 0.0
    %4190 = vmatprep.subr.mxu0 0.0
    %4191 = vmatpush2.msra.mxu0 0.0
    %4192 = vmatprep.subr.mxu0 0.0
    %4193 = vmatpush2.msra.mxu0 0.0
    %4194 = vmatprep.subr.mxu0 0.0
    %4195 = vmatpush2.msra.mxu0 0.0
    %4196 = vmatprep.subr.mxu0 0.0
    %4197 = vmatpush2.msra.mxu0 0.0
    %4198 = vmatprep.subr.mxu0 0.0
    %4199 = vmatpush2.msra.mxu0 0.0
    %4200 = vmatprep.subr.mxu0 0.0
    %4201 = vmatpush2.msra.mxu0 0.0
    %4202 = vmatprep.subr.mxu0 0.0
    %4203 = vmatpush2.msra.mxu0 0.0
    %4204 = vmatprep.subr.mxu0 0.0
    %4205 = vmatpush2.msra.mxu0 0.0
    %4206 = vmatprep.subr.mxu0 0.0
    %4207 = vmatpush2.msra.mxu0 0.0
    %4208 = vmatprep.mubr.f32.mxu0 0.0
    %v4209 = vand.u32 %v3964, 4294901760
    %v4210 = vsub.f32 %v3964, %v4209
    %4211 = vmatmul.mubr.f32.gmra.mxu0 %v4210
    %v4212 = vpop.f32.mrf.mxu0
    %v4213 = vadd.f32 %v4133, %v4212
    %v4214 = vpop.f32.mrf.mxu0
    %4215 = vdwg.mxu0
    %4216 = vmatprep.subr.mxu0 0.0
    %4217 = vmatpush1.msra.mxu0 0.0
    %4218 = vmatprep.subr.mxu0 0.0
    %4219 = vmatpush1.msra.mxu0 0.0
    %4220 = vmatprep.subr.mxu0 0.0
    %4221 = vmatpush1.msra.mxu0 0.0
    %4222 = vmatprep.subr.mxu0 0.0
    %4223 = vmatpush1.msra.mxu0 0.0
    %4224 = vmatprep.subr.mxu0 0.0
    %4225 = vmatpush1.msra.mxu0 0.0
    %4226 = vmatprep.subr.mxu0 0.0
    %4227 = vmatpush1.msra.mxu0 0.0
    %4228 = vmatprep.subr.mxu0 0.0
    %4229 = vmatpush1.msra.mxu0 0.0
    %4230 = vmatprep.subr.mxu0 0.0
    %4231 = vmatpush1.msra.mxu0 0.0
    %4232 = vmatprep.subr.mxu0 0.0
    %4233 = vmatpush1.msra.mxu0 0.0
    %4234 = vmatprep.subr.mxu0 0.0
    %4235 = vmatpush1.msra.mxu0 0.0
    %4236 = vmatprep.subr.mxu0 0.0
    %4237 = vmatpush1.msra.mxu0 0.0
    %4238 = vmatprep.subr.mxu0 0.0
    %4239 = vmatpush1.msra.mxu0 0.0
    %4240 = vmatprep.subr.mxu0 0.0
    %v4241 = vand.u32 %v41, 4294901760
    %4242 = vmatpush1.msra.mxu0 %v4241
    %4243 = vmatprep.subr.mxu0 0.0
    %v4244 = vand.u32 %v40, 4294901760
    %4245 = vmatpush1.msra.mxu0 %v4244
    %4246 = vmatprep.subr.mxu0 0.0
    %v4247 = vand.u32 %v39, 4294901760
    %4248 = vmatpush1.msra.mxu0 %v4247
    %4249 = vmatprep.subr.mxu0 0.0
    %v4250 = vand.u32 %v38, 4294901760
    %4251 = vmatpush1.msra.mxu0 %v4250
    %4252 = vmatprep.subr.mxu0 0.0
    %4253 = vmatpush2.msra.mxu0 0.0
    %4254 = vmatprep.subr.mxu0 0.0
    %4255 = vmatpush2.msra.mxu0 0.0
    %4256 = vmatprep.subr.mxu0 0.0
    %4257 = vmatpush2.msra.mxu0 0.0
    %4258 = vmatprep.subr.mxu0 0.0
    %4259 = vmatpush2.msra.mxu0 0.0
    %4260 = vmatprep.subr.mxu0 0.0
    %4261 = vmatpush2.msra.mxu0 0.0
    %4262 = vmatprep.subr.mxu0 0.0
    %4263 = vmatpush2.msra.mxu0 0.0
    %4264 = vmatprep.subr.mxu0 0.0
    %4265 = vmatpush2.msra.mxu0 0.0
    %4266 = vmatprep.subr.mxu0 0.0
    %4267 = vmatpush2.msra.mxu0 0.0
    %4268 = vmatprep.subr.mxu0 0.0
    %4269 = vmatpush2.msra.mxu0 0.0
    %4270 = vmatprep.subr.mxu0 0.0
    %4271 = vmatpush2.msra.mxu0 0.0
    %4272 = vmatprep.subr.mxu0 0.0
    %4273 = vmatpush2.msra.mxu0 0.0
    %4274 = vmatprep.subr.mxu0 0.0
    %4275 = vmatpush2.msra.mxu0 0.0
    %4276 = vmatprep.subr.mxu0 0.0
    %4277 = vmatpush2.msra.mxu0 0.0
    %4278 = vmatprep.subr.mxu0 0.0
    %4279 = vmatpush2.msra.mxu0 0.0
    %4280 = vmatprep.subr.mxu0 0.0
    %4281 = vmatpush2.msra.mxu0 0.0
    %4282 = vmatprep.subr.mxu0 0.0
    %4283 = vmatpush2.msra.mxu0 0.0
    %4284 = vmatprep.mubr.f32.mxu0 0.0
    %v4285 = vand.u32 %v3964, 4294901760
    %v4286 = vsub.f32 %v3964, %v4285
    %v4287 = vand.u32 %v4286, 4294901760
    %4288 = vmatmul.mubr.f32.gmra.mxu0 %v4287
    %v4289 = vpop.f32.mrf.mxu0
    %v4290 = vadd.f32 %v4213, %v4289
    %v4291 = vpop.f32.mrf.mxu0
    %4292 = vdwg.mxu0
    %4293 = vmatprep.subr.mxu0 0.0
    %4294 = vmatpush1.msra.mxu0 0.0
    %4295 = vmatprep.subr.mxu0 0.0
    %4296 = vmatpush1.msra.mxu0 0.0
    %4297 = vmatprep.subr.mxu0 0.0
    %4298 = vmatpush1.msra.mxu0 0.0
    %4299 = vmatprep.subr.mxu0 0.0
    %4300 = vmatpush1.msra.mxu0 0.0
    %4301 = vmatprep.subr.mxu0 0.0
    %4302 = vmatpush1.msra.mxu0 0.0
    %4303 = vmatprep.subr.mxu0 0.0
    %4304 = vmatpush1.msra.mxu0 0.0
    %4305 = vmatprep.subr.mxu0 0.0
    %4306 = vmatpush1.msra.mxu0 0.0
    %4307 = vmatprep.subr.mxu0 0.0
    %4308 = vmatpush1.msra.mxu0 0.0
    %4309 = vmatprep.subr.mxu0 0.0
    %4310 = vmatpush1.msra.mxu0 0.0
    %4311 = vmatprep.subr.mxu0 0.0
    %4312 = vmatpush1.msra.mxu0 0.0
    %4313 = vmatprep.subr.mxu0 0.0
    %4314 = vmatpush1.msra.mxu0 0.0
    %4315 = vmatprep.subr.mxu0 0.0
    %4316 = vmatpush1.msra.mxu0 0.0
    %4317 = vmatprep.subr.mxu0 0.0
    %v4318 = vand.u32 %v41, 4294901760
    %v4319 = vsub.f32 %v41, %v4318
    %v4320 = vand.u32 %v4319, 4294901760
    %4321 = vmatpush1.msra.mxu0 %v4320
    %4322 = vmatprep.subr.mxu0 0.0
    %v4323 = vand.u32 %v40, 4294901760
    %v4324 = vsub.f32 %v40, %v4323
    %v4325 = vand.u32 %v4324, 4294901760
    %4326 = vmatpush1.msra.mxu0 %v4325
    %4327 = vmatprep.subr.mxu0 0.0
    %v4328 = vand.u32 %v39, 4294901760
    %v4329 = vsub.f32 %v39, %v4328
    %v4330 = vand.u32 %v4329, 4294901760
    %4331 = vmatpush1.msra.mxu0 %v4330
    %4332 = vmatprep.subr.mxu0 0.0
    %v4333 = vand.u32 %v38, 4294901760
    %v4334 = vsub.f32 %v38, %v4333
    %v4335 = vand.u32 %v4334, 4294901760
    %4336 = vmatpush1.msra.mxu0 %v4335
    %4337 = vmatprep.subr.mxu0 0.0
    %4338 = vmatpush2.msra.mxu0 0.0
    %4339 = vmatprep.subr.mxu0 0.0
    %4340 = vmatpush2.msra.mxu0 0.0
    %4341 = vmatprep.subr.mxu0 0.0
    %4342 = vmatpush2.msra.mxu0 0.0
    %4343 = vmatprep.subr.mxu0 0.0
    %4344 = vmatpush2.msra.mxu0 0.0
    %4345 = vmatprep.subr.mxu0 0.0
    %4346 = vmatpush2.msra.mxu0 0.0
    %4347 = vmatprep.subr.mxu0 0.0
    %4348 = vmatpush2.msra.mxu0 0.0
    %4349 = vmatprep.subr.mxu0 0.0
    %4350 = vmatpush2.msra.mxu0 0.0
    %4351 = vmatprep.subr.mxu0 0.0
    %4352 = vmatpush2.msra.mxu0 0.0
    %4353 = vmatprep.subr.mxu0 0.0
    %4354 = vmatpush2.msra.mxu0 0.0
    %4355 = vmatprep.subr.mxu0 0.0
    %4356 = vmatpush2.msra.mxu0 0.0
    %4357 = vmatprep.subr.mxu0 0.0
    %4358 = vmatpush2.msra.mxu0 0.0
    %4359 = vmatprep.subr.mxu0 0.0
    %4360 = vmatpush2.msra.mxu0 0.0
    %4361 = vmatprep.subr.mxu0 0.0
    %4362 = vmatpush2.msra.mxu0 0.0
    %4363 = vmatprep.subr.mxu0 0.0
    %4364 = vmatpush2.msra.mxu0 0.0
    %4365 = vmatprep.subr.mxu0 0.0
    %4366 = vmatpush2.msra.mxu0 0.0
    %4367 = vmatprep.subr.mxu0 0.0
    %4368 = vmatpush2.msra.mxu0 0.0
    %4369 = vmatprep.mubr.f32.mxu0 0.0
    %v4370 = vand.u32 %v3964, 4294901760
    %4371 = vmatmul.mubr.f32.gmra.mxu0 %v4370
    %v4372 = vpop.f32.mrf.mxu0
    %v4373 = vadd.f32 %v4290, %v4372
    %v4374 = vpop.f32.mrf.mxu0
    %4375 = vdwg.mxu0
    %4376 = vmatprep.subr.mxu0 0.0
    %4377 = vmatpush1.msra.mxu0 0.0
    %4378 = vmatprep.subr.mxu0 0.0
    %4379 = vmatpush1.msra.mxu0 0.0
    %4380 = vmatprep.subr.mxu0 0.0
    %4381 = vmatpush1.msra.mxu0 0.0
    %4382 = vmatprep.subr.mxu0 0.0
    %4383 = vmatpush1.msra.mxu0 0.0
    %4384 = vmatprep.subr.mxu0 0.0
    %4385 = vmatpush1.msra.mxu0 0.0
    %4386 = vmatprep.subr.mxu0 0.0
    %4387 = vmatpush1.msra.mxu0 0.0
    %4388 = vmatprep.subr.mxu0 0.0
    %4389 = vmatpush1.msra.mxu0 0.0
    %4390 = vmatprep.subr.mxu0 0.0
    %4391 = vmatpush1.msra.mxu0 0.0
    %4392 = vmatprep.subr.mxu0 0.0
    %4393 = vmatpush1.msra.mxu0 0.0
    %4394 = vmatprep.subr.mxu0 0.0
    %4395 = vmatpush1.msra.mxu0 0.0
    %4396 = vmatprep.subr.mxu0 0.0
    %4397 = vmatpush1.msra.mxu0 0.0
    %4398 = vmatprep.subr.mxu0 0.0
    %4399 = vmatpush1.msra.mxu0 0.0
    %4400 = vmatprep.subr.mxu0 0.0
    %v4401 = vand.u32 %v41, 4294901760
    %4402 = vmatpush1.msra.mxu0 %v4401
    %4403 = vmatprep.subr.mxu0 0.0
    %v4404 = vand.u32 %v40, 4294901760
    %4405 = vmatpush1.msra.mxu0 %v4404
    %4406 = vmatprep.subr.mxu0 0.0
    %v4407 = vand.u32 %v39, 4294901760
    %4408 = vmatpush1.msra.mxu0 %v4407
    %4409 = vmatprep.subr.mxu0 0.0
    %v4410 = vand.u32 %v38, 4294901760
    %4411 = vmatpush1.msra.mxu0 %v4410
    %4412 = vmatprep.subr.mxu0 0.0
    %4413 = vmatpush2.msra.mxu0 0.0
    %4414 = vmatprep.subr.mxu0 0.0
    %4415 = vmatpush2.msra.mxu0 0.0
    %4416 = vmatprep.subr.mxu0 0.0
    %4417 = vmatpush2.msra.mxu0 0.0
    %4418 = vmatprep.subr.mxu0 0.0
    %4419 = vmatpush2.msra.mxu0 0.0
    %4420 = vmatprep.subr.mxu0 0.0
    %4421 = vmatpush2.msra.mxu0 0.0
    %4422 = vmatprep.subr.mxu0 0.0
    %4423 = vmatpush2.msra.mxu0 0.0
    %4424 = vmatprep.subr.mxu0 0.0
    %4425 = vmatpush2.msra.mxu0 0.0
    %4426 = vmatprep.subr.mxu0 0.0
    %4427 = vmatpush2.msra.mxu0 0.0
    %4428 = vmatprep.subr.mxu0 0.0
    %4429 = vmatpush2.msra.mxu0 0.0
    %4430 = vmatprep.subr.mxu0 0.0
    %4431 = vmatpush2.msra.mxu0 0.0
    %4432 = vmatprep.subr.mxu0 0.0
    %4433 = vmatpush2.msra.mxu0 0.0
    %4434 = vmatprep.subr.mxu0 0.0
    %4435 = vmatpush2.msra.mxu0 0.0
    %4436 = vmatprep.subr.mxu0 0.0
    %4437 = vmatpush2.msra.mxu0 0.0
    %4438 = vmatprep.subr.mxu0 0.0
    %4439 = vmatpush2.msra.mxu0 0.0
    %4440 = vmatprep.subr.mxu0 0.0
    %4441 = vmatpush2.msra.mxu0 0.0
    %4442 = vmatprep.subr.mxu0 0.0
    %4443 = vmatpush2.msra.mxu0 0.0
    %4444 = vmatprep.mubr.f32.mxu0 0.0
    %v4445 = vand.u32 %v3964, 4294901760
    %4446 = vmatmul.mubr.f32.gmra.mxu0 %v4445
    %v4447 = vpop.f32.mrf.mxu0
    %v4448 = vadd.f32 %v4373, %v4447
    %v4449 = vpop.f32.mrf.mxu0
    %4450 = vdwg.mxu0
    %v4451 = vadd.f32 %v4448, %v55
    %v4452 = vtanh.pop %v4451
    %4454 = vrot.lane.b32.xlu0 %v3962, 32
    %v4455 = vpop.permute.xlu0 %4454
    %v4457 = vsel %vm853, %v4452, %v4455
    %v4459 = vsel %vm1349, %v4457, 0
    %4461 = vmatprep.subr.mxu0 0.0
    %4462 = vmatpush1.msra.mxu0 0.0
    %4463 = vmatprep.subr.mxu0 0.0
    %4464 = vmatpush1.msra.mxu0 0.0
    %4465 = vmatprep.subr.mxu0 0.0
    %4466 = vmatpush1.msra.mxu0 0.0
    %4467 = vmatprep.subr.mxu0 0.0
    %4468 = vmatpush1.msra.mxu0 0.0
    %4469 = vmatprep.subr.mxu0 0.0
    %4470 = vmatpush1.msra.mxu0 0.0
    %4471 = vmatprep.subr.mxu0 0.0
    %4472 = vmatpush1.msra.mxu0 0.0
    %4473 = vmatprep.subr.mxu0 0.0
    %4474 = vmatpush1.msra.mxu0 0.0
    %4475 = vmatprep.subr.mxu0 0.0
    %4476 = vmatpush1.msra.mxu0 0.0
    %4477 = vmatprep.subr.mxu0 0.0
    %v4478 = vand.u32 %v49, 4294901760
    %4479 = vmatpush1.msra.mxu0 %v4478
    %4480 = vmatprep.subr.mxu0 0.0
    %v4481 = vand.u32 %v48, 4294901760
    %4482 = vmatpush1.msra.mxu0 %v4481
    %4483 = vmatprep.subr.mxu0 0.0
    %v4484 = vand.u32 %v47, 4294901760
    %4485 = vmatpush1.msra.mxu0 %v4484
    %4486 = vmatprep.subr.mxu0 0.0
    %v4487 = vand.u32 %v46, 4294901760
    %4488 = vmatpush1.msra.mxu0 %v4487
    %4489 = vmatprep.subr.mxu0 0.0
    %v4490 = vand.u32 %v45, 4294901760
    %4491 = vmatpush1.msra.mxu0 %v4490
    %4492 = vmatprep.subr.mxu0 0.0
    %v4493 = vand.u32 %v44, 4294901760
    %4494 = vmatpush1.msra.mxu0 %v4493
    %4495 = vmatprep.subr.mxu0 0.0
    %v4496 = vand.u32 %v43, 4294901760
    %4497 = vmatpush1.msra.mxu0 %v4496
    %4498 = vmatprep.subr.mxu0 0.0
    %v4499 = vand.u32 %v42, 4294901760
    %4500 = vmatpush1.msra.mxu0 %v4499
    %4501 = vmatprep.subr.mxu0 0.0
    %4502 = vmatpush2.msra.mxu0 0.0
    %4503 = vmatprep.subr.mxu0 0.0
    %4504 = vmatpush2.msra.mxu0 0.0
    %4505 = vmatprep.subr.mxu0 0.0
    %4506 = vmatpush2.msra.mxu0 0.0
    %4507 = vmatprep.subr.mxu0 0.0
    %4508 = vmatpush2.msra.mxu0 0.0
    %4509 = vmatprep.subr.mxu0 0.0
    %4510 = vmatpush2.msra.mxu0 0.0
    %4511 = vmatprep.subr.mxu0 0.0
    %4512 = vmatpush2.msra.mxu0 0.0
    %4513 = vmatprep.subr.mxu0 0.0
    %4514 = vmatpush2.msra.mxu0 0.0
    %4515 = vmatprep.subr.mxu0 0.0
    %4516 = vmatpush2.msra.mxu0 0.0
    %4517 = vmatprep.subr.mxu0 0.0
    %4518 = vmatpush2.msra.mxu0 0.0
    %4519 = vmatprep.subr.mxu0 0.0
    %4520 = vmatpush2.msra.mxu0 0.0
    %4521 = vmatprep.subr.mxu0 0.0
    %4522 = vmatpush2.msra.mxu0 0.0
    %4523 = vmatprep.subr.mxu0 0.0
    %4524 = vmatpush2.msra.mxu0 0.0
    %4525 = vmatprep.subr.mxu0 0.0
    %4526 = vmatpush2.msra.mxu0 0.0
    %4527 = vmatprep.subr.mxu0 0.0
    %4528 = vmatpush2.msra.mxu0 0.0
    %4529 = vmatprep.subr.mxu0 0.0
    %4530 = vmatpush2.msra.mxu0 0.0
    %4531 = vmatprep.subr.mxu0 0.0
    %4532 = vmatpush2.msra.mxu0 0.0
    %4533 = vmatprep.mubr.f32.mxu0 0.0
    %v4534 = vand.u32 %v4459, 4294901760
    %v4535 = vsub.f32 %v4459, %v4534
    %v4536 = vand.u32 %v4535, 4294901760
    %v4537 = vsub.f32 %v4535, %v4536
    %v4538 = vand.u32 %v4537, 4294901760
    %4539 = vmatmul.mubr.f32.gmra.mxu0 %v4538
    %v4540 = vpop.f32.mrf.mxu0
    %v4541 = vadd.f32 %v63, %v4540
    %v4542 = vpop.f32.mrf.mxu0
    %4543 = vdwg.mxu0
    %4544 = vmatprep.subr.mxu0 0.0
    %4545 = vmatpush1.msra.mxu0 0.0
    %4546 = vmatprep.subr.mxu0 0.0
    %4547 = vmatpush1.msra.mxu0 0.0
    %4548 = vmatprep.subr.mxu0 0.0
    %4549 = vmatpush1.msra.mxu0 0.0
    %4550 = vmatprep.subr.mxu0 0.0
    %4551 = vmatpush1.msra.mxu0 0.0
    %4552 = vmatprep.subr.mxu0 0.0
    %4553 = vmatpush1.msra.mxu0 0.0
    %4554 = vmatprep.subr.mxu0 0.0
    %4555 = vmatpush1.msra.mxu0 0.0
    %4556 = vmatprep.subr.mxu0 0.0
    %4557 = vmatpush1.msra.mxu0 0.0
    %4558 = vmatprep.subr.mxu0 0.0
    %4559 = vmatpush1.msra.mxu0 0.0
    %4560 = vmatprep.subr.mxu0 0.0
    %v4561 = vand.u32 %v49, 4294901760
    %v4562 = vsub.f32 %v49, %v4561
    %v4563 = vand.u32 %v4562, 4294901760
    %v4564 = vsub.f32 %v4562, %v4563
    %v4565 = vand.u32 %v4564, 4294901760
    %4566 = vmatpush1.msra.mxu0 %v4565
    %4567 = vmatprep.subr.mxu0 0.0
    %v4568 = vand.u32 %v48, 4294901760
    %v4569 = vsub.f32 %v48, %v4568
    %v4570 = vand.u32 %v4569, 4294901760
    %v4571 = vsub.f32 %v4569, %v4570
    %v4572 = vand.u32 %v4571, 4294901760
    %4573 = vmatpush1.msra.mxu0 %v4572
    %4574 = vmatprep.subr.mxu0 0.0
    %v4575 = vand.u32 %v47, 4294901760
    %v4576 = vsub.f32 %v47, %v4575
    %v4577 = vand.u32 %v4576, 4294901760
    %v4578 = vsub.f32 %v4576, %v4577
    %v4579 = vand.u32 %v4578, 4294901760
    %4580 = vmatpush1.msra.mxu0 %v4579
    %4581 = vmatprep.subr.mxu0 0.0
    %v4582 = vand.u32 %v46, 4294901760
    %v4583 = vsub.f32 %v46, %v4582
    %v4584 = vand.u32 %v4583, 4294901760
    %v4585 = vsub.f32 %v4583, %v4584
    %v4586 = vand.u32 %v4585, 4294901760
    %4587 = vmatpush1.msra.mxu0 %v4586
    %4588 = vmatprep.subr.mxu0 0.0
    %v4589 = vand.u32 %v45, 4294901760
    %v4590 = vsub.f32 %v45, %v4589
    %v4591 = vand.u32 %v4590, 4294901760
    %v4592 = vsub.f32 %v4590, %v4591
    %v4593 = vand.u32 %v4592, 4294901760
    %4594 = vmatpush1.msra.mxu0 %v4593
    %4595 = vmatprep.subr.mxu0 0.0
    %v4596 = vand.u32 %v44, 4294901760
    %v4597 = vsub.f32 %v44, %v4596
    %v4598 = vand.u32 %v4597, 4294901760
    %v4599 = vsub.f32 %v4597, %v4598
    %v4600 = vand.u32 %v4599, 4294901760
    %4601 = vmatpush1.msra.mxu0 %v4600
    %4602 = vmatprep.subr.mxu0 0.0
    %v4603 = vand.u32 %v43, 4294901760
    %v4604 = vsub.f32 %v43, %v4603
    %v4605 = vand.u32 %v4604, 4294901760
    %v4606 = vsub.f32 %v4604, %v4605
    %v4607 = vand.u32 %v4606, 4294901760
    %4608 = vmatpush1.msra.mxu0 %v4607
    %4609 = vmatprep.subr.mxu0 0.0
    %v4610 = vand.u32 %v42, 4294901760
    %v4611 = vsub.f32 %v42, %v4610
    %v4612 = vand.u32 %v4611, 4294901760
    %v4613 = vsub.f32 %v4611, %v4612
    %v4614 = vand.u32 %v4613, 4294901760
    %4615 = vmatpush1.msra.mxu0 %v4614
    %4616 = vmatprep.subr.mxu0 0.0
    %4617 = vmatpush2.msra.mxu0 0.0
    %4618 = vmatprep.subr.mxu0 0.0
    %4619 = vmatpush2.msra.mxu0 0.0
    %4620 = vmatprep.subr.mxu0 0.0
    %4621 = vmatpush2.msra.mxu0 0.0
    %4622 = vmatprep.subr.mxu0 0.0
    %4623 = vmatpush2.msra.mxu0 0.0
    %4624 = vmatprep.subr.mxu0 0.0
    %4625 = vmatpush2.msra.mxu0 0.0
    %4626 = vmatprep.subr.mxu0 0.0
    %4627 = vmatpush2.msra.mxu0 0.0
    %4628 = vmatprep.subr.mxu0 0.0
    %4629 = vmatpush2.msra.mxu0 0.0
    %4630 = vmatprep.subr.mxu0 0.0
    %4631 = vmatpush2.msra.mxu0 0.0
    %4632 = vmatprep.subr.mxu0 0.0
    %4633 = vmatpush2.msra.mxu0 0.0
    %4634 = vmatprep.subr.mxu0 0.0
    %4635 = vmatpush2.msra.mxu0 0.0
    %4636 = vmatprep.subr.mxu0 0.0
    %4637 = vmatpush2.msra.mxu0 0.0
    %4638 = vmatprep.subr.mxu0 0.0
    %4639 = vmatpush2.msra.mxu0 0.0
    %4640 = vmatprep.subr.mxu0 0.0
    %4641 = vmatpush2.msra.mxu0 0.0
    %4642 = vmatprep.subr.mxu0 0.0
    %4643 = vmatpush2.msra.mxu0 0.0
    %4644 = vmatprep.subr.mxu0 0.0
    %4645 = vmatpush2.msra.mxu0 0.0
    %4646 = vmatprep.subr.mxu0 0.0
    %4647 = vmatpush2.msra.mxu0 0.0
    %4648 = vmatprep.mubr.f32.mxu0 0.0
    %v4649 = vand.u32 %v4459, 4294901760
    %4650 = vmatmul.mubr.f32.gmra.mxu0 %v4649
    %v4651 = vpop.f32.mrf.mxu0
    %v4652 = vadd.f32 %v4541, %v4651
    %v4653 = vpop.f32.mrf.mxu0
    %4654 = vdwg.mxu0
    %4655 = vmatprep.subr.mxu0 0.0
    %4656 = vmatpush1.msra.mxu0 0.0
    %4657 = vmatprep.subr.mxu0 0.0
    %4658 = vmatpush1.msra.mxu0 0.0
    %4659 = vmatprep.subr.mxu0 0.0
    %4660 = vmatpush1.msra.mxu0 0.0
    %4661 = vmatprep.subr.mxu0 0.0
    %4662 = vmatpush1.msra.mxu0 0.0
    %4663 = vmatprep.subr.mxu0 0.0
    %4664 = vmatpush1.msra.mxu0 0.0
    %4665 = vmatprep.subr.mxu0 0.0
    %4666 = vmatpush1.msra.mxu0 0.0
    %4667 = vmatprep.subr.mxu0 0.0
    %4668 = vmatpush1.msra.mxu0 0.0
    %4669 = vmatprep.subr.mxu0 0.0
    %4670 = vmatpush1.msra.mxu0 0.0
    %4671 = vmatprep.subr.mxu0 0.0
    %v4672 = vand.u32 %v49, 4294901760
    %v4673 = vsub.f32 %v49, %v4672
    %4674 = vmatpush1.msra.mxu0 %v4673
    %4675 = vmatprep.subr.mxu0 0.0
    %v4676 = vand.u32 %v48, 4294901760
    %v4677 = vsub.f32 %v48, %v4676
    %4678 = vmatpush1.msra.mxu0 %v4677
    %4679 = vmatprep.subr.mxu0 0.0
    %v4680 = vand.u32 %v47, 4294901760
    %v4681 = vsub.f32 %v47, %v4680
    %4682 = vmatpush1.msra.mxu0 %v4681
    %4683 = vmatprep.subr.mxu0 0.0
    %v4684 = vand.u32 %v46, 4294901760
    %v4685 = vsub.f32 %v46, %v4684
    %4686 = vmatpush1.msra.mxu0 %v4685
    %4687 = vmatprep.subr.mxu0 0.0
    %v4688 = vand.u32 %v45, 4294901760
    %v4689 = vsub.f32 %v45, %v4688
    %4690 = vmatpush1.msra.mxu0 %v4689
    %4691 = vmatprep.subr.mxu0 0.0
    %v4692 = vand.u32 %v44, 4294901760
    %v4693 = vsub.f32 %v44, %v4692
    %4694 = vmatpush1.msra.mxu0 %v4693
    %4695 = vmatprep.subr.mxu0 0.0
    %v4696 = vand.u32 %v43, 4294901760
    %v4697 = vsub.f32 %v43, %v4696
    %4698 = vmatpush1.msra.mxu0 %v4697
    %4699 = vmatprep.subr.mxu0 0.0
    %v4700 = vand.u32 %v42, 4294901760
    %v4701 = vsub.f32 %v42, %v4700
    %4702 = vmatpush1.msra.mxu0 %v4701
    %4703 = vmatprep.subr.mxu0 0.0
    %4704 = vmatpush2.msra.mxu0 0.0
    %4705 = vmatprep.subr.mxu0 0.0
    %4706 = vmatpush2.msra.mxu0 0.0
    %4707 = vmatprep.subr.mxu0 0.0
    %4708 = vmatpush2.msra.mxu0 0.0
    %4709 = vmatprep.subr.mxu0 0.0
    %4710 = vmatpush2.msra.mxu0 0.0
    %4711 = vmatprep.subr.mxu0 0.0
    %4712 = vmatpush2.msra.mxu0 0.0
    %4713 = vmatprep.subr.mxu0 0.0
    %4714 = vmatpush2.msra.mxu0 0.0
    %4715 = vmatprep.subr.mxu0 0.0
    %4716 = vmatpush2.msra.mxu0 0.0
    %4717 = vmatprep.subr.mxu0 0.0
    %4718 = vmatpush2.msra.mxu0 0.0
    %4719 = vmatprep.subr.mxu0 0.0
    %4720 = vmatpush2.msra.mxu0 0.0
    %4721 = vmatprep.subr.mxu0 0.0
    %4722 = vmatpush2.msra.mxu0 0.0
    %4723 = vmatprep.subr.mxu0 0.0
    %4724 = vmatpush2.msra.mxu0 0.0
    %4725 = vmatprep.subr.mxu0 0.0
    %4726 = vmatpush2.msra.mxu0 0.0
    %4727 = vmatprep.subr.mxu0 0.0
    %4728 = vmatpush2.msra.mxu0 0.0
    %4729 = vmatprep.subr.mxu0 0.0
    %4730 = vmatpush2.msra.mxu0 0.0
    %4731 = vmatprep.subr.mxu0 0.0
    %4732 = vmatpush2.msra.mxu0 0.0
    %4733 = vmatprep.subr.mxu0 0.0
    %4734 = vmatpush2.msra.mxu0 0.0
    %4735 = vmatprep.mubr.f32.mxu0 0.0
    %v4736 = vand.u32 %v4459, 4294901760
    %v4737 = vsub.f32 %v4459, %v4736
    %4738 = vmatmul.mubr.f32.gmra.mxu0 %v4737
    %v4739 = vpop.f32.mrf.mxu0
    %v4740 = vadd.f32 %v4652, %v4739
    %v4741 = vpop.f32.mrf.mxu0
    %4742 = vdwg.mxu0
    %4743 = vmatprep.subr.mxu0 0.0
    %4744 = vmatpush1.msra.mxu0 0.0
    %4745 = vmatprep.subr.mxu0 0.0
    %4746 = vmatpush1.msra.mxu0 0.0
    %4747 = vmatprep.subr.mxu0 0.0
    %4748 = vmatpush1.msra.mxu0 0.0
    %4749 = vmatprep.subr.mxu0 0.0
    %4750 = vmatpush1.msra.mxu0 0.0
    %4751 = vmatprep.subr.mxu0 0.0
    %4752 = vmatpush1.msra.mxu0 0.0
    %4753 = vmatprep.subr.mxu0 0.0
    %4754 = vmatpush1.msra.mxu0 0.0
    %4755 = vmatprep.subr.mxu0 0.0
    %4756 = vmatpush1.msra.mxu0 0.0
    %4757 = vmatprep.subr.mxu0 0.0
    %4758 = vmatpush1.msra.mxu0 0.0
    %4759 = vmatprep.subr.mxu0 0.0
    %v4760 = vand.u32 %v49, 4294901760
    %4761 = vmatpush1.msra.mxu0 %v4760
    %4762 = vmatprep.subr.mxu0 0.0
    %v4763 = vand.u32 %v48, 4294901760
    %4764 = vmatpush1.msra.mxu0 %v4763
    %4765 = vmatprep.subr.mxu0 0.0
    %v4766 = vand.u32 %v47, 4294901760
    %4767 = vmatpush1.msra.mxu0 %v4766
    %4768 = vmatprep.subr.mxu0 0.0
    %v4769 = vand.u32 %v46, 4294901760
    %4770 = vmatpush1.msra.mxu0 %v4769
    %4771 = vmatprep.subr.mxu0 0.0
    %v4772 = vand.u32 %v45, 4294901760
    %4773 = vmatpush1.msra.mxu0 %v4772
    %4774 = vmatprep.subr.mxu0 0.0
    %v4775 = vand.u32 %v44, 4294901760
    %4776 = vmatpush1.msra.mxu0 %v4775
    %4777 = vmatprep.subr.mxu0 0.0
    %v4778 = vand.u32 %v43, 4294901760
    %4779 = vmatpush1.msra.mxu0 %v4778
    %4780 = vmatprep.subr.mxu0 0.0
    %v4781 = vand.u32 %v42, 4294901760
    %4782 = vmatpush1.msra.mxu0 %v4781
    %4783 = vmatprep.subr.mxu0 0.0
    %4784 = vmatpush2.msra.mxu0 0.0
    %4785 = vmatprep.subr.mxu0 0.0
    %4786 = vmatpush2.msra.mxu0 0.0
    %4787 = vmatprep.subr.mxu0 0.0
    %4788 = vmatpush2.msra.mxu0 0.0
    %4789 = vmatprep.subr.mxu0 0.0
    %4790 = vmatpush2.msra.mxu0 0.0
    %4791 = vmatprep.subr.mxu0 0.0
    %4792 = vmatpush2.msra.mxu0 0.0
    %4793 = vmatprep.subr.mxu0 0.0
    %4794 = vmatpush2.msra.mxu0 0.0
    %4795 = vmatprep.subr.mxu0 0.0
    %4796 = vmatpush2.msra.mxu0 0.0
    %4797 = vmatprep.subr.mxu0 0.0
    %4798 = vmatpush2.msra.mxu0 0.0
    %4799 = vmatprep.subr.mxu0 0.0
    %4800 = vmatpush2.msra.mxu0 0.0
    %4801 = vmatprep.subr.mxu0 0.0
    %4802 = vmatpush2.msra.mxu0 0.0
    %4803 = vmatprep.subr.mxu0 0.0
    %4804 = vmatpush2.msra.mxu0 0.0
    %4805 = vmatprep.subr.mxu0 0.0
    %4806 = vmatpush2.msra.mxu0 0.0
    %4807 = vmatprep.subr.mxu0 0.0
    %4808 = vmatpush2.msra.mxu0 0.0
    %4809 = vmatprep.subr.mxu0 0.0
    %4810 = vmatpush2.msra.mxu0 0.0
    %4811 = vmatprep.subr.mxu0 0.0
    %4812 = vmatpush2.msra.mxu0 0.0
    %4813 = vmatprep.subr.mxu0 0.0
    %4814 = vmatpush2.msra.mxu0 0.0
    %4815 = vmatprep.mubr.f32.mxu0 0.0
    %v4816 = vand.u32 %v4459, 4294901760
    %v4817 = vsub.f32 %v4459, %v4816
    %v4818 = vand.u32 %v4817, 4294901760
    %4819 = vmatmul.mubr.f32.gmra.mxu0 %v4818
    %v4820 = vpop.f32.mrf.mxu0
    %v4821 = vadd.f32 %v4740, %v4820
    %v4822 = vpop.f32.mrf.mxu0
    %4823 = vdwg.mxu0
    %4824 = vmatprep.subr.mxu0 0.0
    %4825 = vmatpush1.msra.mxu0 0.0
    %4826 = vmatprep.subr.mxu0 0.0
    %4827 = vmatpush1.msra.mxu0 0.0
    %4828 = vmatprep.subr.mxu0 0.0
    %4829 = vmatpush1.msra.mxu0 0.0
    %4830 = vmatprep.subr.mxu0 0.0
    %4831 = vmatpush1.msra.mxu0 0.0
    %4832 = vmatprep.subr.mxu0 0.0
    %4833 = vmatpush1.msra.mxu0 0.0
    %4834 = vmatprep.subr.mxu0 0.0
    %4835 = vmatpush1.msra.mxu0 0.0
    %4836 = vmatprep.subr.mxu0 0.0
    %4837 = vmatpush1.msra.mxu0 0.0
    %4838 = vmatprep.subr.mxu0 0.0
    %4839 = vmatpush1.msra.mxu0 0.0
    %4840 = vmatprep.subr.mxu0 0.0
    %v4841 = vand.u32 %v49, 4294901760
    %v4842 = vsub.f32 %v49, %v4841
    %v4843 = vand.u32 %v4842, 4294901760
    %4844 = vmatpush1.msra.mxu0 %v4843
    %4845 = vmatprep.subr.mxu0 0.0
    %v4846 = vand.u32 %v48, 4294901760
    %v4847 = vsub.f32 %v48, %v4846
    %v4848 = vand.u32 %v4847, 4294901760
    %4849 = vmatpush1.msra.mxu0 %v4848
    %4850 = vmatprep.subr.mxu0 0.0
    %v4851 = vand.u32 %v47, 4294901760
    %v4852 = vsub.f32 %v47, %v4851
    %v4853 = vand.u32 %v4852, 4294901760
    %4854 = vmatpush1.msra.mxu0 %v4853
    %4855 = vmatprep.subr.mxu0 0.0
    %v4856 = vand.u32 %v46, 4294901760
    %v4857 = vsub.f32 %v46, %v4856
    %v4858 = vand.u32 %v4857, 4294901760
    %4859 = vmatpush1.msra.mxu0 %v4858
    %4860 = vmatprep.subr.mxu0 0.0
    %v4861 = vand.u32 %v45, 4294901760
    %v4862 = vsub.f32 %v45, %v4861
    %v4863 = vand.u32 %v4862, 4294901760
    %4864 = vmatpush1.msra.mxu0 %v4863
    %4865 = vmatprep.subr.mxu0 0.0
    %v4866 = vand.u32 %v44, 4294901760
    %v4867 = vsub.f32 %v44, %v4866
    %v4868 = vand.u32 %v4867, 4294901760
    %4869 = vmatpush1.msra.mxu0 %v4868
    %4870 = vmatprep.subr.mxu0 0.0
    %v4871 = vand.u32 %v43, 4294901760
    %v4872 = vsub.f32 %v43, %v4871
    %v4873 = vand.u32 %v4872, 4294901760
    %4874 = vmatpush1.msra.mxu0 %v4873
    %4875 = vmatprep.subr.mxu0 0.0
    %v4876 = vand.u32 %v42, 4294901760
    %v4877 = vsub.f32 %v42, %v4876
    %v4878 = vand.u32 %v4877, 4294901760
    %4879 = vmatpush1.msra.mxu0 %v4878
    %4880 = vmatprep.subr.mxu0 0.0
    %4881 = vmatpush2.msra.mxu0 0.0
    %4882 = vmatprep.subr.mxu0 0.0
    %4883 = vmatpush2.msra.mxu0 0.0
    %4884 = vmatprep.subr.mxu0 0.0
    %4885 = vmatpush2.msra.mxu0 0.0
    %4886 = vmatprep.subr.mxu0 0.0
    %4887 = vmatpush2.msra.mxu0 0.0
    %4888 = vmatprep.subr.mxu0 0.0
    %4889 = vmatpush2.msra.mxu0 0.0
    %4890 = vmatprep.subr.mxu0 0.0
    %4891 = vmatpush2.msra.mxu0 0.0
    %4892 = vmatprep.subr.mxu0 0.0
    %4893 = vmatpush2.msra.mxu0 0.0
    %4894 = vmatprep.subr.mxu0 0.0
    %4895 = vmatpush2.msra.mxu0 0.0
    %4896 = vmatprep.subr.mxu0 0.0
    %4897 = vmatpush2.msra.mxu0 0.0
    %4898 = vmatprep.subr.mxu0 0.0
    %4899 = vmatpush2.msra.mxu0 0.0
    %4900 = vmatprep.subr.mxu0 0.0
    %4901 = vmatpush2.msra.mxu0 0.0
    %4902 = vmatprep.subr.mxu0 0.0
    %4903 = vmatpush2.msra.mxu0 0.0
    %4904 = vmatprep.subr.mxu0 0.0
    %4905 = vmatpush2.msra.mxu0 0.0
    %4906 = vmatprep.subr.mxu0 0.0
    %4907 = vmatpush2.msra.mxu0 0.0
    %4908 = vmatprep.subr.mxu0 0.0
    %4909 = vmatpush2.msra.mxu0 0.0
    %4910 = vmatprep.subr.mxu0 0.0
    %4911 = vmatpush2.msra.mxu0 0.0
    %4912 = vmatprep.mubr.f32.mxu0 0.0
    %v4913 = vand.u32 %v4459, 4294901760
    %4914 = vmatmul.mubr.f32.gmra.mxu0 %v4913
    %v4915 = vpop.f32.mrf.mxu0
    %v4916 = vadd.f32 %v4821, %v4915
    %v4917 = vpop.f32.mrf.mxu0
    %4918 = vdwg.mxu0
    %4919 = vmatprep.subr.mxu0 0.0
    %4920 = vmatpush1.msra.mxu0 0.0
    %4921 = vmatprep.subr.mxu0 0.0
    %4922 = vmatpush1.msra.mxu0 0.0
    %4923 = vmatprep.subr.mxu0 0.0
    %4924 = vmatpush1.msra.mxu0 0.0
    %4925 = vmatprep.subr.mxu0 0.0
    %4926 = vmatpush1.msra.mxu0 0.0
    %4927 = vmatprep.subr.mxu0 0.0
    %4928 = vmatpush1.msra.mxu0 0.0
    %4929 = vmatprep.subr.mxu0 0.0
    %4930 = vmatpush1.msra.mxu0 0.0
    %4931 = vmatprep.subr.mxu0 0.0
    %4932 = vmatpush1.msra.mxu0 0.0
    %4933 = vmatprep.subr.mxu0 0.0
    %4934 = vmatpush1.msra.mxu0 0.0
    %4935 = vmatprep.subr.mxu0 0.0
    %v4936 = vand.u32 %v49, 4294901760
    %4937 = vmatpush1.msra.mxu0 %v4936
    %4938 = vmatprep.subr.mxu0 0.0
    %v4939 = vand.u32 %v48, 4294901760
    %4940 = vmatpush1.msra.mxu0 %v4939
    %4941 = vmatprep.subr.mxu0 0.0
    %v4942 = vand.u32 %v47, 4294901760
    %4943 = vmatpush1.msra.mxu0 %v4942
    %4944 = vmatprep.subr.mxu0 0.0
    %v4945 = vand.u32 %v46, 4294901760
    %4946 = vmatpush1.msra.mxu0 %v4945
    %4947 = vmatprep.subr.mxu0 0.0
    %v4948 = vand.u32 %v45, 4294901760
    %4949 = vmatpush1.msra.mxu0 %v4948
    %4950 = vmatprep.subr.mxu0 0.0
    %v4951 = vand.u32 %v44, 4294901760
    %4952 = vmatpush1.msra.mxu0 %v4951
    %4953 = vmatprep.subr.mxu0 0.0
    %v4954 = vand.u32 %v43, 4294901760
    %4955 = vmatpush1.msra.mxu0 %v4954
    %4956 = vmatprep.subr.mxu0 0.0
    %v4957 = vand.u32 %v42, 4294901760
    %4958 = vmatpush1.msra.mxu0 %v4957
    %4959 = vmatprep.subr.mxu0 0.0
    %4960 = vmatpush2.msra.mxu0 0.0
    %4961 = vmatprep.subr.mxu0 0.0
    %4962 = vmatpush2.msra.mxu0 0.0
    %4963 = vmatprep.subr.mxu0 0.0
    %4964 = vmatpush2.msra.mxu0 0.0
    %4965 = vmatprep.subr.mxu0 0.0
    %4966 = vmatpush2.msra.mxu0 0.0
    %4967 = vmatprep.subr.mxu0 0.0
    %4968 = vmatpush2.msra.mxu0 0.0
    %4969 = vmatprep.subr.mxu0 0.0
    %4970 = vmatpush2.msra.mxu0 0.0
    %4971 = vmatprep.subr.mxu0 0.0
    %4972 = vmatpush2.msra.mxu0 0.0
    %4973 = vmatprep.subr.mxu0 0.0
    %4974 = vmatpush2.msra.mxu0 0.0
    %4975 = vmatprep.subr.mxu0 0.0
    %4976 = vmatpush2.msra.mxu0 0.0
    %4977 = vmatprep.subr.mxu0 0.0
    %4978 = vmatpush2.msra.mxu0 0.0
    %4979 = vmatprep.subr.mxu0 0.0
    %4980 = vmatpush2.msra.mxu0 0.0
    %4981 = vmatprep.subr.mxu0 0.0
    %4982 = vmatpush2.msra.mxu0 0.0
    %4983 = vmatprep.subr.mxu0 0.0
    %4984 = vmatpush2.msra.mxu0 0.0
    %4985 = vmatprep.subr.mxu0 0.0
    %4986 = vmatpush2.msra.mxu0 0.0
    %4987 = vmatprep.subr.mxu0 0.0
    %4988 = vmatpush2.msra.mxu0 0.0
    %4989 = vmatprep.subr.mxu0 0.0
    %4990 = vmatpush2.msra.mxu0 0.0
    %4991 = vmatprep.mubr.f32.mxu0 0.0
    %v4992 = vand.u32 %v4459, 4294901760
    %4993 = vmatmul.mubr.f32.gmra.mxu0 %v4992
    %v4994 = vpop.f32.mrf.mxu0
    %v4995 = vadd.f32 %v4916, %v4994
    %v4996 = vpop.f32.mrf.mxu0
    %4997 = vdwg.mxu0
    %v4998 = vtanh.pop %v4995
    %v5000 = vsel %vm853, %v4452, 0
    %5002 = vmatprep.subr.mxu0 0.0
    %5003 = vmatpush1.msra.mxu0 0.0
    %5004 = vmatprep.subr.mxu0 0.0
    %5005 = vmatpush1.msra.mxu0 0.0
    %5006 = vmatprep.subr.mxu0 0.0
    %5007 = vmatpush1.msra.mxu0 0.0
    %5008 = vmatprep.subr.mxu0 0.0
    %5009 = vmatpush1.msra.mxu0 0.0
    %5010 = vmatprep.subr.mxu0 0.0
    %5011 = vmatpush1.msra.mxu0 0.0
    %5012 = vmatprep.subr.mxu0 0.0
    %5013 = vmatpush1.msra.mxu0 0.0
    %5014 = vmatprep.subr.mxu0 0.0
    %5015 = vmatpush1.msra.mxu0 0.0
    %5016 = vmatprep.subr.mxu0 0.0
    %5017 = vmatpush1.msra.mxu0 0.0
    %5018 = vmatprep.subr.mxu0 0.0
    %5019 = vmatpush1.msra.mxu0 0.0
    %5020 = vmatprep.subr.mxu0 0.0
    %5021 = vmatpush1.msra.mxu0 0.0
    %5022 = vmatprep.subr.mxu0 0.0
    %5023 = vmatpush1.msra.mxu0 0.0
    %5024 = vmatprep.subr.mxu0 0.0
    %5025 = vmatpush1.msra.mxu0 0.0
    %5026 = vmatprep.subr.mxu0 0.0
    %v5027 = vand.u32 %v41, 4294901760
    %5028 = vmatpush1.msra.mxu0 %v5027
    %5029 = vmatprep.subr.mxu0 0.0
    %v5030 = vand.u32 %v40, 4294901760
    %5031 = vmatpush1.msra.mxu0 %v5030
    %5032 = vmatprep.subr.mxu0 0.0
    %v5033 = vand.u32 %v39, 4294901760
    %5034 = vmatpush1.msra.mxu0 %v5033
    %5035 = vmatprep.subr.mxu0 0.0
    %v5036 = vand.u32 %v38, 4294901760
    %5037 = vmatpush1.msra.mxu0 %v5036
    %5038 = vmatprep.subr.mxu0 0.0
    %5039 = vmatpush2.msra.mxu0 0.0
    %5040 = vmatprep.subr.mxu0 0.0
    %5041 = vmatpush2.msra.mxu0 0.0
    %5042 = vmatprep.subr.mxu0 0.0
    %5043 = vmatpush2.msra.mxu0 0.0
    %5044 = vmatprep.subr.mxu0 0.0
    %5045 = vmatpush2.msra.mxu0 0.0
    %5046 = vmatprep.subr.mxu0 0.0
    %5047 = vmatpush2.msra.mxu0 0.0
    %5048 = vmatprep.subr.mxu0 0.0
    %5049 = vmatpush2.msra.mxu0 0.0
    %5050 = vmatprep.subr.mxu0 0.0
    %5051 = vmatpush2.msra.mxu0 0.0
    %5052 = vmatprep.subr.mxu0 0.0
    %5053 = vmatpush2.msra.mxu0 0.0
    %5054 = vmatprep.subr.mxu0 0.0
    %5055 = vmatpush2.msra.mxu0 0.0
    %5056 = vmatprep.subr.mxu0 0.0
    %5057 = vmatpush2.msra.mxu0 0.0
    %5058 = vmatprep.subr.mxu0 0.0
    %5059 = vmatpush2.msra.mxu0 0.0
    %5060 = vmatprep.subr.mxu0 0.0
    %5061 = vmatpush2.msra.mxu0 0.0
    %5062 = vmatprep.subr.mxu0 0.0
    %5063 = vmatpush2.msra.mxu0 0.0
    %5064 = vmatprep.subr.mxu0 0.0
    %5065 = vmatpush2.msra.mxu0 0.0
    %5066 = vmatprep.subr.mxu0 0.0
    %5067 = vmatpush2.msra.mxu0 0.0
    %5068 = vmatprep.subr.mxu0 0.0
    %5069 = vmatpush2.msra.mxu0 0.0
    %5070 = vmatprep.mubr.f32.mxu0 0.0
    %v5071 = vand.u32 %v5000, 4294901760
    %v5072 = vsub.f32 %v5000, %v5071
    %v5073 = vand.u32 %v5072, 4294901760
    %v5074 = vsub.f32 %v5072, %v5073
    %v5075 = vand.u32 %v5074, 4294901760
    %5076 = vmatmul.mubr.f32.gmra.mxu0 %v5075
    %v5077 = vpop.f32.mrf.mxu0
    %v5078 = vadd.f32 %v829, %v5077
    %v5079 = vpop.f32.mrf.mxu0
    %5080 = vdwg.mxu0
    %5081 = vmatprep.subr.mxu0 0.0
    %5082 = vmatpush1.msra.mxu0 0.0
    %5083 = vmatprep.subr.mxu0 0.0
    %5084 = vmatpush1.msra.mxu0 0.0
    %5085 = vmatprep.subr.mxu0 0.0
    %5086 = vmatpush1.msra.mxu0 0.0
    %5087 = vmatprep.subr.mxu0 0.0
    %5088 = vmatpush1.msra.mxu0 0.0
    %5089 = vmatprep.subr.mxu0 0.0
    %5090 = vmatpush1.msra.mxu0 0.0
    %5091 = vmatprep.subr.mxu0 0.0
    %5092 = vmatpush1.msra.mxu0 0.0
    %5093 = vmatprep.subr.mxu0 0.0
    %5094 = vmatpush1.msra.mxu0 0.0
    %5095 = vmatprep.subr.mxu0 0.0
    %5096 = vmatpush1.msra.mxu0 0.0
    %5097 = vmatprep.subr.mxu0 0.0
    %5098 = vmatpush1.msra.mxu0 0.0
    %5099 = vmatprep.subr.mxu0 0.0
    %5100 = vmatpush1.msra.mxu0 0.0
    %5101 = vmatprep.subr.mxu0 0.0
    %5102 = vmatpush1.msra.mxu0 0.0
    %5103 = vmatprep.subr.mxu0 0.0
    %5104 = vmatpush1.msra.mxu0 0.0
    %5105 = vmatprep.subr.mxu0 0.0
    %v5106 = vand.u32 %v41, 4294901760
    %v5107 = vsub.f32 %v41, %v5106
    %v5108 = vand.u32 %v5107, 4294901760
    %v5109 = vsub.f32 %v5107, %v5108
    %v5110 = vand.u32 %v5109, 4294901760
    %5111 = vmatpush1.msra.mxu0 %v5110
    %5112 = vmatprep.subr.mxu0 0.0
    %v5113 = vand.u32 %v40, 4294901760
    %v5114 = vsub.f32 %v40, %v5113
    %v5115 = vand.u32 %v5114, 4294901760
    %v5116 = vsub.f32 %v5114, %v5115
    %v5117 = vand.u32 %v5116, 4294901760
    %5118 = vmatpush1.msra.mxu0 %v5117
    %5119 = vmatprep.subr.mxu0 0.0
    %v5120 = vand.u32 %v39, 4294901760
    %v5121 = vsub.f32 %v39, %v5120
    %v5122 = vand.u32 %v5121, 4294901760
    %v5123 = vsub.f32 %v5121, %v5122
    %v5124 = vand.u32 %v5123, 4294901760
    %5125 = vmatpush1.msra.mxu0 %v5124
    %5126 = vmatprep.subr.mxu0 0.0
    %v5127 = vand.u32 %v38, 4294901760
    %v5128 = vsub.f32 %v38, %v5127
    %v5129 = vand.u32 %v5128, 4294901760
    %v5130 = vsub.f32 %v5128, %v5129
    %v5131 = vand.u32 %v5130, 4294901760
    %5132 = vmatpush1.msra.mxu0 %v5131
    %5133 = vmatprep.subr.mxu0 0.0
    %5134 = vmatpush2.msra.mxu0 0.0
    %5135 = vmatprep.subr.mxu0 0.0
    %5136 = vmatpush2.msra.mxu0 0.0
    %5137 = vmatprep.subr.mxu0 0.0
    %5138 = vmatpush2.msra.mxu0 0.0
    %5139 = vmatprep.subr.mxu0 0.0
    %5140 = vmatpush2.msra.mxu0 0.0
    %5141 = vmatprep.subr.mxu0 0.0
    %5142 = vmatpush2.msra.mxu0 0.0
    %5143 = vmatprep.subr.mxu0 0.0
    %5144 = vmatpush2.msra.mxu0 0.0
    %5145 = vmatprep.subr.mxu0 0.0
    %5146 = vmatpush2.msra.mxu0 0.0
    %5147 = vmatprep.subr.mxu0 0.0
    %5148 = vmatpush2.msra.mxu0 0.0
    %5149 = vmatprep.subr.mxu0 0.0
    %5150 = vmatpush2.msra.mxu0 0.0
    %5151 = vmatprep.subr.mxu0 0.0
    %5152 = vmatpush2.msra.mxu0 0.0
    %5153 = vmatprep.subr.mxu0 0.0
    %5154 = vmatpush2.msra.mxu0 0.0
    %5155 = vmatprep.subr.mxu0 0.0
    %5156 = vmatpush2.msra.mxu0 0.0
    %5157 = vmatprep.subr.mxu0 0.0
    %5158 = vmatpush2.msra.mxu0 0.0
    %5159 = vmatprep.subr.mxu0 0.0
    %5160 = vmatpush2.msra.mxu0 0.0
    %5161 = vmatprep.subr.mxu0 0.0
    %5162 = vmatpush2.msra.mxu0 0.0
    %5163 = vmatprep.subr.mxu0 0.0
    %5164 = vmatpush2.msra.mxu0 0.0
    %5165 = vmatprep.mubr.f32.mxu0 0.0
    %v5166 = vand.u32 %v5000, 4294901760
    %5167 = vmatmul.mubr.f32.gmra.mxu0 %v5166
    %v5168 = vpop.f32.mrf.mxu0
    %v5169 = vadd.f32 %v5078, %v5168
    %v5170 = vpop.f32.mrf.mxu0
    %5171 = vdwg.mxu0
    %5172 = vmatprep.subr.mxu0 0.0
    %5173 = vmatpush1.msra.mxu0 0.0
    %5174 = vmatprep.subr.mxu0 0.0
    %5175 = vmatpush1.msra.mxu0 0.0
    %5176 = vmatprep.subr.mxu0 0.0
    %5177 = vmatpush1.msra.mxu0 0.0
    %5178 = vmatprep.subr.mxu0 0.0
    %5179 = vmatpush1.msra.mxu0 0.0
    %5180 = vmatprep.subr.mxu0 0.0
    %5181 = vmatpush1.msra.mxu0 0.0
    %5182 = vmatprep.subr.mxu0 0.0
    %5183 = vmatpush1.msra.mxu0 0.0
    %5184 = vmatprep.subr.mxu0 0.0
    %5185 = vmatpush1.msra.mxu0 0.0
    %5186 = vmatprep.subr.mxu0 0.0
    %5187 = vmatpush1.msra.mxu0 0.0
    %5188 = vmatprep.subr.mxu0 0.0
    %5189 = vmatpush1.msra.mxu0 0.0
    %5190 = vmatprep.subr.mxu0 0.0
    %5191 = vmatpush1.msra.mxu0 0.0
    %5192 = vmatprep.subr.mxu0 0.0
    %5193 = vmatpush1.msra.mxu0 0.0
    %5194 = vmatprep.subr.mxu0 0.0
    %5195 = vmatpush1.msra.mxu0 0.0
    %5196 = vmatprep.subr.mxu0 0.0
    %v5197 = vand.u32 %v41, 4294901760
    %v5198 = vsub.f32 %v41, %v5197
    %5199 = vmatpush1.msra.mxu0 %v5198
    %5200 = vmatprep.subr.mxu0 0.0
    %v5201 = vand.u32 %v40, 4294901760
    %v5202 = vsub.f32 %v40, %v5201
    %5203 = vmatpush1.msra.mxu0 %v5202
    %5204 = vmatprep.subr.mxu0 0.0
    %v5205 = vand.u32 %v39, 4294901760
    %v5206 = vsub.f32 %v39, %v5205
    %5207 = vmatpush1.msra.mxu0 %v5206
    %5208 = vmatprep.subr.mxu0 0.0
    %v5209 = vand.u32 %v38, 4294901760
    %v5210 = vsub.f32 %v38, %v5209
    %5211 = vmatpush1.msra.mxu0 %v5210
    %5212 = vmatprep.subr.mxu0 0.0
    %5213 = vmatpush2.msra.mxu0 0.0
    %5214 = vmatprep.subr.mxu0 0.0
    %5215 = vmatpush2.msra.mxu0 0.0
    %5216 = vmatprep.subr.mxu0 0.0
    %5217 = vmatpush2.msra.mxu0 0.0
    %5218 = vmatprep.subr.mxu0 0.0
    %5219 = vmatpush2.msra.mxu0 0.0
    %5220 = vmatprep.subr.mxu0 0.0
    %5221 = vmatpush2.msra.mxu0 0.0
    %5222 = vmatprep.subr.mxu0 0.0
    %5223 = vmatpush2.msra.mxu0 0.0
    %5224 = vmatprep.subr.mxu0 0.0
    %5225 = vmatpush2.msra.mxu0 0.0
    %5226 = vmatprep.subr.mxu0 0.0
    %5227 = vmatpush2.msra.mxu0 0.0
    %5228 = vmatprep.subr.mxu0 0.0
    %5229 = vmatpush2.msra.mxu0 0.0
    %5230 = vmatprep.subr.mxu0 0.0
    %5231 = vmatpush2.msra.mxu0 0.0
    %5232 = vmatprep.subr.mxu0 0.0
    %5233 = vmatpush2.msra.mxu0 0.0
    %5234 = vmatprep.subr.mxu0 0.0
    %5235 = vmatpush2.msra.mxu0 0.0
    %5236 = vmatprep.subr.mxu0 0.0
    %5237 = vmatpush2.msra.mxu0 0.0
    %5238 = vmatprep.subr.mxu0 0.0
    %5239 = vmatpush2.msra.mxu0 0.0
    %5240 = vmatprep.subr.mxu0 0.0
    %5241 = vmatpush2.msra.mxu0 0.0
    %5242 = vmatprep.subr.mxu0 0.0
    %5243 = vmatpush2.msra.mxu0 0.0
    %5244 = vmatprep.mubr.f32.mxu0 0.0
    %v5245 = vand.u32 %v5000, 4294901760
    %v5246 = vsub.f32 %v5000, %v5245
    %5247 = vmatmul.mubr.f32.gmra.mxu0 %v5246
    %v5248 = vpop.f32.mrf.mxu0
    %v5249 = vadd.f32 %v5169, %v5248
    %v5250 = vpop.f32.mrf.mxu0
    %5251 = vdwg.mxu0
    %5252 = vmatprep.subr.mxu0 0.0
    %5253 = vmatpush1.msra.mxu0 0.0
    %5254 = vmatprep.subr.mxu0 0.0
    %5255 = vmatpush1.msra.mxu0 0.0
    %5256 = vmatprep.subr.mxu0 0.0
    %5257 = vmatpush1.msra.mxu0 0.0
    %5258 = vmatprep.subr.mxu0 0.0
    %5259 = vmatpush1.msra.mxu0 0.0
    %5260 = vmatprep.subr.mxu0 0.0
    %5261 = vmatpush1.msra.mxu0 0.0
    %5262 = vmatprep.subr.mxu0 0.0
    %5263 = vmatpush1.msra.mxu0 0.0
    %5264 = vmatprep.subr.mxu0 0.0
    %5265 = vmatpush1.msra.mxu0 0.0
    %5266 = vmatprep.subr.mxu0 0.0
    %5267 = vmatpush1.msra.mxu0 0.0
    %5268 = vmatprep.subr.mxu0 0.0
    %5269 = vmatpush1.msra.mxu0 0.0
    %5270 = vmatprep.subr.mxu0 0.0
    %5271 = vmatpush1.msra.mxu0 0.0
    %5272 = vmatprep.subr.mxu0 0.0
    %5273 = vmatpush1.msra.mxu0 0.0
    %5274 = vmatprep.subr.mxu0 0.0
    %5275 = vmatpush1.msra.mxu0 0.0
    %5276 = vmatprep.subr.mxu0 0.0
    %v5277 = vand.u32 %v41, 4294901760
    %5278 = vmatpush1.msra.mxu0 %v5277
    %5279 = vmatprep.subr.mxu0 0.0
    %v5280 = vand.u32 %v40, 4294901760
    %5281 = vmatpush1.msra.mxu0 %v5280
    %5282 = vmatprep.subr.mxu0 0.0
    %v5283 = vand.u32 %v39, 4294901760
    %5284 = vmatpush1.msra.mxu0 %v5283
    %5285 = vmatprep.subr.mxu0 0.0
    %v5286 = vand.u32 %v38, 4294901760
    %5287 = vmatpush1.msra.mxu0 %v5286
    %5288 = vmatprep.subr.mxu0 0.0
    %5289 = vmatpush2.msra.mxu0 0.0
    %5290 = vmatprep.subr.mxu0 0.0
    %5291 = vmatpush2.msra.mxu0 0.0
    %5292 = vmatprep.subr.mxu0 0.0
    %5293 = vmatpush2.msra.mxu0 0.0
    %5294 = vmatprep.subr.mxu0 0.0
    %5295 = vmatpush2.msra.mxu0 0.0
    %5296 = vmatprep.subr.mxu0 0.0
    %5297 = vmatpush2.msra.mxu0 0.0
    %5298 = vmatprep.subr.mxu0 0.0
    %5299 = vmatpush2.msra.mxu0 0.0
    %5300 = vmatprep.subr.mxu0 0.0
    %5301 = vmatpush2.msra.mxu0 0.0
    %5302 = vmatprep.subr.mxu0 0.0
    %5303 = vmatpush2.msra.mxu0 0.0
    %5304 = vmatprep.subr.mxu0 0.0
    %5305 = vmatpush2.msra.mxu0 0.0
    %5306 = vmatprep.subr.mxu0 0.0
    %5307 = vmatpush2.msra.mxu0 0.0
    %5308 = vmatprep.subr.mxu0 0.0
    %5309 = vmatpush2.msra.mxu0 0.0
    %5310 = vmatprep.subr.mxu0 0.0
    %5311 = vmatpush2.msra.mxu0 0.0
    %5312 = vmatprep.subr.mxu0 0.0
    %5313 = vmatpush2.msra.mxu0 0.0
    %5314 = vmatprep.subr.mxu0 0.0
    %5315 = vmatpush2.msra.mxu0 0.0
    %5316 = vmatprep.subr.mxu0 0.0
    %5317 = vmatpush2.msra.mxu0 0.0
    %5318 = vmatprep.subr.mxu0 0.0
    %5319 = vmatpush2.msra.mxu0 0.0
    %5320 = vmatprep.mubr.f32.mxu0 0.0
    %v5321 = vand.u32 %v5000, 4294901760
    %v5322 = vsub.f32 %v5000, %v5321
    %v5323 = vand.u32 %v5322, 4294901760
    %5324 = vmatmul.mubr.f32.gmra.mxu0 %v5323
    %v5325 = vpop.f32.mrf.mxu0
    %v5326 = vadd.f32 %v5249, %v5325
    %v5327 = vpop.f32.mrf.mxu0
    %5328 = vdwg.mxu0
    %5329 = vmatprep.subr.mxu0 0.0
    %5330 = vmatpush1.msra.mxu0 0.0
    %5331 = vmatprep.subr.mxu0 0.0
    %5332 = vmatpush1.msra.mxu0 0.0
    %5333 = vmatprep.subr.mxu0 0.0
    %5334 = vmatpush1.msra.mxu0 0.0
    %5335 = vmatprep.subr.mxu0 0.0
    %5336 = vmatpush1.msra.mxu0 0.0
    %5337 = vmatprep.subr.mxu0 0.0
    %5338 = vmatpush1.msra.mxu0 0.0
    %5339 = vmatprep.subr.mxu0 0.0
    %5340 = vmatpush1.msra.mxu0 0.0
    %5341 = vmatprep.subr.mxu0 0.0
    %5342 = vmatpush1.msra.mxu0 0.0
    %5343 = vmatprep.subr.mxu0 0.0
    %5344 = vmatpush1.msra.mxu0 0.0
    %5345 = vmatprep.subr.mxu0 0.0
    %5346 = vmatpush1.msra.mxu0 0.0
    %5347 = vmatprep.subr.mxu0 0.0
    %5348 = vmatpush1.msra.mxu0 0.0
    %5349 = vmatprep.subr.mxu0 0.0
    %5350 = vmatpush1.msra.mxu0 0.0
    %5351 = vmatprep.subr.mxu0 0.0
    %5352 = vmatpush1.msra.mxu0 0.0
    %5353 = vmatprep.subr.mxu0 0.0
    %v5354 = vand.u32 %v41, 4294901760
    %v5355 = vsub.f32 %v41, %v5354
    %v5356 = vand.u32 %v5355, 4294901760
    %5357 = vmatpush1.msra.mxu0 %v5356
    %5358 = vmatprep.subr.mxu0 0.0
    %v5359 = vand.u32 %v40, 4294901760
    %v5360 = vsub.f32 %v40, %v5359
    %v5361 = vand.u32 %v5360, 4294901760
    %5362 = vmatpush1.msra.mxu0 %v5361
    %5363 = vmatprep.subr.mxu0 0.0
    %v5364 = vand.u32 %v39, 4294901760
    %v5365 = vsub.f32 %v39, %v5364
    %v5366 = vand.u32 %v5365, 4294901760
    %5367 = vmatpush1.msra.mxu0 %v5366
    %5368 = vmatprep.subr.mxu0 0.0
    %v5369 = vand.u32 %v38, 4294901760
    %v5370 = vsub.f32 %v38, %v5369
    %v5371 = vand.u32 %v5370, 4294901760
    %5372 = vmatpush1.msra.mxu0 %v5371
    %5373 = vmatprep.subr.mxu0 0.0
    %5374 = vmatpush2.msra.mxu0 0.0
    %5375 = vmatprep.subr.mxu0 0.0
    %5376 = vmatpush2.msra.mxu0 0.0
    %5377 = vmatprep.subr.mxu0 0.0
    %5378 = vmatpush2.msra.mxu0 0.0
    %5379 = vmatprep.subr.mxu0 0.0
    %5380 = vmatpush2.msra.mxu0 0.0
    %5381 = vmatprep.subr.mxu0 0.0
    %5382 = vmatpush2.msra.mxu0 0.0
    %5383 = vmatprep.subr.mxu0 0.0
    %5384 = vmatpush2.msra.mxu0 0.0
    %5385 = vmatprep.subr.mxu0 0.0
    %5386 = vmatpush2.msra.mxu0 0.0
    %5387 = vmatprep.subr.mxu0 0.0
    %5388 = vmatpush2.msra.mxu0 0.0
    %5389 = vmatprep.subr.mxu0 0.0
    %5390 = vmatpush2.msra.mxu0 0.0
    %5391 = vmatprep.subr.mxu0 0.0
    %5392 = vmatpush2.msra.mxu0 0.0
    %5393 = vmatprep.subr.mxu0 0.0
    %5394 = vmatpush2.msra.mxu0 0.0
    %5395 = vmatprep.subr.mxu0 0.0
    %5396 = vmatpush2.msra.mxu0 0.0
    %5397 = vmatprep.subr.mxu0 0.0
    %5398 = vmatpush2.msra.mxu0 0.0
    %5399 = vmatprep.subr.mxu0 0.0
    %5400 = vmatpush2.msra.mxu0 0.0
    %5401 = vmatprep.subr.mxu0 0.0
    %5402 = vmatpush2.msra.mxu0 0.0
    %5403 = vmatprep.subr.mxu0 0.0
    %5404 = vmatpush2.msra.mxu0 0.0
    %5405 = vmatprep.mubr.f32.mxu0 0.0
    %v5406 = vand.u32 %v5000, 4294901760
    %5407 = vmatmul.mubr.f32.gmra.mxu0 %v5406
    %v5408 = vpop.f32.mrf.mxu0
    %v5409 = vadd.f32 %v5326, %v5408
    %v5410 = vpop.f32.mrf.mxu0
    %5411 = vdwg.mxu0
    %5412 = vmatprep.subr.mxu0 0.0
    %5413 = vmatpush1.msra.mxu0 0.0
    %5414 = vmatprep.subr.mxu0 0.0
    %5415 = vmatpush1.msra.mxu0 0.0
    %5416 = vmatprep.subr.mxu0 0.0
    %5417 = vmatpush1.msra.mxu0 0.0
    %5418 = vmatprep.subr.mxu0 0.0
    %5419 = vmatpush1.msra.mxu0 0.0
    %5420 = vmatprep.subr.mxu0 0.0
    %5421 = vmatpush1.msra.mxu0 0.0
    %5422 = vmatprep.subr.mxu0 0.0
    %5423 = vmatpush1.msra.mxu0 0.0
    %5424 = vmatprep.subr.mxu0 0.0
    %5425 = vmatpush1.msra.mxu0 0.0
    %5426 = vmatprep.subr.mxu0 0.0
    %5427 = vmatpush1.msra.mxu0 0.0
    %5428 = vmatprep.subr.mxu0 0.0
    %5429 = vmatpush1.msra.mxu0 0.0
    %5430 = vmatprep.subr.mxu0 0.0
    %5431 = vmatpush1.msra.mxu0 0.0
    %5432 = vmatprep.subr.mxu0 0.0
    %5433 = vmatpush1.msra.mxu0 0.0
    %5434 = vmatprep.subr.mxu0 0.0
    %5435 = vmatpush1.msra.mxu0 0.0
    %5436 = vmatprep.subr.mxu0 0.0
    %v5437 = vand.u32 %v41, 4294901760
    %5438 = vmatpush1.msra.mxu0 %v5437
    %5439 = vmatprep.subr.mxu0 0.0
    %v5440 = vand.u32 %v40, 4294901760
    %5441 = vmatpush1.msra.mxu0 %v5440
    %5442 = vmatprep.subr.mxu0 0.0
    %v5443 = vand.u32 %v39, 4294901760
    %5444 = vmatpush1.msra.mxu0 %v5443
    %5445 = vmatprep.subr.mxu0 0.0
    %v5446 = vand.u32 %v38, 4294901760
    %5447 = vmatpush1.msra.mxu0 %v5446
    %5448 = vmatprep.subr.mxu0 0.0
    %5449 = vmatpush2.msra.mxu0 0.0
    %5450 = vmatprep.subr.mxu0 0.0
    %5451 = vmatpush2.msra.mxu0 0.0
    %5452 = vmatprep.subr.mxu0 0.0
    %5453 = vmatpush2.msra.mxu0 0.0
    %5454 = vmatprep.subr.mxu0 0.0
    %5455 = vmatpush2.msra.mxu0 0.0
    %5456 = vmatprep.subr.mxu0 0.0
    %5457 = vmatpush2.msra.mxu0 0.0
    %5458 = vmatprep.subr.mxu0 0.0
    %5459 = vmatpush2.msra.mxu0 0.0
    %5460 = vmatprep.subr.mxu0 0.0
    %5461 = vmatpush2.msra.mxu0 0.0
    %5462 = vmatprep.subr.mxu0 0.0
    %5463 = vmatpush2.msra.mxu0 0.0
    %5464 = vmatprep.subr.mxu0 0.0
    %5465 = vmatpush2.msra.mxu0 0.0
    %5466 = vmatprep.subr.mxu0 0.0
    %5467 = vmatpush2.msra.mxu0 0.0
    %5468 = vmatprep.subr.mxu0 0.0
    %5469 = vmatpush2.msra.mxu0 0.0
    %5470 = vmatprep.subr.mxu0 0.0
    %5471 = vmatpush2.msra.mxu0 0.0
    %5472 = vmatprep.subr.mxu0 0.0
    %5473 = vmatpush2.msra.mxu0 0.0
    %5474 = vmatprep.subr.mxu0 0.0
    %5475 = vmatpush2.msra.mxu0 0.0
    %5476 = vmatprep.subr.mxu0 0.0
    %5477 = vmatpush2.msra.mxu0 0.0
    %5478 = vmatprep.subr.mxu0 0.0
    %5479 = vmatpush2.msra.mxu0 0.0
    %5480 = vmatprep.mubr.f32.mxu0 0.0
    %v5481 = vand.u32 %v5000, 4294901760
    %5482 = vmatmul.mubr.f32.gmra.mxu0 %v5481
    %v5483 = vpop.f32.mrf.mxu0
    %v5484 = vadd.f32 %v5409, %v5483
    %v5485 = vpop.f32.mrf.mxu0
    %5486 = vdwg.mxu0
    %v5487 = vadd.f32 %v5484, %v55
    %v5488 = vtanh.pop %v5487
    %5490 = vrot.lane.b32.xlu0 %v4998, 32
    %v5491 = vpop.permute.xlu0 %5490
    %v5493 = vsel %vm853, %v5488, %v5491
    %v5495 = vsel %vm1349, %v5493, 0
    %5497 = vmatprep.subr.mxu0 0.0
    %5498 = vmatpush1.msra.mxu0 0.0
    %5499 = vmatprep.subr.mxu0 0.0
    %5500 = vmatpush1.msra.mxu0 0.0
    %5501 = vmatprep.subr.mxu0 0.0
    %5502 = vmatpush1.msra.mxu0 0.0
    %5503 = vmatprep.subr.mxu0 0.0
    %5504 = vmatpush1.msra.mxu0 0.0
    %5505 = vmatprep.subr.mxu0 0.0
    %5506 = vmatpush1.msra.mxu0 0.0
    %5507 = vmatprep.subr.mxu0 0.0
    %5508 = vmatpush1.msra.mxu0 0.0
    %5509 = vmatprep.subr.mxu0 0.0
    %5510 = vmatpush1.msra.mxu0 0.0
    %5511 = vmatprep.subr.mxu0 0.0
    %5512 = vmatpush1.msra.mxu0 0.0
    %5513 = vmatprep.subr.mxu0 0.0
    %v5514 = vand.u32 %v49, 4294901760
    %5515 = vmatpush1.msra.mxu0 %v5514
    %5516 = vmatprep.subr.mxu0 0.0
    %v5517 = vand.u32 %v48, 4294901760
    %5518 = vmatpush1.msra.mxu0 %v5517
    %5519 = vmatprep.subr.mxu0 0.0
    %v5520 = vand.u32 %v47, 4294901760
    %5521 = vmatpush1.msra.mxu0 %v5520
    %5522 = vmatprep.subr.mxu0 0.0
    %v5523 = vand.u32 %v46, 4294901760
    %5524 = vmatpush1.msra.mxu0 %v5523
    %5525 = vmatprep.subr.mxu0 0.0
    %v5526 = vand.u32 %v45, 4294901760
    %5527 = vmatpush1.msra.mxu0 %v5526
    %5528 = vmatprep.subr.mxu0 0.0
    %v5529 = vand.u32 %v44, 4294901760
    %5530 = vmatpush1.msra.mxu0 %v5529
    %5531 = vmatprep.subr.mxu0 0.0
    %v5532 = vand.u32 %v43, 4294901760
    %5533 = vmatpush1.msra.mxu0 %v5532
    %5534 = vmatprep.subr.mxu0 0.0
    %v5535 = vand.u32 %v42, 4294901760
    %5536 = vmatpush1.msra.mxu0 %v5535
    %5537 = vmatprep.subr.mxu0 0.0
    %5538 = vmatpush2.msra.mxu0 0.0
    %5539 = vmatprep.subr.mxu0 0.0
    %5540 = vmatpush2.msra.mxu0 0.0
    %5541 = vmatprep.subr.mxu0 0.0
    %5542 = vmatpush2.msra.mxu0 0.0
    %5543 = vmatprep.subr.mxu0 0.0
    %5544 = vmatpush2.msra.mxu0 0.0
    %5545 = vmatprep.subr.mxu0 0.0
    %5546 = vmatpush2.msra.mxu0 0.0
    %5547 = vmatprep.subr.mxu0 0.0
    %5548 = vmatpush2.msra.mxu0 0.0
    %5549 = vmatprep.subr.mxu0 0.0
    %5550 = vmatpush2.msra.mxu0 0.0
    %5551 = vmatprep.subr.mxu0 0.0
    %5552 = vmatpush2.msra.mxu0 0.0
    %5553 = vmatprep.subr.mxu0 0.0
    %5554 = vmatpush2.msra.mxu0 0.0
    %5555 = vmatprep.subr.mxu0 0.0
    %5556 = vmatpush2.msra.mxu0 0.0
    %5557 = vmatprep.subr.mxu0 0.0
    %5558 = vmatpush2.msra.mxu0 0.0
    %5559 = vmatprep.subr.mxu0 0.0
    %5560 = vmatpush2.msra.mxu0 0.0
    %5561 = vmatprep.subr.mxu0 0.0
    %5562 = vmatpush2.msra.mxu0 0.0
    %5563 = vmatprep.subr.mxu0 0.0
    %5564 = vmatpush2.msra.mxu0 0.0
    %5565 = vmatprep.subr.mxu0 0.0
    %5566 = vmatpush2.msra.mxu0 0.0
    %5567 = vmatprep.subr.mxu0 0.0
    %5568 = vmatpush2.msra.mxu0 0.0
    %5569 = vmatprep.mubr.f32.mxu0 0.0
    %v5570 = vand.u32 %v5495, 4294901760
    %v5571 = vsub.f32 %v5495, %v5570
    %v5572 = vand.u32 %v5571, 4294901760
    %v5573 = vsub.f32 %v5571, %v5572
    %v5574 = vand.u32 %v5573, 4294901760
    %5575 = vmatmul.mubr.f32.gmra.mxu0 %v5574
    %v5576 = vpop.f32.mrf.mxu0
    %v5577 = vadd.f32 %v63, %v5576
    %v5578 = vpop.f32.mrf.mxu0
    %5579 = vdwg.mxu0
    %5580 = vmatprep.subr.mxu0 0.0
    %5581 = vmatpush1.msra.mxu0 0.0
    %5582 = vmatprep.subr.mxu0 0.0
    %5583 = vmatpush1.msra.mxu0 0.0
    %5584 = vmatprep.subr.mxu0 0.0
    %5585 = vmatpush1.msra.mxu0 0.0
    %5586 = vmatprep.subr.mxu0 0.0
    %5587 = vmatpush1.msra.mxu0 0.0
    %5588 = vmatprep.subr.mxu0 0.0
    %5589 = vmatpush1.msra.mxu0 0.0
    %5590 = vmatprep.subr.mxu0 0.0
    %5591 = vmatpush1.msra.mxu0 0.0
    %5592 = vmatprep.subr.mxu0 0.0
    %5593 = vmatpush1.msra.mxu0 0.0
    %5594 = vmatprep.subr.mxu0 0.0
    %5595 = vmatpush1.msra.mxu0 0.0
    %5596 = vmatprep.subr.mxu0 0.0
    %v5597 = vand.u32 %v49, 4294901760
    %v5598 = vsub.f32 %v49, %v5597
    %v5599 = vand.u32 %v5598, 4294901760
    %v5600 = vsub.f32 %v5598, %v5599
    %v5601 = vand.u32 %v5600, 4294901760
    %5602 = vmatpush1.msra.mxu0 %v5601
    %5603 = vmatprep.subr.mxu0 0.0
    %v5604 = vand.u32 %v48, 4294901760
    %v5605 = vsub.f32 %v48, %v5604
    %v5606 = vand.u32 %v5605, 4294901760
    %v5607 = vsub.f32 %v5605, %v5606
    %v5608 = vand.u32 %v5607, 4294901760
    %5609 = vmatpush1.msra.mxu0 %v5608
    %5610 = vmatprep.subr.mxu0 0.0
    %v5611 = vand.u32 %v47, 4294901760
    %v5612 = vsub.f32 %v47, %v5611
    %v5613 = vand.u32 %v5612, 4294901760
    %v5614 = vsub.f32 %v5612, %v5613
    %v5615 = vand.u32 %v5614, 4294901760
    %5616 = vmatpush1.msra.mxu0 %v5615
    %5617 = vmatprep.subr.mxu0 0.0
    %v5618 = vand.u32 %v46, 4294901760
    %v5619 = vsub.f32 %v46, %v5618
    %v5620 = vand.u32 %v5619, 4294901760
    %v5621 = vsub.f32 %v5619, %v5620
    %v5622 = vand.u32 %v5621, 4294901760
    %5623 = vmatpush1.msra.mxu0 %v5622
    %5624 = vmatprep.subr.mxu0 0.0
    %v5625 = vand.u32 %v45, 4294901760
    %v5626 = vsub.f32 %v45, %v5625
    %v5627 = vand.u32 %v5626, 4294901760
    %v5628 = vsub.f32 %v5626, %v5627
    %v5629 = vand.u32 %v5628, 4294901760
    %5630 = vmatpush1.msra.mxu0 %v5629
    %5631 = vmatprep.subr.mxu0 0.0
    %v5632 = vand.u32 %v44, 4294901760
    %v5633 = vsub.f32 %v44, %v5632
    %v5634 = vand.u32 %v5633, 4294901760
    %v5635 = vsub.f32 %v5633, %v5634
    %v5636 = vand.u32 %v5635, 4294901760
    %5637 = vmatpush1.msra.mxu0 %v5636
    %5638 = vmatprep.subr.mxu0 0.0
    %v5639 = vand.u32 %v43, 4294901760
    %v5640 = vsub.f32 %v43, %v5639
    %v5641 = vand.u32 %v5640, 4294901760
    %v5642 = vsub.f32 %v5640, %v5641
    %v5643 = vand.u32 %v5642, 4294901760
    %5644 = vmatpush1.msra.mxu0 %v5643
    %5645 = vmatprep.subr.mxu0 0.0
    %v5646 = vand.u32 %v42, 4294901760
    %v5647 = vsub.f32 %v42, %v5646
    %v5648 = vand.u32 %v5647, 4294901760
    %v5649 = vsub.f32 %v5647, %v5648
    %v5650 = vand.u32 %v5649, 4294901760
    %5651 = vmatpush1.msra.mxu0 %v5650
    %5652 = vmatprep.subr.mxu0 0.0
    %5653 = vmatpush2.msra.mxu0 0.0
    %5654 = vmatprep.subr.mxu0 0.0
    %5655 = vmatpush2.msra.mxu0 0.0
    %5656 = vmatprep.subr.mxu0 0.0
    %5657 = vmatpush2.msra.mxu0 0.0
    %5658 = vmatprep.subr.mxu0 0.0
    %5659 = vmatpush2.msra.mxu0 0.0
    %5660 = vmatprep.subr.mxu0 0.0
    %5661 = vmatpush2.msra.mxu0 0.0
    %5662 = vmatprep.subr.mxu0 0.0
    %5663 = vmatpush2.msra.mxu0 0.0
    %5664 = vmatprep.subr.mxu0 0.0
    %5665 = vmatpush2.msra.mxu0 0.0
    %5666 = vmatprep.subr.mxu0 0.0
    %5667 = vmatpush2.msra.mxu0 0.0
    %5668 = vmatprep.subr.mxu0 0.0
    %5669 = vmatpush2.msra.mxu0 0.0
    %5670 = vmatprep.subr.mxu0 0.0
    %5671 = vmatpush2.msra.mxu0 0.0
    %5672 = vmatprep.subr.mxu0 0.0
    %5673 = vmatpush2.msra.mxu0 0.0
    %5674 = vmatprep.subr.mxu0 0.0
    %5675 = vmatpush2.msra.mxu0 0.0
    %5676 = vmatprep.subr.mxu0 0.0
    %5677 = vmatpush2.msra.mxu0 0.0
    %5678 = vmatprep.subr.mxu0 0.0
    %5679 = vmatpush2.msra.mxu0 0.0
    %5680 = vmatprep.subr.mxu0 0.0
    %5681 = vmatpush2.msra.mxu0 0.0
    %5682 = vmatprep.subr.mxu0 0.0
    %5683 = vmatpush2.msra.mxu0 0.0
    %5684 = vmatprep.mubr.f32.mxu0 0.0
    %v5685 = vand.u32 %v5495, 4294901760
    %5686 = vmatmul.mubr.f32.gmra.mxu0 %v5685
    %v5687 = vpop.f32.mrf.mxu0
    %v5688 = vadd.f32 %v5577, %v5687
    %v5689 = vpop.f32.mrf.mxu0
    %5690 = vdwg.mxu0
    %5691 = vmatprep.subr.mxu0 0.0
    %5692 = vmatpush1.msra.mxu0 0.0
    %5693 = vmatprep.subr.mxu0 0.0
    %5694 = vmatpush1.msra.mxu0 0.0
    %5695 = vmatprep.subr.mxu0 0.0
    %5696 = vmatpush1.msra.mxu0 0.0
    %5697 = vmatprep.subr.mxu0 0.0
    %5698 = vmatpush1.msra.mxu0 0.0
    %5699 = vmatprep.subr.mxu0 0.0
    %5700 = vmatpush1.msra.mxu0 0.0
    %5701 = vmatprep.subr.mxu0 0.0
    %5702 = vmatpush1.msra.mxu0 0.0
    %5703 = vmatprep.subr.mxu0 0.0
    %5704 = vmatpush1.msra.mxu0 0.0
    %5705 = vmatprep.subr.mxu0 0.0
    %5706 = vmatpush1.msra.mxu0 0.0
    %5707 = vmatprep.subr.mxu0 0.0
    %v5708 = vand.u32 %v49, 4294901760
    %v5709 = vsub.f32 %v49, %v5708
    %5710 = vmatpush1.msra.mxu0 %v5709
    %5711 = vmatprep.subr.mxu0 0.0
    %v5712 = vand.u32 %v48, 4294901760
    %v5713 = vsub.f32 %v48, %v5712
    %5714 = vmatpush1.msra.mxu0 %v5713
    %5715 = vmatprep.subr.mxu0 0.0
    %v5716 = vand.u32 %v47, 4294901760
    %v5717 = vsub.f32 %v47, %v5716
    %5718 = vmatpush1.msra.mxu0 %v5717
    %5719 = vmatprep.subr.mxu0 0.0
    %v5720 = vand.u32 %v46, 4294901760
    %v5721 = vsub.f32 %v46, %v5720
    %5722 = vmatpush1.msra.mxu0 %v5721
    %5723 = vmatprep.subr.mxu0 0.0
    %v5724 = vand.u32 %v45, 4294901760
    %v5725 = vsub.f32 %v45, %v5724
    %5726 = vmatpush1.msra.mxu0 %v5725
    %5727 = vmatprep.subr.mxu0 0.0
    %v5728 = vand.u32 %v44, 4294901760
    %v5729 = vsub.f32 %v44, %v5728
    %5730 = vmatpush1.msra.mxu0 %v5729
    %5731 = vmatprep.subr.mxu0 0.0
    %v5732 = vand.u32 %v43, 4294901760
    %v5733 = vsub.f32 %v43, %v5732
    %5734 = vmatpush1.msra.mxu0 %v5733
    %5735 = vmatprep.subr.mxu0 0.0
    %v5736 = vand.u32 %v42, 4294901760
    %v5737 = vsub.f32 %v42, %v5736
    %5738 = vmatpush1.msra.mxu0 %v5737
    %5739 = vmatprep.subr.mxu0 0.0
    %5740 = vmatpush2.msra.mxu0 0.0
    %5741 = vmatprep.subr.mxu0 0.0
    %5742 = vmatpush2.msra.mxu0 0.0
    %5743 = vmatprep.subr.mxu0 0.0
    %5744 = vmatpush2.msra.mxu0 0.0
    %5745 = vmatprep.subr.mxu0 0.0
    %5746 = vmatpush2.msra.mxu0 0.0
    %5747 = vmatprep.subr.mxu0 0.0
    %5748 = vmatpush2.msra.mxu0 0.0
    %5749 = vmatprep.subr.mxu0 0.0
    %5750 = vmatpush2.msra.mxu0 0.0
    %5751 = vmatprep.subr.mxu0 0.0
    %5752 = vmatpush2.msra.mxu0 0.0
    %5753 = vmatprep.subr.mxu0 0.0
    %5754 = vmatpush2.msra.mxu0 0.0
    %5755 = vmatprep.subr.mxu0 0.0
    %5756 = vmatpush2.msra.mxu0 0.0
    %5757 = vmatprep.subr.mxu0 0.0
    %5758 = vmatpush2.msra.mxu0 0.0
    %5759 = vmatprep.subr.mxu0 0.0
    %5760 = vmatpush2.msra.mxu0 0.0
    %5761 = vmatprep.subr.mxu0 0.0
    %5762 = vmatpush2.msra.mxu0 0.0
    %5763 = vmatprep.subr.mxu0 0.0
    %5764 = vmatpush2.msra.mxu0 0.0
    %5765 = vmatprep.subr.mxu0 0.0
    %5766 = vmatpush2.msra.mxu0 0.0
    %5767 = vmatprep.subr.mxu0 0.0
    %5768 = vmatpush2.msra.mxu0 0.0
    %5769 = vmatprep.subr.mxu0 0.0
    %5770 = vmatpush2.msra.mxu0 0.0
    %5771 = vmatprep.mubr.f32.mxu0 0.0
    %v5772 = vand.u32 %v5495, 4294901760
    %v5773 = vsub.f32 %v5495, %v5772
    %5774 = vmatmul.mubr.f32.gmra.mxu0 %v5773
    %v5775 = vpop.f32.mrf.mxu0
    %v5776 = vadd.f32 %v5688, %v5775
    %v5777 = vpop.f32.mrf.mxu0
    %5778 = vdwg.mxu0
    %5779 = vmatprep.subr.mxu0 0.0
    %5780 = vmatpush1.msra.mxu0 0.0
    %5781 = vmatprep.subr.mxu0 0.0
    %5782 = vmatpush1.msra.mxu0 0.0
    %5783 = vmatprep.subr.mxu0 0.0
    %5784 = vmatpush1.msra.mxu0 0.0
    %5785 = vmatprep.subr.mxu0 0.0
    %5786 = vmatpush1.msra.mxu0 0.0
    %5787 = vmatprep.subr.mxu0 0.0
    %5788 = vmatpush1.msra.mxu0 0.0
    %5789 = vmatprep.subr.mxu0 0.0
    %5790 = vmatpush1.msra.mxu0 0.0
    %5791 = vmatprep.subr.mxu0 0.0
    %5792 = vmatpush1.msra.mxu0 0.0
    %5793 = vmatprep.subr.mxu0 0.0
    %5794 = vmatpush1.msra.mxu0 0.0
    %5795 = vmatprep.subr.mxu0 0.0
    %v5796 = vand.u32 %v49, 4294901760
    %5797 = vmatpush1.msra.mxu0 %v5796
    %5798 = vmatprep.subr.mxu0 0.0
    %v5799 = vand.u32 %v48, 4294901760
    %5800 = vmatpush1.msra.mxu0 %v5799
    %5801 = vmatprep.subr.mxu0 0.0
    %v5802 = vand.u32 %v47, 4294901760
    %5803 = vmatpush1.msra.mxu0 %v5802
    %5804 = vmatprep.subr.mxu0 0.0
    %v5805 = vand.u32 %v46, 4294901760
    %5806 = vmatpush1.msra.mxu0 %v5805
    %5807 = vmatprep.subr.mxu0 0.0
    %v5808 = vand.u32 %v45, 4294901760
    %5809 = vmatpush1.msra.mxu0 %v5808
    %5810 = vmatprep.subr.mxu0 0.0
    %v5811 = vand.u32 %v44, 4294901760
    %5812 = vmatpush1.msra.mxu0 %v5811
    %5813 = vmatprep.subr.mxu0 0.0
    %v5814 = vand.u32 %v43, 4294901760
    %5815 = vmatpush1.msra.mxu0 %v5814
    %5816 = vmatprep.subr.mxu0 0.0
    %v5817 = vand.u32 %v42, 4294901760
    %5818 = vmatpush1.msra.mxu0 %v5817
    %5819 = vmatprep.subr.mxu0 0.0
    %5820 = vmatpush2.msra.mxu0 0.0
    %5821 = vmatprep.subr.mxu0 0.0
    %5822 = vmatpush2.msra.mxu0 0.0
    %5823 = vmatprep.subr.mxu0 0.0
    %5824 = vmatpush2.msra.mxu0 0.0
    %5825 = vmatprep.subr.mxu0 0.0
    %5826 = vmatpush2.msra.mxu0 0.0
    %5827 = vmatprep.subr.mxu0 0.0
    %5828 = vmatpush2.msra.mxu0 0.0
    %5829 = vmatprep.subr.mxu0 0.0
    %5830 = vmatpush2.msra.mxu0 0.0
    %5831 = vmatprep.subr.mxu0 0.0
    %5832 = vmatpush2.msra.mxu0 0.0
    %5833 = vmatprep.subr.mxu0 0.0
    %5834 = vmatpush2.msra.mxu0 0.0
    %5835 = vmatprep.subr.mxu0 0.0
    %5836 = vmatpush2.msra.mxu0 0.0
    %5837 = vmatprep.subr.mxu0 0.0
    %5838 = vmatpush2.msra.mxu0 0.0
    %5839 = vmatprep.subr.mxu0 0.0
    %5840 = vmatpush2.msra.mxu0 0.0
    %5841 = vmatprep.subr.mxu0 0.0
    %5842 = vmatpush2.msra.mxu0 0.0
    %5843 = vmatprep.subr.mxu0 0.0
    %5844 = vmatpush2.msra.mxu0 0.0
    %5845 = vmatprep.subr.mxu0 0.0
    %5846 = vmatpush2.msra.mxu0 0.0
    %5847 = vmatprep.subr.mxu0 0.0
    %5848 = vmatpush2.msra.mxu0 0.0
    %5849 = vmatprep.subr.mxu0 0.0
    %5850 = vmatpush2.msra.mxu0 0.0
    %5851 = vmatprep.mubr.f32.mxu0 0.0
    %v5852 = vand.u32 %v5495, 4294901760
    %v5853 = vsub.f32 %v5495, %v5852
    %v5854 = vand.u32 %v5853, 4294901760
    %5855 = vmatmul.mubr.f32.gmra.mxu0 %v5854
    %v5856 = vpop.f32.mrf.mxu0
    %v5857 = vadd.f32 %v5776, %v5856
    %v5858 = vpop.f32.mrf.mxu0
    %5859 = vdwg.mxu0
    %5860 = vmatprep.subr.mxu0 0.0
    %5861 = vmatpush1.msra.mxu0 0.0
    %5862 = vmatprep.subr.mxu0 0.0
    %5863 = vmatpush1.msra.mxu0 0.0
    %5864 = vmatprep.subr.mxu0 0.0
    %5865 = vmatpush1.msra.mxu0 0.0
    %5866 = vmatprep.subr.mxu0 0.0
    %5867 = vmatpush1.msra.mxu0 0.0
    %5868 = vmatprep.subr.mxu0 0.0
    %5869 = vmatpush1.msra.mxu0 0.0
    %5870 = vmatprep.subr.mxu0 0.0
    %5871 = vmatpush1.msra.mxu0 0.0
    %5872 = vmatprep.subr.mxu0 0.0
    %5873 = vmatpush1.msra.mxu0 0.0
    %5874 = vmatprep.subr.mxu0 0.0
    %5875 = vmatpush1.msra.mxu0 0.0
    %5876 = vmatprep.subr.mxu0 0.0
    %v5877 = vand.u32 %v49, 4294901760
    %v5878 = vsub.f32 %v49, %v5877
    %v5879 = vand.u32 %v5878, 4294901760
    %5880 = vmatpush1.msra.mxu0 %v5879
    %5881 = vmatprep.subr.mxu0 0.0
    %v5882 = vand.u32 %v48, 4294901760
    %v5883 = vsub.f32 %v48, %v5882
    %v5884 = vand.u32 %v5883, 4294901760
    %5885 = vmatpush1.msra.mxu0 %v5884
    %5886 = vmatprep.subr.mxu0 0.0
    %v5887 = vand.u32 %v47, 4294901760
    %v5888 = vsub.f32 %v47, %v5887
    %v5889 = vand.u32 %v5888, 4294901760
    %5890 = vmatpush1.msra.mxu0 %v5889
    %5891 = vmatprep.subr.mxu0 0.0
    %v5892 = vand.u32 %v46, 4294901760
    %v5893 = vsub.f32 %v46, %v5892
    %v5894 = vand.u32 %v5893, 4294901760
    %5895 = vmatpush1.msra.mxu0 %v5894
    %5896 = vmatprep.subr.mxu0 0.0
    %v5897 = vand.u32 %v45, 4294901760
    %v5898 = vsub.f32 %v45, %v5897
    %v5899 = vand.u32 %v5898, 4294901760
    %5900 = vmatpush1.msra.mxu0 %v5899
    %5901 = vmatprep.subr.mxu0 0.0
    %v5902 = vand.u32 %v44, 4294901760
    %v5903 = vsub.f32 %v44, %v5902
    %v5904 = vand.u32 %v5903, 4294901760
    %5905 = vmatpush1.msra.mxu0 %v5904
    %5906 = vmatprep.subr.mxu0 0.0
    %v5907 = vand.u32 %v43, 4294901760
    %v5908 = vsub.f32 %v43, %v5907
    %v5909 = vand.u32 %v5908, 4294901760
    %5910 = vmatpush1.msra.mxu0 %v5909
    %5911 = vmatprep.subr.mxu0 0.0
    %v5912 = vand.u32 %v42, 4294901760
    %v5913 = vsub.f32 %v42, %v5912
    %v5914 = vand.u32 %v5913, 4294901760
    %5915 = vmatpush1.msra.mxu0 %v5914
    %5916 = vmatprep.subr.mxu0 0.0
    %5917 = vmatpush2.msra.mxu0 0.0
    %5918 = vmatprep.subr.mxu0 0.0
    %5919 = vmatpush2.msra.mxu0 0.0
    %5920 = vmatprep.subr.mxu0 0.0
    %5921 = vmatpush2.msra.mxu0 0.0
    %5922 = vmatprep.subr.mxu0 0.0
    %5923 = vmatpush2.msra.mxu0 0.0
    %5924 = vmatprep.subr.mxu0 0.0
    %5925 = vmatpush2.msra.mxu0 0.0
    %5926 = vmatprep.subr.mxu0 0.0
    %5927 = vmatpush2.msra.mxu0 0.0
    %5928 = vmatprep.subr.mxu0 0.0
    %5929 = vmatpush2.msra.mxu0 0.0
    %5930 = vmatprep.subr.mxu0 0.0
    %5931 = vmatpush2.msra.mxu0 0.0
    %5932 = vmatprep.subr.mxu0 0.0
    %5933 = vmatpush2.msra.mxu0 0.0
    %5934 = vmatprep.subr.mxu0 0.0
    %5935 = vmatpush2.msra.mxu0 0.0
    %5936 = vmatprep.subr.mxu0 0.0
    %5937 = vmatpush2.msra.mxu0 0.0
    %5938 = vmatprep.subr.mxu0 0.0
    %5939 = vmatpush2.msra.mxu0 0.0
    %5940 = vmatprep.subr.mxu0 0.0
    %5941 = vmatpush2.msra.mxu0 0.0
    %5942 = vmatprep.subr.mxu0 0.0
    %5943 = vmatpush2.msra.mxu0 0.0
    %5944 = vmatprep.subr.mxu0 0.0
    %5945 = vmatpush2.msra.mxu0 0.0
    %5946 = vmatprep.subr.mxu0 0.0
    %5947 = vmatpush2.msra.mxu0 0.0
    %5948 = vmatprep.mubr.f32.mxu0 0.0
    %v5949 = vand.u32 %v5495, 4294901760
    %5950 = vmatmul.mubr.f32.gmra.mxu0 %v5949
    %v5951 = vpop.f32.mrf.mxu0
    %v5952 = vadd.f32 %v5857, %v5951
    %v5953 = vpop.f32.mrf.mxu0
    %5954 = vdwg.mxu0
    %5955 = vmatprep.subr.mxu0 0.0
    %5956 = vmatpush1.msra.mxu0 0.0
    %5957 = vmatprep.subr.mxu0 0.0
    %5958 = vmatpush1.msra.mxu0 0.0
    %5959 = vmatprep.subr.mxu0 0.0
    %5960 = vmatpush1.msra.mxu0 0.0
    %5961 = vmatprep.subr.mxu0 0.0
    %5962 = vmatpush1.msra.mxu0 0.0
    %5963 = vmatprep.subr.mxu0 0.0
    %5964 = vmatpush1.msra.mxu0 0.0
    %5965 = vmatprep.subr.mxu0 0.0
    %5966 = vmatpush1.msra.mxu0 0.0
    %5967 = vmatprep.subr.mxu0 0.0
    %5968 = vmatpush1.msra.mxu0 0.0
    %5969 = vmatprep.subr.mxu0 0.0
    %5970 = vmatpush1.msra.mxu0 0.0
    %5971 = vmatprep.subr.mxu0 0.0
    %v5972 = vand.u32 %v49, 4294901760
    %5973 = vmatpush1.msra.mxu0 %v5972
    %5974 = vmatprep.subr.mxu0 0.0
    %v5975 = vand.u32 %v48, 4294901760
    %5976 = vmatpush1.msra.mxu0 %v5975
    %5977 = vmatprep.subr.mxu0 0.0
    %v5978 = vand.u32 %v47, 4294901760
    %5979 = vmatpush1.msra.mxu0 %v5978
    %5980 = vmatprep.subr.mxu0 0.0
    %v5981 = vand.u32 %v46, 4294901760
    %5982 = vmatpush1.msra.mxu0 %v5981
    %5983 = vmatprep.subr.mxu0 0.0
    %v5984 = vand.u32 %v45, 4294901760
    %5985 = vmatpush1.msra.mxu0 %v5984
    %5986 = vmatprep.subr.mxu0 0.0
    %v5987 = vand.u32 %v44, 4294901760
    %5988 = vmatpush1.msra.mxu0 %v5987
    %5989 = vmatprep.subr.mxu0 0.0
    %v5990 = vand.u32 %v43, 4294901760
    %5991 = vmatpush1.msra.mxu0 %v5990
    %5992 = vmatprep.subr.mxu0 0.0
    %v5993 = vand.u32 %v42, 4294901760
    %5994 = vmatpush1.msra.mxu0 %v5993
    %5995 = vmatprep.subr.mxu0 0.0
    %5996 = vmatpush2.msra.mxu0 0.0
    %5997 = vmatprep.subr.mxu0 0.0
    %5998 = vmatpush2.msra.mxu0 0.0
    %5999 = vmatprep.subr.mxu0 0.0
    %6000 = vmatpush2.msra.mxu0 0.0
    %6001 = vmatprep.subr.mxu0 0.0
    %6002 = vmatpush2.msra.mxu0 0.0
    %6003 = vmatprep.subr.mxu0 0.0
    %6004 = vmatpush2.msra.mxu0 0.0
    %6005 = vmatprep.subr.mxu0 0.0
    %6006 = vmatpush2.msra.mxu0 0.0
    %6007 = vmatprep.subr.mxu0 0.0
    %6008 = vmatpush2.msra.mxu0 0.0
    %6009 = vmatprep.subr.mxu0 0.0
    %6010 = vmatpush2.msra.mxu0 0.0
    %6011 = vmatprep.subr.mxu0 0.0
    %6012 = vmatpush2.msra.mxu0 0.0
    %6013 = vmatprep.subr.mxu0 0.0
    %6014 = vmatpush2.msra.mxu0 0.0
    %6015 = vmatprep.subr.mxu0 0.0
    %6016 = vmatpush2.msra.mxu0 0.0
    %6017 = vmatprep.subr.mxu0 0.0
    %6018 = vmatpush2.msra.mxu0 0.0
    %6019 = vmatprep.subr.mxu0 0.0
    %6020 = vmatpush2.msra.mxu0 0.0
    %6021 = vmatprep.subr.mxu0 0.0
    %6022 = vmatpush2.msra.mxu0 0.0
    %6023 = vmatprep.subr.mxu0 0.0
    %6024 = vmatpush2.msra.mxu0 0.0
    %6025 = vmatprep.subr.mxu0 0.0
    %6026 = vmatpush2.msra.mxu0 0.0
    %6027 = vmatprep.mubr.f32.mxu0 0.0
    %v6028 = vand.u32 %v5495, 4294901760
    %6029 = vmatmul.mubr.f32.gmra.mxu0 %v6028
    %v6030 = vpop.f32.mrf.mxu0
    %v6031 = vadd.f32 %v5952, %v6030
    %v6032 = vpop.f32.mrf.mxu0
    %6033 = vdwg.mxu0
    %v6034 = vtanh.pop %v6031
    %v6036 = vsel %vm853, %v5488, 0
    %6038 = vmatprep.subr.mxu0 0.0
    %6039 = vmatpush1.msra.mxu0 0.0
    %6040 = vmatprep.subr.mxu0 0.0
    %6041 = vmatpush1.msra.mxu0 0.0
    %6042 = vmatprep.subr.mxu0 0.0
    %6043 = vmatpush1.msra.mxu0 0.0
    %6044 = vmatprep.subr.mxu0 0.0
    %6045 = vmatpush1.msra.mxu0 0.0
    %6046 = vmatprep.subr.mxu0 0.0
    %6047 = vmatpush1.msra.mxu0 0.0
    %6048 = vmatprep.subr.mxu0 0.0
    %6049 = vmatpush1.msra.mxu0 0.0
    %6050 = vmatprep.subr.mxu0 0.0
    %6051 = vmatpush1.msra.mxu0 0.0
    %6052 = vmatprep.subr.mxu0 0.0
    %6053 = vmatpush1.msra.mxu0 0.0
    %6054 = vmatprep.subr.mxu0 0.0
    %6055 = vmatpush1.msra.mxu0 0.0
    %6056 = vmatprep.subr.mxu0 0.0
    %6057 = vmatpush1.msra.mxu0 0.0
    %6058 = vmatprep.subr.mxu0 0.0
    %6059 = vmatpush1.msra.mxu0 0.0
    %6060 = vmatprep.subr.mxu0 0.0
    %6061 = vmatpush1.msra.mxu0 0.0
    %6062 = vmatprep.subr.mxu0 0.0
    %v6063 = vand.u32 %v41, 4294901760
    %6064 = vmatpush1.msra.mxu0 %v6063
    %6065 = vmatprep.subr.mxu0 0.0
    %v6066 = vand.u32 %v40, 4294901760
    %6067 = vmatpush1.msra.mxu0 %v6066
    %6068 = vmatprep.subr.mxu0 0.0
    %v6069 = vand.u32 %v39, 4294901760
    %6070 = vmatpush1.msra.mxu0 %v6069
    %6071 = vmatprep.subr.mxu0 0.0
    %v6072 = vand.u32 %v38, 4294901760
    %6073 = vmatpush1.msra.mxu0 %v6072
    %6074 = vmatprep.subr.mxu0 0.0
    %6075 = vmatpush2.msra.mxu0 0.0
    %6076 = vmatprep.subr.mxu0 0.0
    %6077 = vmatpush2.msra.mxu0 0.0
    %6078 = vmatprep.subr.mxu0 0.0
    %6079 = vmatpush2.msra.mxu0 0.0
    %6080 = vmatprep.subr.mxu0 0.0
    %6081 = vmatpush2.msra.mxu0 0.0
    %6082 = vmatprep.subr.mxu0 0.0
    %6083 = vmatpush2.msra.mxu0 0.0
    %6084 = vmatprep.subr.mxu0 0.0
    %6085 = vmatpush2.msra.mxu0 0.0
    %6086 = vmatprep.subr.mxu0 0.0
    %6087 = vmatpush2.msra.mxu0 0.0
    %6088 = vmatprep.subr.mxu0 0.0
    %6089 = vmatpush2.msra.mxu0 0.0
    %6090 = vmatprep.subr.mxu0 0.0
    %6091 = vmatpush2.msra.mxu0 0.0
    %6092 = vmatprep.subr.mxu0 0.0
    %6093 = vmatpush2.msra.mxu0 0.0
    %6094 = vmatprep.subr.mxu0 0.0
    %6095 = vmatpush2.msra.mxu0 0.0
    %6096 = vmatprep.subr.mxu0 0.0
    %6097 = vmatpush2.msra.mxu0 0.0
    %6098 = vmatprep.subr.mxu0 0.0
    %6099 = vmatpush2.msra.mxu0 0.0
    %6100 = vmatprep.subr.mxu0 0.0
    %6101 = vmatpush2.msra.mxu0 0.0
    %6102 = vmatprep.subr.mxu0 0.0
    %6103 = vmatpush2.msra.mxu0 0.0
    %6104 = vmatprep.subr.mxu0 0.0
    %6105 = vmatpush2.msra.mxu0 0.0
    %6106 = vmatprep.mubr.f32.mxu0 0.0
    %v6107 = vand.u32 %v6036, 4294901760
    %v6108 = vsub.f32 %v6036, %v6107
    %v6109 = vand.u32 %v6108, 4294901760
    %v6110 = vsub.f32 %v6108, %v6109
    %v6111 = vand.u32 %v6110, 4294901760
    %6112 = vmatmul.mubr.f32.gmra.mxu0 %v6111
    %v6113 = vpop.f32.mrf.mxu0
    %v6114 = vadd.f32 %v835, %v6113
    %v6115 = vpop.f32.mrf.mxu0
    %6116 = vdwg.mxu0
    %6117 = vmatprep.subr.mxu0 0.0
    %6118 = vmatpush1.msra.mxu0 0.0
    %6119 = vmatprep.subr.mxu0 0.0
    %6120 = vmatpush1.msra.mxu0 0.0
    %6121 = vmatprep.subr.mxu0 0.0
    %6122 = vmatpush1.msra.mxu0 0.0
    %6123 = vmatprep.subr.mxu0 0.0
    %6124 = vmatpush1.msra.mxu0 0.0
    %6125 = vmatprep.subr.mxu0 0.0
    %6126 = vmatpush1.msra.mxu0 0.0
    %6127 = vmatprep.subr.mxu0 0.0
    %6128 = vmatpush1.msra.mxu0 0.0
    %6129 = vmatprep.subr.mxu0 0.0
    %6130 = vmatpush1.msra.mxu0 0.0
    %6131 = vmatprep.subr.mxu0 0.0
    %6132 = vmatpush1.msra.mxu0 0.0
    %6133 = vmatprep.subr.mxu0 0.0
    %6134 = vmatpush1.msra.mxu0 0.0
    %6135 = vmatprep.subr.mxu0 0.0
    %6136 = vmatpush1.msra.mxu0 0.0
    %6137 = vmatprep.subr.mxu0 0.0
    %6138 = vmatpush1.msra.mxu0 0.0
    %6139 = vmatprep.subr.mxu0 0.0
    %6140 = vmatpush1.msra.mxu0 0.0
    %6141 = vmatprep.subr.mxu0 0.0
    %v6142 = vand.u32 %v41, 4294901760
    %v6143 = vsub.f32 %v41, %v6142
    %v6144 = vand.u32 %v6143, 4294901760
    %v6145 = vsub.f32 %v6143, %v6144
    %v6146 = vand.u32 %v6145, 4294901760
    %6147 = vmatpush1.msra.mxu0 %v6146
    %6148 = vmatprep.subr.mxu0 0.0
    %v6149 = vand.u32 %v40, 4294901760
    %v6150 = vsub.f32 %v40, %v6149
    %v6151 = vand.u32 %v6150, 4294901760
    %v6152 = vsub.f32 %v6150, %v6151
    %v6153 = vand.u32 %v6152, 4294901760
    %6154 = vmatpush1.msra.mxu0 %v6153
    %6155 = vmatprep.subr.mxu0 0.0
    %v6156 = vand.u32 %v39, 4294901760
    %v6157 = vsub.f32 %v39, %v6156
    %v6158 = vand.u32 %v6157, 4294901760
    %v6159 = vsub.f32 %v6157, %v6158
    %v6160 = vand.u32 %v6159, 4294901760
    %6161 = vmatpush1.msra.mxu0 %v6160
    %6162 = vmatprep.subr.mxu0 0.0
    %v6163 = vand.u32 %v38, 4294901760
    %v6164 = vsub.f32 %v38, %v6163
    %v6165 = vand.u32 %v6164, 4294901760
    %v6166 = vsub.f32 %v6164, %v6165
    %v6167 = vand.u32 %v6166, 4294901760
    %6168 = vmatpush1.msra.mxu0 %v6167
    %6169 = vmatprep.subr.mxu0 0.0
    %6170 = vmatpush2.msra.mxu0 0.0
    %6171 = vmatprep.subr.mxu0 0.0
    %6172 = vmatpush2.msra.mxu0 0.0
    %6173 = vmatprep.subr.mxu0 0.0
    %6174 = vmatpush2.msra.mxu0 0.0
    %6175 = vmatprep.subr.mxu0 0.0
    %6176 = vmatpush2.msra.mxu0 0.0
    %6177 = vmatprep.subr.mxu0 0.0
    %6178 = vmatpush2.msra.mxu0 0.0
    %6179 = vmatprep.subr.mxu0 0.0
    %6180 = vmatpush2.msra.mxu0 0.0
    %6181 = vmatprep.subr.mxu0 0.0
    %6182 = vmatpush2.msra.mxu0 0.0
    %6183 = vmatprep.subr.mxu0 0.0
    %6184 = vmatpush2.msra.mxu0 0.0
    %6185 = vmatprep.subr.mxu0 0.0
    %6186 = vmatpush2.msra.mxu0 0.0
    %6187 = vmatprep.subr.mxu0 0.0
    %6188 = vmatpush2.msra.mxu0 0.0
    %6189 = vmatprep.subr.mxu0 0.0
    %6190 = vmatpush2.msra.mxu0 0.0
    %6191 = vmatprep.subr.mxu0 0.0
    %6192 = vmatpush2.msra.mxu0 0.0
    %6193 = vmatprep.subr.mxu0 0.0
    %6194 = vmatpush2.msra.mxu0 0.0
    %6195 = vmatprep.subr.mxu0 0.0
    %6196 = vmatpush2.msra.mxu0 0.0
    %6197 = vmatprep.subr.mxu0 0.0
    %6198 = vmatpush2.msra.mxu0 0.0
    %6199 = vmatprep.subr.mxu0 0.0
    %6200 = vmatpush2.msra.mxu0 0.0
    %6201 = vmatprep.mubr.f32.mxu0 0.0
    %v6202 = vand.u32 %v6036, 4294901760
    %6203 = vmatmul.mubr.f32.gmra.mxu0 %v6202
    %v6204 = vpop.f32.mrf.mxu0
    %v6205 = vadd.f32 %v6114, %v6204
    %v6206 = vpop.f32.mrf.mxu0
    %6207 = vdwg.mxu0
    %6208 = vmatprep.subr.mxu0 0.0
    %6209 = vmatpush1.msra.mxu0 0.0
    %6210 = vmatprep.subr.mxu0 0.0
    %6211 = vmatpush1.msra.mxu0 0.0
    %6212 = vmatprep.subr.mxu0 0.0
    %6213 = vmatpush1.msra.mxu0 0.0
    %6214 = vmatprep.subr.mxu0 0.0
    %6215 = vmatpush1.msra.mxu0 0.0
    %6216 = vmatprep.subr.mxu0 0.0
    %6217 = vmatpush1.msra.mxu0 0.0
    %6218 = vmatprep.subr.mxu0 0.0
    %6219 = vmatpush1.msra.mxu0 0.0
    %6220 = vmatprep.subr.mxu0 0.0
    %6221 = vmatpush1.msra.mxu0 0.0
    %6222 = vmatprep.subr.mxu0 0.0
    %6223 = vmatpush1.msra.mxu0 0.0
    %6224 = vmatprep.subr.mxu0 0.0
    %6225 = vmatpush1.msra.mxu0 0.0
    %6226 = vmatprep.subr.mxu0 0.0
    %6227 = vmatpush1.msra.mxu0 0.0
    %6228 = vmatprep.subr.mxu0 0.0
    %6229 = vmatpush1.msra.mxu0 0.0
    %6230 = vmatprep.subr.mxu0 0.0
    %6231 = vmatpush1.msra.mxu0 0.0
    %6232 = vmatprep.subr.mxu0 0.0
    %v6233 = vand.u32 %v41, 4294901760
    %v6234 = vsub.f32 %v41, %v6233
    %6235 = vmatpush1.msra.mxu0 %v6234
    %6236 = vmatprep.subr.mxu0 0.0
    %v6237 = vand.u32 %v40, 4294901760
    %v6238 = vsub.f32 %v40, %v6237
    %6239 = vmatpush1.msra.mxu0 %v6238
    %6240 = vmatprep.subr.mxu0 0.0
    %v6241 = vand.u32 %v39, 4294901760
    %v6242 = vsub.f32 %v39, %v6241
    %6243 = vmatpush1.msra.mxu0 %v6242
    %6244 = vmatprep.subr.mxu0 0.0
    %v6245 = vand.u32 %v38, 4294901760
    %v6246 = vsub.f32 %v38, %v6245
    %6247 = vmatpush1.msra.mxu0 %v6246
    %6248 = vmatprep.subr.mxu0 0.0
    %6249 = vmatpush2.msra.mxu0 0.0
    %6250 = vmatprep.subr.mxu0 0.0
    %6251 = vmatpush2.msra.mxu0 0.0
    %6252 = vmatprep.subr.mxu0 0.0
    %6253 = vmatpush2.msra.mxu0 0.0
    %6254 = vmatprep.subr.mxu0 0.0
    %6255 = vmatpush2.msra.mxu0 0.0
    %6256 = vmatprep.subr.mxu0 0.0
    %6257 = vmatpush2.msra.mxu0 0.0
    %6258 = vmatprep.subr.mxu0 0.0
    %6259 = vmatpush2.msra.mxu0 0.0
    %6260 = vmatprep.subr.mxu0 0.0
    %6261 = vmatpush2.msra.mxu0 0.0
    %6262 = vmatprep.subr.mxu0 0.0
    %6263 = vmatpush2.msra.mxu0 0.0
    %6264 = vmatprep.subr.mxu0 0.0
    %6265 = vmatpush2.msra.mxu0 0.0
    %6266 = vmatprep.subr.mxu0 0.0
    %6267 = vmatpush2.msra.mxu0 0.0
    %6268 = vmatprep.subr.mxu0 0.0
    %6269 = vmatpush2.msra.mxu0 0.0
    %6270 = vmatprep.subr.mxu0 0.0
    %6271 = vmatpush2.msra.mxu0 0.0
    %6272 = vmatprep.subr.mxu0 0.0
    %6273 = vmatpush2.msra.mxu0 0.0
    %6274 = vmatprep.subr.mxu0 0.0
    %6275 = vmatpush2.msra.mxu0 0.0
    %6276 = vmatprep.subr.mxu0 0.0
    %6277 = vmatpush2.msra.mxu0 0.0
    %6278 = vmatprep.subr.mxu0 0.0
    %6279 = vmatpush2.msra.mxu0 0.0
    %6280 = vmatprep.mubr.f32.mxu0 0.0
    %v6281 = vand.u32 %v6036, 4294901760
    %v6282 = vsub.f32 %v6036, %v6281
    %6283 = vmatmul.mubr.f32.gmra.mxu0 %v6282
    %v6284 = vpop.f32.mrf.mxu0
    %v6285 = vadd.f32 %v6205, %v6284
    %v6286 = vpop.f32.mrf.mxu0
    %6287 = vdwg.mxu0
    %6288 = vmatprep.subr.mxu0 0.0
    %6289 = vmatpush1.msra.mxu0 0.0
    %6290 = vmatprep.subr.mxu0 0.0
    %6291 = vmatpush1.msra.mxu0 0.0
    %6292 = vmatprep.subr.mxu0 0.0
    %6293 = vmatpush1.msra.mxu0 0.0
    %6294 = vmatprep.subr.mxu0 0.0
    %6295 = vmatpush1.msra.mxu0 0.0
    %6296 = vmatprep.subr.mxu0 0.0
    %6297 = vmatpush1.msra.mxu0 0.0
    %6298 = vmatprep.subr.mxu0 0.0
    %6299 = vmatpush1.msra.mxu0 0.0
    %6300 = vmatprep.subr.mxu0 0.0
    %6301 = vmatpush1.msra.mxu0 0.0
    %6302 = vmatprep.subr.mxu0 0.0
    %6303 = vmatpush1.msra.mxu0 0.0
    %6304 = vmatprep.subr.mxu0 0.0
    %6305 = vmatpush1.msra.mxu0 0.0
    %6306 = vmatprep.subr.mxu0 0.0
    %6307 = vmatpush1.msra.mxu0 0.0
    %6308 = vmatprep.subr.mxu0 0.0
    %6309 = vmatpush1.msra.mxu0 0.0
    %6310 = vmatprep.subr.mxu0 0.0
    %6311 = vmatpush1.msra.mxu0 0.0
    %6312 = vmatprep.subr.mxu0 0.0
    %v6313 = vand.u32 %v41, 4294901760
    %6314 = vmatpush1.msra.mxu0 %v6313
    %6315 = vmatprep.subr.mxu0 0.0
    %v6316 = vand.u32 %v40, 4294901760
    %6317 = vmatpush1.msra.mxu0 %v6316
    %6318 = vmatprep.subr.mxu0 0.0
    %v6319 = vand.u32 %v39, 4294901760
    %6320 = vmatpush1.msra.mxu0 %v6319
    %6321 = vmatprep.subr.mxu0 0.0
    %v6322 = vand.u32 %v38, 4294901760
    %6323 = vmatpush1.msra.mxu0 %v6322
    %6324 = vmatprep.subr.mxu0 0.0
    %6325 = vmatpush2.msra.mxu0 0.0
    %6326 = vmatprep.subr.mxu0 0.0
    %6327 = vmatpush2.msra.mxu0 0.0
    %6328 = vmatprep.subr.mxu0 0.0
    %6329 = vmatpush2.msra.mxu0 0.0
    %6330 = vmatprep.subr.mxu0 0.0
    %6331 = vmatpush2.msra.mxu0 0.0
    %6332 = vmatprep.subr.mxu0 0.0
    %6333 = vmatpush2.msra.mxu0 0.0
    %6334 = vmatprep.subr.mxu0 0.0
    %6335 = vmatpush2.msra.mxu0 0.0
    %6336 = vmatprep.subr.mxu0 0.0
    %6337 = vmatpush2.msra.mxu0 0.0
    %6338 = vmatprep.subr.mxu0 0.0
    %6339 = vmatpush2.msra.mxu0 0.0
    %6340 = vmatprep.subr.mxu0 0.0
    %6341 = vmatpush2.msra.mxu0 0.0
    %6342 = vmatprep.subr.mxu0 0.0
    %6343 = vmatpush2.msra.mxu0 0.0
    %6344 = vmatprep.subr.mxu0 0.0
    %6345 = vmatpush2.msra.mxu0 0.0
    %6346 = vmatprep.subr.mxu0 0.0
    %6347 = vmatpush2.msra.mxu0 0.0
    %6348 = vmatprep.subr.mxu0 0.0
    %6349 = vmatpush2.msra.mxu0 0.0
    %6350 = vmatprep.subr.mxu0 0.0
    %6351 = vmatpush2.msra.mxu0 0.0
    %6352 = vmatprep.subr.mxu0 0.0
    %6353 = vmatpush2.msra.mxu0 0.0
    %6354 = vmatprep.subr.mxu0 0.0
    %6355 = vmatpush2.msra.mxu0 0.0
    %6356 = vmatprep.mubr.f32.mxu0 0.0
    %v6357 = vand.u32 %v6036, 4294901760
    %v6358 = vsub.f32 %v6036, %v6357
    %v6359 = vand.u32 %v6358, 4294901760
    %6360 = vmatmul.mubr.f32.gmra.mxu0 %v6359
    %v6361 = vpop.f32.mrf.mxu0
    %v6362 = vadd.f32 %v6285, %v6361
    %v6363 = vpop.f32.mrf.mxu0
    %6364 = vdwg.mxu0
    %6365 = vmatprep.subr.mxu0 0.0
    %6366 = vmatpush1.msra.mxu0 0.0
    %6367 = vmatprep.subr.mxu0 0.0
    %6368 = vmatpush1.msra.mxu0 0.0
    %6369 = vmatprep.subr.mxu0 0.0
    %6370 = vmatpush1.msra.mxu0 0.0
    %6371 = vmatprep.subr.mxu0 0.0
    %6372 = vmatpush1.msra.mxu0 0.0
    %6373 = vmatprep.subr.mxu0 0.0
    %6374 = vmatpush1.msra.mxu0 0.0
    %6375 = vmatprep.subr.mxu0 0.0
    %6376 = vmatpush1.msra.mxu0 0.0
    %6377 = vmatprep.subr.mxu0 0.0
    %6378 = vmatpush1.msra.mxu0 0.0
    %6379 = vmatprep.subr.mxu0 0.0
    %6380 = vmatpush1.msra.mxu0 0.0
    %6381 = vmatprep.subr.mxu0 0.0
    %6382 = vmatpush1.msra.mxu0 0.0
    %6383 = vmatprep.subr.mxu0 0.0
    %6384 = vmatpush1.msra.mxu0 0.0
    %6385 = vmatprep.subr.mxu0 0.0
    %6386 = vmatpush1.msra.mxu0 0.0
    %6387 = vmatprep.subr.mxu0 0.0
    %6388 = vmatpush1.msra.mxu0 0.0
    %6389 = vmatprep.subr.mxu0 0.0
    %v6390 = vand.u32 %v41, 4294901760
    %v6391 = vsub.f32 %v41, %v6390
    %v6392 = vand.u32 %v6391, 4294901760
    %6393 = vmatpush1.msra.mxu0 %v6392
    %6394 = vmatprep.subr.mxu0 0.0
    %v6395 = vand.u32 %v40, 4294901760
    %v6396 = vsub.f32 %v40, %v6395
    %v6397 = vand.u32 %v6396, 4294901760
    %6398 = vmatpush1.msra.mxu0 %v6397
    %6399 = vmatprep.subr.mxu0 0.0
    %v6400 = vand.u32 %v39, 4294901760
    %v6401 = vsub.f32 %v39, %v6400
    %v6402 = vand.u32 %v6401, 4294901760
    %6403 = vmatpush1.msra.mxu0 %v6402
    %6404 = vmatprep.subr.mxu0 0.0
    %v6405 = vand.u32 %v38, 4294901760
    %v6406 = vsub.f32 %v38, %v6405
    %v6407 = vand.u32 %v6406, 4294901760
    %6408 = vmatpush1.msra.mxu0 %v6407
    %6409 = vmatprep.subr.mxu0 0.0
    %6410 = vmatpush2.msra.mxu0 0.0
    %6411 = vmatprep.subr.mxu0 0.0
    %6412 = vmatpush2.msra.mxu0 0.0
    %6413 = vmatprep.subr.mxu0 0.0
    %6414 = vmatpush2.msra.mxu0 0.0
    %6415 = vmatprep.subr.mxu0 0.0
    %6416 = vmatpush2.msra.mxu0 0.0
    %6417 = vmatprep.subr.mxu0 0.0
    %6418 = vmatpush2.msra.mxu0 0.0
    %6419 = vmatprep.subr.mxu0 0.0
    %6420 = vmatpush2.msra.mxu0 0.0
    %6421 = vmatprep.subr.mxu0 0.0
    %6422 = vmatpush2.msra.mxu0 0.0
    %6423 = vmatprep.subr.mxu0 0.0
    %6424 = vmatpush2.msra.mxu0 0.0
    %6425 = vmatprep.subr.mxu0 0.0
    %6426 = vmatpush2.msra.mxu0 0.0
    %6427 = vmatprep.subr.mxu0 0.0
    %6428 = vmatpush2.msra.mxu0 0.0
    %6429 = vmatprep.subr.mxu0 0.0
    %6430 = vmatpush2.msra.mxu0 0.0
    %6431 = vmatprep.subr.mxu0 0.0
    %6432 = vmatpush2.msra.mxu0 0.0
    %6433 = vmatprep.subr.mxu0 0.0
    %6434 = vmatpush2.msra.mxu0 0.0
    %6435 = vmatprep.subr.mxu0 0.0
    %6436 = vmatpush2.msra.mxu0 0.0
    %6437 = vmatprep.subr.mxu0 0.0
    %6438 = vmatpush2.msra.mxu0 0.0
    %6439 = vmatprep.subr.mxu0 0.0
    %6440 = vmatpush2.msra.mxu0 0.0
    %6441 = vmatprep.mubr.f32.mxu0 0.0
    %v6442 = vand.u32 %v6036, 4294901760
    %6443 = vmatmul.mubr.f32.gmra.mxu0 %v6442
    %v6444 = vpop.f32.mrf.mxu0
    %v6445 = vadd.f32 %v6362, %v6444
    %v6446 = vpop.f32.mrf.mxu0
    %6447 = vdwg.mxu0
    %6448 = vmatprep.subr.mxu0 0.0
    %6449 = vmatpush1.msra.mxu0 0.0
    %6450 = vmatprep.subr.mxu0 0.0
    %6451 = vmatpush1.msra.mxu0 0.0
    %6452 = vmatprep.subr.mxu0 0.0
    %6453 = vmatpush1.msra.mxu0 0.0
    %6454 = vmatprep.subr.mxu0 0.0
    %6455 = vmatpush1.msra.mxu0 0.0
    %6456 = vmatprep.subr.mxu0 0.0
    %6457 = vmatpush1.msra.mxu0 0.0
    %6458 = vmatprep.subr.mxu0 0.0
    %6459 = vmatpush1.msra.mxu0 0.0
    %6460 = vmatprep.subr.mxu0 0.0
    %6461 = vmatpush1.msra.mxu0 0.0
    %6462 = vmatprep.subr.mxu0 0.0
    %6463 = vmatpush1.msra.mxu0 0.0
    %6464 = vmatprep.subr.mxu0 0.0
    %6465 = vmatpush1.msra.mxu0 0.0
    %6466 = vmatprep.subr.mxu0 0.0
    %6467 = vmatpush1.msra.mxu0 0.0
    %6468 = vmatprep.subr.mxu0 0.0
    %6469 = vmatpush1.msra.mxu0 0.0
    %6470 = vmatprep.subr.mxu0 0.0
    %6471 = vmatpush1.msra.mxu0 0.0
    %6472 = vmatprep.subr.mxu0 0.0
    %v6473 = vand.u32 %v41, 4294901760
    %6474 = vmatpush1.msra.mxu0 %v6473
    %6475 = vmatprep.subr.mxu0 0.0
    %v6476 = vand.u32 %v40, 4294901760
    %6477 = vmatpush1.msra.mxu0 %v6476
    %6478 = vmatprep.subr.mxu0 0.0
    %v6479 = vand.u32 %v39, 4294901760
    %6480 = vmatpush1.msra.mxu0 %v6479
    %6481 = vmatprep.subr.mxu0 0.0
    %v6482 = vand.u32 %v38, 4294901760
    %6483 = vmatpush1.msra.mxu0 %v6482
    %6484 = vmatprep.subr.mxu0 0.0
    %6485 = vmatpush2.msra.mxu0 0.0
    %6486 = vmatprep.subr.mxu0 0.0
    %6487 = vmatpush2.msra.mxu0 0.0
    %6488 = vmatprep.subr.mxu0 0.0
    %6489 = vmatpush2.msra.mxu0 0.0
    %6490 = vmatprep.subr.mxu0 0.0
    %6491 = vmatpush2.msra.mxu0 0.0
    %6492 = vmatprep.subr.mxu0 0.0
    %6493 = vmatpush2.msra.mxu0 0.0
    %6494 = vmatprep.subr.mxu0 0.0
    %6495 = vmatpush2.msra.mxu0 0.0
    %6496 = vmatprep.subr.mxu0 0.0
    %6497 = vmatpush2.msra.mxu0 0.0
    %6498 = vmatprep.subr.mxu0 0.0
    %6499 = vmatpush2.msra.mxu0 0.0
    %6500 = vmatprep.subr.mxu0 0.0
    %6501 = vmatpush2.msra.mxu0 0.0
    %6502 = vmatprep.subr.mxu0 0.0
    %6503 = vmatpush2.msra.mxu0 0.0
    %6504 = vmatprep.subr.mxu0 0.0
    %6505 = vmatpush2.msra.mxu0 0.0
    %6506 = vmatprep.subr.mxu0 0.0
    %6507 = vmatpush2.msra.mxu0 0.0
    %6508 = vmatprep.subr.mxu0 0.0
    %6509 = vmatpush2.msra.mxu0 0.0
    %6510 = vmatprep.subr.mxu0 0.0
    %6511 = vmatpush2.msra.mxu0 0.0
    %6512 = vmatprep.subr.mxu0 0.0
    %6513 = vmatpush2.msra.mxu0 0.0
    %6514 = vmatprep.subr.mxu0 0.0
    %6515 = vmatpush2.msra.mxu0 0.0
    %6516 = vmatprep.mubr.f32.mxu0 0.0
    %v6517 = vand.u32 %v6036, 4294901760
    %6518 = vmatmul.mubr.f32.gmra.mxu0 %v6517
    %v6519 = vpop.f32.mrf.mxu0
    %v6520 = vadd.f32 %v6445, %v6519
    %v6521 = vpop.f32.mrf.mxu0
    %6522 = vdwg.mxu0
    %v6523 = vadd.f32 %v6520, %v55
    %v6524 = vtanh.pop %v6523
    %6526 = vrot.lane.b32.xlu0 %v6034, 32
    %v6527 = vpop.permute.xlu0 %6526
    %v6529 = vsel %vm853, %v6524, %v6527
    %v6531 = vsel %vm1349, %v6529, 0
    %6533 = vmatprep.subr.mxu0 0.0
    %6534 = vmatpush1.msra.mxu0 0.0
    %6535 = vmatprep.subr.mxu0 0.0
    %6536 = vmatpush1.msra.mxu0 0.0
    %6537 = vmatprep.subr.mxu0 0.0
    %6538 = vmatpush1.msra.mxu0 0.0
    %6539 = vmatprep.subr.mxu0 0.0
    %6540 = vmatpush1.msra.mxu0 0.0
    %6541 = vmatprep.subr.mxu0 0.0
    %6542 = vmatpush1.msra.mxu0 0.0
    %6543 = vmatprep.subr.mxu0 0.0
    %6544 = vmatpush1.msra.mxu0 0.0
    %6545 = vmatprep.subr.mxu0 0.0
    %6546 = vmatpush1.msra.mxu0 0.0
    %6547 = vmatprep.subr.mxu0 0.0
    %6548 = vmatpush1.msra.mxu0 0.0
    %6549 = vmatprep.subr.mxu0 0.0
    %v6550 = vand.u32 %v49, 4294901760
    %6551 = vmatpush1.msra.mxu0 %v6550
    %6552 = vmatprep.subr.mxu0 0.0
    %v6553 = vand.u32 %v48, 4294901760
    %6554 = vmatpush1.msra.mxu0 %v6553
    %6555 = vmatprep.subr.mxu0 0.0
    %v6556 = vand.u32 %v47, 4294901760
    %6557 = vmatpush1.msra.mxu0 %v6556
    %6558 = vmatprep.subr.mxu0 0.0
    %v6559 = vand.u32 %v46, 4294901760
    %6560 = vmatpush1.msra.mxu0 %v6559
    %6561 = vmatprep.subr.mxu0 0.0
    %v6562 = vand.u32 %v45, 4294901760
    %6563 = vmatpush1.msra.mxu0 %v6562
    %6564 = vmatprep.subr.mxu0 0.0
    %v6565 = vand.u32 %v44, 4294901760
    %6566 = vmatpush1.msra.mxu0 %v6565
    %6567 = vmatprep.subr.mxu0 0.0
    %v6568 = vand.u32 %v43, 4294901760
    %6569 = vmatpush1.msra.mxu0 %v6568
    %6570 = vmatprep.subr.mxu0 0.0
    %v6571 = vand.u32 %v42, 4294901760
    %6572 = vmatpush1.msra.mxu0 %v6571
    %6573 = vmatprep.subr.mxu0 0.0
    %6574 = vmatpush2.msra.mxu0 0.0
    %6575 = vmatprep.subr.mxu0 0.0
    %6576 = vmatpush2.msra.mxu0 0.0
    %6577 = vmatprep.subr.mxu0 0.0
    %6578 = vmatpush2.msra.mxu0 0.0
    %6579 = vmatprep.subr.mxu0 0.0
    %6580 = vmatpush2.msra.mxu0 0.0
    %6581 = vmatprep.subr.mxu0 0.0
    %6582 = vmatpush2.msra.mxu0 0.0
    %6583 = vmatprep.subr.mxu0 0.0
    %6584 = vmatpush2.msra.mxu0 0.0
    %6585 = vmatprep.subr.mxu0 0.0
    %6586 = vmatpush2.msra.mxu0 0.0
    %6587 = vmatprep.subr.mxu0 0.0
    %6588 = vmatpush2.msra.mxu0 0.0
    %6589 = vmatprep.subr.mxu0 0.0
    %6590 = vmatpush2.msra.mxu0 0.0
    %6591 = vmatprep.subr.mxu0 0.0
    %6592 = vmatpush2.msra.mxu0 0.0
    %6593 = vmatprep.subr.mxu0 0.0
    %6594 = vmatpush2.msra.mxu0 0.0
    %6595 = vmatprep.subr.mxu0 0.0
    %6596 = vmatpush2.msra.mxu0 0.0
    %6597 = vmatprep.subr.mxu0 0.0
    %6598 = vmatpush2.msra.mxu0 0.0
    %6599 = vmatprep.subr.mxu0 0.0
    %6600 = vmatpush2.msra.mxu0 0.0
    %6601 = vmatprep.subr.mxu0 0.0
    %6602 = vmatpush2.msra.mxu0 0.0
    %6603 = vmatprep.subr.mxu0 0.0
    %6604 = vmatpush2.msra.mxu0 0.0
    %6605 = vmatprep.mubr.f32.mxu0 0.0
    %v6606 = vand.u32 %v6531, 4294901760
    %v6607 = vsub.f32 %v6531, %v6606
    %v6608 = vand.u32 %v6607, 4294901760
    %v6609 = vsub.f32 %v6607, %v6608
    %v6610 = vand.u32 %v6609, 4294901760
    %6611 = vmatmul.mubr.f32.gmra.mxu0 %v6610
    %v6612 = vpop.f32.mrf.mxu0
    %v6613 = vadd.f32 %v63, %v6612
    %v6614 = vpop.f32.mrf.mxu0
    %6615 = vdwg.mxu0
    %6616 = vmatprep.subr.mxu0 0.0
    %6617 = vmatpush1.msra.mxu0 0.0
    %6618 = vmatprep.subr.mxu0 0.0
    %6619 = vmatpush1.msra.mxu0 0.0
    %6620 = vmatprep.subr.mxu0 0.0
    %6621 = vmatpush1.msra.mxu0 0.0
    %6622 = vmatprep.subr.mxu0 0.0
    %6623 = vmatpush1.msra.mxu0 0.0
    %6624 = vmatprep.subr.mxu0 0.0
    %6625 = vmatpush1.msra.mxu0 0.0
    %6626 = vmatprep.subr.mxu0 0.0
    %6627 = vmatpush1.msra.mxu0 0.0
    %6628 = vmatprep.subr.mxu0 0.0
    %6629 = vmatpush1.msra.mxu0 0.0
    %6630 = vmatprep.subr.mxu0 0.0
    %6631 = vmatpush1.msra.mxu0 0.0
    %6632 = vmatprep.subr.mxu0 0.0
    %v6633 = vand.u32 %v49, 4294901760
    %v6634 = vsub.f32 %v49, %v6633
    %v6635 = vand.u32 %v6634, 4294901760
    %v6636 = vsub.f32 %v6634, %v6635
    %v6637 = vand.u32 %v6636, 4294901760
    %6638 = vmatpush1.msra.mxu0 %v6637
    %6639 = vmatprep.subr.mxu0 0.0
    %v6640 = vand.u32 %v48, 4294901760
    %v6641 = vsub.f32 %v48, %v6640
    %v6642 = vand.u32 %v6641, 4294901760
    %v6643 = vsub.f32 %v6641, %v6642
    %v6644 = vand.u32 %v6643, 4294901760
    %6645 = vmatpush1.msra.mxu0 %v6644
    %6646 = vmatprep.subr.mxu0 0.0
    %v6647 = vand.u32 %v47, 4294901760
    %v6648 = vsub.f32 %v47, %v6647
    %v6649 = vand.u32 %v6648, 4294901760
    %v6650 = vsub.f32 %v6648, %v6649
    %v6651 = vand.u32 %v6650, 4294901760
    %6652 = vmatpush1.msra.mxu0 %v6651
    %6653 = vmatprep.subr.mxu0 0.0
    %v6654 = vand.u32 %v46, 4294901760
    %v6655 = vsub.f32 %v46, %v6654
    %v6656 = vand.u32 %v6655, 4294901760
    %v6657 = vsub.f32 %v6655, %v6656
    %v6658 = vand.u32 %v6657, 4294901760
    %6659 = vmatpush1.msra.mxu0 %v6658
    %6660 = vmatprep.subr.mxu0 0.0
    %v6661 = vand.u32 %v45, 4294901760
    %v6662 = vsub.f32 %v45, %v6661
    %v6663 = vand.u32 %v6662, 4294901760
    %v6664 = vsub.f32 %v6662, %v6663
    %v6665 = vand.u32 %v6664, 4294901760
    %6666 = vmatpush1.msra.mxu0 %v6665
    %6667 = vmatprep.subr.mxu0 0.0
    %v6668 = vand.u32 %v44, 4294901760
    %v6669 = vsub.f32 %v44, %v6668
    %v6670 = vand.u32 %v6669, 4294901760
    %v6671 = vsub.f32 %v6669, %v6670
    %v6672 = vand.u32 %v6671, 4294901760
    %6673 = vmatpush1.msra.mxu0 %v6672
    %6674 = vmatprep.subr.mxu0 0.0
    %v6675 = vand.u32 %v43, 4294901760
    %v6676 = vsub.f32 %v43, %v6675
    %v6677 = vand.u32 %v6676, 4294901760
    %v6678 = vsub.f32 %v6676, %v6677
    %v6679 = vand.u32 %v6678, 4294901760
    %6680 = vmatpush1.msra.mxu0 %v6679
    %6681 = vmatprep.subr.mxu0 0.0
    %v6682 = vand.u32 %v42, 4294901760
    %v6683 = vsub.f32 %v42, %v6682
    %v6684 = vand.u32 %v6683, 4294901760
    %v6685 = vsub.f32 %v6683, %v6684
    %v6686 = vand.u32 %v6685, 4294901760
    %6687 = vmatpush1.msra.mxu0 %v6686
    %6688 = vmatprep.subr.mxu0 0.0
    %6689 = vmatpush2.msra.mxu0 0.0
    %6690 = vmatprep.subr.mxu0 0.0
    %6691 = vmatpush2.msra.mxu0 0.0
    %6692 = vmatprep.subr.mxu0 0.0
    %6693 = vmatpush2.msra.mxu0 0.0
    %6694 = vmatprep.subr.mxu0 0.0
    %6695 = vmatpush2.msra.mxu0 0.0
    %6696 = vmatprep.subr.mxu0 0.0
    %6697 = vmatpush2.msra.mxu0 0.0
    %6698 = vmatprep.subr.mxu0 0.0
    %6699 = vmatpush2.msra.mxu0 0.0
    %6700 = vmatprep.subr.mxu0 0.0
    %6701 = vmatpush2.msra.mxu0 0.0
    %6702 = vmatprep.subr.mxu0 0.0
    %6703 = vmatpush2.msra.mxu0 0.0
    %6704 = vmatprep.subr.mxu0 0.0
    %6705 = vmatpush2.msra.mxu0 0.0
    %6706 = vmatprep.subr.mxu0 0.0
    %6707 = vmatpush2.msra.mxu0 0.0
    %6708 = vmatprep.subr.mxu0 0.0
    %6709 = vmatpush2.msra.mxu0 0.0
    %6710 = vmatprep.subr.mxu0 0.0
    %6711 = vmatpush2.msra.mxu0 0.0
    %6712 = vmatprep.subr.mxu0 0.0
    %6713 = vmatpush2.msra.mxu0 0.0
    %6714 = vmatprep.subr.mxu0 0.0
    %6715 = vmatpush2.msra.mxu0 0.0
    %6716 = vmatprep.subr.mxu0 0.0
    %6717 = vmatpush2.msra.mxu0 0.0
    %6718 = vmatprep.subr.mxu0 0.0
    %6719 = vmatpush2.msra.mxu0 0.0
    %6720 = vmatprep.mubr.f32.mxu0 0.0
    %v6721 = vand.u32 %v6531, 4294901760
    %6722 = vmatmul.mubr.f32.gmra.mxu0 %v6721
    %v6723 = vpop.f32.mrf.mxu0
    %v6724 = vadd.f32 %v6613, %v6723
    %v6725 = vpop.f32.mrf.mxu0
    %6726 = vdwg.mxu0
    %6727 = vmatprep.subr.mxu0 0.0
    %6728 = vmatpush1.msra.mxu0 0.0
    %6729 = vmatprep.subr.mxu0 0.0
    %6730 = vmatpush1.msra.mxu0 0.0
    %6731 = vmatprep.subr.mxu0 0.0
    %6732 = vmatpush1.msra.mxu0 0.0
    %6733 = vmatprep.subr.mxu0 0.0
    %6734 = vmatpush1.msra.mxu0 0.0
    %6735 = vmatprep.subr.mxu0 0.0
    %6736 = vmatpush1.msra.mxu0 0.0
    %6737 = vmatprep.subr.mxu0 0.0
    %6738 = vmatpush1.msra.mxu0 0.0
    %6739 = vmatprep.subr.mxu0 0.0
    %6740 = vmatpush1.msra.mxu0 0.0
    %6741 = vmatprep.subr.mxu0 0.0
    %6742 = vmatpush1.msra.mxu0 0.0
    %6743 = vmatprep.subr.mxu0 0.0
    %v6744 = vand.u32 %v49, 4294901760
    %v6745 = vsub.f32 %v49, %v6744
    %6746 = vmatpush1.msra.mxu0 %v6745
    %6747 = vmatprep.subr.mxu0 0.0
    %v6748 = vand.u32 %v48, 4294901760
    %v6749 = vsub.f32 %v48, %v6748
    %6750 = vmatpush1.msra.mxu0 %v6749
    %6751 = vmatprep.subr.mxu0 0.0
    %v6752 = vand.u32 %v47, 4294901760
    %v6753 = vsub.f32 %v47, %v6752
    %6754 = vmatpush1.msra.mxu0 %v6753
    %6755 = vmatprep.subr.mxu0 0.0
    %v6756 = vand.u32 %v46, 4294901760
    %v6757 = vsub.f32 %v46, %v6756
    %6758 = vmatpush1.msra.mxu0 %v6757
    %6759 = vmatprep.subr.mxu0 0.0
    %v6760 = vand.u32 %v45, 4294901760
    %v6761 = vsub.f32 %v45, %v6760
    %6762 = vmatpush1.msra.mxu0 %v6761
    %6763 = vmatprep.subr.mxu0 0.0
    %v6764 = vand.u32 %v44, 4294901760
    %v6765 = vsub.f32 %v44, %v6764
    %6766 = vmatpush1.msra.mxu0 %v6765
    %6767 = vmatprep.subr.mxu0 0.0
    %v6768 = vand.u32 %v43, 4294901760
    %v6769 = vsub.f32 %v43, %v6768
    %6770 = vmatpush1.msra.mxu0 %v6769
    %6771 = vmatprep.subr.mxu0 0.0
    %v6772 = vand.u32 %v42, 4294901760
    %v6773 = vsub.f32 %v42, %v6772
    %6774 = vmatpush1.msra.mxu0 %v6773
    %6775 = vmatprep.subr.mxu0 0.0
    %6776 = vmatpush2.msra.mxu0 0.0
    %6777 = vmatprep.subr.mxu0 0.0
    %6778 = vmatpush2.msra.mxu0 0.0
    %6779 = vmatprep.subr.mxu0 0.0
    %6780 = vmatpush2.msra.mxu0 0.0
    %6781 = vmatprep.subr.mxu0 0.0
    %6782 = vmatpush2.msra.mxu0 0.0
    %6783 = vmatprep.subr.mxu0 0.0
    %6784 = vmatpush2.msra.mxu0 0.0
    %6785 = vmatprep.subr.mxu0 0.0
    %6786 = vmatpush2.msra.mxu0 0.0
    %6787 = vmatprep.subr.mxu0 0.0
    %6788 = vmatpush2.msra.mxu0 0.0
    %6789 = vmatprep.subr.mxu0 0.0
    %6790 = vmatpush2.msra.mxu0 0.0
    %6791 = vmatprep.subr.mxu0 0.0
    %6792 = vmatpush2.msra.mxu0 0.0
    %6793 = vmatprep.subr.mxu0 0.0
    %6794 = vmatpush2.msra.mxu0 0.0
    %6795 = vmatprep.subr.mxu0 0.0
    %6796 = vmatpush2.msra.mxu0 0.0
    %6797 = vmatprep.subr.mxu0 0.0
    %6798 = vmatpush2.msra.mxu0 0.0
    %6799 = vmatprep.subr.mxu0 0.0
    %6800 = vmatpush2.msra.mxu0 0.0
    %6801 = vmatprep.subr.mxu0 0.0
    %6802 = vmatpush2.msra.mxu0 0.0
    %6803 = vmatprep.subr.mxu0 0.0
    %6804 = vmatpush2.msra.mxu0 0.0
    %6805 = vmatprep.subr.mxu0 0.0
    %6806 = vmatpush2.msra.mxu0 0.0
    %6807 = vmatprep.mubr.f32.mxu0 0.0
    %v6808 = vand.u32 %v6531, 4294901760
    %v6809 = vsub.f32 %v6531, %v6808
    %6810 = vmatmul.mubr.f32.gmra.mxu0 %v6809
    %v6811 = vpop.f32.mrf.mxu0
    %v6812 = vadd.f32 %v6724, %v6811
    %v6813 = vpop.f32.mrf.mxu0
    %6814 = vdwg.mxu0
    %6815 = vmatprep.subr.mxu0 0.0
    %6816 = vmatpush1.msra.mxu0 0.0
    %6817 = vmatprep.subr.mxu0 0.0
    %6818 = vmatpush1.msra.mxu0 0.0
    %6819 = vmatprep.subr.mxu0 0.0
    %6820 = vmatpush1.msra.mxu0 0.0
    %6821 = vmatprep.subr.mxu0 0.0
    %6822 = vmatpush1.msra.mxu0 0.0
    %6823 = vmatprep.subr.mxu0 0.0
    %6824 = vmatpush1.msra.mxu0 0.0
    %6825 = vmatprep.subr.mxu0 0.0
    %6826 = vmatpush1.msra.mxu0 0.0
    %6827 = vmatprep.subr.mxu0 0.0
    %6828 = vmatpush1.msra.mxu0 0.0
    %6829 = vmatprep.subr.mxu0 0.0
    %6830 = vmatpush1.msra.mxu0 0.0
    %6831 = vmatprep.subr.mxu0 0.0
    %v6832 = vand.u32 %v49, 4294901760
    %6833 = vmatpush1.msra.mxu0 %v6832
    %6834 = vmatprep.subr.mxu0 0.0
    %v6835 = vand.u32 %v48, 4294901760
    %6836 = vmatpush1.msra.mxu0 %v6835
    %6837 = vmatprep.subr.mxu0 0.0
    %v6838 = vand.u32 %v47, 4294901760
    %6839 = vmatpush1.msra.mxu0 %v6838
    %6840 = vmatprep.subr.mxu0 0.0
    %v6841 = vand.u32 %v46, 4294901760
    %6842 = vmatpush1.msra.mxu0 %v6841
    %6843 = vmatprep.subr.mxu0 0.0
    %v6844 = vand.u32 %v45, 4294901760
    %6845 = vmatpush1.msra.mxu0 %v6844
    %6846 = vmatprep.subr.mxu0 0.0
    %v6847 = vand.u32 %v44, 4294901760
    %6848 = vmatpush1.msra.mxu0 %v6847
    %6849 = vmatprep.subr.mxu0 0.0
    %v6850 = vand.u32 %v43, 4294901760
    %6851 = vmatpush1.msra.mxu0 %v6850
    %6852 = vmatprep.subr.mxu0 0.0
    %v6853 = vand.u32 %v42, 4294901760
    %6854 = vmatpush1.msra.mxu0 %v6853
    %6855 = vmatprep.subr.mxu0 0.0
    %6856 = vmatpush2.msra.mxu0 0.0
    %6857 = vmatprep.subr.mxu0 0.0
    %6858 = vmatpush2.msra.mxu0 0.0
    %6859 = vmatprep.subr.mxu0 0.0
    %6860 = vmatpush2.msra.mxu0 0.0
    %6861 = vmatprep.subr.mxu0 0.0
    %6862 = vmatpush2.msra.mxu0 0.0
    %6863 = vmatprep.subr.mxu0 0.0
    %6864 = vmatpush2.msra.mxu0 0.0
    %6865 = vmatprep.subr.mxu0 0.0
    %6866 = vmatpush2.msra.mxu0 0.0
    %6867 = vmatprep.subr.mxu0 0.0
    %6868 = vmatpush2.msra.mxu0 0.0
    %6869 = vmatprep.subr.mxu0 0.0
    %6870 = vmatpush2.msra.mxu0 0.0
    %6871 = vmatprep.subr.mxu0 0.0
    %6872 = vmatpush2.msra.mxu0 0.0
    %6873 = vmatprep.subr.mxu0 0.0
    %6874 = vmatpush2.msra.mxu0 0.0
    %6875 = vmatprep.subr.mxu0 0.0
    %6876 = vmatpush2.msra.mxu0 0.0
    %6877 = vmatprep.subr.mxu0 0.0
    %6878 = vmatpush2.msra.mxu0 0.0
    %6879 = vmatprep.subr.mxu0 0.0
    %6880 = vmatpush2.msra.mxu0 0.0
    %6881 = vmatprep.subr.mxu0 0.0
    %6882 = vmatpush2.msra.mxu0 0.0
    %6883 = vmatprep.subr.mxu0 0.0
    %6884 = vmatpush2.msra.mxu0 0.0
    %6885 = vmatprep.subr.mxu0 0.0
    %6886 = vmatpush2.msra.mxu0 0.0
    %6887 = vmatprep.mubr.f32.mxu0 0.0
    %v6888 = vand.u32 %v6531, 4294901760
    %v6889 = vsub.f32 %v6531, %v6888
    %v6890 = vand.u32 %v6889, 4294901760
    %6891 = vmatmul.mubr.f32.gmra.mxu0 %v6890
    %v6892 = vpop.f32.mrf.mxu0
    %v6893 = vadd.f32 %v6812, %v6892
    %v6894 = vpop.f32.mrf.mxu0
    %6895 = vdwg.mxu0
    %6896 = vmatprep.subr.mxu0 0.0
    %6897 = vmatpush1.msra.mxu0 0.0
    %6898 = vmatprep.subr.mxu0 0.0
    %6899 = vmatpush1.msra.mxu0 0.0
    %6900 = vmatprep.subr.mxu0 0.0
    %6901 = vmatpush1.msra.mxu0 0.0
    %6902 = vmatprep.subr.mxu0 0.0
    %6903 = vmatpush1.msra.mxu0 0.0
    %6904 = vmatprep.subr.mxu0 0.0
    %6905 = vmatpush1.msra.mxu0 0.0
    %6906 = vmatprep.subr.mxu0 0.0
    %6907 = vmatpush1.msra.mxu0 0.0
    %6908 = vmatprep.subr.mxu0 0.0
    %6909 = vmatpush1.msra.mxu0 0.0
    %6910 = vmatprep.subr.mxu0 0.0
    %6911 = vmatpush1.msra.mxu0 0.0
    %6912 = vmatprep.subr.mxu0 0.0
    %v6913 = vand.u32 %v49, 4294901760
    %v6914 = vsub.f32 %v49, %v6913
    %v6915 = vand.u32 %v6914, 4294901760
    %6916 = vmatpush1.msra.mxu0 %v6915
    %6917 = vmatprep.subr.mxu0 0.0
    %v6918 = vand.u32 %v48, 4294901760
    %v6919 = vsub.f32 %v48, %v6918
    %v6920 = vand.u32 %v6919, 4294901760
    %6921 = vmatpush1.msra.mxu0 %v6920
    %6922 = vmatprep.subr.mxu0 0.0
    %v6923 = vand.u32 %v47, 4294901760
    %v6924 = vsub.f32 %v47, %v6923
    %v6925 = vand.u32 %v6924, 4294901760
    %6926 = vmatpush1.msra.mxu0 %v6925
    %6927 = vmatprep.subr.mxu0 0.0
    %v6928 = vand.u32 %v46, 4294901760
    %v6929 = vsub.f32 %v46, %v6928
    %v6930 = vand.u32 %v6929, 4294901760
    %6931 = vmatpush1.msra.mxu0 %v6930
    %6932 = vmatprep.subr.mxu0 0.0
    %v6933 = vand.u32 %v45, 4294901760
    %v6934 = vsub.f32 %v45, %v6933
    %v6935 = vand.u32 %v6934, 4294901760
    %6936 = vmatpush1.msra.mxu0 %v6935
    %6937 = vmatprep.subr.mxu0 0.0
    %v6938 = vand.u32 %v44, 4294901760
    %v6939 = vsub.f32 %v44, %v6938
    %v6940 = vand.u32 %v6939, 4294901760
    %6941 = vmatpush1.msra.mxu0 %v6940
    %6942 = vmatprep.subr.mxu0 0.0
    %v6943 = vand.u32 %v43, 4294901760
    %v6944 = vsub.f32 %v43, %v6943
    %v6945 = vand.u32 %v6944, 4294901760
    %6946 = vmatpush1.msra.mxu0 %v6945
    %6947 = vmatprep.subr.mxu0 0.0
    %v6948 = vand.u32 %v42, 4294901760
    %v6949 = vsub.f32 %v42, %v6948
    %v6950 = vand.u32 %v6949, 4294901760
    %6951 = vmatpush1.msra.mxu0 %v6950
    %6952 = vmatprep.subr.mxu0 0.0
    %6953 = vmatpush2.msra.mxu0 0.0
    %6954 = vmatprep.subr.mxu0 0.0
    %6955 = vmatpush2.msra.mxu0 0.0
    %6956 = vmatprep.subr.mxu0 0.0
    %6957 = vmatpush2.msra.mxu0 0.0
    %6958 = vmatprep.subr.mxu0 0.0
    %6959 = vmatpush2.msra.mxu0 0.0
    %6960 = vmatprep.subr.mxu0 0.0
    %6961 = vmatpush2.msra.mxu0 0.0
    %6962 = vmatprep.subr.mxu0 0.0
    %6963 = vmatpush2.msra.mxu0 0.0
    %6964 = vmatprep.subr.mxu0 0.0
    %6965 = vmatpush2.msra.mxu0 0.0
    %6966 = vmatprep.subr.mxu0 0.0
    %6967 = vmatpush2.msra.mxu0 0.0
    %6968 = vmatprep.subr.mxu0 0.0
    %6969 = vmatpush2.msra.mxu0 0.0
    %6970 = vmatprep.subr.mxu0 0.0
    %6971 = vmatpush2.msra.mxu0 0.0
    %6972 = vmatprep.subr.mxu0 0.0
    %6973 = vmatpush2.msra.mxu0 0.0
    %6974 = vmatprep.subr.mxu0 0.0
    %6975 = vmatpush2.msra.mxu0 0.0
    %6976 = vmatprep.subr.mxu0 0.0
    %6977 = vmatpush2.msra.mxu0 0.0
    %6978 = vmatprep.subr.mxu0 0.0
    %6979 = vmatpush2.msra.mxu0 0.0
    %6980 = vmatprep.subr.mxu0 0.0
    %6981 = vmatpush2.msra.mxu0 0.0
    %6982 = vmatprep.subr.mxu0 0.0
    %6983 = vmatpush2.msra.mxu0 0.0
    %6984 = vmatprep.mubr.f32.mxu0 0.0
    %v6985 = vand.u32 %v6531, 4294901760
    %6986 = vmatmul.mubr.f32.gmra.mxu0 %v6985
    %v6987 = vpop.f32.mrf.mxu0
    %v6988 = vadd.f32 %v6893, %v6987
    %v6989 = vpop.f32.mrf.mxu0
    %6990 = vdwg.mxu0
    %6991 = vmatprep.subr.mxu0 0.0
    %6992 = vmatpush1.msra.mxu0 0.0
    %6993 = vmatprep.subr.mxu0 0.0
    %6994 = vmatpush1.msra.mxu0 0.0
    %6995 = vmatprep.subr.mxu0 0.0
    %6996 = vmatpush1.msra.mxu0 0.0
    %6997 = vmatprep.subr.mxu0 0.0
    %6998 = vmatpush1.msra.mxu0 0.0
    %6999 = vmatprep.subr.mxu0 0.0
    %7000 = vmatpush1.msra.mxu0 0.0
    %7001 = vmatprep.subr.mxu0 0.0
    %7002 = vmatpush1.msra.mxu0 0.0
    %7003 = vmatprep.subr.mxu0 0.0
    %7004 = vmatpush1.msra.mxu0 0.0
    %7005 = vmatprep.subr.mxu0 0.0
    %7006 = vmatpush1.msra.mxu0 0.0
    %7007 = vmatprep.subr.mxu0 0.0
    %v7008 = vand.u32 %v49, 4294901760
    %7009 = vmatpush1.msra.mxu0 %v7008
    %7010 = vmatprep.subr.mxu0 0.0
    %v7011 = vand.u32 %v48, 4294901760
    %7012 = vmatpush1.msra.mxu0 %v7011
    %7013 = vmatprep.subr.mxu0 0.0
    %v7014 = vand.u32 %v47, 4294901760
    %7015 = vmatpush1.msra.mxu0 %v7014
    %7016 = vmatprep.subr.mxu0 0.0
    %v7017 = vand.u32 %v46, 4294901760
    %7018 = vmatpush1.msra.mxu0 %v7017
    %7019 = vmatprep.subr.mxu0 0.0
    %v7020 = vand.u32 %v45, 4294901760
    %7021 = vmatpush1.msra.mxu0 %v7020
    %7022 = vmatprep.subr.mxu0 0.0
    %v7023 = vand.u32 %v44, 4294901760
    %7024 = vmatpush1.msra.mxu0 %v7023
    %7025 = vmatprep.subr.mxu0 0.0
    %v7026 = vand.u32 %v43, 4294901760
    %7027 = vmatpush1.msra.mxu0 %v7026
    %7028 = vmatprep.subr.mxu0 0.0
    %v7029 = vand.u32 %v42, 4294901760
    %7030 = vmatpush1.msra.mxu0 %v7029
    %7031 = vmatprep.subr.mxu0 0.0
    %7032 = vmatpush2.msra.mxu0 0.0
    %7033 = vmatprep.subr.mxu0 0.0
    %7034 = vmatpush2.msra.mxu0 0.0
    %7035 = vmatprep.subr.mxu0 0.0
    %7036 = vmatpush2.msra.mxu0 0.0
    %7037 = vmatprep.subr.mxu0 0.0
    %7038 = vmatpush2.msra.mxu0 0.0
    %7039 = vmatprep.subr.mxu0 0.0
    %7040 = vmatpush2.msra.mxu0 0.0
    %7041 = vmatprep.subr.mxu0 0.0
    %7042 = vmatpush2.msra.mxu0 0.0
    %7043 = vmatprep.subr.mxu0 0.0
    %7044 = vmatpush2.msra.mxu0 0.0
    %7045 = vmatprep.subr.mxu0 0.0
    %7046 = vmatpush2.msra.mxu0 0.0
    %7047 = vmatprep.subr.mxu0 0.0
    %7048 = vmatpush2.msra.mxu0 0.0
    %7049 = vmatprep.subr.mxu0 0.0
    %7050 = vmatpush2.msra.mxu0 0.0
    %7051 = vmatprep.subr.mxu0 0.0
    %7052 = vmatpush2.msra.mxu0 0.0
    %7053 = vmatprep.subr.mxu0 0.0
    %7054 = vmatpush2.msra.mxu0 0.0
    %7055 = vmatprep.subr.mxu0 0.0
    %7056 = vmatpush2.msra.mxu0 0.0
    %7057 = vmatprep.subr.mxu0 0.0
    %7058 = vmatpush2.msra.mxu0 0.0
    %7059 = vmatprep.subr.mxu0 0.0
    %7060 = vmatpush2.msra.mxu0 0.0
    %7061 = vmatprep.subr.mxu0 0.0
    %7062 = vmatpush2.msra.mxu0 0.0
    %7063 = vmatprep.mubr.f32.mxu0 0.0
    %v7064 = vand.u32 %v6531, 4294901760
    %7065 = vmatmul.mubr.f32.gmra.mxu0 %v7064
    %v7066 = vpop.f32.mrf.mxu0
    %v7067 = vadd.f32 %v6988, %v7066
    %v7068 = vpop.f32.mrf.mxu0
    %7069 = vdwg.mxu0
    %v7070 = vtanh.pop %v7067
    %v7072 = vsel %vm853, %v6524, 0
    %7074 = vmatprep.subr.mxu0 0.0
    %7075 = vmatpush1.msra.mxu0 0.0
    %7076 = vmatprep.subr.mxu0 0.0
    %7077 = vmatpush1.msra.mxu0 0.0
    %7078 = vmatprep.subr.mxu0 0.0
    %7079 = vmatpush1.msra.mxu0 0.0
    %7080 = vmatprep.subr.mxu0 0.0
    %7081 = vmatpush1.msra.mxu0 0.0
    %7082 = vmatprep.subr.mxu0 0.0
    %7083 = vmatpush1.msra.mxu0 0.0
    %7084 = vmatprep.subr.mxu0 0.0
    %7085 = vmatpush1.msra.mxu0 0.0
    %7086 = vmatprep.subr.mxu0 0.0
    %7087 = vmatpush1.msra.mxu0 0.0
    %7088 = vmatprep.subr.mxu0 0.0
    %7089 = vmatpush1.msra.mxu0 0.0
    %7090 = vmatprep.subr.mxu0 0.0
    %7091 = vmatpush1.msra.mxu0 0.0
    %7092 = vmatprep.subr.mxu0 0.0
    %7093 = vmatpush1.msra.mxu0 0.0
    %7094 = vmatprep.subr.mxu0 0.0
    %7095 = vmatpush1.msra.mxu0 0.0
    %7096 = vmatprep.subr.mxu0 0.0
    %7097 = vmatpush1.msra.mxu0 0.0
    %7098 = vmatprep.subr.mxu0 0.0
    %v7099 = vand.u32 %v41, 4294901760
    %7100 = vmatpush1.msra.mxu0 %v7099
    %7101 = vmatprep.subr.mxu0 0.0
    %v7102 = vand.u32 %v40, 4294901760
    %7103 = vmatpush1.msra.mxu0 %v7102
    %7104 = vmatprep.subr.mxu0 0.0
    %v7105 = vand.u32 %v39, 4294901760
    %7106 = vmatpush1.msra.mxu0 %v7105
    %7107 = vmatprep.subr.mxu0 0.0
    %v7108 = vand.u32 %v38, 4294901760
    %7109 = vmatpush1.msra.mxu0 %v7108
    %7110 = vmatprep.subr.mxu0 0.0
    %7111 = vmatpush2.msra.mxu0 0.0
    %7112 = vmatprep.subr.mxu0 0.0
    %7113 = vmatpush2.msra.mxu0 0.0
    %7114 = vmatprep.subr.mxu0 0.0
    %7115 = vmatpush2.msra.mxu0 0.0
    %7116 = vmatprep.subr.mxu0 0.0
    %7117 = vmatpush2.msra.mxu0 0.0
    %7118 = vmatprep.subr.mxu0 0.0
    %7119 = vmatpush2.msra.mxu0 0.0
    %7120 = vmatprep.subr.mxu0 0.0
    %7121 = vmatpush2.msra.mxu0 0.0
    %7122 = vmatprep.subr.mxu0 0.0
    %7123 = vmatpush2.msra.mxu0 0.0
    %7124 = vmatprep.subr.mxu0 0.0
    %7125 = vmatpush2.msra.mxu0 0.0
    %7126 = vmatprep.subr.mxu0 0.0
    %7127 = vmatpush2.msra.mxu0 0.0
    %7128 = vmatprep.subr.mxu0 0.0
    %7129 = vmatpush2.msra.mxu0 0.0
    %7130 = vmatprep.subr.mxu0 0.0
    %7131 = vmatpush2.msra.mxu0 0.0
    %7132 = vmatprep.subr.mxu0 0.0
    %7133 = vmatpush2.msra.mxu0 0.0
    %7134 = vmatprep.subr.mxu0 0.0
    %7135 = vmatpush2.msra.mxu0 0.0
    %7136 = vmatprep.subr.mxu0 0.0
    %7137 = vmatpush2.msra.mxu0 0.0
    %7138 = vmatprep.subr.mxu0 0.0
    %7139 = vmatpush2.msra.mxu0 0.0
    %7140 = vmatprep.subr.mxu0 0.0
    %7141 = vmatpush2.msra.mxu0 0.0
    %7142 = vmatprep.mubr.f32.mxu0 0.0
    %v7143 = vand.u32 %v7072, 4294901760
    %v7144 = vsub.f32 %v7072, %v7143
    %v7145 = vand.u32 %v7144, 4294901760
    %v7146 = vsub.f32 %v7144, %v7145
    %v7147 = vand.u32 %v7146, 4294901760
    %7148 = vmatmul.mubr.f32.gmra.mxu0 %v7147
    %v7149 = vpop.f32.mrf.mxu0
    %v7150 = vadd.f32 %v841, %v7149
    %v7151 = vpop.f32.mrf.mxu0
    %7152 = vdwg.mxu0
    %7153 = vmatprep.subr.mxu0 0.0
    %7154 = vmatpush1.msra.mxu0 0.0
    %7155 = vmatprep.subr.mxu0 0.0
    %7156 = vmatpush1.msra.mxu0 0.0
    %7157 = vmatprep.subr.mxu0 0.0
    %7158 = vmatpush1.msra.mxu0 0.0
    %7159 = vmatprep.subr.mxu0 0.0
    %7160 = vmatpush1.msra.mxu0 0.0
    %7161 = vmatprep.subr.mxu0 0.0
    %7162 = vmatpush1.msra.mxu0 0.0
    %7163 = vmatprep.subr.mxu0 0.0
    %7164 = vmatpush1.msra.mxu0 0.0
    %7165 = vmatprep.subr.mxu0 0.0
    %7166 = vmatpush1.msra.mxu0 0.0
    %7167 = vmatprep.subr.mxu0 0.0
    %7168 = vmatpush1.msra.mxu0 0.0
    %7169 = vmatprep.subr.mxu0 0.0
    %7170 = vmatpush1.msra.mxu0 0.0
    %7171 = vmatprep.subr.mxu0 0.0
    %7172 = vmatpush1.msra.mxu0 0.0
    %7173 = vmatprep.subr.mxu0 0.0
    %7174 = vmatpush1.msra.mxu0 0.0
    %7175 = vmatprep.subr.mxu0 0.0
    %7176 = vmatpush1.msra.mxu0 0.0
    %7177 = vmatprep.subr.mxu0 0.0
    %v7178 = vand.u32 %v41, 4294901760
    %v7179 = vsub.f32 %v41, %v7178
    %v7180 = vand.u32 %v7179, 4294901760
    %v7181 = vsub.f32 %v7179, %v7180
    %v7182 = vand.u32 %v7181, 4294901760
    %7183 = vmatpush1.msra.mxu0 %v7182
    %7184 = vmatprep.subr.mxu0 0.0
    %v7185 = vand.u32 %v40, 4294901760
    %v7186 = vsub.f32 %v40, %v7185
    %v7187 = vand.u32 %v7186, 4294901760
    %v7188 = vsub.f32 %v7186, %v7187
    %v7189 = vand.u32 %v7188, 4294901760
    %7190 = vmatpush1.msra.mxu0 %v7189
    %7191 = vmatprep.subr.mxu0 0.0
    %v7192 = vand.u32 %v39, 4294901760
    %v7193 = vsub.f32 %v39, %v7192
    %v7194 = vand.u32 %v7193, 4294901760
    %v7195 = vsub.f32 %v7193, %v7194
    %v7196 = vand.u32 %v7195, 4294901760
    %7197 = vmatpush1.msra.mxu0 %v7196
    %7198 = vmatprep.subr.mxu0 0.0
    %v7199 = vand.u32 %v38, 4294901760
    %v7200 = vsub.f32 %v38, %v7199
    %v7201 = vand.u32 %v7200, 4294901760
    %v7202 = vsub.f32 %v7200, %v7201
    %v7203 = vand.u32 %v7202, 4294901760
    %7204 = vmatpush1.msra.mxu0 %v7203
    %7205 = vmatprep.subr.mxu0 0.0
    %7206 = vmatpush2.msra.mxu0 0.0
    %7207 = vmatprep.subr.mxu0 0.0
    %7208 = vmatpush2.msra.mxu0 0.0
    %7209 = vmatprep.subr.mxu0 0.0
    %7210 = vmatpush2.msra.mxu0 0.0
    %7211 = vmatprep.subr.mxu0 0.0
    %7212 = vmatpush2.msra.mxu0 0.0
    %7213 = vmatprep.subr.mxu0 0.0
    %7214 = vmatpush2.msra.mxu0 0.0
    %7215 = vmatprep.subr.mxu0 0.0
    %7216 = vmatpush2.msra.mxu0 0.0
    %7217 = vmatprep.subr.mxu0 0.0
    %7218 = vmatpush2.msra.mxu0 0.0
    %7219 = vmatprep.subr.mxu0 0.0
    %7220 = vmatpush2.msra.mxu0 0.0
    %7221 = vmatprep.subr.mxu0 0.0
    %7222 = vmatpush2.msra.mxu0 0.0
    %7223 = vmatprep.subr.mxu0 0.0
    %7224 = vmatpush2.msra.mxu0 0.0
    %7225 = vmatprep.subr.mxu0 0.0
    %7226 = vmatpush2.msra.mxu0 0.0
    %7227 = vmatprep.subr.mxu0 0.0
    %7228 = vmatpush2.msra.mxu0 0.0
    %7229 = vmatprep.subr.mxu0 0.0
    %7230 = vmatpush2.msra.mxu0 0.0
    %7231 = vmatprep.subr.mxu0 0.0
    %7232 = vmatpush2.msra.mxu0 0.0
    %7233 = vmatprep.subr.mxu0 0.0
    %7234 = vmatpush2.msra.mxu0 0.0
    %7235 = vmatprep.subr.mxu0 0.0
    %7236 = vmatpush2.msra.mxu0 0.0
    %7237 = vmatprep.mubr.f32.mxu0 0.0
    %v7238 = vand.u32 %v7072, 4294901760
    %7239 = vmatmul.mubr.f32.gmra.mxu0 %v7238
    %v7240 = vpop.f32.mrf.mxu0
    %v7241 = vadd.f32 %v7150, %v7240
    %v7242 = vpop.f32.mrf.mxu0
    %7243 = vdwg.mxu0
    %7244 = vmatprep.subr.mxu0 0.0
    %7245 = vmatpush1.msra.mxu0 0.0
    %7246 = vmatprep.subr.mxu0 0.0
    %7247 = vmatpush1.msra.mxu0 0.0
    %7248 = vmatprep.subr.mxu0 0.0
    %7249 = vmatpush1.msra.mxu0 0.0
    %7250 = vmatprep.subr.mxu0 0.0
    %7251 = vmatpush1.msra.mxu0 0.0
    %7252 = vmatprep.subr.mxu0 0.0
    %7253 = vmatpush1.msra.mxu0 0.0
    %7254 = vmatprep.subr.mxu0 0.0
    %7255 = vmatpush1.msra.mxu0 0.0
    %7256 = vmatprep.subr.mxu0 0.0
    %7257 = vmatpush1.msra.mxu0 0.0
    %7258 = vmatprep.subr.mxu0 0.0
    %7259 = vmatpush1.msra.mxu0 0.0
    %7260 = vmatprep.subr.mxu0 0.0
    %7261 = vmatpush1.msra.mxu0 0.0
    %7262 = vmatprep.subr.mxu0 0.0
    %7263 = vmatpush1.msra.mxu0 0.0
    %7264 = vmatprep.subr.mxu0 0.0
    %7265 = vmatpush1.msra.mxu0 0.0
    %7266 = vmatprep.subr.mxu0 0.0
    %7267 = vmatpush1.msra.mxu0 0.0
    %7268 = vmatprep.subr.mxu0 0.0
    %v7269 = vand.u32 %v41, 4294901760
    %v7270 = vsub.f32 %v41, %v7269
    %7271 = vmatpush1.msra.mxu0 %v7270
    %7272 = vmatprep.subr.mxu0 0.0
    %v7273 = vand.u32 %v40, 4294901760
    %v7274 = vsub.f32 %v40, %v7273
    %7275 = vmatpush1.msra.mxu0 %v7274
    %7276 = vmatprep.subr.mxu0 0.0
    %v7277 = vand.u32 %v39, 4294901760
    %v7278 = vsub.f32 %v39, %v7277
    %7279 = vmatpush1.msra.mxu0 %v7278
    %7280 = vmatprep.subr.mxu0 0.0
    %v7281 = vand.u32 %v38, 4294901760
    %v7282 = vsub.f32 %v38, %v7281
    %7283 = vmatpush1.msra.mxu0 %v7282
    %7284 = vmatprep.subr.mxu0 0.0
    %7285 = vmatpush2.msra.mxu0 0.0
    %7286 = vmatprep.subr.mxu0 0.0
    %7287 = vmatpush2.msra.mxu0 0.0
    %7288 = vmatprep.subr.mxu0 0.0
    %7289 = vmatpush2.msra.mxu0 0.0
    %7290 = vmatprep.subr.mxu0 0.0
    %7291 = vmatpush2.msra.mxu0 0.0
    %7292 = vmatprep.subr.mxu0 0.0
    %7293 = vmatpush2.msra.mxu0 0.0
    %7294 = vmatprep.subr.mxu0 0.0
    %7295 = vmatpush2.msra.mxu0 0.0
    %7296 = vmatprep.subr.mxu0 0.0
    %7297 = vmatpush2.msra.mxu0 0.0
    %7298 = vmatprep.subr.mxu0 0.0
    %7299 = vmatpush2.msra.mxu0 0.0
    %7300 = vmatprep.subr.mxu0 0.0
    %7301 = vmatpush2.msra.mxu0 0.0
    %7302 = vmatprep.subr.mxu0 0.0
    %7303 = vmatpush2.msra.mxu0 0.0
    %7304 = vmatprep.subr.mxu0 0.0
    %7305 = vmatpush2.msra.mxu0 0.0
    %7306 = vmatprep.subr.mxu0 0.0
    %7307 = vmatpush2.msra.mxu0 0.0
    %7308 = vmatprep.subr.mxu0 0.0
    %7309 = vmatpush2.msra.mxu0 0.0
    %7310 = vmatprep.subr.mxu0 0.0
    %7311 = vmatpush2.msra.mxu0 0.0
    %7312 = vmatprep.subr.mxu0 0.0
    %7313 = vmatpush2.msra.mxu0 0.0
    %7314 = vmatprep.subr.mxu0 0.0
    %7315 = vmatpush2.msra.mxu0 0.0
    %7316 = vmatprep.mubr.f32.mxu0 0.0
    %v7317 = vand.u32 %v7072, 4294901760
    %v7318 = vsub.f32 %v7072, %v7317
    %7319 = vmatmul.mubr.f32.gmra.mxu0 %v7318
    %v7320 = vpop.f32.mrf.mxu0
    %v7321 = vadd.f32 %v7241, %v7320
    %v7322 = vpop.f32.mrf.mxu0
    %7323 = vdwg.mxu0
    %7324 = vmatprep.subr.mxu0 0.0
    %7325 = vmatpush1.msra.mxu0 0.0
    %7326 = vmatprep.subr.mxu0 0.0
    %7327 = vmatpush1.msra.mxu0 0.0
    %7328 = vmatprep.subr.mxu0 0.0
    %7329 = vmatpush1.msra.mxu0 0.0
    %7330 = vmatprep.subr.mxu0 0.0
    %7331 = vmatpush1.msra.mxu0 0.0
    %7332 = vmatprep.subr.mxu0 0.0
    %7333 = vmatpush1.msra.mxu0 0.0
    %7334 = vmatprep.subr.mxu0 0.0
    %7335 = vmatpush1.msra.mxu0 0.0
    %7336 = vmatprep.subr.mxu0 0.0
    %7337 = vmatpush1.msra.mxu0 0.0
    %7338 = vmatprep.subr.mxu0 0.0
    %7339 = vmatpush1.msra.mxu0 0.0
    %7340 = vmatprep.subr.mxu0 0.0
    %7341 = vmatpush1.msra.mxu0 0.0
    %7342 = vmatprep.subr.mxu0 0.0
    %7343 = vmatpush1.msra.mxu0 0.0
    %7344 = vmatprep.subr.mxu0 0.0
    %7345 = vmatpush1.msra.mxu0 0.0
    %7346 = vmatprep.subr.mxu0 0.0
    %7347 = vmatpush1.msra.mxu0 0.0
    %7348 = vmatprep.subr.mxu0 0.0
    %v7349 = vand.u32 %v41, 4294901760
    %7350 = vmatpush1.msra.mxu0 %v7349
    %7351 = vmatprep.subr.mxu0 0.0
    %v7352 = vand.u32 %v40, 4294901760
    %7353 = vmatpush1.msra.mxu0 %v7352
    %7354 = vmatprep.subr.mxu0 0.0
    %v7355 = vand.u32 %v39, 4294901760
    %7356 = vmatpush1.msra.mxu0 %v7355
    %7357 = vmatprep.subr.mxu0 0.0
    %v7358 = vand.u32 %v38, 4294901760
    %7359 = vmatpush1.msra.mxu0 %v7358
    %7360 = vmatprep.subr.mxu0 0.0
    %7361 = vmatpush2.msra.mxu0 0.0
    %7362 = vmatprep.subr.mxu0 0.0
    %7363 = vmatpush2.msra.mxu0 0.0
    %7364 = vmatprep.subr.mxu0 0.0
    %7365 = vmatpush2.msra.mxu0 0.0
    %7366 = vmatprep.subr.mxu0 0.0
    %7367 = vmatpush2.msra.mxu0 0.0
    %7368 = vmatprep.subr.mxu0 0.0
    %7369 = vmatpush2.msra.mxu0 0.0
    %7370 = vmatprep.subr.mxu0 0.0
    %7371 = vmatpush2.msra.mxu0 0.0
    %7372 = vmatprep.subr.mxu0 0.0
    %7373 = vmatpush2.msra.mxu0 0.0
    %7374 = vmatprep.subr.mxu0 0.0
    %7375 = vmatpush2.msra.mxu0 0.0
    %7376 = vmatprep.subr.mxu0 0.0
    %7377 = vmatpush2.msra.mxu0 0.0
    %7378 = vmatprep.subr.mxu0 0.0
    %7379 = vmatpush2.msra.mxu0 0.0
    %7380 = vmatprep.subr.mxu0 0.0
    %7381 = vmatpush2.msra.mxu0 0.0
    %7382 = vmatprep.subr.mxu0 0.0
    %7383 = vmatpush2.msra.mxu0 0.0
    %7384 = vmatprep.subr.mxu0 0.0
    %7385 = vmatpush2.msra.mxu0 0.0
    %7386 = vmatprep.subr.mxu0 0.0
    %7387 = vmatpush2.msra.mxu0 0.0
    %7388 = vmatprep.subr.mxu0 0.0
    %7389 = vmatpush2.msra.mxu0 0.0
    %7390 = vmatprep.subr.mxu0 0.0
    %7391 = vmatpush2.msra.mxu0 0.0
    %7392 = vmatprep.mubr.f32.mxu0 0.0
    %v7393 = vand.u32 %v7072, 4294901760
    %v7394 = vsub.f32 %v7072, %v7393
    %v7395 = vand.u32 %v7394, 4294901760
    %7396 = vmatmul.mubr.f32.gmra.mxu0 %v7395
    %v7397 = vpop.f32.mrf.mxu0
    %v7398 = vadd.f32 %v7321, %v7397
    %v7399 = vpop.f32.mrf.mxu0
    %7400 = vdwg.mxu0
    %7401 = vmatprep.subr.mxu0 0.0
    %7402 = vmatpush1.msra.mxu0 0.0
    %7403 = vmatprep.subr.mxu0 0.0
    %7404 = vmatpush1.msra.mxu0 0.0
    %7405 = vmatprep.subr.mxu0 0.0
    %7406 = vmatpush1.msra.mxu0 0.0
    %7407 = vmatprep.subr.mxu0 0.0
    %7408 = vmatpush1.msra.mxu0 0.0
    %7409 = vmatprep.subr.mxu0 0.0
    %7410 = vmatpush1.msra.mxu0 0.0
    %7411 = vmatprep.subr.mxu0 0.0
    %7412 = vmatpush1.msra.mxu0 0.0
    %7413 = vmatprep.subr.mxu0 0.0
    %7414 = vmatpush1.msra.mxu0 0.0
    %7415 = vmatprep.subr.mxu0 0.0
    %7416 = vmatpush1.msra.mxu0 0.0
    %7417 = vmatprep.subr.mxu0 0.0
    %7418 = vmatpush1.msra.mxu0 0.0
    %7419 = vmatprep.subr.mxu0 0.0
    %7420 = vmatpush1.msra.mxu0 0.0
    %7421 = vmatprep.subr.mxu0 0.0
    %7422 = vmatpush1.msra.mxu0 0.0
    %7423 = vmatprep.subr.mxu0 0.0
    %7424 = vmatpush1.msra.mxu0 0.0
    %7425 = vmatprep.subr.mxu0 0.0
    %v7426 = vand.u32 %v41, 4294901760
    %v7427 = vsub.f32 %v41, %v7426
    %v7428 = vand.u32 %v7427, 4294901760
    %7429 = vmatpush1.msra.mxu0 %v7428
    %7430 = vmatprep.subr.mxu0 0.0
    %v7431 = vand.u32 %v40, 4294901760
    %v7432 = vsub.f32 %v40, %v7431
    %v7433 = vand.u32 %v7432, 4294901760
    %7434 = vmatpush1.msra.mxu0 %v7433
    %7435 = vmatprep.subr.mxu0 0.0
    %v7436 = vand.u32 %v39, 4294901760
    %v7437 = vsub.f32 %v39, %v7436
    %v7438 = vand.u32 %v7437, 4294901760
    %7439 = vmatpush1.msra.mxu0 %v7438
    %7440 = vmatprep.subr.mxu0 0.0
    %v7441 = vand.u32 %v38, 4294901760
    %v7442 = vsub.f32 %v38, %v7441
    %v7443 = vand.u32 %v7442, 4294901760
    %7444 = vmatpush1.msra.mxu0 %v7443
    %7445 = vmatprep.subr.mxu0 0.0
    %7446 = vmatpush2.msra.mxu0 0.0
    %7447 = vmatprep.subr.mxu0 0.0
    %7448 = vmatpush2.msra.mxu0 0.0
    %7449 = vmatprep.subr.mxu0 0.0
    %7450 = vmatpush2.msra.mxu0 0.0
    %7451 = vmatprep.subr.mxu0 0.0
    %7452 = vmatpush2.msra.mxu0 0.0
    %7453 = vmatprep.subr.mxu0 0.0
    %7454 = vmatpush2.msra.mxu0 0.0
    %7455 = vmatprep.subr.mxu0 0.0
    %7456 = vmatpush2.msra.mxu0 0.0
    %7457 = vmatprep.subr.mxu0 0.0
    %7458 = vmatpush2.msra.mxu0 0.0
    %7459 = vmatprep.subr.mxu0 0.0
    %7460 = vmatpush2.msra.mxu0 0.0
    %7461 = vmatprep.subr.mxu0 0.0
    %7462 = vmatpush2.msra.mxu0 0.0
    %7463 = vmatprep.subr.mxu0 0.0
    %7464 = vmatpush2.msra.mxu0 0.0
    %7465 = vmatprep.subr.mxu0 0.0
    %7466 = vmatpush2.msra.mxu0 0.0
    %7467 = vmatprep.subr.mxu0 0.0
    %7468 = vmatpush2.msra.mxu0 0.0
    %7469 = vmatprep.subr.mxu0 0.0
    %7470 = vmatpush2.msra.mxu0 0.0
    %7471 = vmatprep.subr.mxu0 0.0
    %7472 = vmatpush2.msra.mxu0 0.0
    %7473 = vmatprep.subr.mxu0 0.0
    %7474 = vmatpush2.msra.mxu0 0.0
    %7475 = vmatprep.subr.mxu0 0.0
    %7476 = vmatpush2.msra.mxu0 0.0
    %7477 = vmatprep.mubr.f32.mxu0 0.0
    %v7478 = vand.u32 %v7072, 4294901760
    %7479 = vmatmul.mubr.f32.gmra.mxu0 %v7478
    %v7480 = vpop.f32.mrf.mxu0
    %v7481 = vadd.f32 %v7398, %v7480
    %v7482 = vpop.f32.mrf.mxu0
    %7483 = vdwg.mxu0
    %7484 = vmatprep.subr.mxu0 0.0
    %7485 = vmatpush1.msra.mxu0 0.0
    %7486 = vmatprep.subr.mxu0 0.0
    %7487 = vmatpush1.msra.mxu0 0.0
    %7488 = vmatprep.subr.mxu0 0.0
    %7489 = vmatpush1.msra.mxu0 0.0
    %7490 = vmatprep.subr.mxu0 0.0
    %7491 = vmatpush1.msra.mxu0 0.0
    %7492 = vmatprep.subr.mxu0 0.0
    %7493 = vmatpush1.msra.mxu0 0.0
    %7494 = vmatprep.subr.mxu0 0.0
    %7495 = vmatpush1.msra.mxu0 0.0
    %7496 = vmatprep.subr.mxu0 0.0
    %7497 = vmatpush1.msra.mxu0 0.0
    %7498 = vmatprep.subr.mxu0 0.0
    %7499 = vmatpush1.msra.mxu0 0.0
    %7500 = vmatprep.subr.mxu0 0.0
    %7501 = vmatpush1.msra.mxu0 0.0
    %7502 = vmatprep.subr.mxu0 0.0
    %7503 = vmatpush1.msra.mxu0 0.0
    %7504 = vmatprep.subr.mxu0 0.0
    %7505 = vmatpush1.msra.mxu0 0.0
    %7506 = vmatprep.subr.mxu0 0.0
    %7507 = vmatpush1.msra.mxu0 0.0
    %7508 = vmatprep.subr.mxu0 0.0
    %v7509 = vand.u32 %v41, 4294901760
    %7510 = vmatpush1.msra.mxu0 %v7509
    %7511 = vmatprep.subr.mxu0 0.0
    %v7512 = vand.u32 %v40, 4294901760
    %7513 = vmatpush1.msra.mxu0 %v7512
    %7514 = vmatprep.subr.mxu0 0.0
    %v7515 = vand.u32 %v39, 4294901760
    %7516 = vmatpush1.msra.mxu0 %v7515
    %7517 = vmatprep.subr.mxu0 0.0
    %v7518 = vand.u32 %v38, 4294901760
    %7519 = vmatpush1.msra.mxu0 %v7518
    %7520 = vmatprep.subr.mxu0 0.0
    %7521 = vmatpush2.msra.mxu0 0.0
    %7522 = vmatprep.subr.mxu0 0.0
    %7523 = vmatpush2.msra.mxu0 0.0
    %7524 = vmatprep.subr.mxu0 0.0
    %7525 = vmatpush2.msra.mxu0 0.0
    %7526 = vmatprep.subr.mxu0 0.0
    %7527 = vmatpush2.msra.mxu0 0.0
    %7528 = vmatprep.subr.mxu0 0.0
    %7529 = vmatpush2.msra.mxu0 0.0
    %7530 = vmatprep.subr.mxu0 0.0
    %7531 = vmatpush2.msra.mxu0 0.0
    %7532 = vmatprep.subr.mxu0 0.0
    %7533 = vmatpush2.msra.mxu0 0.0
    %7534 = vmatprep.subr.mxu0 0.0
    %7535 = vmatpush2.msra.mxu0 0.0
    %7536 = vmatprep.subr.mxu0 0.0
    %7537 = vmatpush2.msra.mxu0 0.0
    %7538 = vmatprep.subr.mxu0 0.0
    %7539 = vmatpush2.msra.mxu0 0.0
    %7540 = vmatprep.subr.mxu0 0.0
    %7541 = vmatpush2.msra.mxu0 0.0
    %7542 = vmatprep.subr.mxu0 0.0
    %7543 = vmatpush2.msra.mxu0 0.0
    %7544 = vmatprep.subr.mxu0 0.0
    %7545 = vmatpush2.msra.mxu0 0.0
    %7546 = vmatprep.subr.mxu0 0.0
    %7547 = vmatpush2.msra.mxu0 0.0
    %7548 = vmatprep.subr.mxu0 0.0
    %7549 = vmatpush2.msra.mxu0 0.0
    %7550 = vmatprep.subr.mxu0 0.0
    %7551 = vmatpush2.msra.mxu0 0.0
    %7552 = vmatprep.mubr.f32.mxu0 0.0
    %v7553 = vand.u32 %v7072, 4294901760
    %7554 = vmatmul.mubr.f32.gmra.mxu0 %v7553
    %v7555 = vpop.f32.mrf.mxu0
    %v7556 = vadd.f32 %v7481, %v7555
    %v7557 = vpop.f32.mrf.mxu0
    %7558 = vdwg.mxu0
    %v7559 = vadd.f32 %v7556, %v55
    %v7560 = vtanh.pop %v7559
    %7562 = vrot.lane.b32.xlu0 %v7070, 32
    %v7563 = vpop.permute.xlu0 %7562
    %v7565 = vsel %vm853, %v7560, %v7563
    %v7567 = vsel %vm1349, %v7565, 0
    %7569 = vmatprep.subr.mxu0 0.0
    %7570 = vmatpush1.msra.mxu0 0.0
    %7571 = vmatprep.subr.mxu0 0.0
    %7572 = vmatpush1.msra.mxu0 0.0
    %7573 = vmatprep.subr.mxu0 0.0
    %7574 = vmatpush1.msra.mxu0 0.0
    %7575 = vmatprep.subr.mxu0 0.0
    %7576 = vmatpush1.msra.mxu0 0.0
    %7577 = vmatprep.subr.mxu0 0.0
    %7578 = vmatpush1.msra.mxu0 0.0
    %7579 = vmatprep.subr.mxu0 0.0
    %7580 = vmatpush1.msra.mxu0 0.0
    %7581 = vmatprep.subr.mxu0 0.0
    %7582 = vmatpush1.msra.mxu0 0.0
    %7583 = vmatprep.subr.mxu0 0.0
    %7584 = vmatpush1.msra.mxu0 0.0
    %7585 = vmatprep.subr.mxu0 0.0
    %v7586 = vand.u32 %v49, 4294901760
    %7587 = vmatpush1.msra.mxu0 %v7586
    %7588 = vmatprep.subr.mxu0 0.0
    %v7589 = vand.u32 %v48, 4294901760
    %7590 = vmatpush1.msra.mxu0 %v7589
    %7591 = vmatprep.subr.mxu0 0.0
    %v7592 = vand.u32 %v47, 4294901760
    %7593 = vmatpush1.msra.mxu0 %v7592
    %7594 = vmatprep.subr.mxu0 0.0
    %v7595 = vand.u32 %v46, 4294901760
    %7596 = vmatpush1.msra.mxu0 %v7595
    %7597 = vmatprep.subr.mxu0 0.0
    %v7598 = vand.u32 %v45, 4294901760
    %7599 = vmatpush1.msra.mxu0 %v7598
    %7600 = vmatprep.subr.mxu0 0.0
    %v7601 = vand.u32 %v44, 4294901760
    %7602 = vmatpush1.msra.mxu0 %v7601
    %7603 = vmatprep.subr.mxu0 0.0
    %v7604 = vand.u32 %v43, 4294901760
    %7605 = vmatpush1.msra.mxu0 %v7604
    %7606 = vmatprep.subr.mxu0 0.0
    %v7607 = vand.u32 %v42, 4294901760
    %7608 = vmatpush1.msra.mxu0 %v7607
    %7609 = vmatprep.subr.mxu0 0.0
    %7610 = vmatpush2.msra.mxu0 0.0
    %7611 = vmatprep.subr.mxu0 0.0
    %7612 = vmatpush2.msra.mxu0 0.0
    %7613 = vmatprep.subr.mxu0 0.0
    %7614 = vmatpush2.msra.mxu0 0.0
    %7615 = vmatprep.subr.mxu0 0.0
    %7616 = vmatpush2.msra.mxu0 0.0
    %7617 = vmatprep.subr.mxu0 0.0
    %7618 = vmatpush2.msra.mxu0 0.0
    %7619 = vmatprep.subr.mxu0 0.0
    %7620 = vmatpush2.msra.mxu0 0.0
    %7621 = vmatprep.subr.mxu0 0.0
    %7622 = vmatpush2.msra.mxu0 0.0
    %7623 = vmatprep.subr.mxu0 0.0
    %7624 = vmatpush2.msra.mxu0 0.0
    %7625 = vmatprep.subr.mxu0 0.0
    %7626 = vmatpush2.msra.mxu0 0.0
    %7627 = vmatprep.subr.mxu0 0.0
    %7628 = vmatpush2.msra.mxu0 0.0
    %7629 = vmatprep.subr.mxu0 0.0
    %7630 = vmatpush2.msra.mxu0 0.0
    %7631 = vmatprep.subr.mxu0 0.0
    %7632 = vmatpush2.msra.mxu0 0.0
    %7633 = vmatprep.subr.mxu0 0.0
    %7634 = vmatpush2.msra.mxu0 0.0
    %7635 = vmatprep.subr.mxu0 0.0
    %7636 = vmatpush2.msra.mxu0 0.0
    %7637 = vmatprep.subr.mxu0 0.0
    %7638 = vmatpush2.msra.mxu0 0.0
    %7639 = vmatprep.subr.mxu0 0.0
    %7640 = vmatpush2.msra.mxu0 0.0
    %7641 = vmatprep.mubr.f32.mxu0 0.0
    %v7642 = vand.u32 %v7567, 4294901760
    %v7643 = vsub.f32 %v7567, %v7642
    %v7644 = vand.u32 %v7643, 4294901760
    %v7645 = vsub.f32 %v7643, %v7644
    %v7646 = vand.u32 %v7645, 4294901760
    %7647 = vmatmul.mubr.f32.gmra.mxu0 %v7646
    %v7648 = vpop.f32.mrf.mxu0
    %v7649 = vadd.f32 %v63, %v7648
    %v7650 = vpop.f32.mrf.mxu0
    %7651 = vdwg.mxu0
    %7652 = vmatprep.subr.mxu0 0.0
    %7653 = vmatpush1.msra.mxu0 0.0
    %7654 = vmatprep.subr.mxu0 0.0
    %7655 = vmatpush1.msra.mxu0 0.0
    %7656 = vmatprep.subr.mxu0 0.0
    %7657 = vmatpush1.msra.mxu0 0.0
    %7658 = vmatprep.subr.mxu0 0.0
    %7659 = vmatpush1.msra.mxu0 0.0
    %7660 = vmatprep.subr.mxu0 0.0
    %7661 = vmatpush1.msra.mxu0 0.0
    %7662 = vmatprep.subr.mxu0 0.0
    %7663 = vmatpush1.msra.mxu0 0.0
    %7664 = vmatprep.subr.mxu0 0.0
    %7665 = vmatpush1.msra.mxu0 0.0
    %7666 = vmatprep.subr.mxu0 0.0
    %7667 = vmatpush1.msra.mxu0 0.0
    %7668 = vmatprep.subr.mxu0 0.0
    %v7669 = vand.u32 %v49, 4294901760
    %v7670 = vsub.f32 %v49, %v7669
    %v7671 = vand.u32 %v7670, 4294901760
    %v7672 = vsub.f32 %v7670, %v7671
    %v7673 = vand.u32 %v7672, 4294901760
    %7674 = vmatpush1.msra.mxu0 %v7673
    %7675 = vmatprep.subr.mxu0 0.0
    %v7676 = vand.u32 %v48, 4294901760
    %v7677 = vsub.f32 %v48, %v7676
    %v7678 = vand.u32 %v7677, 4294901760
    %v7679 = vsub.f32 %v7677, %v7678
    %v7680 = vand.u32 %v7679, 4294901760
    %7681 = vmatpush1.msra.mxu0 %v7680
    %7682 = vmatprep.subr.mxu0 0.0
    %v7683 = vand.u32 %v47, 4294901760
    %v7684 = vsub.f32 %v47, %v7683
    %v7685 = vand.u32 %v7684, 4294901760
    %v7686 = vsub.f32 %v7684, %v7685
    %v7687 = vand.u32 %v7686, 4294901760
    %7688 = vmatpush1.msra.mxu0 %v7687
    %7689 = vmatprep.subr.mxu0 0.0
    %v7690 = vand.u32 %v46, 4294901760
    %v7691 = vsub.f32 %v46, %v7690
    %v7692 = vand.u32 %v7691, 4294901760
    %v7693 = vsub.f32 %v7691, %v7692
    %v7694 = vand.u32 %v7693, 4294901760
    %7695 = vmatpush1.msra.mxu0 %v7694
    %7696 = vmatprep.subr.mxu0 0.0
    %v7697 = vand.u32 %v45, 4294901760
    %v7698 = vsub.f32 %v45, %v7697
    %v7699 = vand.u32 %v7698, 4294901760
    %v7700 = vsub.f32 %v7698, %v7699
    %v7701 = vand.u32 %v7700, 4294901760
    %7702 = vmatpush1.msra.mxu0 %v7701
    %7703 = vmatprep.subr.mxu0 0.0
    %v7704 = vand.u32 %v44, 4294901760
    %v7705 = vsub.f32 %v44, %v7704
    %v7706 = vand.u32 %v7705, 4294901760
    %v7707 = vsub.f32 %v7705, %v7706
    %v7708 = vand.u32 %v7707, 4294901760
    %7709 = vmatpush1.msra.mxu0 %v7708
    %7710 = vmatprep.subr.mxu0 0.0
    %v7711 = vand.u32 %v43, 4294901760
    %v7712 = vsub.f32 %v43, %v7711
    %v7713 = vand.u32 %v7712, 4294901760
    %v7714 = vsub.f32 %v7712, %v7713
    %v7715 = vand.u32 %v7714, 4294901760
    %7716 = vmatpush1.msra.mxu0 %v7715
    %7717 = vmatprep.subr.mxu0 0.0
    %v7718 = vand.u32 %v42, 4294901760
    %v7719 = vsub.f32 %v42, %v7718
    %v7720 = vand.u32 %v7719, 4294901760
    %v7721 = vsub.f32 %v7719, %v7720
    %v7722 = vand.u32 %v7721, 4294901760
    %7723 = vmatpush1.msra.mxu0 %v7722
    %7724 = vmatprep.subr.mxu0 0.0
    %7725 = vmatpush2.msra.mxu0 0.0
    %7726 = vmatprep.subr.mxu0 0.0
    %7727 = vmatpush2.msra.mxu0 0.0
    %7728 = vmatprep.subr.mxu0 0.0
    %7729 = vmatpush2.msra.mxu0 0.0
    %7730 = vmatprep.subr.mxu0 0.0
    %7731 = vmatpush2.msra.mxu0 0.0
    %7732 = vmatprep.subr.mxu0 0.0
    %7733 = vmatpush2.msra.mxu0 0.0
    %7734 = vmatprep.subr.mxu0 0.0
    %7735 = vmatpush2.msra.mxu0 0.0
    %7736 = vmatprep.subr.mxu0 0.0
    %7737 = vmatpush2.msra.mxu0 0.0
    %7738 = vmatprep.subr.mxu0 0.0
    %7739 = vmatpush2.msra.mxu0 0.0
    %7740 = vmatprep.subr.mxu0 0.0
    %7741 = vmatpush2.msra.mxu0 0.0
    %7742 = vmatprep.subr.mxu0 0.0
    %7743 = vmatpush2.msra.mxu0 0.0
    %7744 = vmatprep.subr.mxu0 0.0
    %7745 = vmatpush2.msra.mxu0 0.0
    %7746 = vmatprep.subr.mxu0 0.0
    %7747 = vmatpush2.msra.mxu0 0.0
    %7748 = vmatprep.subr.mxu0 0.0
    %7749 = vmatpush2.msra.mxu0 0.0
    %7750 = vmatprep.subr.mxu0 0.0
    %7751 = vmatpush2.msra.mxu0 0.0
    %7752 = vmatprep.subr.mxu0 0.0
    %7753 = vmatpush2.msra.mxu0 0.0
    %7754 = vmatprep.subr.mxu0 0.0
    %7755 = vmatpush2.msra.mxu0 0.0
    %7756 = vmatprep.mubr.f32.mxu0 0.0
    %v7757 = vand.u32 %v7567, 4294901760
    %7758 = vmatmul.mubr.f32.gmra.mxu0 %v7757
    %v7759 = vpop.f32.mrf.mxu0
    %v7760 = vadd.f32 %v7649, %v7759
    %v7761 = vpop.f32.mrf.mxu0
    %7762 = vdwg.mxu0
    %7763 = vmatprep.subr.mxu0 0.0
    %7764 = vmatpush1.msra.mxu0 0.0
    %7765 = vmatprep.subr.mxu0 0.0
    %7766 = vmatpush1.msra.mxu0 0.0
    %7767 = vmatprep.subr.mxu0 0.0
    %7768 = vmatpush1.msra.mxu0 0.0
    %7769 = vmatprep.subr.mxu0 0.0
    %7770 = vmatpush1.msra.mxu0 0.0
    %7771 = vmatprep.subr.mxu0 0.0
    %7772 = vmatpush1.msra.mxu0 0.0
    %7773 = vmatprep.subr.mxu0 0.0
    %7774 = vmatpush1.msra.mxu0 0.0
    %7775 = vmatprep.subr.mxu0 0.0
    %7776 = vmatpush1.msra.mxu0 0.0
    %7777 = vmatprep.subr.mxu0 0.0
    %7778 = vmatpush1.msra.mxu0 0.0
    %7779 = vmatprep.subr.mxu0 0.0
    %v7780 = vand.u32 %v49, 4294901760
    %v7781 = vsub.f32 %v49, %v7780
    %7782 = vmatpush1.msra.mxu0 %v7781
    %7783 = vmatprep.subr.mxu0 0.0
    %v7784 = vand.u32 %v48, 4294901760
    %v7785 = vsub.f32 %v48, %v7784
    %7786 = vmatpush1.msra.mxu0 %v7785
    %7787 = vmatprep.subr.mxu0 0.0
    %v7788 = vand.u32 %v47, 4294901760
    %v7789 = vsub.f32 %v47, %v7788
    %7790 = vmatpush1.msra.mxu0 %v7789
    %7791 = vmatprep.subr.mxu0 0.0
    %v7792 = vand.u32 %v46, 4294901760
    %v7793 = vsub.f32 %v46, %v7792
    %7794 = vmatpush1.msra.mxu0 %v7793
    %7795 = vmatprep.subr.mxu0 0.0
    %v7796 = vand.u32 %v45, 4294901760
    %v7797 = vsub.f32 %v45, %v7796
    %7798 = vmatpush1.msra.mxu0 %v7797
    %7799 = vmatprep.subr.mxu0 0.0
    %v7800 = vand.u32 %v44, 4294901760
    %v7801 = vsub.f32 %v44, %v7800
    %7802 = vmatpush1.msra.mxu0 %v7801
    %7803 = vmatprep.subr.mxu0 0.0
    %v7804 = vand.u32 %v43, 4294901760
    %v7805 = vsub.f32 %v43, %v7804
    %7806 = vmatpush1.msra.mxu0 %v7805
    %7807 = vmatprep.subr.mxu0 0.0
    %v7808 = vand.u32 %v42, 4294901760
    %v7809 = vsub.f32 %v42, %v7808
    %7810 = vmatpush1.msra.mxu0 %v7809
    %7811 = vmatprep.subr.mxu0 0.0
    %7812 = vmatpush2.msra.mxu0 0.0
    %7813 = vmatprep.subr.mxu0 0.0
    %7814 = vmatpush2.msra.mxu0 0.0
    %7815 = vmatprep.subr.mxu0 0.0
    %7816 = vmatpush2.msra.mxu0 0.0
    %7817 = vmatprep.subr.mxu0 0.0
    %7818 = vmatpush2.msra.mxu0 0.0
    %7819 = vmatprep.subr.mxu0 0.0
    %7820 = vmatpush2.msra.mxu0 0.0
    %7821 = vmatprep.subr.mxu0 0.0
    %7822 = vmatpush2.msra.mxu0 0.0
    %7823 = vmatprep.subr.mxu0 0.0
    %7824 = vmatpush2.msra.mxu0 0.0
    %7825 = vmatprep.subr.mxu0 0.0
    %7826 = vmatpush2.msra.mxu0 0.0
    %7827 = vmatprep.subr.mxu0 0.0
    %7828 = vmatpush2.msra.mxu0 0.0
    %7829 = vmatprep.subr.mxu0 0.0
    %7830 = vmatpush2.msra.mxu0 0.0
    %7831 = vmatprep.subr.mxu0 0.0
    %7832 = vmatpush2.msra.mxu0 0.0
    %7833 = vmatprep.subr.mxu0 0.0
    %7834 = vmatpush2.msra.mxu0 0.0
    %7835 = vmatprep.subr.mxu0 0.0
    %7836 = vmatpush2.msra.mxu0 0.0
    %7837 = vmatprep.subr.mxu0 0.0
    %7838 = vmatpush2.msra.mxu0 0.0
    %7839 = vmatprep.subr.mxu0 0.0
    %7840 = vmatpush2.msra.mxu0 0.0
    %7841 = vmatprep.subr.mxu0 0.0
    %7842 = vmatpush2.msra.mxu0 0.0
    %7843 = vmatprep.mubr.f32.mxu0 0.0
    %v7844 = vand.u32 %v7567, 4294901760
    %v7845 = vsub.f32 %v7567, %v7844
    %7846 = vmatmul.mubr.f32.gmra.mxu0 %v7845
    %v7847 = vpop.f32.mrf.mxu0
    %v7848 = vadd.f32 %v7760, %v7847
    %v7849 = vpop.f32.mrf.mxu0
    %7850 = vdwg.mxu0
    %7851 = vmatprep.subr.mxu0 0.0
    %7852 = vmatpush1.msra.mxu0 0.0
    %7853 = vmatprep.subr.mxu0 0.0
    %7854 = vmatpush1.msra.mxu0 0.0
    %7855 = vmatprep.subr.mxu0 0.0
    %7856 = vmatpush1.msra.mxu0 0.0
    %7857 = vmatprep.subr.mxu0 0.0
    %7858 = vmatpush1.msra.mxu0 0.0
    %7859 = vmatprep.subr.mxu0 0.0
    %7860 = vmatpush1.msra.mxu0 0.0
    %7861 = vmatprep.subr.mxu0 0.0
    %7862 = vmatpush1.msra.mxu0 0.0
    %7863 = vmatprep.subr.mxu0 0.0
    %7864 = vmatpush1.msra.mxu0 0.0
    %7865 = vmatprep.subr.mxu0 0.0
    %7866 = vmatpush1.msra.mxu0 0.0
    %7867 = vmatprep.subr.mxu0 0.0
    %v7868 = vand.u32 %v49, 4294901760
    %7869 = vmatpush1.msra.mxu0 %v7868
    %7870 = vmatprep.subr.mxu0 0.0
    %v7871 = vand.u32 %v48, 4294901760
    %7872 = vmatpush1.msra.mxu0 %v7871
    %7873 = vmatprep.subr.mxu0 0.0
    %v7874 = vand.u32 %v47, 4294901760
    %7875 = vmatpush1.msra.mxu0 %v7874
    %7876 = vmatprep.subr.mxu0 0.0
    %v7877 = vand.u32 %v46, 4294901760
    %7878 = vmatpush1.msra.mxu0 %v7877
    %7879 = vmatprep.subr.mxu0 0.0
    %v7880 = vand.u32 %v45, 4294901760
    %7881 = vmatpush1.msra.mxu0 %v7880
    %7882 = vmatprep.subr.mxu0 0.0
    %v7883 = vand.u32 %v44, 4294901760
    %7884 = vmatpush1.msra.mxu0 %v7883
    %7885 = vmatprep.subr.mxu0 0.0
    %v7886 = vand.u32 %v43, 4294901760
    %7887 = vmatpush1.msra.mxu0 %v7886
    %7888 = vmatprep.subr.mxu0 0.0
    %v7889 = vand.u32 %v42, 4294901760
    %7890 = vmatpush1.msra.mxu0 %v7889
    %7891 = vmatprep.subr.mxu0 0.0
    %7892 = vmatpush2.msra.mxu0 0.0
    %7893 = vmatprep.subr.mxu0 0.0
    %7894 = vmatpush2.msra.mxu0 0.0
    %7895 = vmatprep.subr.mxu0 0.0
    %7896 = vmatpush2.msra.mxu0 0.0
    %7897 = vmatprep.subr.mxu0 0.0
    %7898 = vmatpush2.msra.mxu0 0.0
    %7899 = vmatprep.subr.mxu0 0.0
    %7900 = vmatpush2.msra.mxu0 0.0
    %7901 = vmatprep.subr.mxu0 0.0
    %7902 = vmatpush2.msra.mxu0 0.0
    %7903 = vmatprep.subr.mxu0 0.0
    %7904 = vmatpush2.msra.mxu0 0.0
    %7905 = vmatprep.subr.mxu0 0.0
    %7906 = vmatpush2.msra.mxu0 0.0
    %7907 = vmatprep.subr.mxu0 0.0
    %7908 = vmatpush2.msra.mxu0 0.0
    %7909 = vmatprep.subr.mxu0 0.0
    %7910 = vmatpush2.msra.mxu0 0.0
    %7911 = vmatprep.subr.mxu0 0.0
    %7912 = vmatpush2.msra.mxu0 0.0
    %7913 = vmatprep.subr.mxu0 0.0
    %7914 = vmatpush2.msra.mxu0 0.0
    %7915 = vmatprep.subr.mxu0 0.0
    %7916 = vmatpush2.msra.mxu0 0.0
    %7917 = vmatprep.subr.mxu0 0.0
    %7918 = vmatpush2.msra.mxu0 0.0
    %7919 = vmatprep.subr.mxu0 0.0
    %7920 = vmatpush2.msra.mxu0 0.0
    %7921 = vmatprep.subr.mxu0 0.0
    %7922 = vmatpush2.msra.mxu0 0.0
    %7923 = vmatprep.mubr.f32.mxu0 0.0
    %v7924 = vand.u32 %v7567, 4294901760
    %v7925 = vsub.f32 %v7567, %v7924
    %v7926 = vand.u32 %v7925, 4294901760
    %7927 = vmatmul.mubr.f32.gmra.mxu0 %v7926
    %v7928 = vpop.f32.mrf.mxu0
    %v7929 = vadd.f32 %v7848, %v7928
    %v7930 = vpop.f32.mrf.mxu0
    %7931 = vdwg.mxu0
    %7932 = vmatprep.subr.mxu0 0.0
    %7933 = vmatpush1.msra.mxu0 0.0
    %7934 = vmatprep.subr.mxu0 0.0
    %7935 = vmatpush1.msra.mxu0 0.0
    %7936 = vmatprep.subr.mxu0 0.0
    %7937 = vmatpush1.msra.mxu0 0.0
    %7938 = vmatprep.subr.mxu0 0.0
    %7939 = vmatpush1.msra.mxu0 0.0
    %7940 = vmatprep.subr.mxu0 0.0
    %7941 = vmatpush1.msra.mxu0 0.0
    %7942 = vmatprep.subr.mxu0 0.0
    %7943 = vmatpush1.msra.mxu0 0.0
    %7944 = vmatprep.subr.mxu0 0.0
    %7945 = vmatpush1.msra.mxu0 0.0
    %7946 = vmatprep.subr.mxu0 0.0
    %7947 = vmatpush1.msra.mxu0 0.0
    %7948 = vmatprep.subr.mxu0 0.0
    %v7949 = vand.u32 %v49, 4294901760
    %v7950 = vsub.f32 %v49, %v7949
    %v7951 = vand.u32 %v7950, 4294901760
    %7952 = vmatpush1.msra.mxu0 %v7951
    %7953 = vmatprep.subr.mxu0 0.0
    %v7954 = vand.u32 %v48, 4294901760
    %v7955 = vsub.f32 %v48, %v7954
    %v7956 = vand.u32 %v7955, 4294901760
    %7957 = vmatpush1.msra.mxu0 %v7956
    %7958 = vmatprep.subr.mxu0 0.0
    %v7959 = vand.u32 %v47, 4294901760
    %v7960 = vsub.f32 %v47, %v7959
    %v7961 = vand.u32 %v7960, 4294901760
    %7962 = vmatpush1.msra.mxu0 %v7961
    %7963 = vmatprep.subr.mxu0 0.0
    %v7964 = vand.u32 %v46, 4294901760
    %v7965 = vsub.f32 %v46, %v7964
    %v7966 = vand.u32 %v7965, 4294901760
    %7967 = vmatpush1.msra.mxu0 %v7966
    %7968 = vmatprep.subr.mxu0 0.0
    %v7969 = vand.u32 %v45, 4294901760
    %v7970 = vsub.f32 %v45, %v7969
    %v7971 = vand.u32 %v7970, 4294901760
    %7972 = vmatpush1.msra.mxu0 %v7971
    %7973 = vmatprep.subr.mxu0 0.0
    %v7974 = vand.u32 %v44, 4294901760
    %v7975 = vsub.f32 %v44, %v7974
    %v7976 = vand.u32 %v7975, 4294901760
    %7977 = vmatpush1.msra.mxu0 %v7976
    %7978 = vmatprep.subr.mxu0 0.0
    %v7979 = vand.u32 %v43, 4294901760
    %v7980 = vsub.f32 %v43, %v7979
    %v7981 = vand.u32 %v7980, 4294901760
    %7982 = vmatpush1.msra.mxu0 %v7981
    %7983 = vmatprep.subr.mxu0 0.0
    %v7984 = vand.u32 %v42, 4294901760
    %v7985 = vsub.f32 %v42, %v7984
    %v7986 = vand.u32 %v7985, 4294901760
    %7987 = vmatpush1.msra.mxu0 %v7986
    %7988 = vmatprep.subr.mxu0 0.0
    %7989 = vmatpush2.msra.mxu0 0.0
    %7990 = vmatprep.subr.mxu0 0.0
    %7991 = vmatpush2.msra.mxu0 0.0
    %7992 = vmatprep.subr.mxu0 0.0
    %7993 = vmatpush2.msra.mxu0 0.0
    %7994 = vmatprep.subr.mxu0 0.0
    %7995 = vmatpush2.msra.mxu0 0.0
    %7996 = vmatprep.subr.mxu0 0.0
    %7997 = vmatpush2.msra.mxu0 0.0
    %7998 = vmatprep.subr.mxu0 0.0
    %7999 = vmatpush2.msra.mxu0 0.0
    %8000 = vmatprep.subr.mxu0 0.0
    %8001 = vmatpush2.msra.mxu0 0.0
    %8002 = vmatprep.subr.mxu0 0.0
    %8003 = vmatpush2.msra.mxu0 0.0
    %8004 = vmatprep.subr.mxu0 0.0
    %8005 = vmatpush2.msra.mxu0 0.0
    %8006 = vmatprep.subr.mxu0 0.0
    %8007 = vmatpush2.msra.mxu0 0.0
    %8008 = vmatprep.subr.mxu0 0.0
    %8009 = vmatpush2.msra.mxu0 0.0
    %8010 = vmatprep.subr.mxu0 0.0
    %8011 = vmatpush2.msra.mxu0 0.0
    %8012 = vmatprep.subr.mxu0 0.0
    %8013 = vmatpush2.msra.mxu0 0.0
    %8014 = vmatprep.subr.mxu0 0.0
    %8015 = vmatpush2.msra.mxu0 0.0
    %8016 = vmatprep.subr.mxu0 0.0
    %8017 = vmatpush2.msra.mxu0 0.0
    %8018 = vmatprep.subr.mxu0 0.0
    %8019 = vmatpush2.msra.mxu0 0.0
    %8020 = vmatprep.mubr.f32.mxu0 0.0
    %v8021 = vand.u32 %v7567, 4294901760
    %8022 = vmatmul.mubr.f32.gmra.mxu0 %v8021
    %v8023 = vpop.f32.mrf.mxu0
    %v8024 = vadd.f32 %v7929, %v8023
    %v8025 = vpop.f32.mrf.mxu0
    %8026 = vdwg.mxu0
    %8027 = vmatprep.subr.mxu0 0.0
    %8028 = vmatpush1.msra.mxu0 0.0
    %8029 = vmatprep.subr.mxu0 0.0
    %8030 = vmatpush1.msra.mxu0 0.0
    %8031 = vmatprep.subr.mxu0 0.0
    %8032 = vmatpush1.msra.mxu0 0.0
    %8033 = vmatprep.subr.mxu0 0.0
    %8034 = vmatpush1.msra.mxu0 0.0
    %8035 = vmatprep.subr.mxu0 0.0
    %8036 = vmatpush1.msra.mxu0 0.0
    %8037 = vmatprep.subr.mxu0 0.0
    %8038 = vmatpush1.msra.mxu0 0.0
    %8039 = vmatprep.subr.mxu0 0.0
    %8040 = vmatpush1.msra.mxu0 0.0
    %8041 = vmatprep.subr.mxu0 0.0
    %8042 = vmatpush1.msra.mxu0 0.0
    %8043 = vmatprep.subr.mxu0 0.0
    %v8044 = vand.u32 %v49, 4294901760
    %8045 = vmatpush1.msra.mxu0 %v8044
    %8046 = vmatprep.subr.mxu0 0.0
    %v8047 = vand.u32 %v48, 4294901760
    %8048 = vmatpush1.msra.mxu0 %v8047
    %8049 = vmatprep.subr.mxu0 0.0
    %v8050 = vand.u32 %v47, 4294901760
    %8051 = vmatpush1.msra.mxu0 %v8050
    %8052 = vmatprep.subr.mxu0 0.0
    %v8053 = vand.u32 %v46, 4294901760
    %8054 = vmatpush1.msra.mxu0 %v8053
    %8055 = vmatprep.subr.mxu0 0.0
    %v8056 = vand.u32 %v45, 4294901760
    %8057 = vmatpush1.msra.mxu0 %v8056
    %8058 = vmatprep.subr.mxu0 0.0
    %v8059 = vand.u32 %v44, 4294901760
    %8060 = vmatpush1.msra.mxu0 %v8059
    %8061 = vmatprep.subr.mxu0 0.0
    %v8062 = vand.u32 %v43, 4294901760
    %8063 = vmatpush1.msra.mxu0 %v8062
    %8064 = vmatprep.subr.mxu0 0.0
    %v8065 = vand.u32 %v42, 4294901760
    %8066 = vmatpush1.msra.mxu0 %v8065
    %8067 = vmatprep.subr.mxu0 0.0
    %8068 = vmatpush2.msra.mxu0 0.0
    %8069 = vmatprep.subr.mxu0 0.0
    %8070 = vmatpush2.msra.mxu0 0.0
    %8071 = vmatprep.subr.mxu0 0.0
    %8072 = vmatpush2.msra.mxu0 0.0
    %8073 = vmatprep.subr.mxu0 0.0
    %8074 = vmatpush2.msra.mxu0 0.0
    %8075 = vmatprep.subr.mxu0 0.0
    %8076 = vmatpush2.msra.mxu0 0.0
    %8077 = vmatprep.subr.mxu0 0.0
    %8078 = vmatpush2.msra.mxu0 0.0
    %8079 = vmatprep.subr.mxu0 0.0
    %8080 = vmatpush2.msra.mxu0 0.0
    %8081 = vmatprep.subr.mxu0 0.0
    %8082 = vmatpush2.msra.mxu0 0.0
    %8083 = vmatprep.subr.mxu0 0.0
    %8084 = vmatpush2.msra.mxu0 0.0
    %8085 = vmatprep.subr.mxu0 0.0
    %8086 = vmatpush2.msra.mxu0 0.0
    %8087 = vmatprep.subr.mxu0 0.0
    %8088 = vmatpush2.msra.mxu0 0.0
    %8089 = vmatprep.subr.mxu0 0.0
    %8090 = vmatpush2.msra.mxu0 0.0
    %8091 = vmatprep.subr.mxu0 0.0
    %8092 = vmatpush2.msra.mxu0 0.0
    %8093 = vmatprep.subr.mxu0 0.0
    %8094 = vmatpush2.msra.mxu0 0.0
    %8095 = vmatprep.subr.mxu0 0.0
    %8096 = vmatpush2.msra.mxu0 0.0
    %8097 = vmatprep.subr.mxu0 0.0
    %8098 = vmatpush2.msra.mxu0 0.0
    %8099 = vmatprep.mubr.f32.mxu0 0.0
    %v8100 = vand.u32 %v7567, 4294901760
    %8101 = vmatmul.mubr.f32.gmra.mxu0 %v8100
    %v8102 = vpop.f32.mrf.mxu0
    %v8103 = vadd.f32 %v8024, %v8102
    %v8104 = vpop.f32.mrf.mxu0
    %8105 = vdwg.mxu0
    %v8106 = vtanh.pop %v8103
    %v8108 = vsel %vm853, %v7560, 0
    %8110 = vmatprep.subr.mxu0 0.0
    %8111 = vmatpush1.msra.mxu0 0.0
    %8112 = vmatprep.subr.mxu0 0.0
    %8113 = vmatpush1.msra.mxu0 0.0
    %8114 = vmatprep.subr.mxu0 0.0
    %8115 = vmatpush1.msra.mxu0 0.0
    %8116 = vmatprep.subr.mxu0 0.0
    %8117 = vmatpush1.msra.mxu0 0.0
    %8118 = vmatprep.subr.mxu0 0.0
    %8119 = vmatpush1.msra.mxu0 0.0
    %8120 = vmatprep.subr.mxu0 0.0
    %8121 = vmatpush1.msra.mxu0 0.0
    %8122 = vmatprep.subr.mxu0 0.0
    %8123 = vmatpush1.msra.mxu0 0.0
    %8124 = vmatprep.subr.mxu0 0.0
    %8125 = vmatpush1.msra.mxu0 0.0
    %8126 = vmatprep.subr.mxu0 0.0
    %8127 = vmatpush1.msra.mxu0 0.0
    %8128 = vmatprep.subr.mxu0 0.0
    %8129 = vmatpush1.msra.mxu0 0.0
    %8130 = vmatprep.subr.mxu0 0.0
    %8131 = vmatpush1.msra.mxu0 0.0
    %8132 = vmatprep.subr.mxu0 0.0
    %8133 = vmatpush1.msra.mxu0 0.0
    %8134 = vmatprep.subr.mxu0 0.0
    %v8135 = vand.u32 %v41, 4294901760
    %8136 = vmatpush1.msra.mxu0 %v8135
    %8137 = vmatprep.subr.mxu0 0.0
    %v8138 = vand.u32 %v40, 4294901760
    %8139 = vmatpush1.msra.mxu0 %v8138
    %8140 = vmatprep.subr.mxu0 0.0
    %v8141 = vand.u32 %v39, 4294901760
    %8142 = vmatpush1.msra.mxu0 %v8141
    %8143 = vmatprep.subr.mxu0 0.0
    %v8144 = vand.u32 %v38, 4294901760
    %8145 = vmatpush1.msra.mxu0 %v8144
    %8146 = vmatprep.subr.mxu0 0.0
    %8147 = vmatpush2.msra.mxu0 0.0
    %8148 = vmatprep.subr.mxu0 0.0
    %8149 = vmatpush2.msra.mxu0 0.0
    %8150 = vmatprep.subr.mxu0 0.0
    %8151 = vmatpush2.msra.mxu0 0.0
    %8152 = vmatprep.subr.mxu0 0.0
    %8153 = vmatpush2.msra.mxu0 0.0
    %8154 = vmatprep.subr.mxu0 0.0
    %8155 = vmatpush2.msra.mxu0 0.0
    %8156 = vmatprep.subr.mxu0 0.0
    %8157 = vmatpush2.msra.mxu0 0.0
    %8158 = vmatprep.subr.mxu0 0.0
    %8159 = vmatpush2.msra.mxu0 0.0
    %8160 = vmatprep.subr.mxu0 0.0
    %8161 = vmatpush2.msra.mxu0 0.0
    %8162 = vmatprep.subr.mxu0 0.0
    %8163 = vmatpush2.msra.mxu0 0.0
    %8164 = vmatprep.subr.mxu0 0.0
    %8165 = vmatpush2.msra.mxu0 0.0
    %8166 = vmatprep.subr.mxu0 0.0
    %8167 = vmatpush2.msra.mxu0 0.0
    %8168 = vmatprep.subr.mxu0 0.0
    %8169 = vmatpush2.msra.mxu0 0.0
    %8170 = vmatprep.subr.mxu0 0.0
    %8171 = vmatpush2.msra.mxu0 0.0
    %8172 = vmatprep.subr.mxu0 0.0
    %8173 = vmatpush2.msra.mxu0 0.0
    %8174 = vmatprep.subr.mxu0 0.0
    %8175 = vmatpush2.msra.mxu0 0.0
    %8176 = vmatprep.subr.mxu0 0.0
    %8177 = vmatpush2.msra.mxu0 0.0
    %8178 = vmatprep.mubr.f32.mxu0 0.0
    %v8179 = vand.u32 %v8108, 4294901760
    %v8180 = vsub.f32 %v8108, %v8179
    %v8181 = vand.u32 %v8180, 4294901760
    %v8182 = vsub.f32 %v8180, %v8181
    %v8183 = vand.u32 %v8182, 4294901760
    %8184 = vmatmul.mubr.f32.gmra.mxu0 %v8183
    %v8185 = vpop.f32.mrf.mxu0
    %v8186 = vadd.f32 %v847, %v8185
    %v8187 = vpop.f32.mrf.mxu0
    %8188 = vdwg.mxu0
    %8189 = vmatprep.subr.mxu0 0.0
    %8190 = vmatpush1.msra.mxu0 0.0
    %8191 = vmatprep.subr.mxu0 0.0
    %8192 = vmatpush1.msra.mxu0 0.0
    %8193 = vmatprep.subr.mxu0 0.0
    %8194 = vmatpush1.msra.mxu0 0.0
    %8195 = vmatprep.subr.mxu0 0.0
    %8196 = vmatpush1.msra.mxu0 0.0
    %8197 = vmatprep.subr.mxu0 0.0
    %8198 = vmatpush1.msra.mxu0 0.0
    %8199 = vmatprep.subr.mxu0 0.0
    %8200 = vmatpush1.msra.mxu0 0.0
    %8201 = vmatprep.subr.mxu0 0.0
    %8202 = vmatpush1.msra.mxu0 0.0
    %8203 = vmatprep.subr.mxu0 0.0
    %8204 = vmatpush1.msra.mxu0 0.0
    %8205 = vmatprep.subr.mxu0 0.0
    %8206 = vmatpush1.msra.mxu0 0.0
    %8207 = vmatprep.subr.mxu0 0.0
    %8208 = vmatpush1.msra.mxu0 0.0
    %8209 = vmatprep.subr.mxu0 0.0
    %8210 = vmatpush1.msra.mxu0 0.0
    %8211 = vmatprep.subr.mxu0 0.0
    %8212 = vmatpush1.msra.mxu0 0.0
    %8213 = vmatprep.subr.mxu0 0.0
    %v8214 = vand.u32 %v41, 4294901760
    %v8215 = vsub.f32 %v41, %v8214
    %v8216 = vand.u32 %v8215, 4294901760
    %v8217 = vsub.f32 %v8215, %v8216
    %v8218 = vand.u32 %v8217, 4294901760
    %8219 = vmatpush1.msra.mxu0 %v8218
    %8220 = vmatprep.subr.mxu0 0.0
    %v8221 = vand.u32 %v40, 4294901760
    %v8222 = vsub.f32 %v40, %v8221
    %v8223 = vand.u32 %v8222, 4294901760
    %v8224 = vsub.f32 %v8222, %v8223
    %v8225 = vand.u32 %v8224, 4294901760
    %8226 = vmatpush1.msra.mxu0 %v8225
    %8227 = vmatprep.subr.mxu0 0.0
    %v8228 = vand.u32 %v39, 4294901760
    %v8229 = vsub.f32 %v39, %v8228
    %v8230 = vand.u32 %v8229, 4294901760
    %v8231 = vsub.f32 %v8229, %v8230
    %v8232 = vand.u32 %v8231, 4294901760
    %8233 = vmatpush1.msra.mxu0 %v8232
    %8234 = vmatprep.subr.mxu0 0.0
    %v8235 = vand.u32 %v38, 4294901760
    %v8236 = vsub.f32 %v38, %v8235
    %v8237 = vand.u32 %v8236, 4294901760
    %v8238 = vsub.f32 %v8236, %v8237
    %v8239 = vand.u32 %v8238, 4294901760
    %8240 = vmatpush1.msra.mxu0 %v8239
    %8241 = vmatprep.subr.mxu0 0.0
    %8242 = vmatpush2.msra.mxu0 0.0
    %8243 = vmatprep.subr.mxu0 0.0
    %8244 = vmatpush2.msra.mxu0 0.0
    %8245 = vmatprep.subr.mxu0 0.0
    %8246 = vmatpush2.msra.mxu0 0.0
    %8247 = vmatprep.subr.mxu0 0.0
    %8248 = vmatpush2.msra.mxu0 0.0
    %8249 = vmatprep.subr.mxu0 0.0
    %8250 = vmatpush2.msra.mxu0 0.0
    %8251 = vmatprep.subr.mxu0 0.0
    %8252 = vmatpush2.msra.mxu0 0.0
    %8253 = vmatprep.subr.mxu0 0.0
    %8254 = vmatpush2.msra.mxu0 0.0
    %8255 = vmatprep.subr.mxu0 0.0
    %8256 = vmatpush2.msra.mxu0 0.0
    %8257 = vmatprep.subr.mxu0 0.0
    %8258 = vmatpush2.msra.mxu0 0.0
    %8259 = vmatprep.subr.mxu0 0.0
    %8260 = vmatpush2.msra.mxu0 0.0
    %8261 = vmatprep.subr.mxu0 0.0
    %8262 = vmatpush2.msra.mxu0 0.0
    %8263 = vmatprep.subr.mxu0 0.0
    %8264 = vmatpush2.msra.mxu0 0.0
    %8265 = vmatprep.subr.mxu0 0.0
    %8266 = vmatpush2.msra.mxu0 0.0
    %8267 = vmatprep.subr.mxu0 0.0
    %8268 = vmatpush2.msra.mxu0 0.0
    %8269 = vmatprep.subr.mxu0 0.0
    %8270 = vmatpush2.msra.mxu0 0.0
    %8271 = vmatprep.subr.mxu0 0.0
    %8272 = vmatpush2.msra.mxu0 0.0
    %8273 = vmatprep.mubr.f32.mxu0 0.0
    %v8274 = vand.u32 %v8108, 4294901760
    %8275 = vmatmul.mubr.f32.gmra.mxu0 %v8274
    %v8276 = vpop.f32.mrf.mxu0
    %v8277 = vadd.f32 %v8186, %v8276
    %v8278 = vpop.f32.mrf.mxu0
    %8279 = vdwg.mxu0
    %8280 = vmatprep.subr.mxu0 0.0
    %8281 = vmatpush1.msra.mxu0 0.0
    %8282 = vmatprep.subr.mxu0 0.0
    %8283 = vmatpush1.msra.mxu0 0.0
    %8284 = vmatprep.subr.mxu0 0.0
    %8285 = vmatpush1.msra.mxu0 0.0
    %8286 = vmatprep.subr.mxu0 0.0
    %8287 = vmatpush1.msra.mxu0 0.0
    %8288 = vmatprep.subr.mxu0 0.0
    %8289 = vmatpush1.msra.mxu0 0.0
    %8290 = vmatprep.subr.mxu0 0.0
    %8291 = vmatpush1.msra.mxu0 0.0
    %8292 = vmatprep.subr.mxu0 0.0
    %8293 = vmatpush1.msra.mxu0 0.0
    %8294 = vmatprep.subr.mxu0 0.0
    %8295 = vmatpush1.msra.mxu0 0.0
    %8296 = vmatprep.subr.mxu0 0.0
    %8297 = vmatpush1.msra.mxu0 0.0
    %8298 = vmatprep.subr.mxu0 0.0
    %8299 = vmatpush1.msra.mxu0 0.0
    %8300 = vmatprep.subr.mxu0 0.0
    %8301 = vmatpush1.msra.mxu0 0.0
    %8302 = vmatprep.subr.mxu0 0.0
    %8303 = vmatpush1.msra.mxu0 0.0
    %8304 = vmatprep.subr.mxu0 0.0
    %v8305 = vand.u32 %v41, 4294901760
    %v8306 = vsub.f32 %v41, %v8305
    %8307 = vmatpush1.msra.mxu0 %v8306
    %8308 = vmatprep.subr.mxu0 0.0
    %v8309 = vand.u32 %v40, 4294901760
    %v8310 = vsub.f32 %v40, %v8309
    %8311 = vmatpush1.msra.mxu0 %v8310
    %8312 = vmatprep.subr.mxu0 0.0
    %v8313 = vand.u32 %v39, 4294901760
    %v8314 = vsub.f32 %v39, %v8313
    %8315 = vmatpush1.msra.mxu0 %v8314
    %8316 = vmatprep.subr.mxu0 0.0
    %v8317 = vand.u32 %v38, 4294901760
    %v8318 = vsub.f32 %v38, %v8317
    %8319 = vmatpush1.msra.mxu0 %v8318
    %8320 = vmatprep.subr.mxu0 0.0
    %8321 = vmatpush2.msra.mxu0 0.0
    %8322 = vmatprep.subr.mxu0 0.0
    %8323 = vmatpush2.msra.mxu0 0.0
    %8324 = vmatprep.subr.mxu0 0.0
    %8325 = vmatpush2.msra.mxu0 0.0
    %8326 = vmatprep.subr.mxu0 0.0
    %8327 = vmatpush2.msra.mxu0 0.0
    %8328 = vmatprep.subr.mxu0 0.0
    %8329 = vmatpush2.msra.mxu0 0.0
    %8330 = vmatprep.subr.mxu0 0.0
    %8331 = vmatpush2.msra.mxu0 0.0
    %8332 = vmatprep.subr.mxu0 0.0
    %8333 = vmatpush2.msra.mxu0 0.0
    %8334 = vmatprep.subr.mxu0 0.0
    %8335 = vmatpush2.msra.mxu0 0.0
    %8336 = vmatprep.subr.mxu0 0.0
    %8337 = vmatpush2.msra.mxu0 0.0
    %8338 = vmatprep.subr.mxu0 0.0
    %8339 = vmatpush2.msra.mxu0 0.0
    %8340 = vmatprep.subr.mxu0 0.0
    %8341 = vmatpush2.msra.mxu0 0.0
    %8342 = vmatprep.subr.mxu0 0.0
    %8343 = vmatpush2.msra.mxu0 0.0
    %8344 = vmatprep.subr.mxu0 0.0
    %8345 = vmatpush2.msra.mxu0 0.0
    %8346 = vmatprep.subr.mxu0 0.0
    %8347 = vmatpush2.msra.mxu0 0.0
    %8348 = vmatprep.subr.mxu0 0.0
    %8349 = vmatpush2.msra.mxu0 0.0
    %8350 = vmatprep.subr.mxu0 0.0
    %8351 = vmatpush2.msra.mxu0 0.0
    %8352 = vmatprep.mubr.f32.mxu0 0.0
    %v8353 = vand.u32 %v8108, 4294901760
    %v8354 = vsub.f32 %v8108, %v8353
    %8355 = vmatmul.mubr.f32.gmra.mxu0 %v8354
    %v8356 = vpop.f32.mrf.mxu0
    %v8357 = vadd.f32 %v8277, %v8356
    %v8358 = vpop.f32.mrf.mxu0
    %8359 = vdwg.mxu0
    %8360 = vmatprep.subr.mxu0 0.0
    %8361 = vmatpush1.msra.mxu0 0.0
    %8362 = vmatprep.subr.mxu0 0.0
    %8363 = vmatpush1.msra.mxu0 0.0
    %8364 = vmatprep.subr.mxu0 0.0
    %8365 = vmatpush1.msra.mxu0 0.0
    %8366 = vmatprep.subr.mxu0 0.0
    %8367 = vmatpush1.msra.mxu0 0.0
    %8368 = vmatprep.subr.mxu0 0.0
    %8369 = vmatpush1.msra.mxu0 0.0
    %8370 = vmatprep.subr.mxu0 0.0
    %8371 = vmatpush1.msra.mxu0 0.0
    %8372 = vmatprep.subr.mxu0 0.0
    %8373 = vmatpush1.msra.mxu0 0.0
    %8374 = vmatprep.subr.mxu0 0.0
    %8375 = vmatpush1.msra.mxu0 0.0
    %8376 = vmatprep.subr.mxu0 0.0
    %8377 = vmatpush1.msra.mxu0 0.0
    %8378 = vmatprep.subr.mxu0 0.0
    %8379 = vmatpush1.msra.mxu0 0.0
    %8380 = vmatprep.subr.mxu0 0.0
    %8381 = vmatpush1.msra.mxu0 0.0
    %8382 = vmatprep.subr.mxu0 0.0
    %8383 = vmatpush1.msra.mxu0 0.0
    %8384 = vmatprep.subr.mxu0 0.0
    %v8385 = vand.u32 %v41, 4294901760
    %8386 = vmatpush1.msra.mxu0 %v8385
    %8387 = vmatprep.subr.mxu0 0.0
    %v8388 = vand.u32 %v40, 4294901760
    %8389 = vmatpush1.msra.mxu0 %v8388
    %8390 = vmatprep.subr.mxu0 0.0
    %v8391 = vand.u32 %v39, 4294901760
    %8392 = vmatpush1.msra.mxu0 %v8391
    %8393 = vmatprep.subr.mxu0 0.0
    %v8394 = vand.u32 %v38, 4294901760
    %8395 = vmatpush1.msra.mxu0 %v8394
    %8396 = vmatprep.subr.mxu0 0.0
    %8397 = vmatpush2.msra.mxu0 0.0
    %8398 = vmatprep.subr.mxu0 0.0
    %8399 = vmatpush2.msra.mxu0 0.0
    %8400 = vmatprep.subr.mxu0 0.0
    %8401 = vmatpush2.msra.mxu0 0.0
    %8402 = vmatprep.subr.mxu0 0.0
    %8403 = vmatpush2.msra.mxu0 0.0
    %8404 = vmatprep.subr.mxu0 0.0
    %8405 = vmatpush2.msra.mxu0 0.0
    %8406 = vmatprep.subr.mxu0 0.0
    %8407 = vmatpush2.msra.mxu0 0.0
    %8408 = vmatprep.subr.mxu0 0.0
    %8409 = vmatpush2.msra.mxu0 0.0
    %8410 = vmatprep.subr.mxu0 0.0
    %8411 = vmatpush2.msra.mxu0 0.0
    %8412 = vmatprep.subr.mxu0 0.0
    %8413 = vmatpush2.msra.mxu0 0.0
    %8414 = vmatprep.subr.mxu0 0.0
    %8415 = vmatpush2.msra.mxu0 0.0
    %8416 = vmatprep.subr.mxu0 0.0
    %8417 = vmatpush2.msra.mxu0 0.0
    %8418 = vmatprep.subr.mxu0 0.0
    %8419 = vmatpush2.msra.mxu0 0.0
    %8420 = vmatprep.subr.mxu0 0.0
    %8421 = vmatpush2.msra.mxu0 0.0
    %8422 = vmatprep.subr.mxu0 0.0
    %8423 = vmatpush2.msra.mxu0 0.0
    %8424 = vmatprep.subr.mxu0 0.0
    %8425 = vmatpush2.msra.mxu0 0.0
    %8426 = vmatprep.subr.mxu0 0.0
    %8427 = vmatpush2.msra.mxu0 0.0
    %8428 = vmatprep.mubr.f32.mxu0 0.0
    %v8429 = vand.u32 %v8108, 4294901760
    %v8430 = vsub.f32 %v8108, %v8429
    %v8431 = vand.u32 %v8430, 4294901760
    %8432 = vmatmul.mubr.f32.gmra.mxu0 %v8431
    %v8433 = vpop.f32.mrf.mxu0
    %v8434 = vadd.f32 %v8357, %v8433
    %v8435 = vpop.f32.mrf.mxu0
    %8436 = vdwg.mxu0
    %8437 = vmatprep.subr.mxu0 0.0
    %8438 = vmatpush1.msra.mxu0 0.0
    %8439 = vmatprep.subr.mxu0 0.0
    %8440 = vmatpush1.msra.mxu0 0.0
    %8441 = vmatprep.subr.mxu0 0.0
    %8442 = vmatpush1.msra.mxu0 0.0
    %8443 = vmatprep.subr.mxu0 0.0
    %8444 = vmatpush1.msra.mxu0 0.0
    %8445 = vmatprep.subr.mxu0 0.0
    %8446 = vmatpush1.msra.mxu0 0.0
    %8447 = vmatprep.subr.mxu0 0.0
    %8448 = vmatpush1.msra.mxu0 0.0
    %8449 = vmatprep.subr.mxu0 0.0
    %8450 = vmatpush1.msra.mxu0 0.0
    %8451 = vmatprep.subr.mxu0 0.0
    %8452 = vmatpush1.msra.mxu0 0.0
    %8453 = vmatprep.subr.mxu0 0.0
    %8454 = vmatpush1.msra.mxu0 0.0
    %8455 = vmatprep.subr.mxu0 0.0
    %8456 = vmatpush1.msra.mxu0 0.0
    %8457 = vmatprep.subr.mxu0 0.0
    %8458 = vmatpush1.msra.mxu0 0.0
    %8459 = vmatprep.subr.mxu0 0.0
    %8460 = vmatpush1.msra.mxu0 0.0
    %8461 = vmatprep.subr.mxu0 0.0
    %v8462 = vand.u32 %v41, 4294901760
    %v8463 = vsub.f32 %v41, %v8462
    %v8464 = vand.u32 %v8463, 4294901760
    %8465 = vmatpush1.msra.mxu0 %v8464
    %8466 = vmatprep.subr.mxu0 0.0
    %v8467 = vand.u32 %v40, 4294901760
    %v8468 = vsub.f32 %v40, %v8467
    %v8469 = vand.u32 %v8468, 4294901760
    %8470 = vmatpush1.msra.mxu0 %v8469
    %8471 = vmatprep.subr.mxu0 0.0
    %v8472 = vand.u32 %v39, 4294901760
    %v8473 = vsub.f32 %v39, %v8472
    %v8474 = vand.u32 %v8473, 4294901760
    %8475 = vmatpush1.msra.mxu0 %v8474
    %8476 = vmatprep.subr.mxu0 0.0
    %v8477 = vand.u32 %v38, 4294901760
    %v8478 = vsub.f32 %v38, %v8477
    %v8479 = vand.u32 %v8478, 4294901760
    %8480 = vmatpush1.msra.mxu0 %v8479
    %8481 = vmatprep.subr.mxu0 0.0
    %8482 = vmatpush2.msra.mxu0 0.0
    %8483 = vmatprep.subr.mxu0 0.0
    %8484 = vmatpush2.msra.mxu0 0.0
    %8485 = vmatprep.subr.mxu0 0.0
    %8486 = vmatpush2.msra.mxu0 0.0
    %8487 = vmatprep.subr.mxu0 0.0
    %8488 = vmatpush2.msra.mxu0 0.0
    %8489 = vmatprep.subr.mxu0 0.0
    %8490 = vmatpush2.msra.mxu0 0.0
    %8491 = vmatprep.subr.mxu0 0.0
    %8492 = vmatpush2.msra.mxu0 0.0
    %8493 = vmatprep.subr.mxu0 0.0
    %8494 = vmatpush2.msra.mxu0 0.0
    %8495 = vmatprep.subr.mxu0 0.0
    %8496 = vmatpush2.msra.mxu0 0.0
    %8497 = vmatprep.subr.mxu0 0.0
    %8498 = vmatpush2.msra.mxu0 0.0
    %8499 = vmatprep.subr.mxu0 0.0
    %8500 = vmatpush2.msra.mxu0 0.0
    %8501 = vmatprep.subr.mxu0 0.0
    %8502 = vmatpush2.msra.mxu0 0.0
    %8503 = vmatprep.subr.mxu0 0.0
    %8504 = vmatpush2.msra.mxu0 0.0
    %8505 = vmatprep.subr.mxu0 0.0
    %8506 = vmatpush2.msra.mxu0 0.0
    %8507 = vmatprep.subr.mxu0 0.0
    %8508 = vmatpush2.msra.mxu0 0.0
    %8509 = vmatprep.subr.mxu0 0.0
    %8510 = vmatpush2.msra.mxu0 0.0
    %8511 = vmatprep.subr.mxu0 0.0
    %8512 = vmatpush2.msra.mxu0 0.0
    %8513 = vmatprep.mubr.f32.mxu0 0.0
    %v8514 = vand.u32 %v8108, 4294901760
    %8515 = vmatmul.mubr.f32.gmra.mxu0 %v8514
    %v8516 = vpop.f32.mrf.mxu0
    %v8517 = vadd.f32 %v8434, %v8516
    %v8518 = vpop.f32.mrf.mxu0
    %8519 = vdwg.mxu0
    %8520 = vmatprep.subr.mxu0 0.0
    %8521 = vmatpush1.msra.mxu0 0.0
    %8522 = vmatprep.subr.mxu0 0.0
    %8523 = vmatpush1.msra.mxu0 0.0
    %8524 = vmatprep.subr.mxu0 0.0
    %8525 = vmatpush1.msra.mxu0 0.0
    %8526 = vmatprep.subr.mxu0 0.0
    %8527 = vmatpush1.msra.mxu0 0.0
    %8528 = vmatprep.subr.mxu0 0.0
    %8529 = vmatpush1.msra.mxu0 0.0
    %8530 = vmatprep.subr.mxu0 0.0
    %8531 = vmatpush1.msra.mxu0 0.0
    %8532 = vmatprep.subr.mxu0 0.0
    %8533 = vmatpush1.msra.mxu0 0.0
    %8534 = vmatprep.subr.mxu0 0.0
    %8535 = vmatpush1.msra.mxu0 0.0
    %8536 = vmatprep.subr.mxu0 0.0
    %8537 = vmatpush1.msra.mxu0 0.0
    %8538 = vmatprep.subr.mxu0 0.0
    %8539 = vmatpush1.msra.mxu0 0.0
    %8540 = vmatprep.subr.mxu0 0.0
    %8541 = vmatpush1.msra.mxu0 0.0
    %8542 = vmatprep.subr.mxu0 0.0
    %8543 = vmatpush1.msra.mxu0 0.0
    %8544 = vmatprep.subr.mxu0 0.0
    %v8545 = vand.u32 %v41, 4294901760
    %8546 = vmatpush1.msra.mxu0 %v8545
    %8547 = vmatprep.subr.mxu0 0.0
    %v8548 = vand.u32 %v40, 4294901760
    %8549 = vmatpush1.msra.mxu0 %v8548
    %8550 = vmatprep.subr.mxu0 0.0
    %v8551 = vand.u32 %v39, 4294901760
    %8552 = vmatpush1.msra.mxu0 %v8551
    %8553 = vmatprep.subr.mxu0 0.0
    %v8554 = vand.u32 %v38, 4294901760
    %8555 = vmatpush1.msra.mxu0 %v8554
    %8556 = vmatprep.subr.mxu0 0.0
    %8557 = vmatpush2.msra.mxu0 0.0
    %8558 = vmatprep.subr.mxu0 0.0
    %8559 = vmatpush2.msra.mxu0 0.0
    %8560 = vmatprep.subr.mxu0 0.0
    %8561 = vmatpush2.msra.mxu0 0.0
    %8562 = vmatprep.subr.mxu0 0.0
    %8563 = vmatpush2.msra.mxu0 0.0
    %8564 = vmatprep.subr.mxu0 0.0
    %8565 = vmatpush2.msra.mxu0 0.0
    %8566 = vmatprep.subr.mxu0 0.0
    %8567 = vmatpush2.msra.mxu0 0.0
    %8568 = vmatprep.subr.mxu0 0.0
    %8569 = vmatpush2.msra.mxu0 0.0
    %8570 = vmatprep.subr.mxu0 0.0
    %8571 = vmatpush2.msra.mxu0 0.0
    %8572 = vmatprep.subr.mxu0 0.0
    %8573 = vmatpush2.msra.mxu0 0.0
    %8574 = vmatprep.subr.mxu0 0.0
    %8575 = vmatpush2.msra.mxu0 0.0
    %8576 = vmatprep.subr.mxu0 0.0
    %8577 = vmatpush2.msra.mxu0 0.0
    %8578 = vmatprep.subr.mxu0 0.0
    %8579 = vmatpush2.msra.mxu0 0.0
    %8580 = vmatprep.subr.mxu0 0.0
    %8581 = vmatpush2.msra.mxu0 0.0
    %8582 = vmatprep.subr.mxu0 0.0
    %8583 = vmatpush2.msra.mxu0 0.0
    %8584 = vmatprep.subr.mxu0 0.0
    %8585 = vmatpush2.msra.mxu0 0.0
    %8586 = vmatprep.subr.mxu0 0.0
    %8587 = vmatpush2.msra.mxu0 0.0
    %8588 = vmatprep.mubr.f32.mxu0 0.0
    %v8589 = vand.u32 %v8108, 4294901760
    %8590 = vmatmul.mubr.f32.gmra.mxu0 %v8589
    %v8591 = vpop.f32.mrf.mxu0
    %v8592 = vadd.f32 %v8517, %v8591
    %v8593 = vpop.f32.mrf.mxu0
    %8594 = vdwg.mxu0
    %v8595 = vadd.f32 %v8592, %v55
    %v8596 = vtanh.pop %v8595
    %8598 = vrot.lane.b32.xlu0 %v8106, 32
    %v8599 = vpop.permute.xlu0 %8598
    %v8601 = vsel %vm853, %v8596, %v8599
    %v8603 = vsel %vm1349, %v8601, 0
    %8605 = vmatprep.subr.mxu0 0.0
    %8606 = vmatpush1.msra.mxu0 0.0
    %8607 = vmatprep.subr.mxu0 0.0
    %8608 = vmatpush1.msra.mxu0 0.0
    %8609 = vmatprep.subr.mxu0 0.0
    %8610 = vmatpush1.msra.mxu0 0.0
    %8611 = vmatprep.subr.mxu0 0.0
    %8612 = vmatpush1.msra.mxu0 0.0
    %8613 = vmatprep.subr.mxu0 0.0
    %8614 = vmatpush1.msra.mxu0 0.0
    %8615 = vmatprep.subr.mxu0 0.0
    %8616 = vmatpush1.msra.mxu0 0.0
    %8617 = vmatprep.subr.mxu0 0.0
    %8618 = vmatpush1.msra.mxu0 0.0
    %8619 = vmatprep.subr.mxu0 0.0
    %8620 = vmatpush1.msra.mxu0 0.0
    %8621 = vmatprep.subr.mxu0 0.0
    %v8622 = vand.u32 %v49, 4294901760
    %8623 = vmatpush1.msra.mxu0 %v8622
    %8624 = vmatprep.subr.mxu0 0.0
    %v8625 = vand.u32 %v48, 4294901760
    %8626 = vmatpush1.msra.mxu0 %v8625
    %8627 = vmatprep.subr.mxu0 0.0
    %v8628 = vand.u32 %v47, 4294901760
    %8629 = vmatpush1.msra.mxu0 %v8628
    %8630 = vmatprep.subr.mxu0 0.0
    %v8631 = vand.u32 %v46, 4294901760
    %8632 = vmatpush1.msra.mxu0 %v8631
    %8633 = vmatprep.subr.mxu0 0.0
    %v8634 = vand.u32 %v45, 4294901760
    %8635 = vmatpush1.msra.mxu0 %v8634
    %8636 = vmatprep.subr.mxu0 0.0
    %v8637 = vand.u32 %v44, 4294901760
    %8638 = vmatpush1.msra.mxu0 %v8637
    %8639 = vmatprep.subr.mxu0 0.0
    %v8640 = vand.u32 %v43, 4294901760
    %8641 = vmatpush1.msra.mxu0 %v8640
    %8642 = vmatprep.subr.mxu0 0.0
    %v8643 = vand.u32 %v42, 4294901760
    %8644 = vmatpush1.msra.mxu0 %v8643
    %8645 = vmatprep.subr.mxu0 0.0
    %8646 = vmatpush2.msra.mxu0 0.0
    %8647 = vmatprep.subr.mxu0 0.0
    %8648 = vmatpush2.msra.mxu0 0.0
    %8649 = vmatprep.subr.mxu0 0.0
    %8650 = vmatpush2.msra.mxu0 0.0
    %8651 = vmatprep.subr.mxu0 0.0
    %8652 = vmatpush2.msra.mxu0 0.0
    %8653 = vmatprep.subr.mxu0 0.0
    %8654 = vmatpush2.msra.mxu0 0.0
    %8655 = vmatprep.subr.mxu0 0.0
    %8656 = vmatpush2.msra.mxu0 0.0
    %8657 = vmatprep.subr.mxu0 0.0
    %8658 = vmatpush2.msra.mxu0 0.0
    %8659 = vmatprep.subr.mxu0 0.0
    %8660 = vmatpush2.msra.mxu0 0.0
    %8661 = vmatprep.subr.mxu0 0.0
    %8662 = vmatpush2.msra.mxu0 0.0
    %8663 = vmatprep.subr.mxu0 0.0
    %8664 = vmatpush2.msra.mxu0 0.0
    %8665 = vmatprep.subr.mxu0 0.0
    %8666 = vmatpush2.msra.mxu0 0.0
    %8667 = vmatprep.subr.mxu0 0.0
    %8668 = vmatpush2.msra.mxu0 0.0
    %8669 = vmatprep.subr.mxu0 0.0
    %8670 = vmatpush2.msra.mxu0 0.0
    %8671 = vmatprep.subr.mxu0 0.0
    %8672 = vmatpush2.msra.mxu0 0.0
    %8673 = vmatprep.subr.mxu0 0.0
    %8674 = vmatpush2.msra.mxu0 0.0
    %8675 = vmatprep.subr.mxu0 0.0
    %8676 = vmatpush2.msra.mxu0 0.0
    %8677 = vmatprep.mubr.f32.mxu0 0.0
    %v8678 = vand.u32 %v8603, 4294901760
    %v8679 = vsub.f32 %v8603, %v8678
    %v8680 = vand.u32 %v8679, 4294901760
    %v8681 = vsub.f32 %v8679, %v8680
    %v8682 = vand.u32 %v8681, 4294901760
    %8683 = vmatmul.mubr.f32.gmra.mxu0 %v8682
    %v8684 = vpop.f32.mrf.mxu0
    %v8685 = vadd.f32 %v63, %v8684
    %v8686 = vpop.f32.mrf.mxu0
    %8687 = vdwg.mxu0
    %8688 = vmatprep.subr.mxu0 0.0
    %8689 = vmatpush1.msra.mxu0 0.0
    %8690 = vmatprep.subr.mxu0 0.0
    %8691 = vmatpush1.msra.mxu0 0.0
    %8692 = vmatprep.subr.mxu0 0.0
    %8693 = vmatpush1.msra.mxu0 0.0
    %8694 = vmatprep.subr.mxu0 0.0
    %8695 = vmatpush1.msra.mxu0 0.0
    %8696 = vmatprep.subr.mxu0 0.0
    %8697 = vmatpush1.msra.mxu0 0.0
    %8698 = vmatprep.subr.mxu0 0.0
    %8699 = vmatpush1.msra.mxu0 0.0
    %8700 = vmatprep.subr.mxu0 0.0
    %8701 = vmatpush1.msra.mxu0 0.0
    %8702 = vmatprep.subr.mxu0 0.0
    %8703 = vmatpush1.msra.mxu0 0.0
    %8704 = vmatprep.subr.mxu0 0.0
    %v8705 = vand.u32 %v49, 4294901760
    %v8706 = vsub.f32 %v49, %v8705
    %v8707 = vand.u32 %v8706, 4294901760
    %v8708 = vsub.f32 %v8706, %v8707
    %v8709 = vand.u32 %v8708, 4294901760
    %8710 = vmatpush1.msra.mxu0 %v8709
    %8711 = vmatprep.subr.mxu0 0.0
    %v8712 = vand.u32 %v48, 4294901760
    %v8713 = vsub.f32 %v48, %v8712
    %v8714 = vand.u32 %v8713, 4294901760
    %v8715 = vsub.f32 %v8713, %v8714
    %v8716 = vand.u32 %v8715, 4294901760
    %8717 = vmatpush1.msra.mxu0 %v8716
    %8718 = vmatprep.subr.mxu0 0.0
    %v8719 = vand.u32 %v47, 4294901760
    %v8720 = vsub.f32 %v47, %v8719
    %v8721 = vand.u32 %v8720, 4294901760
    %v8722 = vsub.f32 %v8720, %v8721
    %v8723 = vand.u32 %v8722, 4294901760
    %8724 = vmatpush1.msra.mxu0 %v8723
    %8725 = vmatprep.subr.mxu0 0.0
    %v8726 = vand.u32 %v46, 4294901760
    %v8727 = vsub.f32 %v46, %v8726
    %v8728 = vand.u32 %v8727, 4294901760
    %v8729 = vsub.f32 %v8727, %v8728
    %v8730 = vand.u32 %v8729, 4294901760
    %8731 = vmatpush1.msra.mxu0 %v8730
    %8732 = vmatprep.subr.mxu0 0.0
    %v8733 = vand.u32 %v45, 4294901760
    %v8734 = vsub.f32 %v45, %v8733
    %v8735 = vand.u32 %v8734, 4294901760
    %v8736 = vsub.f32 %v8734, %v8735
    %v8737 = vand.u32 %v8736, 4294901760
    %8738 = vmatpush1.msra.mxu0 %v8737
    %8739 = vmatprep.subr.mxu0 0.0
    %v8740 = vand.u32 %v44, 4294901760
    %v8741 = vsub.f32 %v44, %v8740
    %v8742 = vand.u32 %v8741, 4294901760
    %v8743 = vsub.f32 %v8741, %v8742
    %v8744 = vand.u32 %v8743, 4294901760
    %8745 = vmatpush1.msra.mxu0 %v8744
    %8746 = vmatprep.subr.mxu0 0.0
    %v8747 = vand.u32 %v43, 4294901760
    %v8748 = vsub.f32 %v43, %v8747
    %v8749 = vand.u32 %v8748, 4294901760
    %v8750 = vsub.f32 %v8748, %v8749
    %v8751 = vand.u32 %v8750, 4294901760
    %8752 = vmatpush1.msra.mxu0 %v8751
    %8753 = vmatprep.subr.mxu0 0.0
    %v8754 = vand.u32 %v42, 4294901760
    %v8755 = vsub.f32 %v42, %v8754
    %v8756 = vand.u32 %v8755, 4294901760
    %v8757 = vsub.f32 %v8755, %v8756
    %v8758 = vand.u32 %v8757, 4294901760
    %8759 = vmatpush1.msra.mxu0 %v8758
    %8760 = vmatprep.subr.mxu0 0.0
    %8761 = vmatpush2.msra.mxu0 0.0
    %8762 = vmatprep.subr.mxu0 0.0
    %8763 = vmatpush2.msra.mxu0 0.0
    %8764 = vmatprep.subr.mxu0 0.0
    %8765 = vmatpush2.msra.mxu0 0.0
    %8766 = vmatprep.subr.mxu0 0.0
    %8767 = vmatpush2.msra.mxu0 0.0
    %8768 = vmatprep.subr.mxu0 0.0
    %8769 = vmatpush2.msra.mxu0 0.0
    %8770 = vmatprep.subr.mxu0 0.0
    %8771 = vmatpush2.msra.mxu0 0.0
    %8772 = vmatprep.subr.mxu0 0.0
    %8773 = vmatpush2.msra.mxu0 0.0
    %8774 = vmatprep.subr.mxu0 0.0
    %8775 = vmatpush2.msra.mxu0 0.0
    %8776 = vmatprep.subr.mxu0 0.0
    %8777 = vmatpush2.msra.mxu0 0.0
    %8778 = vmatprep.subr.mxu0 0.0
    %8779 = vmatpush2.msra.mxu0 0.0
    %8780 = vmatprep.subr.mxu0 0.0
    %8781 = vmatpush2.msra.mxu0 0.0
    %8782 = vmatprep.subr.mxu0 0.0
    %8783 = vmatpush2.msra.mxu0 0.0
    %8784 = vmatprep.subr.mxu0 0.0
    %8785 = vmatpush2.msra.mxu0 0.0
    %8786 = vmatprep.subr.mxu0 0.0
    %8787 = vmatpush2.msra.mxu0 0.0
    %8788 = vmatprep.subr.mxu0 0.0
    %8789 = vmatpush2.msra.mxu0 0.0
    %8790 = vmatprep.subr.mxu0 0.0
    %8791 = vmatpush2.msra.mxu0 0.0
    %8792 = vmatprep.mubr.f32.mxu0 0.0
    %v8793 = vand.u32 %v8603, 4294901760
    %8794 = vmatmul.mubr.f32.gmra.mxu0 %v8793
    %v8795 = vpop.f32.mrf.mxu0
    %v8796 = vadd.f32 %v8685, %v8795
    %v8797 = vpop.f32.mrf.mxu0
    %8798 = vdwg.mxu0
    %8799 = vmatprep.subr.mxu0 0.0
    %8800 = vmatpush1.msra.mxu0 0.0
    %8801 = vmatprep.subr.mxu0 0.0
    %8802 = vmatpush1.msra.mxu0 0.0
    %8803 = vmatprep.subr.mxu0 0.0
    %8804 = vmatpush1.msra.mxu0 0.0
    %8805 = vmatprep.subr.mxu0 0.0
    %8806 = vmatpush1.msra.mxu0 0.0
    %8807 = vmatprep.subr.mxu0 0.0
    %8808 = vmatpush1.msra.mxu0 0.0
    %8809 = vmatprep.subr.mxu0 0.0
    %8810 = vmatpush1.msra.mxu0 0.0
    %8811 = vmatprep.subr.mxu0 0.0
    %8812 = vmatpush1.msra.mxu0 0.0
    %8813 = vmatprep.subr.mxu0 0.0
    %8814 = vmatpush1.msra.mxu0 0.0
    %8815 = vmatprep.subr.mxu0 0.0
    %v8816 = vand.u32 %v49, 4294901760
    %v8817 = vsub.f32 %v49, %v8816
    %8818 = vmatpush1.msra.mxu0 %v8817
    %8819 = vmatprep.subr.mxu0 0.0
    %v8820 = vand.u32 %v48, 4294901760
    %v8821 = vsub.f32 %v48, %v8820
    %8822 = vmatpush1.msra.mxu0 %v8821
    %8823 = vmatprep.subr.mxu0 0.0
    %v8824 = vand.u32 %v47, 4294901760
    %v8825 = vsub.f32 %v47, %v8824
    %8826 = vmatpush1.msra.mxu0 %v8825
    %8827 = vmatprep.subr.mxu0 0.0
    %v8828 = vand.u32 %v46, 4294901760
    %v8829 = vsub.f32 %v46, %v8828
    %8830 = vmatpush1.msra.mxu0 %v8829
    %8831 = vmatprep.subr.mxu0 0.0
    %v8832 = vand.u32 %v45, 4294901760
    %v8833 = vsub.f32 %v45, %v8832
    %8834 = vmatpush1.msra.mxu0 %v8833
    %8835 = vmatprep.subr.mxu0 0.0
    %v8836 = vand.u32 %v44, 4294901760
    %v8837 = vsub.f32 %v44, %v8836
    %8838 = vmatpush1.msra.mxu0 %v8837
    %8839 = vmatprep.subr.mxu0 0.0
    %v8840 = vand.u32 %v43, 4294901760
    %v8841 = vsub.f32 %v43, %v8840
    %8842 = vmatpush1.msra.mxu0 %v8841
    %8843 = vmatprep.subr.mxu0 0.0
    %v8844 = vand.u32 %v42, 4294901760
    %v8845 = vsub.f32 %v42, %v8844
    %8846 = vmatpush1.msra.mxu0 %v8845
    %8847 = vmatprep.subr.mxu0 0.0
    %8848 = vmatpush2.msra.mxu0 0.0
    %8849 = vmatprep.subr.mxu0 0.0
    %8850 = vmatpush2.msra.mxu0 0.0
    %8851 = vmatprep.subr.mxu0 0.0
    %8852 = vmatpush2.msra.mxu0 0.0
    %8853 = vmatprep.subr.mxu0 0.0
    %8854 = vmatpush2.msra.mxu0 0.0
    %8855 = vmatprep.subr.mxu0 0.0
    %8856 = vmatpush2.msra.mxu0 0.0
    %8857 = vmatprep.subr.mxu0 0.0
    %8858 = vmatpush2.msra.mxu0 0.0
    %8859 = vmatprep.subr.mxu0 0.0
    %8860 = vmatpush2.msra.mxu0 0.0
    %8861 = vmatprep.subr.mxu0 0.0
    %8862 = vmatpush2.msra.mxu0 0.0
    %8863 = vmatprep.subr.mxu0 0.0
    %8864 = vmatpush2.msra.mxu0 0.0
    %8865 = vmatprep.subr.mxu0 0.0
    %8866 = vmatpush2.msra.mxu0 0.0
    %8867 = vmatprep.subr.mxu0 0.0
    %8868 = vmatpush2.msra.mxu0 0.0
    %8869 = vmatprep.subr.mxu0 0.0
    %8870 = vmatpush2.msra.mxu0 0.0
    %8871 = vmatprep.subr.mxu0 0.0
    %8872 = vmatpush2.msra.mxu0 0.0
    %8873 = vmatprep.subr.mxu0 0.0
    %8874 = vmatpush2.msra.mxu0 0.0
    %8875 = vmatprep.subr.mxu0 0.0
    %8876 = vmatpush2.msra.mxu0 0.0
    %8877 = vmatprep.subr.mxu0 0.0
    %8878 = vmatpush2.msra.mxu0 0.0
    %8879 = vmatprep.mubr.f32.mxu0 0.0
    %v8880 = vand.u32 %v8603, 4294901760
    %v8881 = vsub.f32 %v8603, %v8880
    %8882 = vmatmul.mubr.f32.gmra.mxu0 %v8881
    %v8883 = vpop.f32.mrf.mxu0
    %v8884 = vadd.f32 %v8796, %v8883
    %v8885 = vpop.f32.mrf.mxu0
    %8886 = vdwg.mxu0
    %8887 = vmatprep.subr.mxu0 0.0
    %8888 = vmatpush1.msra.mxu0 0.0
    %8889 = vmatprep.subr.mxu0 0.0
    %8890 = vmatpush1.msra.mxu0 0.0
    %8891 = vmatprep.subr.mxu0 0.0
    %8892 = vmatpush1.msra.mxu0 0.0
    %8893 = vmatprep.subr.mxu0 0.0
    %8894 = vmatpush1.msra.mxu0 0.0
    %8895 = vmatprep.subr.mxu0 0.0
    %8896 = vmatpush1.msra.mxu0 0.0
    %8897 = vmatprep.subr.mxu0 0.0
    %8898 = vmatpush1.msra.mxu0 0.0
    %8899 = vmatprep.subr.mxu0 0.0
    %8900 = vmatpush1.msra.mxu0 0.0
    %8901 = vmatprep.subr.mxu0 0.0
    %8902 = vmatpush1.msra.mxu0 0.0
    %8903 = vmatprep.subr.mxu0 0.0
    %v8904 = vand.u32 %v49, 4294901760
    %8905 = vmatpush1.msra.mxu0 %v8904
    %8906 = vmatprep.subr.mxu0 0.0
    %v8907 = vand.u32 %v48, 4294901760
    %8908 = vmatpush1.msra.mxu0 %v8907
    %8909 = vmatprep.subr.mxu0 0.0
    %v8910 = vand.u32 %v47, 4294901760
    %8911 = vmatpush1.msra.mxu0 %v8910
    %8912 = vmatprep.subr.mxu0 0.0
    %v8913 = vand.u32 %v46, 4294901760
    %8914 = vmatpush1.msra.mxu0 %v8913
    %8915 = vmatprep.subr.mxu0 0.0
    %v8916 = vand.u32 %v45, 4294901760
    %8917 = vmatpush1.msra.mxu0 %v8916
    %8918 = vmatprep.subr.mxu0 0.0
    %v8919 = vand.u32 %v44, 4294901760
    %8920 = vmatpush1.msra.mxu0 %v8919
    %8921 = vmatprep.subr.mxu0 0.0
    %v8922 = vand.u32 %v43, 4294901760
    %8923 = vmatpush1.msra.mxu0 %v8922
    %8924 = vmatprep.subr.mxu0 0.0
    %v8925 = vand.u32 %v42, 4294901760
    %8926 = vmatpush1.msra.mxu0 %v8925
    %8927 = vmatprep.subr.mxu0 0.0
    %8928 = vmatpush2.msra.mxu0 0.0
    %8929 = vmatprep.subr.mxu0 0.0
    %8930 = vmatpush2.msra.mxu0 0.0
    %8931 = vmatprep.subr.mxu0 0.0
    %8932 = vmatpush2.msra.mxu0 0.0
    %8933 = vmatprep.subr.mxu0 0.0
    %8934 = vmatpush2.msra.mxu0 0.0
    %8935 = vmatprep.subr.mxu0 0.0
    %8936 = vmatpush2.msra.mxu0 0.0
    %8937 = vmatprep.subr.mxu0 0.0
    %8938 = vmatpush2.msra.mxu0 0.0
    %8939 = vmatprep.subr.mxu0 0.0
    %8940 = vmatpush2.msra.mxu0 0.0
    %8941 = vmatprep.subr.mxu0 0.0
    %8942 = vmatpush2.msra.mxu0 0.0
    %8943 = vmatprep.subr.mxu0 0.0
    %8944 = vmatpush2.msra.mxu0 0.0
    %8945 = vmatprep.subr.mxu0 0.0
    %8946 = vmatpush2.msra.mxu0 0.0
    %8947 = vmatprep.subr.mxu0 0.0
    %8948 = vmatpush2.msra.mxu0 0.0
    %8949 = vmatprep.subr.mxu0 0.0
    %8950 = vmatpush2.msra.mxu0 0.0
    %8951 = vmatprep.subr.mxu0 0.0
    %8952 = vmatpush2.msra.mxu0 0.0
    %8953 = vmatprep.subr.mxu0 0.0
    %8954 = vmatpush2.msra.mxu0 0.0
    %8955 = vmatprep.subr.mxu0 0.0
    %8956 = vmatpush2.msra.mxu0 0.0
    %8957 = vmatprep.subr.mxu0 0.0
    %8958 = vmatpush2.msra.mxu0 0.0
    %8959 = vmatprep.mubr.f32.mxu0 0.0
    %v8960 = vand.u32 %v8603, 4294901760
    %v8961 = vsub.f32 %v8603, %v8960
    %v8962 = vand.u32 %v8961, 4294901760
    %8963 = vmatmul.mubr.f32.gmra.mxu0 %v8962
    %v8964 = vpop.f32.mrf.mxu0
    %v8965 = vadd.f32 %v8884, %v8964
    %v8966 = vpop.f32.mrf.mxu0
    %8967 = vdwg.mxu0
    %8968 = vmatprep.subr.mxu0 0.0
    %8969 = vmatpush1.msra.mxu0 0.0
    %8970 = vmatprep.subr.mxu0 0.0
    %8971 = vmatpush1.msra.mxu0 0.0
    %8972 = vmatprep.subr.mxu0 0.0
    %8973 = vmatpush1.msra.mxu0 0.0
    %8974 = vmatprep.subr.mxu0 0.0
    %8975 = vmatpush1.msra.mxu0 0.0
    %8976 = vmatprep.subr.mxu0 0.0
    %8977 = vmatpush1.msra.mxu0 0.0
    %8978 = vmatprep.subr.mxu0 0.0
    %8979 = vmatpush1.msra.mxu0 0.0
    %8980 = vmatprep.subr.mxu0 0.0
    %8981 = vmatpush1.msra.mxu0 0.0
    %8982 = vmatprep.subr.mxu0 0.0
    %8983 = vmatpush1.msra.mxu0 0.0
    %8984 = vmatprep.subr.mxu0 0.0
    %v8985 = vand.u32 %v49, 4294901760
    %v8986 = vsub.f32 %v49, %v8985
    %v8987 = vand.u32 %v8986, 4294901760
    %8988 = vmatpush1.msra.mxu0 %v8987
    %8989 = vmatprep.subr.mxu0 0.0
    %v8990 = vand.u32 %v48, 4294901760
    %v8991 = vsub.f32 %v48, %v8990
    %v8992 = vand.u32 %v8991, 4294901760
    %8993 = vmatpush1.msra.mxu0 %v8992
    %8994 = vmatprep.subr.mxu0 0.0
    %v8995 = vand.u32 %v47, 4294901760
    %v8996 = vsub.f32 %v47, %v8995
    %v8997 = vand.u32 %v8996, 4294901760
    %8998 = vmatpush1.msra.mxu0 %v8997
    %8999 = vmatprep.subr.mxu0 0.0
    %v9000 = vand.u32 %v46, 4294901760
    %v9001 = vsub.f32 %v46, %v9000
    %v9002 = vand.u32 %v9001, 4294901760
    %9003 = vmatpush1.msra.mxu0 %v9002
    %9004 = vmatprep.subr.mxu0 0.0
    %v9005 = vand.u32 %v45, 4294901760
    %v9006 = vsub.f32 %v45, %v9005
    %v9007 = vand.u32 %v9006, 4294901760
    %9008 = vmatpush1.msra.mxu0 %v9007
    %9009 = vmatprep.subr.mxu0 0.0
    %v9010 = vand.u32 %v44, 4294901760
    %v9011 = vsub.f32 %v44, %v9010
    %v9012 = vand.u32 %v9011, 4294901760
    %9013 = vmatpush1.msra.mxu0 %v9012
    %9014 = vmatprep.subr.mxu0 0.0
    %v9015 = vand.u32 %v43, 4294901760
    %v9016 = vsub.f32 %v43, %v9015
    %v9017 = vand.u32 %v9016, 4294901760
    %9018 = vmatpush1.msra.mxu0 %v9017
    %9019 = vmatprep.subr.mxu0 0.0
    %v9020 = vand.u32 %v42, 4294901760
    %v9021 = vsub.f32 %v42, %v9020
    %v9022 = vand.u32 %v9021, 4294901760
    %9023 = vmatpush1.msra.mxu0 %v9022
    %9024 = vmatprep.subr.mxu0 0.0
    %9025 = vmatpush2.msra.mxu0 0.0
    %9026 = vmatprep.subr.mxu0 0.0
    %9027 = vmatpush2.msra.mxu0 0.0
    %9028 = vmatprep.subr.mxu0 0.0
    %9029 = vmatpush2.msra.mxu0 0.0
    %9030 = vmatprep.subr.mxu0 0.0
    %9031 = vmatpush2.msra.mxu0 0.0
    %9032 = vmatprep.subr.mxu0 0.0
    %9033 = vmatpush2.msra.mxu0 0.0
    %9034 = vmatprep.subr.mxu0 0.0
    %9035 = vmatpush2.msra.mxu0 0.0
    %9036 = vmatprep.subr.mxu0 0.0
    %9037 = vmatpush2.msra.mxu0 0.0
    %9038 = vmatprep.subr.mxu0 0.0
    %9039 = vmatpush2.msra.mxu0 0.0
    %9040 = vmatprep.subr.mxu0 0.0
    %9041 = vmatpush2.msra.mxu0 0.0
    %9042 = vmatprep.subr.mxu0 0.0
    %9043 = vmatpush2.msra.mxu0 0.0
    %9044 = vmatprep.subr.mxu0 0.0
    %9045 = vmatpush2.msra.mxu0 0.0
    %9046 = vmatprep.subr.mxu0 0.0
    %9047 = vmatpush2.msra.mxu0 0.0
    %9048 = vmatprep.subr.mxu0 0.0
    %9049 = vmatpush2.msra.mxu0 0.0
    %9050 = vmatprep.subr.mxu0 0.0
    %9051 = vmatpush2.msra.mxu0 0.0
    %9052 = vmatprep.subr.mxu0 0.0
    %9053 = vmatpush2.msra.mxu0 0.0
    %9054 = vmatprep.subr.mxu0 0.0
    %9055 = vmatpush2.msra.mxu0 0.0
    %9056 = vmatprep.mubr.f32.mxu0 0.0
    %v9057 = vand.u32 %v8603, 4294901760
    %9058 = vmatmul.mubr.f32.gmra.mxu0 %v9057
    %v9059 = vpop.f32.mrf.mxu0
    %v9060 = vadd.f32 %v8965, %v9059
    %v9061 = vpop.f32.mrf.mxu0
    %9062 = vdwg.mxu0
    %9063 = vmatprep.subr.mxu0 0.0
    %9064 = vmatpush1.msra.mxu0 0.0
    %9065 = vmatprep.subr.mxu0 0.0
    %9066 = vmatpush1.msra.mxu0 0.0
    %9067 = vmatprep.subr.mxu0 0.0
    %9068 = vmatpush1.msra.mxu0 0.0
    %9069 = vmatprep.subr.mxu0 0.0
    %9070 = vmatpush1.msra.mxu0 0.0
    %9071 = vmatprep.subr.mxu0 0.0
    %9072 = vmatpush1.msra.mxu0 0.0
    %9073 = vmatprep.subr.mxu0 0.0
    %9074 = vmatpush1.msra.mxu0 0.0
    %9075 = vmatprep.subr.mxu0 0.0
    %9076 = vmatpush1.msra.mxu0 0.0
    %9077 = vmatprep.subr.mxu0 0.0
    %9078 = vmatpush1.msra.mxu0 0.0
    %9079 = vmatprep.subr.mxu0 0.0
    %v9080 = vand.u32 %v49, 4294901760
    %9081 = vmatpush1.msra.mxu0 %v9080
    %9082 = vmatprep.subr.mxu0 0.0
    %v9083 = vand.u32 %v48, 4294901760
    %9084 = vmatpush1.msra.mxu0 %v9083
    %9085 = vmatprep.subr.mxu0 0.0
    %v9086 = vand.u32 %v47, 4294901760
    %9087 = vmatpush1.msra.mxu0 %v9086
    %9088 = vmatprep.subr.mxu0 0.0
    %v9089 = vand.u32 %v46, 4294901760
    %9090 = vmatpush1.msra.mxu0 %v9089
    %9091 = vmatprep.subr.mxu0 0.0
    %v9092 = vand.u32 %v45, 4294901760
    %9093 = vmatpush1.msra.mxu0 %v9092
    %9094 = vmatprep.subr.mxu0 0.0
    %v9095 = vand.u32 %v44, 4294901760
    %9096 = vmatpush1.msra.mxu0 %v9095
    %9097 = vmatprep.subr.mxu0 0.0
    %v9098 = vand.u32 %v43, 4294901760
    %9099 = vmatpush1.msra.mxu0 %v9098
    %9100 = vmatprep.subr.mxu0 0.0
    %v9101 = vand.u32 %v42, 4294901760
    %9102 = vmatpush1.msra.mxu0 %v9101
    %9103 = vmatprep.subr.mxu0 0.0
    %9104 = vmatpush2.msra.mxu0 0.0
    %9105 = vmatprep.subr.mxu0 0.0
    %9106 = vmatpush2.msra.mxu0 0.0
    %9107 = vmatprep.subr.mxu0 0.0
    %9108 = vmatpush2.msra.mxu0 0.0
    %9109 = vmatprep.subr.mxu0 0.0
    %9110 = vmatpush2.msra.mxu0 0.0
    %9111 = vmatprep.subr.mxu0 0.0
    %9112 = vmatpush2.msra.mxu0 0.0
    %9113 = vmatprep.subr.mxu0 0.0
    %9114 = vmatpush2.msra.mxu0 0.0
    %9115 = vmatprep.subr.mxu0 0.0
    %9116 = vmatpush2.msra.mxu0 0.0
    %9117 = vmatprep.subr.mxu0 0.0
    %9118 = vmatpush2.msra.mxu0 0.0
    %9119 = vmatprep.subr.mxu0 0.0
    %9120 = vmatpush2.msra.mxu0 0.0
    %9121 = vmatprep.subr.mxu0 0.0
    %9122 = vmatpush2.msra.mxu0 0.0
    %9123 = vmatprep.subr.mxu0 0.0
    %9124 = vmatpush2.msra.mxu0 0.0
    %9125 = vmatprep.subr.mxu0 0.0
    %9126 = vmatpush2.msra.mxu0 0.0
    %9127 = vmatprep.subr.mxu0 0.0
    %9128 = vmatpush2.msra.mxu0 0.0
    %9129 = vmatprep.subr.mxu0 0.0
    %9130 = vmatpush2.msra.mxu0 0.0
    %9131 = vmatprep.subr.mxu0 0.0
    %9132 = vmatpush2.msra.mxu0 0.0
    %9133 = vmatprep.subr.mxu0 0.0
    %9134 = vmatpush2.msra.mxu0 0.0
    %9135 = vmatprep.mubr.f32.mxu0 0.0
    %v9136 = vand.u32 %v8603, 4294901760
    %9137 = vmatmul.mubr.f32.gmra.mxu0 %v9136
    %v9138 = vpop.f32.mrf.mxu0
    %v9139 = vadd.f32 %v9060, %v9138
    %v9140 = vpop.f32.mrf.mxu0
    %9141 = vdwg.mxu0
    %v9142 = vtanh.pop %v9139
    %9143 = vst.msk [vmem:[#allocation3] sm:$0xff] %vm853, %v8596
    %9144 = vst.msk [vmem:[#allocation3 + $0x8] sm:$0xff] %vm853, %v9142
    %v9145 = vld [vmem:[%s6] sm:$0xff]
    %v9146 = vld [vmem:[%s6 + $0x8] sm:$0xff]
    %v9147 = vld [vmem:[%s6 + $0x10] sm:$0xff]
    %v9148 = vld [vmem:[%s6 + $0x18] sm:$0xff]
    %v9149 = vsel %vm853, %v1890, 0
    %v9151 = vsel %vm853, %v2926, 0
    %v9153 = vsel %vm853, %v3962, 0
    %v9155 = vsel %vm853, %v4998, 0
    %v9157 = vsel %vm853, %v6034, 0
    %v9159 = vsel %vm853, %v7070, 0
    %v9161 = vsel %vm853, %v8106, 0
    %v9164 = vsel %vm853, %v9142, 0
    %9166 = vmatprep.subr.mxu0 0.0
    %9167 = vmatpush1.msra.mxu0 0.0
    %9168 = vmatprep.subr.mxu0 0.0
    %9169 = vmatpush1.msra.mxu0 0.0
    %9170 = vmatprep.subr.mxu0 0.0
    %9171 = vmatpush1.msra.mxu0 0.0
    %9172 = vmatprep.subr.mxu0 0.0
    %9173 = vmatpush1.msra.mxu0 0.0
    %9174 = vmatprep.subr.mxu0 0.0
    %9175 = vmatpush1.msra.mxu0 0.0
    %9176 = vmatprep.subr.mxu0 0.0
    %9177 = vmatpush1.msra.mxu0 0.0
    %9178 = vmatprep.subr.mxu0 0.0
    %9179 = vmatpush1.msra.mxu0 0.0
    %9180 = vmatprep.subr.mxu0 0.0
    %9181 = vmatpush1.msra.mxu0 0.0
    %9182 = vmatprep.subr.mxu0 0.0
    %9183 = vmatpush1.msra.mxu0 0.0
    %9184 = vmatprep.subr.mxu0 0.0
    %9185 = vmatpush1.msra.mxu0 0.0
    %9186 = vmatprep.subr.mxu0 0.0
    %9187 = vmatpush1.msra.mxu0 0.0
    %9188 = vmatprep.subr.mxu0 0.0
    %9189 = vmatpush1.msra.mxu0 0.0
    %9190 = vmatprep.subr.mxu0 0.0
    %v9191 = vand.u32 %v9148, 4294901760
    %9192 = vmatpush1.msra.mxu0 %v9191
    %9193 = vmatprep.subr.mxu0 0.0
    %v9194 = vand.u32 %v9147, 4294901760
    %9195 = vmatpush1.msra.mxu0 %v9194
    %9196 = vmatprep.subr.mxu0 0.0
    %v9197 = vand.u32 %v9146, 4294901760
    %9198 = vmatpush1.msra.mxu0 %v9197
    %9199 = vmatprep.subr.mxu0 0.0
    %v9200 = vand.u32 %v9145, 4294901760
    %9201 = vmatpush1.msra.mxu0 %v9200
    %9202 = vmatprep.subr.mxu0 0.0
    %9203 = vmatpush2.msra.mxu0 0.0
    %9204 = vmatprep.subr.mxu0 0.0
    %9205 = vmatpush2.msra.mxu0 0.0
    %9206 = vmatprep.subr.mxu0 0.0
    %9207 = vmatpush2.msra.mxu0 0.0
    %9208 = vmatprep.subr.mxu0 0.0
    %9209 = vmatpush2.msra.mxu0 0.0
    %9210 = vmatprep.subr.mxu0 0.0
    %9211 = vmatpush2.msra.mxu0 0.0
    %9212 = vmatprep.subr.mxu0 0.0
    %9213 = vmatpush2.msra.mxu0 0.0
    %9214 = vmatprep.subr.mxu0 0.0
    %9215 = vmatpush2.msra.mxu0 0.0
    %9216 = vmatprep.subr.mxu0 0.0
    %9217 = vmatpush2.msra.mxu0 0.0
    %9218 = vmatprep.subr.mxu0 0.0
    %9219 = vmatpush2.msra.mxu0 0.0
    %9220 = vmatprep.subr.mxu0 0.0
    %9221 = vmatpush2.msra.mxu0 0.0
    %9222 = vmatprep.subr.mxu0 0.0
    %9223 = vmatpush2.msra.mxu0 0.0
    %9224 = vmatprep.subr.mxu0 0.0
    %9225 = vmatpush2.msra.mxu0 0.0
    %9226 = vmatprep.subr.mxu0 0.0
    %9227 = vmatpush2.msra.mxu0 0.0
    %9228 = vmatprep.subr.mxu0 0.0
    %9229 = vmatpush2.msra.mxu0 0.0
    %9230 = vmatprep.subr.mxu0 0.0
    %9231 = vmatpush2.msra.mxu0 0.0
    %9232 = vmatprep.subr.mxu0 0.0
    %9233 = vmatpush2.msra.mxu0 0.0
    %9234 = vmatprep.mubr.f32.mxu0 0.0
    %v9235 = vand.u32 %v9149, 4294901760
    %v9236 = vsub.f32 %v9149, %v9235
    %v9237 = vand.u32 %v9236, 4294901760
    %v9238 = vsub.f32 %v9236, %v9237
    %v9239 = vand.u32 %v9238, 4294901760
    %9240 = vmatmul.mubr.f32.gmra.mxu0 %v9239
    %v9241 = vpop.f32.mrf.mxu0
    %v9242 = vadd.f32 0.0, %v9241
    %v9243 = vpop.f32.mrf.mxu0
    %9244 = vmatprep.mubr.f32.mxu0 0.0
    %v9245 = vand.u32 %v9151, 4294901760
    %v9246 = vsub.f32 %v9151, %v9245
    %v9247 = vand.u32 %v9246, 4294901760
    %v9248 = vsub.f32 %v9246, %v9247
    %v9249 = vand.u32 %v9248, 4294901760
    %9250 = vmatmul.mubr.f32.gmra.mxu0 %v9249
    %v9251 = vpop.f32.mrf.mxu0
    %v9252 = vadd.f32 0.0, %v9251
    %v9253 = vpop.f32.mrf.mxu0
    %9254 = vmatprep.mubr.f32.mxu0 0.0
    %v9255 = vand.u32 %v9153, 4294901760
    %v9256 = vsub.f32 %v9153, %v9255
    %v9257 = vand.u32 %v9256, 4294901760
    %v9258 = vsub.f32 %v9256, %v9257
    %v9259 = vand.u32 %v9258, 4294901760
    %9260 = vmatmul.mubr.f32.gmra.mxu0 %v9259
    %v9261 = vpop.f32.mrf.mxu0
    %v9262 = vadd.f32 0.0, %v9261
    %v9263 = vpop.f32.mrf.mxu0
    %9264 = vmatprep.mubr.f32.mxu0 0.0
    %v9265 = vand.u32 %v9155, 4294901760
    %v9266 = vsub.f32 %v9155, %v9265
    %v9267 = vand.u32 %v9266, 4294901760
    %v9268 = vsub.f32 %v9266, %v9267
    %v9269 = vand.u32 %v9268, 4294901760
    %9270 = vmatmul.mubr.f32.gmra.mxu0 %v9269
    %v9271 = vpop.f32.mrf.mxu0
    %v9272 = vadd.f32 0.0, %v9271
    %v9273 = vpop.f32.mrf.mxu0
    %9274 = vmatprep.mubr.f32.mxu0 0.0
    %v9275 = vand.u32 %v9157, 4294901760
    %v9276 = vsub.f32 %v9157, %v9275
    %v9277 = vand.u32 %v9276, 4294901760
    %v9278 = vsub.f32 %v9276, %v9277
    %v9279 = vand.u32 %v9278, 4294901760
    %9280 = vmatmul.mubr.f32.gmra.mxu0 %v9279
    %v9281 = vpop.f32.mrf.mxu0
    %v9282 = vadd.f32 0.0, %v9281
    %v9283 = vpop.f32.mrf.mxu0
    %9284 = vmatprep.mubr.f32.mxu0 0.0
    %v9285 = vand.u32 %v9159, 4294901760
    %v9286 = vsub.f32 %v9159, %v9285
    %v9287 = vand.u32 %v9286, 4294901760
    %v9288 = vsub.f32 %v9286, %v9287
    %v9289 = vand.u32 %v9288, 4294901760
    %9290 = vmatmul.mubr.f32.gmra.mxu0 %v9289
    %v9291 = vpop.f32.mrf.mxu0
    %v9292 = vadd.f32 0.0, %v9291
    %v9293 = vpop.f32.mrf.mxu0
    %9294 = vmatprep.mubr.f32.mxu0 0.0
    %v9295 = vand.u32 %v9161, 4294901760
    %v9296 = vsub.f32 %v9161, %v9295
    %v9297 = vand.u32 %v9296, 4294901760
    %v9298 = vsub.f32 %v9296, %v9297
    %v9299 = vand.u32 %v9298, 4294901760
    %9300 = vmatmul.mubr.f32.gmra.mxu0 %v9299
    %v9301 = vpop.f32.mrf.mxu0
    %v9302 = vadd.f32 0.0, %v9301
    %v9303 = vpop.f32.mrf.mxu0
    %9304 = vmatprep.mubr.f32.mxu0 0.0
    %v9305 = vand.u32 %v9164, 4294901760
    %v9306 = vsub.f32 %v9164, %v9305
    %v9307 = vand.u32 %v9306, 4294901760
    %v9308 = vsub.f32 %v9306, %v9307
    %v9309 = vand.u32 %v9308, 4294901760
    %9310 = vmatmul.mubr.f32.gmra.mxu0 %v9309
    %v9311 = vpop.f32.mrf.mxu0
    %v9312 = vadd.f32 0.0, %v9311
    %v9313 = vpop.f32.mrf.mxu0
    %9314 = vdwg.mxu0
    %9315 = vmatprep.subr.mxu0 0.0
    %9316 = vmatpush1.msra.mxu0 0.0
    %9317 = vmatprep.subr.mxu0 0.0
    %9318 = vmatpush1.msra.mxu0 0.0
    %9319 = vmatprep.subr.mxu0 0.0
    %9320 = vmatpush1.msra.mxu0 0.0
    %9321 = vmatprep.subr.mxu0 0.0
    %9322 = vmatpush1.msra.mxu0 0.0
    %9323 = vmatprep.subr.mxu0 0.0
    %9324 = vmatpush1.msra.mxu0 0.0
    %9325 = vmatprep.subr.mxu0 0.0
    %9326 = vmatpush1.msra.mxu0 0.0
    %9327 = vmatprep.subr.mxu0 0.0
    %9328 = vmatpush1.msra.mxu0 0.0
    %9329 = vmatprep.subr.mxu0 0.0
    %9330 = vmatpush1.msra.mxu0 0.0
    %9331 = vmatprep.subr.mxu0 0.0
    %9332 = vmatpush1.msra.mxu0 0.0
    %9333 = vmatprep.subr.mxu0 0.0
    %9334 = vmatpush1.msra.mxu0 0.0
    %9335 = vmatprep.subr.mxu0 0.0
    %9336 = vmatpush1.msra.mxu0 0.0
    %9337 = vmatprep.subr.mxu0 0.0
    %9338 = vmatpush1.msra.mxu0 0.0
    %9339 = vmatprep.subr.mxu0 0.0
    %v9340 = vand.u32 %v9148, 4294901760
    %v9341 = vsub.f32 %v9148, %v9340
    %v9342 = vand.u32 %v9341, 4294901760
    %v9343 = vsub.f32 %v9341, %v9342
    %v9344 = vand.u32 %v9343, 4294901760
    %9345 = vmatpush1.msra.mxu0 %v9344
    %9346 = vmatprep.subr.mxu0 0.0
    %v9347 = vand.u32 %v9147, 4294901760
    %v9348 = vsub.f32 %v9147, %v9347
    %v9349 = vand.u32 %v9348, 4294901760
    %v9350 = vsub.f32 %v9348, %v9349
    %v9351 = vand.u32 %v9350, 4294901760
    %9352 = vmatpush1.msra.mxu0 %v9351
    %9353 = vmatprep.subr.mxu0 0.0
    %v9354 = vand.u32 %v9146, 4294901760
    %v9355 = vsub.f32 %v9146, %v9354
    %v9356 = vand.u32 %v9355, 4294901760
    %v9357 = vsub.f32 %v9355, %v9356
    %v9358 = vand.u32 %v9357, 4294901760
    %9359 = vmatpush1.msra.mxu0 %v9358
    %9360 = vmatprep.subr.mxu0 0.0
    %v9361 = vand.u32 %v9145, 4294901760
    %v9362 = vsub.f32 %v9145, %v9361
    %v9363 = vand.u32 %v9362, 4294901760
    %v9364 = vsub.f32 %v9362, %v9363
    %v9365 = vand.u32 %v9364, 4294901760
    %9366 = vmatpush1.msra.mxu0 %v9365
    %9367 = vmatprep.subr.mxu0 0.0
    %9368 = vmatpush2.msra.mxu0 0.0
    %9369 = vmatprep.subr.mxu0 0.0
    %9370 = vmatpush2.msra.mxu0 0.0
    %9371 = vmatprep.subr.mxu0 0.0
    %9372 = vmatpush2.msra.mxu0 0.0
    %9373 = vmatprep.subr.mxu0 0.0
    %9374 = vmatpush2.msra.mxu0 0.0
    %9375 = vmatprep.subr.mxu0 0.0
    %9376 = vmatpush2.msra.mxu0 0.0
    %9377 = vmatprep.subr.mxu0 0.0
    %9378 = vmatpush2.msra.mxu0 0.0
    %9379 = vmatprep.subr.mxu0 0.0
    %9380 = vmatpush2.msra.mxu0 0.0
    %9381 = vmatprep.subr.mxu0 0.0
    %9382 = vmatpush2.msra.mxu0 0.0
    %9383 = vmatprep.subr.mxu0 0.0
    %9384 = vmatpush2.msra.mxu0 0.0
    %9385 = vmatprep.subr.mxu0 0.0
    %9386 = vmatpush2.msra.mxu0 0.0
    %9387 = vmatprep.subr.mxu0 0.0
    %9388 = vmatpush2.msra.mxu0 0.0
    %9389 = vmatprep.subr.mxu0 0.0
    %9390 = vmatpush2.msra.mxu0 0.0
    %9391 = vmatprep.subr.mxu0 0.0
    %9392 = vmatpush2.msra.mxu0 0.0
    %9393 = vmatprep.subr.mxu0 0.0
    %9394 = vmatpush2.msra.mxu0 0.0
    %9395 = vmatprep.subr.mxu0 0.0
    %9396 = vmatpush2.msra.mxu0 0.0
    %9397 = vmatprep.subr.mxu0 0.0
    %9398 = vmatpush2.msra.mxu0 0.0
    %9399 = vmatprep.mubr.f32.mxu0 0.0
    %v9400 = vand.u32 %v9149, 4294901760
    %9401 = vmatmul.mubr.f32.gmra.mxu0 %v9400
    %v9402 = vpop.f32.mrf.mxu0
    %v9403 = vadd.f32 %v9242, %v9402
    %v9404 = vpop.f32.mrf.mxu0
    %9405 = vmatprep.mubr.f32.mxu0 0.0
    %v9406 = vand.u32 %v9151, 4294901760
    %9407 = vmatmul.mubr.f32.gmra.mxu0 %v9406
    %v9408 = vpop.f32.mrf.mxu0
    %v9409 = vadd.f32 %v9252, %v9408
    %v9410 = vpop.f32.mrf.mxu0
    %9411 = vmatprep.mubr.f32.mxu0 0.0
    %v9412 = vand.u32 %v9153, 4294901760
    %9413 = vmatmul.mubr.f32.gmra.mxu0 %v9412
    %v9414 = vpop.f32.mrf.mxu0
    %v9415 = vadd.f32 %v9262, %v9414
    %v9416 = vpop.f32.mrf.mxu0
    %9417 = vmatprep.mubr.f32.mxu0 0.0
    %v9418 = vand.u32 %v9155, 4294901760
    %9419 = vmatmul.mubr.f32.gmra.mxu0 %v9418
    %v9420 = vpop.f32.mrf.mxu0
    %v9421 = vadd.f32 %v9272, %v9420
    %v9422 = vpop.f32.mrf.mxu0
    %9423 = vmatprep.mubr.f32.mxu0 0.0
    %v9424 = vand.u32 %v9157, 4294901760
    %9425 = vmatmul.mubr.f32.gmra.mxu0 %v9424
    %v9426 = vpop.f32.mrf.mxu0
    %v9427 = vadd.f32 %v9282, %v9426
    %v9428 = vpop.f32.mrf.mxu0
    %9429 = vmatprep.mubr.f32.mxu0 0.0
    %v9430 = vand.u32 %v9159, 4294901760
    %9431 = vmatmul.mubr.f32.gmra.mxu0 %v9430
    %v9432 = vpop.f32.mrf.mxu0
    %v9433 = vadd.f32 %v9292, %v9432
    %v9434 = vpop.f32.mrf.mxu0
    %9435 = vmatprep.mubr.f32.mxu0 0.0
    %v9436 = vand.u32 %v9161, 4294901760
    %9437 = vmatmul.mubr.f32.gmra.mxu0 %v9436
    %v9438 = vpop.f32.mrf.mxu0
    %v9439 = vadd.f32 %v9302, %v9438
    %v9440 = vpop.f32.mrf.mxu0
    %9441 = vmatprep.mubr.f32.mxu0 0.0
    %v9442 = vand.u32 %v9164, 4294901760
    %9443 = vmatmul.mubr.f32.gmra.mxu0 %v9442
    %v9444 = vpop.f32.mrf.mxu0
    %v9445 = vadd.f32 %v9312, %v9444
    %v9446 = vpop.f32.mrf.mxu0
    %9447 = vdwg.mxu0
    %9448 = vmatprep.subr.mxu0 0.0
    %9449 = vmatpush1.msra.mxu0 0.0
    %9450 = vmatprep.subr.mxu0 0.0
    %9451 = vmatpush1.msra.mxu0 0.0
    %9452 = vmatprep.subr.mxu0 0.0
    %9453 = vmatpush1.msra.mxu0 0.0
    %9454 = vmatprep.subr.mxu0 0.0
    %9455 = vmatpush1.msra.mxu0 0.0
    %9456 = vmatprep.subr.mxu0 0.0
    %9457 = vmatpush1.msra.mxu0 0.0
    %9458 = vmatprep.subr.mxu0 0.0
    %9459 = vmatpush1.msra.mxu0 0.0
    %9460 = vmatprep.subr.mxu0 0.0
    %9461 = vmatpush1.msra.mxu0 0.0
    %9462 = vmatprep.subr.mxu0 0.0
    %9463 = vmatpush1.msra.mxu0 0.0
    %9464 = vmatprep.subr.mxu0 0.0
    %9465 = vmatpush1.msra.mxu0 0.0
    %9466 = vmatprep.subr.mxu0 0.0
    %9467 = vmatpush1.msra.mxu0 0.0
    %9468 = vmatprep.subr.mxu0 0.0
    %9469 = vmatpush1.msra.mxu0 0.0
    %9470 = vmatprep.subr.mxu0 0.0
    %9471 = vmatpush1.msra.mxu0 0.0
    %9472 = vmatprep.subr.mxu0 0.0
    %v9473 = vand.u32 %v9148, 4294901760
    %v9474 = vsub.f32 %v9148, %v9473
    %9475 = vmatpush1.msra.mxu0 %v9474
    %9476 = vmatprep.subr.mxu0 0.0
    %v9477 = vand.u32 %v9147, 4294901760
    %v9478 = vsub.f32 %v9147, %v9477
    %9479 = vmatpush1.msra.mxu0 %v9478
    %9480 = vmatprep.subr.mxu0 0.0
    %v9481 = vand.u32 %v9146, 4294901760
    %v9482 = vsub.f32 %v9146, %v9481
    %9483 = vmatpush1.msra.mxu0 %v9482
    %9484 = vmatprep.subr.mxu0 0.0
    %v9485 = vand.u32 %v9145, 4294901760
    %v9486 = vsub.f32 %v9145, %v9485
    %9487 = vmatpush1.msra.mxu0 %v9486
    %9488 = vmatprep.subr.mxu0 0.0
    %9489 = vmatpush2.msra.mxu0 0.0
    %9490 = vmatprep.subr.mxu0 0.0
    %9491 = vmatpush2.msra.mxu0 0.0
    %9492 = vmatprep.subr.mxu0 0.0
    %9493 = vmatpush2.msra.mxu0 0.0
    %9494 = vmatprep.subr.mxu0 0.0
    %9495 = vmatpush2.msra.mxu0 0.0
    %9496 = vmatprep.subr.mxu0 0.0
    %9497 = vmatpush2.msra.mxu0 0.0
    %9498 = vmatprep.subr.mxu0 0.0
    %9499 = vmatpush2.msra.mxu0 0.0
    %9500 = vmatprep.subr.mxu0 0.0
    %9501 = vmatpush2.msra.mxu0 0.0
    %9502 = vmatprep.subr.mxu0 0.0
    %9503 = vmatpush2.msra.mxu0 0.0
    %9504 = vmatprep.subr.mxu0 0.0
    %9505 = vmatpush2.msra.mxu0 0.0
    %9506 = vmatprep.subr.mxu0 0.0
    %9507 = vmatpush2.msra.mxu0 0.0
    %9508 = vmatprep.subr.mxu0 0.0
    %9509 = vmatpush2.msra.mxu0 0.0
    %9510 = vmatprep.subr.mxu0 0.0
    %9511 = vmatpush2.msra.mxu0 0.0
    %9512 = vmatprep.subr.mxu0 0.0
    %9513 = vmatpush2.msra.mxu0 0.0
    %9514 = vmatprep.subr.mxu0 0.0
    %9515 = vmatpush2.msra.mxu0 0.0
    %9516 = vmatprep.subr.mxu0 0.0
    %9517 = vmatpush2.msra.mxu0 0.0
    %9518 = vmatprep.subr.mxu0 0.0
    %9519 = vmatpush2.msra.mxu0 0.0
    %9520 = vmatprep.mubr.f32.mxu0 0.0
    %v9521 = vand.u32 %v9149, 4294901760
    %v9522 = vsub.f32 %v9149, %v9521
    %9523 = vmatmul.mubr.f32.gmra.mxu0 %v9522
    %v9524 = vpop.f32.mrf.mxu0
    %v9525 = vadd.f32 %v9403, %v9524
    %v9526 = vpop.f32.mrf.mxu0
    %9527 = vmatprep.mubr.f32.mxu0 0.0
    %v9528 = vand.u32 %v9151, 4294901760
    %v9529 = vsub.f32 %v9151, %v9528
    %9530 = vmatmul.mubr.f32.gmra.mxu0 %v9529
    %v9531 = vpop.f32.mrf.mxu0
    %v9532 = vadd.f32 %v9409, %v9531
    %v9533 = vpop.f32.mrf.mxu0
    %9534 = vmatprep.mubr.f32.mxu0 0.0
    %v9535 = vand.u32 %v9153, 4294901760
    %v9536 = vsub.f32 %v9153, %v9535
    %9537 = vmatmul.mubr.f32.gmra.mxu0 %v9536
    %v9538 = vpop.f32.mrf.mxu0
    %v9539 = vadd.f32 %v9415, %v9538
    %v9540 = vpop.f32.mrf.mxu0
    %9541 = vmatprep.mubr.f32.mxu0 0.0
    %v9542 = vand.u32 %v9155, 4294901760
    %v9543 = vsub.f32 %v9155, %v9542
    %9544 = vmatmul.mubr.f32.gmra.mxu0 %v9543
    %v9545 = vpop.f32.mrf.mxu0
    %v9546 = vadd.f32 %v9421, %v9545
    %v9547 = vpop.f32.mrf.mxu0
    %9548 = vmatprep.mubr.f32.mxu0 0.0
    %v9549 = vand.u32 %v9157, 4294901760
    %v9550 = vsub.f32 %v9157, %v9549
    %9551 = vmatmul.mubr.f32.gmra.mxu0 %v9550
    %v9552 = vpop.f32.mrf.mxu0
    %v9553 = vadd.f32 %v9427, %v9552
    %v9554 = vpop.f32.mrf.mxu0
    %9555 = vmatprep.mubr.f32.mxu0 0.0
    %v9556 = vand.u32 %v9159, 4294901760
    %v9557 = vsub.f32 %v9159, %v9556
    %9558 = vmatmul.mubr.f32.gmra.mxu0 %v9557
    %v9559 = vpop.f32.mrf.mxu0
    %v9560 = vadd.f32 %v9433, %v9559
    %v9561 = vpop.f32.mrf.mxu0
    %9562 = vmatprep.mubr.f32.mxu0 0.0
    %v9563 = vand.u32 %v9161, 4294901760
    %v9564 = vsub.f32 %v9161, %v9563
    %9565 = vmatmul.mubr.f32.gmra.mxu0 %v9564
    %v9566 = vpop.f32.mrf.mxu0
    %v9567 = vadd.f32 %v9439, %v9566
    %v9568 = vpop.f32.mrf.mxu0
    %9569 = vmatprep.mubr.f32.mxu0 0.0
    %v9570 = vand.u32 %v9164, 4294901760
    %v9571 = vsub.f32 %v9164, %v9570
    %9572 = vmatmul.mubr.f32.gmra.mxu0 %v9571
    %v9573 = vpop.f32.mrf.mxu0
    %v9574 = vadd.f32 %v9445, %v9573
    %v9575 = vpop.f32.mrf.mxu0
    %9576 = vdwg.mxu0
    %9577 = vmatprep.subr.mxu0 0.0
    %9578 = vmatpush1.msra.mxu0 0.0
    %9579 = vmatprep.subr.mxu0 0.0
    %9580 = vmatpush1.msra.mxu0 0.0
    %9581 = vmatprep.subr.mxu0 0.0
    %9582 = vmatpush1.msra.mxu0 0.0
    %9583 = vmatprep.subr.mxu0 0.0
    %9584 = vmatpush1.msra.mxu0 0.0
    %9585 = vmatprep.subr.mxu0 0.0
    %9586 = vmatpush1.msra.mxu0 0.0
    %9587 = vmatprep.subr.mxu0 0.0
    %9588 = vmatpush1.msra.mxu0 0.0
    %9589 = vmatprep.subr.mxu0 0.0
    %9590 = vmatpush1.msra.mxu0 0.0
    %9591 = vmatprep.subr.mxu0 0.0
    %9592 = vmatpush1.msra.mxu0 0.0
    %9593 = vmatprep.subr.mxu0 0.0
    %9594 = vmatpush1.msra.mxu0 0.0
    %9595 = vmatprep.subr.mxu0 0.0
    %9596 = vmatpush1.msra.mxu0 0.0
    %9597 = vmatprep.subr.mxu0 0.0
    %9598 = vmatpush1.msra.mxu0 0.0
    %9599 = vmatprep.subr.mxu0 0.0
    %9600 = vmatpush1.msra.mxu0 0.0
    %9601 = vmatprep.subr.mxu0 0.0
    %v9602 = vand.u32 %v9148, 4294901760
    %9603 = vmatpush1.msra.mxu0 %v9602
    %9604 = vmatprep.subr.mxu0 0.0
    %v9605 = vand.u32 %v9147, 4294901760
    %9606 = vmatpush1.msra.mxu0 %v9605
    %9607 = vmatprep.subr.mxu0 0.0
    %v9608 = vand.u32 %v9146, 4294901760
    %9609 = vmatpush1.msra.mxu0 %v9608
    %9610 = vmatprep.subr.mxu0 0.0
    %v9611 = vand.u32 %v9145, 4294901760
    %9612 = vmatpush1.msra.mxu0 %v9611
    %9613 = vmatprep.subr.mxu0 0.0
    %9614 = vmatpush2.msra.mxu0 0.0
    %9615 = vmatprep.subr.mxu0 0.0
    %9616 = vmatpush2.msra.mxu0 0.0
    %9617 = vmatprep.subr.mxu0 0.0
    %9618 = vmatpush2.msra.mxu0 0.0
    %9619 = vmatprep.subr.mxu0 0.0
    %9620 = vmatpush2.msra.mxu0 0.0
    %9621 = vmatprep.subr.mxu0 0.0
    %9622 = vmatpush2.msra.mxu0 0.0
    %9623 = vmatprep.subr.mxu0 0.0
    %9624 = vmatpush2.msra.mxu0 0.0
    %9625 = vmatprep.subr.mxu0 0.0
    %9626 = vmatpush2.msra.mxu0 0.0
    %9627 = vmatprep.subr.mxu0 0.0
    %9628 = vmatpush2.msra.mxu0 0.0
    %9629 = vmatprep.subr.mxu0 0.0
    %9630 = vmatpush2.msra.mxu0 0.0
    %9631 = vmatprep.subr.mxu0 0.0
    %9632 = vmatpush2.msra.mxu0 0.0
    %9633 = vmatprep.subr.mxu0 0.0
    %9634 = vmatpush2.msra.mxu0 0.0
    %9635 = vmatprep.subr.mxu0 0.0
    %9636 = vmatpush2.msra.mxu0 0.0
    %9637 = vmatprep.subr.mxu0 0.0
    %9638 = vmatpush2.msra.mxu0 0.0
    %9639 = vmatprep.subr.mxu0 0.0
    %9640 = vmatpush2.msra.mxu0 0.0
    %9641 = vmatprep.subr.mxu0 0.0
    %9642 = vmatpush2.msra.mxu0 0.0
    %9643 = vmatprep.subr.mxu0 0.0
    %9644 = vmatpush2.msra.mxu0 0.0
    %9645 = vmatprep.mubr.f32.mxu0 0.0
    %v9646 = vand.u32 %v9149, 4294901760
    %v9647 = vsub.f32 %v9149, %v9646
    %v9648 = vand.u32 %v9647, 4294901760
    %9649 = vmatmul.mubr.f32.gmra.mxu0 %v9648
    %v9650 = vpop.f32.mrf.mxu0
    %v9651 = vadd.f32 %v9525, %v9650
    %v9652 = vpop.f32.mrf.mxu0
    %9653 = vmatprep.mubr.f32.mxu0 0.0
    %v9654 = vand.u32 %v9151, 4294901760
    %v9655 = vsub.f32 %v9151, %v9654
    %v9656 = vand.u32 %v9655, 4294901760
    %9657 = vmatmul.mubr.f32.gmra.mxu0 %v9656
    %v9658 = vpop.f32.mrf.mxu0
    %v9659 = vadd.f32 %v9532, %v9658
    %v9660 = vpop.f32.mrf.mxu0
    %9661 = vmatprep.mubr.f32.mxu0 0.0
    %v9662 = vand.u32 %v9153, 4294901760
    %v9663 = vsub.f32 %v9153, %v9662
    %v9664 = vand.u32 %v9663, 4294901760
    %9665 = vmatmul.mubr.f32.gmra.mxu0 %v9664
    %v9666 = vpop.f32.mrf.mxu0
    %v9667 = vadd.f32 %v9539, %v9666
    %v9668 = vpop.f32.mrf.mxu0
    %9669 = vmatprep.mubr.f32.mxu0 0.0
    %v9670 = vand.u32 %v9155, 4294901760
    %v9671 = vsub.f32 %v9155, %v9670
    %v9672 = vand.u32 %v9671, 4294901760
    %9673 = vmatmul.mubr.f32.gmra.mxu0 %v9672
    %v9674 = vpop.f32.mrf.mxu0
    %v9675 = vadd.f32 %v9546, %v9674
    %v9676 = vpop.f32.mrf.mxu0
    %9677 = vmatprep.mubr.f32.mxu0 0.0
    %v9678 = vand.u32 %v9157, 4294901760
    %v9679 = vsub.f32 %v9157, %v9678
    %v9680 = vand.u32 %v9679, 4294901760
    %9681 = vmatmul.mubr.f32.gmra.mxu0 %v9680
    %v9682 = vpop.f32.mrf.mxu0
    %v9683 = vadd.f32 %v9553, %v9682
    %v9684 = vpop.f32.mrf.mxu0
    %9685 = vmatprep.mubr.f32.mxu0 0.0
    %v9686 = vand.u32 %v9159, 4294901760
    %v9687 = vsub.f32 %v9159, %v9686
    %v9688 = vand.u32 %v9687, 4294901760
    %9689 = vmatmul.mubr.f32.gmra.mxu0 %v9688
    %v9690 = vpop.f32.mrf.mxu0
    %v9691 = vadd.f32 %v9560, %v9690
    %v9692 = vpop.f32.mrf.mxu0
    %9693 = vmatprep.mubr.f32.mxu0 0.0
    %v9694 = vand.u32 %v9161, 4294901760
    %v9695 = vsub.f32 %v9161, %v9694
    %v9696 = vand.u32 %v9695, 4294901760
    %9697 = vmatmul.mubr.f32.gmra.mxu0 %v9696
    %v9698 = vpop.f32.mrf.mxu0
    %v9699 = vadd.f32 %v9567, %v9698
    %v9700 = vpop.f32.mrf.mxu0
    %9701 = vmatprep.mubr.f32.mxu0 0.0
    %v9702 = vand.u32 %v9164, 4294901760
    %v9703 = vsub.f32 %v9164, %v9702
    %v9704 = vand.u32 %v9703, 4294901760
    %9705 = vmatmul.mubr.f32.gmra.mxu0 %v9704
    %v9706 = vpop.f32.mrf.mxu0
    %v9707 = vadd.f32 %v9574, %v9706
    %v9708 = vpop.f32.mrf.mxu0
    %9709 = vdwg.mxu0
    %9710 = vmatprep.subr.mxu0 0.0
    %9711 = vmatpush1.msra.mxu0 0.0
    %9712 = vmatprep.subr.mxu0 0.0
    %9713 = vmatpush1.msra.mxu0 0.0
    %9714 = vmatprep.subr.mxu0 0.0
    %9715 = vmatpush1.msra.mxu0 0.0
    %9716 = vmatprep.subr.mxu0 0.0
    %9717 = vmatpush1.msra.mxu0 0.0
    %9718 = vmatprep.subr.mxu0 0.0
    %9719 = vmatpush1.msra.mxu0 0.0
    %9720 = vmatprep.subr.mxu0 0.0
    %9721 = vmatpush1.msra.mxu0 0.0
    %9722 = vmatprep.subr.mxu0 0.0
    %9723 = vmatpush1.msra.mxu0 0.0
    %9724 = vmatprep.subr.mxu0 0.0
    %9725 = vmatpush1.msra.mxu0 0.0
    %9726 = vmatprep.subr.mxu0 0.0
    %9727 = vmatpush1.msra.mxu0 0.0
    %9728 = vmatprep.subr.mxu0 0.0
    %9729 = vmatpush1.msra.mxu0 0.0
    %9730 = vmatprep.subr.mxu0 0.0
    %9731 = vmatpush1.msra.mxu0 0.0
    %9732 = vmatprep.subr.mxu0 0.0
    %9733 = vmatpush1.msra.mxu0 0.0
    %9734 = vmatprep.subr.mxu0 0.0
    %v9735 = vand.u32 %v9148, 4294901760
    %v9736 = vsub.f32 %v9148, %v9735
    %v9737 = vand.u32 %v9736, 4294901760
    %9738 = vmatpush1.msra.mxu0 %v9737
    %9739 = vmatprep.subr.mxu0 0.0
    %v9740 = vand.u32 %v9147, 4294901760
    %v9741 = vsub.f32 %v9147, %v9740
    %v9742 = vand.u32 %v9741, 4294901760
    %9743 = vmatpush1.msra.mxu0 %v9742
    %9744 = vmatprep.subr.mxu0 0.0
    %v9745 = vand.u32 %v9146, 4294901760
    %v9746 = vsub.f32 %v9146, %v9745
    %v9747 = vand.u32 %v9746, 4294901760
    %9748 = vmatpush1.msra.mxu0 %v9747
    %9749 = vmatprep.subr.mxu0 0.0
    %v9750 = vand.u32 %v9145, 4294901760
    %v9751 = vsub.f32 %v9145, %v9750
    %v9752 = vand.u32 %v9751, 4294901760
    %9753 = vmatpush1.msra.mxu0 %v9752
    %9754 = vmatprep.subr.mxu0 0.0
    %9755 = vmatpush2.msra.mxu0 0.0
    %9756 = vmatprep.subr.mxu0 0.0
    %9757 = vmatpush2.msra.mxu0 0.0
    %9758 = vmatprep.subr.mxu0 0.0
    %9759 = vmatpush2.msra.mxu0 0.0
    %9760 = vmatprep.subr.mxu0 0.0
    %9761 = vmatpush2.msra.mxu0 0.0
    %9762 = vmatprep.subr.mxu0 0.0
    %9763 = vmatpush2.msra.mxu0 0.0
    %9764 = vmatprep.subr.mxu0 0.0
    %9765 = vmatpush2.msra.mxu0 0.0
    %9766 = vmatprep.subr.mxu0 0.0
    %9767 = vmatpush2.msra.mxu0 0.0
    %9768 = vmatprep.subr.mxu0 0.0
    %9769 = vmatpush2.msra.mxu0 0.0
    %9770 = vmatprep.subr.mxu0 0.0
    %9771 = vmatpush2.msra.mxu0 0.0
    %9772 = vmatprep.subr.mxu0 0.0
    %9773 = vmatpush2.msra.mxu0 0.0
    %9774 = vmatprep.subr.mxu0 0.0
    %9775 = vmatpush2.msra.mxu0 0.0
    %9776 = vmatprep.subr.mxu0 0.0
    %9777 = vmatpush2.msra.mxu0 0.0
    %9778 = vmatprep.subr.mxu0 0.0
    %9779 = vmatpush2.msra.mxu0 0.0
    %9780 = vmatprep.subr.mxu0 0.0
    %9781 = vmatpush2.msra.mxu0 0.0
    %9782 = vmatprep.subr.mxu0 0.0
    %9783 = vmatpush2.msra.mxu0 0.0
    %9784 = vmatprep.subr.mxu0 0.0
    %9785 = vmatpush2.msra.mxu0 0.0
    %9786 = vmatprep.mubr.f32.mxu0 0.0
    %v9787 = vand.u32 %v9149, 4294901760
    %9788 = vmatmul.mubr.f32.gmra.mxu0 %v9787
    %v9789 = vpop.f32.mrf.mxu0
    %v9790 = vadd.f32 %v9651, %v9789
    %v9791 = vpop.f32.mrf.mxu0
    %9792 = vmatprep.mubr.f32.mxu0 0.0
    %v9793 = vand.u32 %v9151, 4294901760
    %9794 = vmatmul.mubr.f32.gmra.mxu0 %v9793
    %v9795 = vpop.f32.mrf.mxu0
    %v9796 = vadd.f32 %v9659, %v9795
    %v9797 = vpop.f32.mrf.mxu0
    %9798 = vmatprep.mubr.f32.mxu0 0.0
    %v9799 = vand.u32 %v9153, 4294901760
    %9800 = vmatmul.mubr.f32.gmra.mxu0 %v9799
    %v9801 = vpop.f32.mrf.mxu0
    %v9802 = vadd.f32 %v9667, %v9801
    %v9803 = vpop.f32.mrf.mxu0
    %9804 = vmatprep.mubr.f32.mxu0 0.0
    %v9805 = vand.u32 %v9155, 4294901760
    %9806 = vmatmul.mubr.f32.gmra.mxu0 %v9805
    %v9807 = vpop.f32.mrf.mxu0
    %v9808 = vadd.f32 %v9675, %v9807
    %v9809 = vpop.f32.mrf.mxu0
    %9810 = vmatprep.mubr.f32.mxu0 0.0
    %v9811 = vand.u32 %v9157, 4294901760
    %9812 = vmatmul.mubr.f32.gmra.mxu0 %v9811
    %v9813 = vpop.f32.mrf.mxu0
    %v9814 = vadd.f32 %v9683, %v9813
    %v9815 = vpop.f32.mrf.mxu0
    %9816 = vmatprep.mubr.f32.mxu0 0.0
    %v9817 = vand.u32 %v9159, 4294901760
    %9818 = vmatmul.mubr.f32.gmra.mxu0 %v9817
    %v9819 = vpop.f32.mrf.mxu0
    %v9820 = vadd.f32 %v9691, %v9819
    %v9821 = vpop.f32.mrf.mxu0
    %9822 = vmatprep.mubr.f32.mxu0 0.0
    %v9823 = vand.u32 %v9161, 4294901760
    %9824 = vmatmul.mubr.f32.gmra.mxu0 %v9823
    %v9825 = vpop.f32.mrf.mxu0
    %v9826 = vadd.f32 %v9699, %v9825
    %v9827 = vpop.f32.mrf.mxu0
    %9828 = vmatprep.mubr.f32.mxu0 0.0
    %v9829 = vand.u32 %v9164, 4294901760
    %9830 = vmatmul.mubr.f32.gmra.mxu0 %v9829
    %v9831 = vpop.f32.mrf.mxu0
    %v9832 = vadd.f32 %v9707, %v9831
    %v9833 = vpop.f32.mrf.mxu0
    %9834 = vdwg.mxu0
    %9835 = vmatprep.subr.mxu0 0.0
    %9836 = vmatpush1.msra.mxu0 0.0
    %9837 = vmatprep.subr.mxu0 0.0
    %9838 = vmatpush1.msra.mxu0 0.0
    %9839 = vmatprep.subr.mxu0 0.0
    %9840 = vmatpush1.msra.mxu0 0.0
    %9841 = vmatprep.subr.mxu0 0.0
    %9842 = vmatpush1.msra.mxu0 0.0
    %9843 = vmatprep.subr.mxu0 0.0
    %9844 = vmatpush1.msra.mxu0 0.0
    %9845 = vmatprep.subr.mxu0 0.0
    %9846 = vmatpush1.msra.mxu0 0.0
    %9847 = vmatprep.subr.mxu0 0.0
    %9848 = vmatpush1.msra.mxu0 0.0
    %9849 = vmatprep.subr.mxu0 0.0
    %9850 = vmatpush1.msra.mxu0 0.0
    %9851 = vmatprep.subr.mxu0 0.0
    %9852 = vmatpush1.msra.mxu0 0.0
    %9853 = vmatprep.subr.mxu0 0.0
    %9854 = vmatpush1.msra.mxu0 0.0
    %9855 = vmatprep.subr.mxu0 0.0
    %9856 = vmatpush1.msra.mxu0 0.0
    %9857 = vmatprep.subr.mxu0 0.0
    %9858 = vmatpush1.msra.mxu0 0.0
    %9859 = vmatprep.subr.mxu0 0.0
    %v9860 = vand.u32 %v9148, 4294901760
    %9861 = vmatpush1.msra.mxu0 %v9860
    %9862 = vmatprep.subr.mxu0 0.0
    %v9863 = vand.u32 %v9147, 4294901760
    %9864 = vmatpush1.msra.mxu0 %v9863
    %9865 = vmatprep.subr.mxu0 0.0
    %v9866 = vand.u32 %v9146, 4294901760
    %9867 = vmatpush1.msra.mxu0 %v9866
    %9868 = vmatprep.subr.mxu0 0.0
    %v9869 = vand.u32 %v9145, 4294901760
    %9870 = vmatpush1.msra.mxu0 %v9869
    %9871 = vmatprep.subr.mxu0 0.0
    %9872 = vmatpush2.msra.mxu0 0.0
    %9873 = vmatprep.subr.mxu0 0.0
    %9874 = vmatpush2.msra.mxu0 0.0
    %9875 = vmatprep.subr.mxu0 0.0
    %9876 = vmatpush2.msra.mxu0 0.0
    %9877 = vmatprep.subr.mxu0 0.0
    %9878 = vmatpush2.msra.mxu0 0.0
    %9879 = vmatprep.subr.mxu0 0.0
    %9880 = vmatpush2.msra.mxu0 0.0
    %9881 = vmatprep.subr.mxu0 0.0
    %9882 = vmatpush2.msra.mxu0 0.0
    %9883 = vmatprep.subr.mxu0 0.0
    %9884 = vmatpush2.msra.mxu0 0.0
    %9885 = vmatprep.subr.mxu0 0.0
    %9886 = vmatpush2.msra.mxu0 0.0
    %9887 = vmatprep.subr.mxu0 0.0
    %9888 = vmatpush2.msra.mxu0 0.0
    %9889 = vmatprep.subr.mxu0 0.0
    %9890 = vmatpush2.msra.mxu0 0.0
    %9891 = vmatprep.subr.mxu0 0.0
    %9892 = vmatpush2.msra.mxu0 0.0
    %9893 = vmatprep.subr.mxu0 0.0
    %9894 = vmatpush2.msra.mxu0 0.0
    %9895 = vmatprep.subr.mxu0 0.0
    %9896 = vmatpush2.msra.mxu0 0.0
    %9897 = vmatprep.subr.mxu0 0.0
    %9898 = vmatpush2.msra.mxu0 0.0
    %9899 = vmatprep.subr.mxu0 0.0
    %9900 = vmatpush2.msra.mxu0 0.0
    %9901 = vmatprep.subr.mxu0 0.0
    %9902 = vmatpush2.msra.mxu0 0.0
    %9903 = vmatprep.mubr.f32.mxu0 0.0
    %v9904 = vand.u32 %v9149, 4294901760
    %9905 = vmatmul.mubr.f32.gmra.mxu0 %v9904
    %v9906 = vpop.f32.mrf.mxu0
    %v9907 = vadd.f32 %v9790, %v9906
    %v9908 = vpop.f32.mrf.mxu0
    %9909 = vmatprep.mubr.f32.mxu0 0.0
    %v9910 = vand.u32 %v9151, 4294901760
    %9911 = vmatmul.mubr.f32.gmra.mxu0 %v9910
    %v9912 = vpop.f32.mrf.mxu0
    %v9913 = vadd.f32 %v9796, %v9912
    %v9914 = vpop.f32.mrf.mxu0
    %9915 = vmatprep.mubr.f32.mxu0 0.0
    %v9916 = vand.u32 %v9153, 4294901760
    %9917 = vmatmul.mubr.f32.gmra.mxu0 %v9916
    %v9918 = vpop.f32.mrf.mxu0
    %v9919 = vadd.f32 %v9802, %v9918
    %v9920 = vpop.f32.mrf.mxu0
    %9921 = vmatprep.mubr.f32.mxu0 0.0
    %v9922 = vand.u32 %v9155, 4294901760
    %9923 = vmatmul.mubr.f32.gmra.mxu0 %v9922
    %v9924 = vpop.f32.mrf.mxu0
    %v9925 = vadd.f32 %v9808, %v9924
    %v9926 = vpop.f32.mrf.mxu0
    %9927 = vmatprep.mubr.f32.mxu0 0.0
    %v9928 = vand.u32 %v9157, 4294901760
    %9929 = vmatmul.mubr.f32.gmra.mxu0 %v9928
    %v9930 = vpop.f32.mrf.mxu0
    %v9931 = vadd.f32 %v9814, %v9930
    %v9932 = vpop.f32.mrf.mxu0
    %9933 = vmatprep.mubr.f32.mxu0 0.0
    %v9934 = vand.u32 %v9159, 4294901760
    %9935 = vmatmul.mubr.f32.gmra.mxu0 %v9934
    %v9936 = vpop.f32.mrf.mxu0
    %v9937 = vadd.f32 %v9820, %v9936
    %v9938 = vpop.f32.mrf.mxu0
    %9939 = vmatprep.mubr.f32.mxu0 0.0
    %v9940 = vand.u32 %v9161, 4294901760
    %9941 = vmatmul.mubr.f32.gmra.mxu0 %v9940
    %v9942 = vpop.f32.mrf.mxu0
    %v9943 = vadd.f32 %v9826, %v9942
    %v9944 = vpop.f32.mrf.mxu0
    %9945 = vmatprep.mubr.f32.mxu0 0.0
    %v9946 = vand.u32 %v9164, 4294901760
    %9947 = vmatmul.mubr.f32.gmra.mxu0 %v9946
    %v9948 = vpop.f32.mrf.mxu0
    %v9949 = vadd.f32 %v9832, %v9948
    %v9950 = vpop.f32.mrf.mxu0
    %9951 = vdwg.mxu0
    %v9952 = vld [vmem:[%s7] sm:$0x1]
    %v9954 = vlaneseq
    %v9955 = vshrl.u32 %v9954, 7
    %v9956 = vsub.s32 0, %v9955
    %v9957 = vrot.slane %v9952, %v9956
    %v9959 = vadd.f32 %v9907, %v9957
    %v9960 = vadd.f32 %v9913, %v9957
    %v9961 = vadd.f32 %v9919, %v9957
    %v9962 = vadd.f32 %v9925, %v9957
    %v9963 = vadd.f32 %v9931, %v9957
    %v9964 = vadd.f32 %v9937, %v9957
    %v9965 = vadd.f32 %v9943, %v9957
    %v9966 = vadd.f32 %v9949, %v9957
    %v9967 = vstv %s36
    %v9968 = vmul.f32 %v9967, %v9959
    %v9969 = vmul.f32 %v9967, %v9960
    %v9970 = vmul.f32 %v9967, %v9961
    %v9971 = vmul.f32 %v9967, %v9962
    %v9972 = vmul.f32 %v9967, %v9963
    %v9973 = vmul.f32 %v9967, %v9964
    %v9974 = vmul.f32 %v9967, %v9965
    %v9975 = vmul.f32 %v9967, %v9966
    %v9976 = vstv %s37
    %v9977 = vmul.f32 %v9976, %v65
    %v9978 = vmul.f32 %v9976, %v66
    %v9979 = vmul.f32 %v9976, %v67
    %v9980 = vmul.f32 %v9976, %v68
    %v9981 = vmul.f32 %v9976, %v69
    %v9982 = vmul.f32 %v9976, %v70
    %v9983 = vmul.f32 %v9976, %v71
    %v9984 = vmul.f32 %v9976, %v72
    %v9985 = vadd.f32 %v9968, %v9977
    %v9986 = vadd.f32 %v9969, %v9978
    %v9987 = vadd.f32 %v9970, %v9979
    %v9988 = vadd.f32 %v9971, %v9980
    %v9989 = vadd.f32 %v9972, %v9981
    %v9990 = vadd.f32 %v9973, %v9982
    %v9991 = vadd.f32 %v9974, %v9983
    %v9992 = vadd.f32 %v9975, %v9984
    %9993 = vst.msk [vmem:[%s9] sm:$0xff] %vm74, %v9985
    %9994 = vst.msk [vmem:[%s9 + $0x8] sm:$0xff] %vm74, %v9986
    %9995 = vst.msk [vmem:[%s9 + $0x10] sm:$0xff] %vm74, %v9987
    %9996 = vst.msk [vmem:[%s9 + $0x18] sm:$0xff] %vm74, %v9988
    %9997 = vst.msk [vmem:[%s9 + $0x20] sm:$0xff] %vm74, %v9989
    %9998 = vst.msk [vmem:[%s9 + $0x28] sm:$0xff] %vm74, %v9990
    %9999 = vst.msk [vmem:[%s9 + $0x30] sm:$0xff] %vm74, %v9991
    %10000 = vst.msk [vmem:[%s9 + $0x38] sm:$0xff] %vm74, %v9992
    // Predicated region
    $region38: #{tpu_custom_call.1} parent=1 // pred_check
      _
    $region39: #{tpu_custom_call.1} parent=1 // pred_check_branch
      %10002 = sbr.rel (0) target = $region41
    $region40: #{tpu_custom_call.1} parent=1 // pred_region
      _
    $region41: #{tpu_custom_call.1} parent=1 // pred_fallthru
      _
    // Predicated region
    $region42: #{tpu_custom_call.1} parent=1 // pred_check
      _
    $region43: #{tpu_custom_call.1} parent=1 // pred_check_branch
      %10004 = sbr.rel (0) target = $region45
    $region44: #{tpu_custom_call.1} parent=1 // pred_region
      %s10006 = ssub.s32 256, 256
      %10007 = vsyncadd [#allocation4], %s10006
      %s10008 = sshll.u32 [#allocation3], 4
      %s10009 = int_to_ptr.vmem [resolvable:$true] %s10008
      %10014 = dma.vmem_to_hbm [thread:$0]  %s10009, 256, %s10, [#allocation4], 128, 128, 8
    $region45: #{tpu_custom_call.1} parent=1 // pred_fallthru
      _
    // Predicated region
    $region46: #{tpu_custom_call.1} parent=1 // pred_check
      _
    $region47: #{tpu_custom_call.1} parent=1 // pred_check_branch
      %10016 = sbr.rel (0) target = $region49
    $region48: #{tpu_custom_call.1} parent=1 // pred_region
      _
    $region49: #{tpu_custom_call.1} parent=1 // pred_fallthru
      _
    // Predicated region
    $region50: #{tpu_custom_call.1} parent=1 // pred_check
      _
    $region51: #{tpu_custom_call.1} parent=1 // pred_check_branch
      %10018 = sbr.rel (0) target = $region53
    $region52: #{tpu_custom_call.1} parent=1 // pred_region
      %10019 = dma.done [#allocation4], 256
    $region53: #{tpu_custom_call.1} parent=1 // pred_fallthru
      _
    %10020 = vsyncpa [#allocation4], 1

</llo_original>
